<compile_context>
chip_gen: v7x
topology: tpu7x:2x2x1
jax: 0.10.0
libtpu: 0.0.40
codegen_flags: <defaults>
</compile_context>

<pallas_src>
import jax
import jax.numpy as jnp
from jax.experimental import pallas as pl
from jax.experimental.pallas import tpu as pltpu


# Channel schedule of the 10-layer point-wise stack (same for both branches).
CHANNELS = [3, 32, 64, 128, 256, 512, 256, 128, 64, 32, 10]
NUM_LAYERS = len(CHANNELS) - 1

C_IN_PAD = 8      # pad input channels 3 -> 8 (clean sublane/MXU feed)
C_OUT_PAD = 128   # pad output channels 10 -> 128 (lane-dense stores)
PADDED_CHANNELS = [C_IN_PAD] + CHANNELS[1:-1] + [C_OUT_PAD]

MAX_TILE_N = 2048  # 2048 rows keeps peak per-tile VMEM ~15 MiB (v7x-safe)


def _round_up(x, m):
    return ((x + m - 1) // m) * m


def _plan_tiles(n):
    """Pick a pixel-tile size and the padded pixel count."""
    tile = min(MAX_TILE_N, _round_up(n, 512))
    n_pad = _round_up(n, tile)
    return tile, n_pad


def _pointwise_kernel(*refs):
    """refs = (x_ref, w1, b1, ..., w10, b10, out_ref).

    x_ref : (TILE_N, 8)       f32  (channels 3..7 are zero padding)
    w_i   : (in_c, out_c)     bf16 (pre-transposed: y = x @ w + b)
    b_i   : (1, out_c)        f32
    out   : (TILE_N, 128)     f32  (channels 10..127 are padding)
    """
    x_ref = refs[0]
    out_ref = refs[-1]
    params = refs[1:-1]

    h = x_ref[...]                                   # f32
    for i in range(NUM_LAYERS):
        w = params[2 * i][...]                       # bf16
        b = params[2 * i + 1][...]                   # f32
        if i > 0:
            h = jnp.maximum(h, 0.0)                  # F.relu before conv2..10
        # bf16 MXU inputs, f32 accumulation; bias add stays f32 on the VPU.
        h = jnp.dot(h.astype(jnp.bfloat16), w,
                    preferred_element_type=jnp.float32) + b
    out_ref[...] = h.astype(out_ref.dtype)


def fused_pointwise(x_stacked, weights, biases, tile_n):
    """Run both branches' 10-layer stacks in one pallas_call.

    x_stacked : (2, N_pad, 8)  f32   (branch, pixel, padded channel)
    weights[i]: (2, in_c, out_c) bf16
    biases[i] : (2, 1, out_c)    f32
    returns   : (2, N_pad, 128) f32
    """
    _, n_pad, _ = x_stacked.shape
    num_tiles = n_pad // tile_n

    in_specs = [pl.BlockSpec((pl.Squeezed(), tile_n, C_IN_PAD),
                             lambda b, i: (b, i, 0))]
    inputs = [x_stacked]
    for li in range(NUM_LAYERS):
        in_c, out_c = PADDED_CHANNELS[li], PADDED_CHANNELS[li + 1]
        # Weights/biases: constant over the pixel axis -> stay VMEM-resident
        # across tiles; the branch grid axis selects the parameter set.
        in_specs.append(pl.BlockSpec((pl.Squeezed(), in_c, out_c),
                                     lambda b, i: (b, 0, 0)))
        in_specs.append(pl.BlockSpec((pl.Squeezed(), 1, out_c),
                                     lambda b, i: (b, 0, 0)))
        inputs.append(weights[li])
        inputs.append(biases[li])

    out_spec = pl.BlockSpec((pl.Squeezed(), tile_n, C_OUT_PAD),
                            lambda b, i: (b, i, 0))

    flops_per_px = 2 * sum(PADDED_CHANNELS[i] * PADDED_CHANNELS[i + 1]
                           for i in range(NUM_LAYERS))
    bytes_accessed = (x_stacked.size * 4 + 2 * n_pad * C_OUT_PAD * 4
                      + sum(w.size * 2 + b.size * 4
                            for w, b in zip(weights, biases)))
    cost = pl.CostEstimate(flops=flops_per_px * n_pad * 2,
                           transcendentals=0,
                           bytes_accessed=bytes_accessed)

    return pl.pallas_call(
        _pointwise_kernel,
        out_shape=jax.ShapeDtypeStruct((2, n_pad, C_OUT_PAD), jnp.float32),
        grid=(2, num_tiles),
        in_specs=in_specs,
        out_specs=out_spec,
        compiler_params=pltpu.CompilerParams(
            dimension_semantics=("parallel", "parallel"),
            vmem_limit_bytes=48 * 1024 * 1024),
        cost_estimate=cost,
    )(*inputs)


def init_branch_params(key):
    """Deterministic init mimicking nn.Conv2d default (uniform +-1/sqrt(fan_in)).

    Weights are stored pre-transposed as (in_c, out_c) so the kernel does
    y = x @ w + b, matching PyTorch conv weight (out_c, in_c, 1, 1).
    """
    weights, biases = [], []
    for i in range(NUM_LAYERS):
        in_c, out_c = CHANNELS[i], CHANNELS[i + 1]
        key, kw, kb = jax.random.split(key, 3)
        bound = 1.0 / jnp.sqrt(float(in_c))
        w = jax.random.uniform(kw, (in_c, out_c), jnp.float32, -bound, bound)
        b = jax.random.uniform(kb, (1, out_c), jnp.float32, -bound, bound)
        weights.append(w)
        biases.append(b)
    return weights, biases


def pack_params(params_i, params_s):
    """Stack both branches per layer, pad to the kernel layout, cast W to bf16."""
    wi, bi = params_i
    ws, bs = params_s
    packed_w, packed_b = [], []
    for li in range(NUM_LAYERS):
        in_c, out_c = CHANNELS[li], CHANNELS[li + 1]
        in_p, out_p = PADDED_CHANNELS[li], PADDED_CHANNELS[li + 1]
        w = jnp.stack([wi[li], ws[li]])                     # (2, in_c, out_c)
        b = jnp.stack([bi[li], bs[li]])                     # (2, 1, out_c)
        w = jnp.pad(w, ((0, 0), (0, in_p - in_c), (0, out_p - out_c)))
        b = jnp.pad(b, ((0, 0), (0, 0), (0, out_p - out_c)))
        packed_w.append(w.astype(jnp.bfloat16))
        packed_b.append(b)                                   # bias stays f32
    return packed_w, packed_b


def nchw_to_flat(x):
    # (B, C, H, W) -> (B*H*W, C)
    b, c, h, w = x.shape
    return jnp.transpose(x, (0, 2, 3, 1)).reshape(b * h * w, c)


def flat_to_nchw(x2d, b, h, w):
    # (B*H*W, C) -> (B, C, H, W)
    c = x2d.shape[-1]
    return jnp.transpose(x2d.reshape(b, h, w, c), (0, 3, 1, 2))


@jax.jit
def pointwise_forward(x_in, x_s, packed_w, packed_b):
    """Equivalent of PointWise.forward -> (out_i, out_s), both NCHW (B,10,H,W)."""
    b, c, h, w = x_in.shape
    n = b * h * w
    tile, n_pad = _plan_tiles(n)

    x = jnp.stack([nchw_to_flat(x_in), nchw_to_flat(x_s)])   # (2, N, 3)
    x = jnp.pad(x, ((0, 0), (0, n_pad - n), (0, C_IN_PAD - c)))

    out = fused_pointwise(x, packed_w, packed_b, tile)        # (2, N_pad, 128)
    out = out[:, :n, :CHANNELS[-1]]                           # (2, N, 10)

    out_i = flat_to_nchw(out[0], b, h, w)
    out_s = flat_to_nchw(out[1], b, h, w)
    return out_i, out_s


def _reference_stack(x2d, weights, biases):
    """Pure-JAX reference mirroring the kernel math (bf16 dot, f32 accumulate)."""
    h = x2d
    for i, (w, b) in enumerate(zip(weights, biases)):
        if i > 0:
            h = jnp.maximum(h, 0.0)
        h = jnp.dot(h.astype(jnp.bfloat16), w.astype(jnp.bfloat16),
                    preferred_element_type=jnp.float32) + b
    return h


if __name__ == "__main__":
    key = jax.random.PRNGKey(0)
    k_pi, k_ps, k_xi, k_xs = jax.random.split(key, 4)

    # Parameters for the two branches (conv1..conv10 and conv1_s..conv10_s).
    params_i = init_branch_params(k_pi)
    params_s = init_branch_params(k_ps)
    packed_w, packed_b = pack_params(params_i, params_s)

    # Small deterministic inputs, NCHW like the PyTorch module.
    B, C, H, W = 2, 3, 16, 16
    x_in = jax.random.normal(k_xi, (B, C, H, W), jnp.float32)
    x_s = jax.random.normal(k_xs, (B, C, H, W), jnp.float32)

    out_i, out_s = pointwise_forward(x_in, x_s, packed_w, packed_b)
    out_i = jax.block_until_ready(out_i)
    out_s = jax.block_until_ready(out_s)

    assert out_i.shape == (B, 10, H, W)
    assert out_s.shape == (B, 10, H, W)

    # Correctness check vs. a pure-JAX reference of the same (bf16-dot) math.
    ref_i = flat_to_nchw(_reference_stack(nchw_to_flat(x_in), *params_i), B, H, W)
    ref_s = flat_to_nchw(_reference_stack(nchw_to_flat(x_s), *params_s), B, H, W)
    assert jnp.allclose(out_i, ref_i, atol=1e-2, rtol=1e-2)
    assert jnp.allclose(out_s, ref_s, atol=1e-2, rtol=1e-2)

    print("KERNEL_OK")
</pallas_src>

<mosaic_0001>
module attributes {stable_mosaic.version = 11 : i64} {
  func.func @_pointwise_kernel(%arg0: i32, %arg1: i32, %arg2: memref<1x512x8xf32, #tpu.memory_space<vmem>>, %arg3: memref<1x8x32xbf16, #tpu.memory_space<vmem>>, %arg4: memref<1x1x32xf32, #tpu.memory_space<vmem>>, %arg5: memref<1x32x64xbf16, #tpu.memory_space<vmem>>, %arg6: memref<1x1x64xf32, #tpu.memory_space<vmem>>, %arg7: memref<1x64x128xbf16, #tpu.memory_space<vmem>>, %arg8: memref<1x1x128xf32, #tpu.memory_space<vmem>>, %arg9: memref<1x128x256xbf16, #tpu.memory_space<vmem>>, %arg10: memref<1x1x256xf32, #tpu.memory_space<vmem>>, %arg11: memref<1x256x512xbf16, #tpu.memory_space<vmem>>, %arg12: memref<1x1x512xf32, #tpu.memory_space<vmem>>, %arg13: memref<1x512x256xbf16, #tpu.memory_space<vmem>>, %arg14: memref<1x1x256xf32, #tpu.memory_space<vmem>>, %arg15: memref<1x256x128xbf16, #tpu.memory_space<vmem>>, %arg16: memref<1x1x128xf32, #tpu.memory_space<vmem>>, %arg17: memref<1x128x64xbf16, #tpu.memory_space<vmem>>, %arg18: memref<1x1x64xf32, #tpu.memory_space<vmem>>, %arg19: memref<1x64x32xbf16, #tpu.memory_space<vmem>>, %arg20: memref<1x1x32xf32, #tpu.memory_space<vmem>>, %arg21: memref<1x32x128xbf16, #tpu.memory_space<vmem>>, %arg22: memref<1x1x128xf32, #tpu.memory_space<vmem>>, %arg23: memref<1x512x128xf32, #tpu.memory_space<vmem>>) attributes {dimension_semantics = [#tpu.dimension_semantics<parallel>, #tpu.dimension_semantics<parallel>], iteration_bounds = array<i64: 2, 1>, scalar_prefetch = 0 : i64, scratch_operands = 0 : i64, tpu.core_type = #tpu.core_type<tc>, window_params = [{transform_indices = @transform_0, window_bounds = array<i64: 1, 512, 8>}, {transform_indices = @transform_1, window_bounds = array<i64: 1, 8, 32>}, {transform_indices = @transform_2, window_bounds = array<i64: 1, 1, 32>}, {transform_indices = @transform_3, window_bounds = array<i64: 1, 32, 64>}, {transform_indices = @transform_4, window_bounds = array<i64: 1, 1, 64>}, {transform_indices = @transform_5, window_bounds = array<i64: 1, 64, 128>}, {transform_indices = @transform_6, window_bounds = array<i64: 1, 1, 128>}, {transform_indices = @transform_7, window_bounds = array<i64: 1, 128, 256>}, {transform_indices = @transform_8, window_bounds = array<i64: 1, 1, 256>}, {transform_indices = @transform_9, window_bounds = array<i64: 1, 256, 512>}, {transform_indices = @transform_10, window_bounds = array<i64: 1, 1, 512>}, {transform_indices = @transform_11, window_bounds = array<i64: 1, 512, 256>}, {transform_indices = @transform_12, window_bounds = array<i64: 1, 1, 256>}, {transform_indices = @transform_13, window_bounds = array<i64: 1, 256, 128>}, {transform_indices = @transform_14, window_bounds = array<i64: 1, 1, 128>}, {transform_indices = @transform_15, window_bounds = array<i64: 1, 128, 64>}, {transform_indices = @transform_16, window_bounds = array<i64: 1, 1, 64>}, {transform_indices = @transform_17, window_bounds = array<i64: 1, 64, 32>}, {transform_indices = @transform_18, window_bounds = array<i64: 1, 1, 32>}, {transform_indices = @transform_19, window_bounds = array<i64: 1, 32, 128>}, {transform_indices = @transform_20, window_bounds = array<i64: 1, 1, 128>}, {transform_indices = @transform_21, window_bounds = array<i64: 1, 512, 128>}]} {
    %c0 = arith.constant 0 : index
    %c0_0 = arith.constant 0 : index
    %c0_1 = arith.constant 0 : index
    %0 = vector.load %arg2[%c0, %c0_0, %c0_1] : memref<1x512x8xf32, #tpu.memory_space<vmem>>, vector<1x512x8xf32>
    %1 = vector.shape_cast %0 : vector<1x512x8xf32> to vector<512x8xf32>
    %c0_2 = arith.constant 0 : index
    %c0_3 = arith.constant 0 : index
    %c0_4 = arith.constant 0 : index
    %2 = vector.load %arg3[%c0_2, %c0_3, %c0_4] : memref<1x8x32xbf16, #tpu.memory_space<vmem>>, vector<1x8x32xbf16>
    %3 = vector.shape_cast %2 : vector<1x8x32xbf16> to vector<8x32xbf16>
    %c0_5 = arith.constant 0 : index
    %c0_6 = arith.constant 0 : index
    %c0_7 = arith.constant 0 : index
    %4 = vector.load %arg4[%c0_5, %c0_6, %c0_7] : memref<1x1x32xf32, #tpu.memory_space<vmem>>, vector<1x1x32xf32>
    %5 = vector.shape_cast %4 : vector<1x1x32xf32> to vector<1x32xf32>
    %6 = arith.truncf %1 : vector<512x8xf32> to vector<512x8xbf16>
    %cst = arith.constant dense<0.000000e+00> : vector<512x32xf32>
    %7 = tpu.matmul %6, %3, %cst {dimension_numbers = #tpu.dot_dimension_numbers<[1], [0], [0], [1], [0, 0, 1, 1], [], []>} : vector<512x8xbf16>, vector<8x32xbf16>, vector<512x32xf32> -> vector<512x32xf32>
    %8 = vector.broadcast %5 : vector<1x32xf32> to vector<512x32xf32>
    %9 = arith.addf %7, %8 : vector<512x32xf32>
    %c0_8 = arith.constant 0 : index
    %c0_9 = arith.constant 0 : index
    %c0_10 = arith.constant 0 : index
    %10 = vector.load %arg5[%c0_8, %c0_9, %c0_10] : memref<1x32x64xbf16, #tpu.memory_space<vmem>>, vector<1x32x64xbf16>
    %11 = vector.shape_cast %10 : vector<1x32x64xbf16> to vector<32x64xbf16>
    %c0_11 = arith.constant 0 : index
    %c0_12 = arith.constant 0 : index
    %c0_13 = arith.constant 0 : index
    %12 = vector.load %arg6[%c0_11, %c0_12, %c0_13] : memref<1x1x64xf32, #tpu.memory_space<vmem>>, vector<1x1x64xf32>
    %13 = vector.shape_cast %12 : vector<1x1x64xf32> to vector<1x64xf32>
    %cst_14 = arith.constant 0.000000e+00 : f32
    %14 = vector.broadcast %cst_14 : f32 to vector<512x32xf32>
    %15 = arith.maximumf %9, %14 : vector<512x32xf32>
    %16 = arith.truncf %15 : vector<512x32xf32> to vector<512x32xbf16>
    %cst_15 = arith.constant dense<0.000000e+00> : vector<512x64xf32>
    %17 = tpu.matmul %16, %11, %cst_15 {dimension_numbers = #tpu.dot_dimension_numbers<[1], [0], [0], [1], [0, 0, 1, 1], [], []>} : vector<512x32xbf16>, vector<32x64xbf16>, vector<512x64xf32> -> vector<512x64xf32>
    %18 = vector.broadcast %13 : vector<1x64xf32> to vector<512x64xf32>
    %19 = arith.addf %17, %18 : vector<512x64xf32>
    %c0_16 = arith.constant 0 : index
    %c0_17 = arith.constant 0 : index
    %c0_18 = arith.constant 0 : index
    %20 = vector.load %arg7[%c0_16, %c0_17, %c0_18] : memref<1x64x128xbf16, #tpu.memory_space<vmem>>, vector<1x64x128xbf16>
    %21 = vector.shape_cast %20 : vector<1x64x128xbf16> to vector<64x128xbf16>
    %c0_19 = arith.constant 0 : index
    %c0_20 = arith.constant 0 : index
    %c0_21 = arith.constant 0 : index
    %22 = vector.load %arg8[%c0_19, %c0_20, %c0_21] : memref<1x1x128xf32, #tpu.memory_space<vmem>>, vector<1x1x128xf32>
    %23 = vector.shape_cast %22 : vector<1x1x128xf32> to vector<1x128xf32>
    %cst_22 = arith.constant 0.000000e+00 : f32
    %24 = vector.broadcast %cst_22 : f32 to vector<512x64xf32>
    %25 = arith.maximumf %19, %24 : vector<512x64xf32>
    %26 = arith.truncf %25 : vector<512x64xf32> to vector<512x64xbf16>
    %cst_23 = arith.constant dense<0.000000e+00> : vector<512x128xf32>
    %27 = tpu.matmul %26, %21, %cst_23 {dimension_numbers = #tpu.dot_dimension_numbers<[1], [0], [0], [1], [0, 0, 1, 1], [], []>} : vector<512x64xbf16>, vector<64x128xbf16>, vector<512x128xf32> -> vector<512x128xf32>
    %28 = vector.broadcast %23 : vector<1x128xf32> to vector<512x128xf32>
    %29 = arith.addf %27, %28 : vector<512x128xf32>
    %c0_24 = arith.constant 0 : index
    %c0_25 = arith.constant 0 : index
    %c0_26 = arith.constant 0 : index
    %30 = vector.load %arg9[%c0_24, %c0_25, %c0_26] : memref<1x128x256xbf16, #tpu.memory_space<vmem>>, vector<1x128x256xbf16>
    %31 = vector.shape_cast %30 : vector<1x128x256xbf16> to vector<128x256xbf16>
    %c0_27 = arith.constant 0 : index
    %c0_28 = arith.constant 0 : index
    %c0_29 = arith.constant 0 : index
    %32 = vector.load %arg10[%c0_27, %c0_28, %c0_29] : memref<1x1x256xf32, #tpu.memory_space<vmem>>, vector<1x1x256xf32>
    %33 = vector.shape_cast %32 : vector<1x1x256xf32> to vector<1x256xf32>
    %cst_30 = arith.constant 0.000000e+00 : f32
    %34 = vector.broadcast %cst_30 : f32 to vector<512x128xf32>
    %35 = arith.maximumf %29, %34 : vector<512x128xf32>
    %36 = arith.truncf %35 : vector<512x128xf32> to vector<512x128xbf16>
    %cst_31 = arith.constant dense<0.000000e+00> : vector<512x256xf32>
    %37 = tpu.matmul %36, %31, %cst_31 {dimension_numbers = #tpu.dot_dimension_numbers<[1], [0], [0], [1], [0, 0, 1, 1], [], []>} : vector<512x128xbf16>, vector<128x256xbf16>, vector<512x256xf32> -> vector<512x256xf32>
    %38 = vector.broadcast %33 : vector<1x256xf32> to vector<512x256xf32>
    %39 = arith.addf %37, %38 : vector<512x256xf32>
    %c0_32 = arith.constant 0 : index
    %c0_33 = arith.constant 0 : index
    %c0_34 = arith.constant 0 : index
    %40 = vector.load %arg11[%c0_32, %c0_33, %c0_34] : memref<1x256x512xbf16, #tpu.memory_space<vmem>>, vector<1x256x512xbf16>
    %41 = vector.shape_cast %40 : vector<1x256x512xbf16> to vector<256x512xbf16>
    %c0_35 = arith.constant 0 : index
    %c0_36 = arith.constant 0 : index
    %c0_37 = arith.constant 0 : index
    %42 = vector.load %arg12[%c0_35, %c0_36, %c0_37] : memref<1x1x512xf32, #tpu.memory_space<vmem>>, vector<1x1x512xf32>
    %43 = vector.shape_cast %42 : vector<1x1x512xf32> to vector<1x512xf32>
    %cst_38 = arith.constant 0.000000e+00 : f32
    %44 = vector.broadcast %cst_38 : f32 to vector<512x256xf32>
    %45 = arith.maximumf %39, %44 : vector<512x256xf32>
    %46 = arith.truncf %45 : vector<512x256xf32> to vector<512x256xbf16>
    %cst_39 = arith.constant dense<0.000000e+00> : vector<512x512xf32>
    %47 = tpu.matmul %46, %41, %cst_39 {dimension_numbers = #tpu.dot_dimension_numbers<[1], [0], [0], [1], [0, 0, 1, 1], [], []>} : vector<512x256xbf16>, vector<256x512xbf16>, vector<512x512xf32> -> vector<512x512xf32>
    %48 = vector.broadcast %43 : vector<1x512xf32> to vector<512x512xf32>
    %49 = arith.addf %47, %48 : vector<512x512xf32>
    %c0_40 = arith.constant 0 : index
    %c0_41 = arith.constant 0 : index
    %c0_42 = arith.constant 0 : index
    %50 = vector.load %arg13[%c0_40, %c0_41, %c0_42] : memref<1x512x256xbf16, #tpu.memory_space<vmem>>, vector<1x512x256xbf16>
    %51 = vector.shape_cast %50 : vector<1x512x256xbf16> to vector<512x256xbf16>
    %c0_43 = arith.constant 0 : index
    %c0_44 = arith.constant 0 : index
    %c0_45 = arith.constant 0 : index
    %52 = vector.load %arg14[%c0_43, %c0_44, %c0_45] : memref<1x1x256xf32, #tpu.memory_space<vmem>>, vector<1x1x256xf32>
    %53 = vector.shape_cast %52 : vector<1x1x256xf32> to vector<1x256xf32>
    %cst_46 = arith.constant 0.000000e+00 : f32
    %54 = vector.broadcast %cst_46 : f32 to vector<512x512xf32>
    %55 = arith.maximumf %49, %54 : vector<512x512xf32>
    %56 = arith.truncf %55 : vector<512x512xf32> to vector<512x512xbf16>
    %cst_47 = arith.constant dense<0.000000e+00> : vector<512x256xf32>
    %57 = tpu.matmul %56, %51, %cst_47 {dimension_numbers = #tpu.dot_dimension_numbers<[1], [0], [0], [1], [0, 0, 1, 1], [], []>} : vector<512x512xbf16>, vector<512x256xbf16>, vector<512x256xf32> -> vector<512x256xf32>
    %58 = vector.broadcast %53 : vector<1x256xf32> to vector<512x256xf32>
    %59 = arith.addf %57, %58 : vector<512x256xf32>
    %c0_48 = arith.constant 0 : index
    %c0_49 = arith.constant 0 : index
    %c0_50 = arith.constant 0 : index
    %60 = vector.load %arg15[%c0_48, %c0_49, %c0_50] : memref<1x256x128xbf16, #tpu.memory_space<vmem>>, vector<1x256x128xbf16>
    %61 = vector.shape_cast %60 : vector<1x256x128xbf16> to vector<256x128xbf16>
    %c0_51 = arith.constant 0 : index
    %c0_52 = arith.constant 0 : index
    %c0_53 = arith.constant 0 : index
    %62 = vector.load %arg16[%c0_51, %c0_52, %c0_53] : memref<1x1x128xf32, #tpu.memory_space<vmem>>, vector<1x1x128xf32>
    %63 = vector.shape_cast %62 : vector<1x1x128xf32> to vector<1x128xf32>
    %cst_54 = arith.constant 0.000000e+00 : f32
    %64 = vector.broadcast %cst_54 : f32 to vector<512x256xf32>
    %65 = arith.maximumf %59, %64 : vector<512x256xf32>
    %66 = arith.truncf %65 : vector<512x256xf32> to vector<512x256xbf16>
    %cst_55 = arith.constant dense<0.000000e+00> : vector<512x128xf32>
    %67 = tpu.matmul %66, %61, %cst_55 {dimension_numbers = #tpu.dot_dimension_numbers<[1], [0], [0], [1], [0, 0, 1, 1], [], []>} : vector<512x256xbf16>, vector<256x128xbf16>, vector<512x128xf32> -> vector<512x128xf32>
    %68 = vector.broadcast %63 : vector<1x128xf32> to vector<512x128xf32>
    %69 = arith.addf %67, %68 : vector<512x128xf32>
    %c0_56 = arith.constant 0 : index
    %c0_57 = arith.constant 0 : index
    %c0_58 = arith.constant 0 : index
    %70 = vector.load %arg17[%c0_56, %c0_57, %c0_58] : memref<1x128x64xbf16, #tpu.memory_space<vmem>>, vector<1x128x64xbf16>
    %71 = vector.shape_cast %70 : vector<1x128x64xbf16> to vector<128x64xbf16>
    %c0_59 = arith.constant 0 : index
    %c0_60 = arith.constant 0 : index
    %c0_61 = arith.constant 0 : index
    %72 = vector.load %arg18[%c0_59, %c0_60, %c0_61] : memref<1x1x64xf32, #tpu.memory_space<vmem>>, vector<1x1x64xf32>
    %73 = vector.shape_cast %72 : vector<1x1x64xf32> to vector<1x64xf32>
    %cst_62 = arith.constant 0.000000e+00 : f32
    %74 = vector.broadcast %cst_62 : f32 to vector<512x128xf32>
    %75 = arith.maximumf %69, %74 : vector<512x128xf32>
    %76 = arith.truncf %75 : vector<512x128xf32> to vector<512x128xbf16>
    %cst_63 = arith.constant dense<0.000000e+00> : vector<512x64xf32>
    %77 = tpu.matmul %76, %71, %cst_63 {dimension_numbers = #tpu.dot_dimension_numbers<[1], [0], [0], [1], [0, 0, 1, 1], [], []>} : vector<512x128xbf16>, vector<128x64xbf16>, vector<512x64xf32> -> vector<512x64xf32>
    %78 = vector.broadcast %73 : vector<1x64xf32> to vector<512x64xf32>
    %79 = arith.addf %77, %78 : vector<512x64xf32>
    %c0_64 = arith.constant 0 : index
    %c0_65 = arith.constant 0 : index
    %c0_66 = arith.constant 0 : index
    %80 = vector.load %arg19[%c0_64, %c0_65, %c0_66] : memref<1x64x32xbf16, #tpu.memory_space<vmem>>, vector<1x64x32xbf16>
    %81 = vector.shape_cast %80 : vector<1x64x32xbf16> to vector<64x32xbf16>
    %c0_67 = arith.constant 0 : index
    %c0_68 = arith.constant 0 : index
    %c0_69 = arith.constant 0 : index
    %82 = vector.load %arg20[%c0_67, %c0_68, %c0_69] : memref<1x1x32xf32, #tpu.memory_space<vmem>>, vector<1x1x32xf32>
    %83 = vector.shape_cast %82 : vector<1x1x32xf32> to vector<1x32xf32>
    %cst_70 = arith.constant 0.000000e+00 : f32
    %84 = vector.broadcast %cst_70 : f32 to vector<512x64xf32>
    %85 = arith.maximumf %79, %84 : vector<512x64xf32>
    %86 = arith.truncf %85 : vector<512x64xf32> to vector<512x64xbf16>
    %cst_71 = arith.constant dense<0.000000e+00> : vector<512x32xf32>
    %87 = tpu.matmul %86, %81, %cst_71 {dimension_numbers = #tpu.dot_dimension_numbers<[1], [0], [0], [1], [0, 0, 1, 1], [], []>} : vector<512x64xbf16>, vector<64x32xbf16>, vector<512x32xf32> -> vector<512x32xf32>
    %88 = vector.broadcast %83 : vector<1x32xf32> to vector<512x32xf32>
    %89 = arith.addf %87, %88 : vector<512x32xf32>
    %c0_72 = arith.constant 0 : index
    %c0_73 = arith.constant 0 : index
    %c0_74 = arith.constant 0 : index
    %90 = vector.load %arg21[%c0_72, %c0_73, %c0_74] : memref<1x32x128xbf16, #tpu.memory_space<vmem>>, vector<1x32x128xbf16>
    %91 = vector.shape_cast %90 : vector<1x32x128xbf16> to vector<32x128xbf16>
    %c0_75 = arith.constant 0 : index
    %c0_76 = arith.constant 0 : index
    %c0_77 = arith.constant 0 : index
    %92 = vector.load %arg22[%c0_75, %c0_76, %c0_77] : memref<1x1x128xf32, #tpu.memory_space<vmem>>, vector<1x1x128xf32>
    %93 = vector.shape_cast %92 : vector<1x1x128xf32> to vector<1x128xf32>
    %cst_78 = arith.constant 0.000000e+00 : f32
    %94 = vector.broadcast %cst_78 : f32 to vector<512x32xf32>
    %95 = arith.maximumf %89, %94 : vector<512x32xf32>
    %96 = arith.truncf %95 : vector<512x32xf32> to vector<512x32xbf16>
    %cst_79 = arith.constant dense<0.000000e+00> : vector<512x128xf32>
    %97 = tpu.matmul %96, %91, %cst_79 {dimension_numbers = #tpu.dot_dimension_numbers<[1], [0], [0], [1], [0, 0, 1, 1], [], []>} : vector<512x32xbf16>, vector<32x128xbf16>, vector<512x128xf32> -> vector<512x128xf32>
    %98 = vector.broadcast %93 : vector<1x128xf32> to vector<512x128xf32>
    %99 = arith.addf %97, %98 : vector<512x128xf32>
    %c0_80 = arith.constant 0 : index
    %c0_81 = arith.constant 0 : index
    %c0_82 = arith.constant 0 : index
    %100 = vector.load %arg23[%c0_80, %c0_81, %c0_82] : memref<1x512x128xf32, #tpu.memory_space<vmem>>, vector<1x512x128xf32>
    %101 = vector.shape_cast %100 : vector<1x512x128xf32> to vector<512x128xf32>
    %102 = vector.shape_cast %99 : vector<512x128xf32> to vector<1x512x128xf32>
    tpu.vector_store %arg23[%c0_80, %c0_81, %c0_82], %102 {strides = array<i32>} : memref<1x512x128xf32, #tpu.memory_space<vmem>>, vector<1x512x128xf32>,
    return
  }
  func.func @transform_0(%arg0: i32, %arg1: i32) -> (i32, i32, i32) {
    %c0_i32 = arith.constant 0 : i32
    %c0_i32_0 = arith.constant 0 : i32
    return %arg0, %arg1, %c0_i32 : i32, i32, i32
  }
  func.func @transform_1(%arg0: i32, %arg1: i32) -> (i32, i32, i32) {
    %c0_i32 = arith.constant 0 : i32
    %c0_i32_0 = arith.constant 0 : i32
    %c0_i32_1 = arith.constant 0 : i32
    return %arg0, %c0_i32, %c0_i32_0 : i32, i32, i32
  }
  func.func @transform_2(%arg0: i32, %arg1: i32) -> (i32, i32, i32) {
    %c0_i32 = arith.constant 0 : i32
    %c0_i32_0 = arith.constant 0 : i32
    %c0_i32_1 = arith.constant 0 : i32
    return %arg0, %c0_i32, %c0_i32_0 : i32, i32, i32
  }
  func.func @transform_3(%arg0: i32, %arg1: i32) -> (i32, i32, i32) {
    %c0_i32 = arith.constant 0 : i32
    %c0_i32_0 = arith.constant 0 : i32
    %c0_i32_1 = arith.constant 0 : i32
    return %arg0, %c0_i32, %c0_i32_0 : i32, i32, i32
  }
  func.func @transform_4(%arg0: i32, %arg1: i32) -> (i32, i32, i32) {
    %c0_i32 = arith.constant 0 : i32
    %c0_i32_0 = arith.constant 0 : i32
    %c0_i32_1 = arith.constant 0 : i32
    return %arg0, %c0_i32, %c0_i32_0 : i32, i32, i32
  }
  func.func @transform_5(%arg0: i32, %arg1: i32) -> (i32, i32, i32) {
    %c0_i32 = arith.constant 0 : i32
    %c0_i32_0 = arith.constant 0 : i32
    %c0_i32_1 = arith.constant 0 : i32
    return %arg0, %c0_i32, %c0_i32_0 : i32, i32, i32
  }
  func.func @transform_6(%arg0: i32, %arg1: i32) -> (i32, i32, i32) {
    %c0_i32 = arith.constant 0 : i32
    %c0_i32_0 = arith.constant 0 : i32
    %c0_i32_1 = arith.constant 0 : i32
    return %arg0, %c0_i32, %c0_i32_0 : i32, i32, i32
  }
  func.func @transform_7(%arg0: i32, %arg1: i32) -> (i32, i32, i32) {
    %c0_i32 = arith.constant 0 : i32
    %c0_i32_0 = arith.constant 0 : i32
    %c0_i32_1 = arith.constant 0 : i32
    return %arg0, %c0_i32, %c0_i32_0 : i32, i32, i32
  }
  func.func @transform_8(%arg0: i32, %arg1: i32) -> (i32, i32, i32) {
    %c0_i32 = arith.constant 0 : i32
    %c0_i32_0 = arith.constant 0 : i32
    %c0_i32_1 = arith.constant 0 : i32
    return %arg0, %c0_i32, %c0_i32_0 : i32, i32, i32
  }
  func.func @transform_9(%arg0: i32, %arg1: i32) -> (i32, i32, i32) {
    %c0_i32 = arith.constant 0 : i32
    %c0_i32_0 = arith.constant 0 : i32
    %c0_i32_1 = arith.constant 0 : i32
    return %arg0, %c0_i32, %c0_i32_0 : i32, i32, i32
  }
  func.func @transform_10(%arg0: i32, %arg1: i32) -> (i32, i32, i32) {
    %c0_i32 = arith.constant 0 : i32
    %c0_i32_0 = arith.constant 0 : i32
    %c0_i32_1 = arith.constant 0 : i32
    return %arg0, %c0_i32, %c0_i32_0 : i32, i32, i32
  }
  func.func @transform_11(%arg0: i32, %arg1: i32) -> (i32, i32, i32) {
    %c0_i32 = arith.constant 0 : i32
    %c0_i32_0 = arith.constant 0 : i32
    %c0_i32_1 = arith.constant 0 : i32
    return %arg0, %c0_i32, %c0_i32_0 : i32, i32, i32
  }
  func.func @transform_12(%arg0: i32, %arg1: i32) -> (i32, i32, i32) {
    %c0_i32 = arith.constant 0 : i32
    %c0_i32_0 = arith.constant 0 : i32
    %c0_i32_1 = arith.constant 0 : i32
    return %arg0, %c0_i32, %c0_i32_0 : i32, i32, i32
  }
  func.func @transform_13(%arg0: i32, %arg1: i32) -> (i32, i32, i32) {
    %c0_i32 = arith.constant 0 : i32
    %c0_i32_0 = arith.constant 0 : i32
    %c0_i32_1 = arith.constant 0 : i32
    return %arg0, %c0_i32, %c0_i32_0 : i32, i32, i32
  }
  func.func @transform_14(%arg0: i32, %arg1: i32) -> (i32, i32, i32) {
    %c0_i32 = arith.constant 0 : i32
    %c0_i32_0 = arith.constant 0 : i32
    %c0_i32_1 = arith.constant 0 : i32
    return %arg0, %c0_i32, %c0_i32_0 : i32, i32, i32
  }
  func.func @transform_15(%arg0: i32, %arg1: i32) -> (i32, i32, i32) {
    %c0_i32 = arith.constant 0 : i32
    %c0_i32_0 = arith.constant 0 : i32
    %c0_i32_1 = arith.constant 0 : i32
    return %arg0, %c0_i32, %c0_i32_0 : i32, i32, i32
  }
  func.func @transform_16(%arg0: i32, %arg1: i32) -> (i32, i32, i32) {
    %c0_i32 = arith.constant 0 : i32
    %c0_i32_0 = arith.constant 0 : i32
    %c0_i32_1 = arith.constant 0 : i32
    return %arg0, %c0_i32, %c0_i32_0 : i32, i32, i32
  }
  func.func @transform_17(%arg0: i32, %arg1: i32) -> (i32, i32, i32) {
    %c0_i32 = arith.constant 0 : i32
    %c0_i32_0 = arith.constant 0 : i32
    %c0_i32_1 = arith.constant 0 : i32
    return %arg0, %c0_i32, %c0_i32_0 : i32, i32, i32
  }
  func.func @transform_18(%arg0: i32, %arg1: i32) -> (i32, i32, i32) {
    %c0_i32 = arith.constant 0 : i32
    %c0_i32_0 = arith.constant 0 : i32
    %c0_i32_1 = arith.constant 0 : i32
    return %arg0, %c0_i32, %c0_i32_0 : i32, i32, i32
  }
  func.func @transform_19(%arg0: i32, %arg1: i32) -> (i32, i32, i32) {
    %c0_i32 = arith.constant 0 : i32
    %c0_i32_0 = arith.constant 0 : i32
    %c0_i32_1 = arith.constant 0 : i32
    return %arg0, %c0_i32, %c0_i32_0 : i32, i32, i32
  }
  func.func @transform_20(%arg0: i32, %arg1: i32) -> (i32, i32, i32) {
    %c0_i32 = arith.constant 0 : i32
    %c0_i32_0 = arith.constant 0 : i32
    %c0_i32_1 = arith.constant 0 : i32
    return %arg0, %c0_i32, %c0_i32_0 : i32, i32, i32
  }
  func.func @transform_21(%arg0: i32, %arg1: i32) -> (i32, i32, i32) {
    %c0_i32 = arith.constant 0 : i32
    %c0_i32_0 = arith.constant 0 : i32
    return %arg0, %arg1, %c0_i32 : i32, i32, i32
  }
}

</mosaic_0001>

<llo_original>
// kernel: pointwise_forward.1
$region0: #{pointwise_forward.1}
  #allocation0 [shape = 'u32[]', space=smem, size = 0x4, offset = 0x4, fixed_abs, tag = 'smem constant byte address 0x4 - core index']
  #allocation1 [shape = 'u32[144,128]{1,0:T(1,128)}', space=vmem, size = 0x12000, scoped, tag = 'internal scratch']
  %s0 = inlined_call_operand.vmem [shape: f32[2,512,8], index: 0, kind: input, shape index: {}]
  %s1 = inlined_call_operand.vmem [shape: bf16[2,8,32], index: 1, kind: input, shape index: {}]
  %s2 = inlined_call_operand.vmem [shape: f32[2,1,32], index: 2, kind: input, shape index: {}]
  %s3 = inlined_call_operand.vmem [shape: bf16[2,32,64], index: 3, kind: input, shape index: {}]
  %s4 = inlined_call_operand.vmem [shape: f32[2,1,64], index: 4, kind: input, shape index: {}]
  %s5 = inlined_call_operand.vmem [shape: bf16[2,64,128], index: 5, kind: input, shape index: {}]
  %s6 = inlined_call_operand.vmem [shape: f32[2,1,128], index: 6, kind: input, shape index: {}]
  %s7 = inlined_call_operand.vmem [shape: bf16[2,128,256], index: 7, kind: input, shape index: {}]
  %s8 = inlined_call_operand.vmem [shape: f32[2,1,256], index: 8, kind: input, shape index: {}]
  %s9 = inlined_call_operand.vmem [shape: bf16[2,256,512], index: 9, kind: input, shape index: {}]
  %s10 = inlined_call_operand.vmem [shape: f32[2,1,512], index: 10, kind: input, shape index: {}]
  %s11 = inlined_call_operand.vmem [shape: bf16[2,512,256], index: 11, kind: input, shape index: {}]
  %s12 = inlined_call_operand.vmem [shape: f32[2,1,256], index: 12, kind: input, shape index: {}]
  %s13 = inlined_call_operand.vmem [shape: bf16[2,256,128], index: 13, kind: input, shape index: {}]
  %s14 = inlined_call_operand.vmem [shape: f32[2,1,128], index: 14, kind: input, shape index: {}]
  %s15 = inlined_call_operand.vmem [shape: bf16[2,128,64], index: 15, kind: input, shape index: {}]
  %s16 = inlined_call_operand.vmem [shape: f32[2,1,64], index: 16, kind: input, shape index: {}]
  %s17 = inlined_call_operand.vmem [shape: bf16[2,64,32], index: 17, kind: input, shape index: {}]
  %s18 = inlined_call_operand.vmem [shape: f32[2,1,32], index: 18, kind: input, shape index: {}]
  %s19 = inlined_call_operand.vmem [shape: bf16[2,32,128], index: 19, kind: input, shape index: {}]
  %s20 = inlined_call_operand.vmem [shape: f32[2,1,128], index: 20, kind: input, shape index: {}]
  %s21 = inlined_call_operand.vmem [shape: f32[2,512,128], index: 21, kind: output, shape index: {}]
  %s22 = sld [smem:[#allocation0]]
  $region117: #{pointwise_forward.1} parent=0
    _
  %s24 = ssub.s32 1, %s22
  %s25 = scalar_select 0, %s24, %s22
  loop: start=0, step=1, limit=4
  $region2: #{pointwise_forward.1} parent=0 // loop_pre_header
    _
  $region3: #{pointwise_forward.1} parent=0 // loop_header
    %s27 = sphi 0, %s31
    %p28 = scmp.ge.s32.totalorder %s27, 4
    %s34 = sphi 0, %s46
    %s35 = sphi 0, %s42
    %s36 = sphi 0, %s34
    %s37 = sphi 0, %s35
    %s38 = sphi 0, %s36
    %s39 = sphi 0, %s37
    %s51 = sphi 0, %s53
    %s54 = sphi 0, %s51
    %s55 = sphi 0, %s54
    %s71 = sphi 0, %s55
    %s77 = sphi 0, %s79
    %s80 = sphi 0, %s77
    %s81 = sphi 0, %s80
    %s97 = sphi 0, %s81
    %s103 = sphi 0, %s105
    %s106 = sphi 0, %s103
    %s107 = sphi 0, %s106
    %s123 = sphi 0, %s107
    %s129 = sphi 0, %s131
    %s132 = sphi 0, %s129
    %s133 = sphi 0, %s132
    %s149 = sphi 0, %s133
    %s155 = sphi 0, %s157
    %s158 = sphi 0, %s155
    %s159 = sphi 0, %s158
    %s175 = sphi 0, %s159
    %s181 = sphi 0, %s183
    %s184 = sphi 0, %s181
    %s185 = sphi 0, %s184
    %s201 = sphi 0, %s185
    %s207 = sphi 0, %s209
    %s210 = sphi 0, %s207
    %s211 = sphi 0, %s210
    %s227 = sphi 0, %s211
    %s233 = sphi 0, %s235
    %s236 = sphi 0, %s233
    %s237 = sphi 0, %s236
    %s253 = sphi 0, %s237
    %s259 = sphi 0, %s261
    %s262 = sphi 0, %s259
    %s263 = sphi 0, %s262
    %s279 = sphi 0, %s263
    %s285 = sphi 0, %s287
    %s288 = sphi 0, %s285
    %s289 = sphi 0, %s288
    %s305 = sphi 0, %s289
    %s311 = sphi 0, %s313
    %s314 = sphi 0, %s311
    %s315 = sphi 0, %s314
    %s331 = sphi 0, %s315
    %s337 = sphi 0, %s339
    %s340 = sphi 0, %s337
    %s341 = sphi 0, %s340
    %s357 = sphi 0, %s341
    %s363 = sphi 0, %s365
    %s366 = sphi 0, %s363
    %s367 = sphi 0, %s366
    %s383 = sphi 0, %s367
    %s389 = sphi 0, %s391
    %s392 = sphi 0, %s389
    %s393 = sphi 0, %s392
    %s409 = sphi 0, %s393
    %s415 = sphi 0, %s417
    %s418 = sphi 0, %s415
    %s419 = sphi 0, %s418
    %s435 = sphi 0, %s419
    %s441 = sphi 0, %s443
    %s444 = sphi 0, %s441
    %s445 = sphi 0, %s444
    %s461 = sphi 0, %s445
    %s467 = sphi 0, %s469
    %s470 = sphi 0, %s467
    %s471 = sphi 0, %s470
    %s487 = sphi 0, %s471
    %s493 = sphi 0, %s495
    %s496 = sphi 0, %s493
    %s497 = sphi 0, %s496
    %s513 = sphi 0, %s497
    %s519 = sphi 0, %s521
    %s522 = sphi 0, %s519
    %s523 = sphi 0, %s522
    %s539 = sphi 0, %s523
    %s545 = sphi 0, %s547
    %s548 = sphi 0, %s545
    %s549 = sphi 0, %s548
    %s565 = sphi 0, %s549
    %s571 = sphi 0, %s573
    %s574 = sphi 0, %s571
    %s575 = sphi 0, %s574
    %s591 = sphi 0, %s575
    %s599 = sphi 0, %s601
    %s602 = sphi 0, %s599
    %s603 = sphi 0, %s602
    %s619 = sphi 0, %s603
  $region4: #{pointwise_forward.1} parent=0 // loop_header_branch
    %30 = sbr.rel (%p28) target = $region8
  $region5: #{pointwise_forward.1} parent=0 // loop_body
    %s32 = ssub.s32 %s27, 1
    %s33 = ssub.s32 %s27, 2
    %s40 = sadd.s32 1, %s35
    %p41 = scmp.ge.s32.totalorder %s40, 1
    %s42 = scalar_select %p41, 0, %s40
    %s43 = sadd.s32 1, %s34
    %s44 = scalar_select %p41, %s43, %s34
    %p45 = scmp.ge.s32.totalorder %s44, 2
    %s46 = scalar_select %p45, 0, %s44
    %s47 = ssub.s32 %s34, %s46
    %s48 = ssub.s32 %s35, %s42
    %s49 = sor.u32 %s47, %s48
    %p50 = scmp.eq.s32.totalorder %s49, 0
    %s52 = sadd.s32 %s51, 1
    %s53 = scalar_select %p50, %s51, %s52
    %p56 = pneg %p50
    %p57 = scmp.eq.s32.totalorder %s27, 1
    %p58 = por %p56, %p57
    %p59 = scmp.ne.s32.totalorder %s51, %s54
    %p60 = scmp.eq.s32.totalorder %s27, 0
    %p61 = por %p59, %p60
    %p62 = scmp.ne.s32.totalorder %s51, %s54
    %p63 = scmp.eq.s32.totalorder %s32, 1
    %p64 = por %p62, %p63
    %p65 = scmp.ne.s32.totalorder %s54, %s55
    %p66 = scmp.eq.s32.totalorder %s32, 0
    %p67 = por %p65, %p66
    %p68 = scmp.ne.s32.totalorder %s54, %s55
    %p69 = scmp.eq.s32.totalorder %s33, 1
    %p70 = por %p68, %p69
    %p72 = scmp.ne.s32.totalorder %s55, %s71
    %p73 = scmp.eq.s32.totalorder %s33, 0
    %p74 = por %p72, %p73
    %s75 = ssub.s32 %s34, %s46
    %p76 = scmp.eq.s32.totalorder %s75, 0
    %s78 = sadd.s32 %s77, 1
    %s79 = scalar_select %p76, %s77, %s78
    %p82 = pneg %p76
    %p83 = scmp.eq.s32.totalorder %s27, 1
    %p84 = por %p82, %p83
    %p85 = scmp.ne.s32.totalorder %s77, %s80
    %p86 = scmp.eq.s32.totalorder %s27, 0
    %p87 = por %p85, %p86
    %p88 = scmp.ne.s32.totalorder %s77, %s80
    %p89 = scmp.eq.s32.totalorder %s32, 1
    %p90 = por %p88, %p89
    %p91 = scmp.ne.s32.totalorder %s80, %s81
    %p92 = scmp.eq.s32.totalorder %s32, 0
    %p93 = por %p91, %p92
    %p94 = scmp.ne.s32.totalorder %s80, %s81
    %p95 = scmp.eq.s32.totalorder %s33, 1
    %p96 = por %p94, %p95
    %p98 = scmp.ne.s32.totalorder %s81, %s97
    %p99 = scmp.eq.s32.totalorder %s33, 0
    %p100 = por %p98, %p99
    %s101 = ssub.s32 %s34, %s46
    %p102 = scmp.eq.s32.totalorder %s101, 0
    %s104 = sadd.s32 %s103, 1
    %s105 = scalar_select %p102, %s103, %s104
    %p108 = pneg %p102
    %p109 = scmp.eq.s32.totalorder %s27, 1
    %p110 = por %p108, %p109
    %p111 = scmp.ne.s32.totalorder %s103, %s106
    %p112 = scmp.eq.s32.totalorder %s27, 0
    %p113 = por %p111, %p112
    %p114 = scmp.ne.s32.totalorder %s103, %s106
    %p115 = scmp.eq.s32.totalorder %s32, 1
    %p116 = por %p114, %p115
    %p117 = scmp.ne.s32.totalorder %s106, %s107
    %p118 = scmp.eq.s32.totalorder %s32, 0
    %p119 = por %p117, %p118
    %p120 = scmp.ne.s32.totalorder %s106, %s107
    %p121 = scmp.eq.s32.totalorder %s33, 1
    %p122 = por %p120, %p121
    %p124 = scmp.ne.s32.totalorder %s107, %s123
    %p125 = scmp.eq.s32.totalorder %s33, 0
    %p126 = por %p124, %p125
    %s127 = ssub.s32 %s34, %s46
    %p128 = scmp.eq.s32.totalorder %s127, 0
    %s130 = sadd.s32 %s129, 1
    %s131 = scalar_select %p128, %s129, %s130
    %p134 = pneg %p128
    %p135 = scmp.eq.s32.totalorder %s27, 1
    %p136 = por %p134, %p135
    %p137 = scmp.ne.s32.totalorder %s129, %s132
    %p138 = scmp.eq.s32.totalorder %s27, 0
    %p139 = por %p137, %p138
    %p140 = scmp.ne.s32.totalorder %s129, %s132
    %p141 = scmp.eq.s32.totalorder %s32, 1
    %p142 = por %p140, %p141
    %p143 = scmp.ne.s32.totalorder %s132, %s133
    %p144 = scmp.eq.s32.totalorder %s32, 0
    %p145 = por %p143, %p144
    %p146 = scmp.ne.s32.totalorder %s132, %s133
    %p147 = scmp.eq.s32.totalorder %s33, 1
    %p148 = por %p146, %p147
    %p150 = scmp.ne.s32.totalorder %s133, %s149
    %p151 = scmp.eq.s32.totalorder %s33, 0
    %p152 = por %p150, %p151
    %s153 = ssub.s32 %s34, %s46
    %p154 = scmp.eq.s32.totalorder %s153, 0
    %s156 = sadd.s32 %s155, 1
    %s157 = scalar_select %p154, %s155, %s156
    %p160 = pneg %p154
    %p161 = scmp.eq.s32.totalorder %s27, 1
    %p162 = por %p160, %p161
    %p163 = scmp.ne.s32.totalorder %s155, %s158
    %p164 = scmp.eq.s32.totalorder %s27, 0
    %p165 = por %p163, %p164
    %p166 = scmp.ne.s32.totalorder %s155, %s158
    %p167 = scmp.eq.s32.totalorder %s32, 1
    %p168 = por %p166, %p167
    %p169 = scmp.ne.s32.totalorder %s158, %s159
    %p170 = scmp.eq.s32.totalorder %s32, 0
    %p171 = por %p169, %p170
    %p172 = scmp.ne.s32.totalorder %s158, %s159
    %p173 = scmp.eq.s32.totalorder %s33, 1
    %p174 = por %p172, %p173
    %p176 = scmp.ne.s32.totalorder %s159, %s175
    %p177 = scmp.eq.s32.totalorder %s33, 0
    %p178 = por %p176, %p177
    %s179 = ssub.s32 %s34, %s46
    %p180 = scmp.eq.s32.totalorder %s179, 0
    %s182 = sadd.s32 %s181, 1
    %s183 = scalar_select %p180, %s181, %s182
    %p186 = pneg %p180
    %p187 = scmp.eq.s32.totalorder %s27, 1
    %p188 = por %p186, %p187
    %p189 = scmp.ne.s32.totalorder %s181, %s184
    %p190 = scmp.eq.s32.totalorder %s27, 0
    %p191 = por %p189, %p190
    %p192 = scmp.ne.s32.totalorder %s181, %s184
    %p193 = scmp.eq.s32.totalorder %s32, 1
    %p194 = por %p192, %p193
    %p195 = scmp.ne.s32.totalorder %s184, %s185
    %p196 = scmp.eq.s32.totalorder %s32, 0
    %p197 = por %p195, %p196
    %p198 = scmp.ne.s32.totalorder %s184, %s185
    %p199 = scmp.eq.s32.totalorder %s33, 1
    %p200 = por %p198, %p199
    %p202 = scmp.ne.s32.totalorder %s185, %s201
    %p203 = scmp.eq.s32.totalorder %s33, 0
    %p204 = por %p202, %p203
    %s205 = ssub.s32 %s34, %s46
    %p206 = scmp.eq.s32.totalorder %s205, 0
    %s208 = sadd.s32 %s207, 1
    %s209 = scalar_select %p206, %s207, %s208
    %p212 = pneg %p206
    %p213 = scmp.eq.s32.totalorder %s27, 1
    %p214 = por %p212, %p213
    %p215 = scmp.ne.s32.totalorder %s207, %s210
    %p216 = scmp.eq.s32.totalorder %s27, 0
    %p217 = por %p215, %p216
    %p218 = scmp.ne.s32.totalorder %s207, %s210
    %p219 = scmp.eq.s32.totalorder %s32, 1
    %p220 = por %p218, %p219
    %p221 = scmp.ne.s32.totalorder %s210, %s211
    %p222 = scmp.eq.s32.totalorder %s32, 0
    %p223 = por %p221, %p222
    %p224 = scmp.ne.s32.totalorder %s210, %s211
    %p225 = scmp.eq.s32.totalorder %s33, 1
    %p226 = por %p224, %p225
    %p228 = scmp.ne.s32.totalorder %s211, %s227
    %p229 = scmp.eq.s32.totalorder %s33, 0
    %p230 = por %p228, %p229
    %s231 = ssub.s32 %s34, %s46
    %p232 = scmp.eq.s32.totalorder %s231, 0
    %s234 = sadd.s32 %s233, 1
    %s235 = scalar_select %p232, %s233, %s234
    %p238 = pneg %p232
    %p239 = scmp.eq.s32.totalorder %s27, 1
    %p240 = por %p238, %p239
    %p241 = scmp.ne.s32.totalorder %s233, %s236
    %p242 = scmp.eq.s32.totalorder %s27, 0
    %p243 = por %p241, %p242
    %p244 = scmp.ne.s32.totalorder %s233, %s236
    %p245 = scmp.eq.s32.totalorder %s32, 1
    %p246 = por %p244, %p245
    %p247 = scmp.ne.s32.totalorder %s236, %s237
    %p248 = scmp.eq.s32.totalorder %s32, 0
    %p249 = por %p247, %p248
    %p250 = scmp.ne.s32.totalorder %s236, %s237
    %p251 = scmp.eq.s32.totalorder %s33, 1
    %p252 = por %p250, %p251
    %p254 = scmp.ne.s32.totalorder %s237, %s253
    %p255 = scmp.eq.s32.totalorder %s33, 0
    %p256 = por %p254, %p255
    %s257 = ssub.s32 %s34, %s46
    %p258 = scmp.eq.s32.totalorder %s257, 0
    %s260 = sadd.s32 %s259, 1
    %s261 = scalar_select %p258, %s259, %s260
    %p264 = pneg %p258
    %p265 = scmp.eq.s32.totalorder %s27, 1
    %p266 = por %p264, %p265
    %p267 = scmp.ne.s32.totalorder %s259, %s262
    %p268 = scmp.eq.s32.totalorder %s27, 0
    %p269 = por %p267, %p268
    %p270 = scmp.ne.s32.totalorder %s259, %s262
    %p271 = scmp.eq.s32.totalorder %s32, 1
    %p272 = por %p270, %p271
    %p273 = scmp.ne.s32.totalorder %s262, %s263
    %p274 = scmp.eq.s32.totalorder %s32, 0
    %p275 = por %p273, %p274
    %p276 = scmp.ne.s32.totalorder %s262, %s263
    %p277 = scmp.eq.s32.totalorder %s33, 1
    %p278 = por %p276, %p277
    %p280 = scmp.ne.s32.totalorder %s263, %s279
    %p281 = scmp.eq.s32.totalorder %s33, 0
    %p282 = por %p280, %p281
    %s283 = ssub.s32 %s34, %s46
    %p284 = scmp.eq.s32.totalorder %s283, 0
    %s286 = sadd.s32 %s285, 1
    %s287 = scalar_select %p284, %s285, %s286
    %p290 = pneg %p284
    %p291 = scmp.eq.s32.totalorder %s27, 1
    %p292 = por %p290, %p291
    %p293 = scmp.ne.s32.totalorder %s285, %s288
    %p294 = scmp.eq.s32.totalorder %s27, 0
    %p295 = por %p293, %p294
    %p296 = scmp.ne.s32.totalorder %s285, %s288
    %p297 = scmp.eq.s32.totalorder %s32, 1
    %p298 = por %p296, %p297
    %p299 = scmp.ne.s32.totalorder %s288, %s289
    %p300 = scmp.eq.s32.totalorder %s32, 0
    %p301 = por %p299, %p300
    %p302 = scmp.ne.s32.totalorder %s288, %s289
    %p303 = scmp.eq.s32.totalorder %s33, 1
    %p304 = por %p302, %p303
    %p306 = scmp.ne.s32.totalorder %s289, %s305
    %p307 = scmp.eq.s32.totalorder %s33, 0
    %p308 = por %p306, %p307
    %s309 = ssub.s32 %s34, %s46
    %p310 = scmp.eq.s32.totalorder %s309, 0
    %s312 = sadd.s32 %s311, 1
    %s313 = scalar_select %p310, %s311, %s312
    %p316 = pneg %p310
    %p317 = scmp.eq.s32.totalorder %s27, 1
    %p318 = por %p316, %p317
    %p319 = scmp.ne.s32.totalorder %s311, %s314
    %p320 = scmp.eq.s32.totalorder %s27, 0
    %p321 = por %p319, %p320
    %p322 = scmp.ne.s32.totalorder %s311, %s314
    %p323 = scmp.eq.s32.totalorder %s32, 1
    %p324 = por %p322, %p323
    %p325 = scmp.ne.s32.totalorder %s314, %s315
    %p326 = scmp.eq.s32.totalorder %s32, 0
    %p327 = por %p325, %p326
    %p328 = scmp.ne.s32.totalorder %s314, %s315
    %p329 = scmp.eq.s32.totalorder %s33, 1
    %p330 = por %p328, %p329
    %p332 = scmp.ne.s32.totalorder %s315, %s331
    %p333 = scmp.eq.s32.totalorder %s33, 0
    %p334 = por %p332, %p333
    %s335 = ssub.s32 %s34, %s46
    %p336 = scmp.eq.s32.totalorder %s335, 0
    %s338 = sadd.s32 %s337, 1
    %s339 = scalar_select %p336, %s337, %s338
    %p342 = pneg %p336
    %p343 = scmp.eq.s32.totalorder %s27, 1
    %p344 = por %p342, %p343
    %p345 = scmp.ne.s32.totalorder %s337, %s340
    %p346 = scmp.eq.s32.totalorder %s27, 0
    %p347 = por %p345, %p346
    %p348 = scmp.ne.s32.totalorder %s337, %s340
    %p349 = scmp.eq.s32.totalorder %s32, 1
    %p350 = por %p348, %p349
    %p351 = scmp.ne.s32.totalorder %s340, %s341
    %p352 = scmp.eq.s32.totalorder %s32, 0
    %p353 = por %p351, %p352
    %p354 = scmp.ne.s32.totalorder %s340, %s341
    %p355 = scmp.eq.s32.totalorder %s33, 1
    %p356 = por %p354, %p355
    %p358 = scmp.ne.s32.totalorder %s341, %s357
    %p359 = scmp.eq.s32.totalorder %s33, 0
    %p360 = por %p358, %p359
    %s361 = ssub.s32 %s34, %s46
    %p362 = scmp.eq.s32.totalorder %s361, 0
    %s364 = sadd.s32 %s363, 1
    %s365 = scalar_select %p362, %s363, %s364
    %p368 = pneg %p362
    %p369 = scmp.eq.s32.totalorder %s27, 1
    %p370 = por %p368, %p369
    %p371 = scmp.ne.s32.totalorder %s363, %s366
    %p372 = scmp.eq.s32.totalorder %s27, 0
    %p373 = por %p371, %p372
    %p374 = scmp.ne.s32.totalorder %s363, %s366
    %p375 = scmp.eq.s32.totalorder %s32, 1
    %p376 = por %p374, %p375
    %p377 = scmp.ne.s32.totalorder %s366, %s367
    %p378 = scmp.eq.s32.totalorder %s32, 0
    %p379 = por %p377, %p378
    %p380 = scmp.ne.s32.totalorder %s366, %s367
    %p381 = scmp.eq.s32.totalorder %s33, 1
    %p382 = por %p380, %p381
    %p384 = scmp.ne.s32.totalorder %s367, %s383
    %p385 = scmp.eq.s32.totalorder %s33, 0
    %p386 = por %p384, %p385
    %s387 = ssub.s32 %s34, %s46
    %p388 = scmp.eq.s32.totalorder %s387, 0
    %s390 = sadd.s32 %s389, 1
    %s391 = scalar_select %p388, %s389, %s390
    %p394 = pneg %p388
    %p395 = scmp.eq.s32.totalorder %s27, 1
    %p396 = por %p394, %p395
    %p397 = scmp.ne.s32.totalorder %s389, %s392
    %p398 = scmp.eq.s32.totalorder %s27, 0
    %p399 = por %p397, %p398
    %p400 = scmp.ne.s32.totalorder %s389, %s392
    %p401 = scmp.eq.s32.totalorder %s32, 1
    %p402 = por %p400, %p401
    %p403 = scmp.ne.s32.totalorder %s392, %s393
    %p404 = scmp.eq.s32.totalorder %s32, 0
    %p405 = por %p403, %p404
    %p406 = scmp.ne.s32.totalorder %s392, %s393
    %p407 = scmp.eq.s32.totalorder %s33, 1
    %p408 = por %p406, %p407
    %p410 = scmp.ne.s32.totalorder %s393, %s409
    %p411 = scmp.eq.s32.totalorder %s33, 0
    %p412 = por %p410, %p411
    %s413 = ssub.s32 %s34, %s46
    %p414 = scmp.eq.s32.totalorder %s413, 0
    %s416 = sadd.s32 %s415, 1
    %s417 = scalar_select %p414, %s415, %s416
    %p420 = pneg %p414
    %p421 = scmp.eq.s32.totalorder %s27, 1
    %p422 = por %p420, %p421
    %p423 = scmp.ne.s32.totalorder %s415, %s418
    %p424 = scmp.eq.s32.totalorder %s27, 0
    %p425 = por %p423, %p424
    %p426 = scmp.ne.s32.totalorder %s415, %s418
    %p427 = scmp.eq.s32.totalorder %s32, 1
    %p428 = por %p426, %p427
    %p429 = scmp.ne.s32.totalorder %s418, %s419
    %p430 = scmp.eq.s32.totalorder %s32, 0
    %p431 = por %p429, %p430
    %p432 = scmp.ne.s32.totalorder %s418, %s419
    %p433 = scmp.eq.s32.totalorder %s33, 1
    %p434 = por %p432, %p433
    %p436 = scmp.ne.s32.totalorder %s419, %s435
    %p437 = scmp.eq.s32.totalorder %s33, 0
    %p438 = por %p436, %p437
    %s439 = ssub.s32 %s34, %s46
    %p440 = scmp.eq.s32.totalorder %s439, 0
    %s442 = sadd.s32 %s441, 1
    %s443 = scalar_select %p440, %s441, %s442
    %p446 = pneg %p440
    %p447 = scmp.eq.s32.totalorder %s27, 1
    %p448 = por %p446, %p447
    %p449 = scmp.ne.s32.totalorder %s441, %s444
    %p450 = scmp.eq.s32.totalorder %s27, 0
    %p451 = por %p449, %p450
    %p452 = scmp.ne.s32.totalorder %s441, %s444
    %p453 = scmp.eq.s32.totalorder %s32, 1
    %p454 = por %p452, %p453
    %p455 = scmp.ne.s32.totalorder %s444, %s445
    %p456 = scmp.eq.s32.totalorder %s32, 0
    %p457 = por %p455, %p456
    %p458 = scmp.ne.s32.totalorder %s444, %s445
    %p459 = scmp.eq.s32.totalorder %s33, 1
    %p460 = por %p458, %p459
    %p462 = scmp.ne.s32.totalorder %s445, %s461
    %p463 = scmp.eq.s32.totalorder %s33, 0
    %p464 = por %p462, %p463
    %s465 = ssub.s32 %s34, %s46
    %p466 = scmp.eq.s32.totalorder %s465, 0
    %s468 = sadd.s32 %s467, 1
    %s469 = scalar_select %p466, %s467, %s468
    %p472 = pneg %p466
    %p473 = scmp.eq.s32.totalorder %s27, 1
    %p474 = por %p472, %p473
    %p475 = scmp.ne.s32.totalorder %s467, %s470
    %p476 = scmp.eq.s32.totalorder %s27, 0
    %p477 = por %p475, %p476
    %p478 = scmp.ne.s32.totalorder %s467, %s470
    %p479 = scmp.eq.s32.totalorder %s32, 1
    %p480 = por %p478, %p479
    %p481 = scmp.ne.s32.totalorder %s470, %s471
    %p482 = scmp.eq.s32.totalorder %s32, 0
    %p483 = por %p481, %p482
    %p484 = scmp.ne.s32.totalorder %s470, %s471
    %p485 = scmp.eq.s32.totalorder %s33, 1
    %p486 = por %p484, %p485
    %p488 = scmp.ne.s32.totalorder %s471, %s487
    %p489 = scmp.eq.s32.totalorder %s33, 0
    %p490 = por %p488, %p489
    %s491 = ssub.s32 %s34, %s46
    %p492 = scmp.eq.s32.totalorder %s491, 0
    %s494 = sadd.s32 %s493, 1
    %s495 = scalar_select %p492, %s493, %s494
    %p498 = pneg %p492
    %p499 = scmp.eq.s32.totalorder %s27, 1
    %p500 = por %p498, %p499
    %p501 = scmp.ne.s32.totalorder %s493, %s496
    %p502 = scmp.eq.s32.totalorder %s27, 0
    %p503 = por %p501, %p502
    %p504 = scmp.ne.s32.totalorder %s493, %s496
    %p505 = scmp.eq.s32.totalorder %s32, 1
    %p506 = por %p504, %p505
    %p507 = scmp.ne.s32.totalorder %s496, %s497
    %p508 = scmp.eq.s32.totalorder %s32, 0
    %p509 = por %p507, %p508
    %p510 = scmp.ne.s32.totalorder %s496, %s497
    %p511 = scmp.eq.s32.totalorder %s33, 1
    %p512 = por %p510, %p511
    %p514 = scmp.ne.s32.totalorder %s497, %s513
    %p515 = scmp.eq.s32.totalorder %s33, 0
    %p516 = por %p514, %p515
    %s517 = ssub.s32 %s34, %s46
    %p518 = scmp.eq.s32.totalorder %s517, 0
    %s520 = sadd.s32 %s519, 1
    %s521 = scalar_select %p518, %s519, %s520
    %p524 = pneg %p518
    %p525 = scmp.eq.s32.totalorder %s27, 1
    %p526 = por %p524, %p525
    %p527 = scmp.ne.s32.totalorder %s519, %s522
    %p528 = scmp.eq.s32.totalorder %s27, 0
    %p529 = por %p527, %p528
    %p530 = scmp.ne.s32.totalorder %s519, %s522
    %p531 = scmp.eq.s32.totalorder %s32, 1
    %p532 = por %p530, %p531
    %p533 = scmp.ne.s32.totalorder %s522, %s523
    %p534 = scmp.eq.s32.totalorder %s32, 0
    %p535 = por %p533, %p534
    %p536 = scmp.ne.s32.totalorder %s522, %s523
    %p537 = scmp.eq.s32.totalorder %s33, 1
    %p538 = por %p536, %p537
    %p540 = scmp.ne.s32.totalorder %s523, %s539
    %p541 = scmp.eq.s32.totalorder %s33, 0
    %p542 = por %p540, %p541
    %s543 = ssub.s32 %s34, %s46
    %p544 = scmp.eq.s32.totalorder %s543, 0
    %s546 = sadd.s32 %s545, 1
    %s547 = scalar_select %p544, %s545, %s546
    %p550 = pneg %p544
    %p551 = scmp.eq.s32.totalorder %s27, 1
    %p552 = por %p550, %p551
    %p553 = scmp.ne.s32.totalorder %s545, %s548
    %p554 = scmp.eq.s32.totalorder %s27, 0
    %p555 = por %p553, %p554
    %p556 = scmp.ne.s32.totalorder %s545, %s548
    %p557 = scmp.eq.s32.totalorder %s32, 1
    %p558 = por %p556, %p557
    %p559 = scmp.ne.s32.totalorder %s548, %s549
    %p560 = scmp.eq.s32.totalorder %s32, 0
    %p561 = por %p559, %p560
    %p562 = scmp.ne.s32.totalorder %s548, %s549
    %p563 = scmp.eq.s32.totalorder %s33, 1
    %p564 = por %p562, %p563
    %p566 = scmp.ne.s32.totalorder %s549, %s565
    %p567 = scmp.eq.s32.totalorder %s33, 0
    %p568 = por %p566, %p567
    %s569 = ssub.s32 %s34, %s46
    %p570 = scmp.eq.s32.totalorder %s569, 0
    %s572 = sadd.s32 %s571, 1
    %s573 = scalar_select %p570, %s571, %s572
    %p576 = pneg %p570
    %p577 = scmp.eq.s32.totalorder %s27, 1
    %p578 = por %p576, %p577
    %p579 = scmp.ne.s32.totalorder %s571, %s574
    %p580 = scmp.eq.s32.totalorder %s27, 0
    %p581 = por %p579, %p580
    %p582 = scmp.ne.s32.totalorder %s571, %s574
    %p583 = scmp.eq.s32.totalorder %s32, 1
    %p584 = por %p582, %p583
    %p585 = scmp.ne.s32.totalorder %s574, %s575
    %p586 = scmp.eq.s32.totalorder %s32, 0
    %p587 = por %p585, %p586
    %p588 = scmp.ne.s32.totalorder %s574, %s575
    %p589 = scmp.eq.s32.totalorder %s33, 1
    %p590 = por %p588, %p589
    %p592 = scmp.ne.s32.totalorder %s575, %s591
    %p593 = scmp.eq.s32.totalorder %s33, 0
    %p594 = por %p592, %p593
    %s595 = ssub.s32 %s34, %s46
    %s596 = ssub.s32 %s35, %s42
    %s597 = sor.u32 %s595, %s596
    %p598 = scmp.eq.s32.totalorder %s597, 0
    %s600 = sadd.s32 %s599, 1
    %s601 = scalar_select %p598, %s599, %s600
    %p604 = pneg %p598
    %p605 = scmp.eq.s32.totalorder %s27, 1
    %p606 = por %p604, %p605
    %p607 = scmp.ne.s32.totalorder %s599, %s602
    %p608 = scmp.eq.s32.totalorder %s27, 0
    %p609 = por %p607, %p608
    %p610 = scmp.ne.s32.totalorder %s599, %s602
    %p611 = scmp.eq.s32.totalorder %s32, 1
    %p612 = por %p610, %p611
    %p613 = scmp.ne.s32.totalorder %s602, %s603
    %p614 = scmp.eq.s32.totalorder %s32, 0
    %p615 = por %p613, %p614
    %p616 = scmp.ne.s32.totalorder %s602, %s603
    %p617 = scmp.eq.s32.totalorder %s33, 1
    %p618 = por %p616, %p617
    %p620 = scmp.ne.s32.totalorder %s603, %s619
    %p621 = scmp.eq.s32.totalorder %s33, 0
    %p622 = por %p620, %p621
    %p623 = scmp.le.s32.totalorder 1, %s27
    %p624 = scmp.lt.s32.totalorder %s27, 3
    %p625 = pnand %p623, %p624
    %p626 = pneg %p625
    // Predicated region
    $region9: #{pointwise_forward.1} parent=5 // pred_check
      _
    $region10: #{pointwise_forward.1} parent=5 // pred_check_branch
      %628 = sbr.rel (%p625) target = $region12
    $region11: #{pointwise_forward.1} parent=5 // pred_region
      %s629 = ssub.s32 %s27, 1
    $region12: #{pointwise_forward.1} parent=5 // pred_fallthru
      _
    %p630 = scmp.lt.s32.totalorder %s27, 2
    // Predicated region
    $region13: #{pointwise_forward.1} parent=5 // pred_check
      %p631 = pneg %p630
    $region14: #{pointwise_forward.1} parent=5 // pred_check_branch
      %633 = sbr.rel (%p631) target = $region16
    $region15: #{pointwise_forward.1} parent=5 // pred_region
      // Predicated region
      $region17: #{pointwise_forward.1} parent=15 // pred_check
        %p634 = pneg %p61
      $region18: #{pointwise_forward.1} parent=15 // pred_check_branch
        %636 = sbr.rel (%p634) target = $region20
      $region19: #{pointwise_forward.1} parent=15 // pred_region
        %s637 = smul.u32 64, %s35
        %p638 = scmp.lt.s32.totalorder %s34, 1
        %s639 = scalar_select %p638, %s34, 1
        %p640 = scmp.lt.s32.totalorder %s637, 63
        %s641 = scalar_select %p640, %s637, 63
        %s642 = smul.addr %s639, 64
        %s643 = sadd.s32 %s641, %s642
        %s644 = smul.addr %s643, 8
        %s645 = scalar_lea.vmem %s0, %s644
        %s646 = smul.u32 64, %s35
      $region20: #{pointwise_forward.1} parent=15 // pred_fallthru
        _
      // Predicated region
      $region21: #{pointwise_forward.1} parent=15 // pred_check
        %p647 = pneg %p87
      $region22: #{pointwise_forward.1} parent=15 // pred_check_branch
        %649 = sbr.rel (%p647) target = $region24
      $region23: #{pointwise_forward.1} parent=15 // pred_region
        %p650 = scmp.lt.s32.totalorder %s34, 1
        %s651 = scalar_select %p650, %s34, 1
        %s652 = smul.addr %s651, 4
        %s653 = scalar_lea.vmem %s1, %s652
      $region24: #{pointwise_forward.1} parent=15 // pred_fallthru
        _
      // Predicated region
      $region25: #{pointwise_forward.1} parent=15 // pred_check
        %p654 = pneg %p113
      $region26: #{pointwise_forward.1} parent=15 // pred_check_branch
        %656 = sbr.rel (%p654) target = $region28
      $region27: #{pointwise_forward.1} parent=15 // pred_region
        %p657 = scmp.lt.s32.totalorder %s34, 1
        %s658 = scalar_select %p657, %s34, 1
        %s659 = scalar_lea.vmem %s2, %s658
      $region28: #{pointwise_forward.1} parent=15 // pred_fallthru
        _
      // Predicated region
      $region29: #{pointwise_forward.1} parent=15 // pred_check
        %p660 = pneg %p139
      $region30: #{pointwise_forward.1} parent=15 // pred_check_branch
        %662 = sbr.rel (%p660) target = $region32
      $region31: #{pointwise_forward.1} parent=15 // pred_region
        %p663 = scmp.lt.s32.totalorder %s34, 1
        %s664 = scalar_select %p663, %s34, 1
        %s665 = smul.addr %s664, 4
        %s666 = smul.addr %s665, 4
        %s667 = scalar_lea.vmem %s3, %s666
      $region32: #{pointwise_forward.1} parent=15 // pred_fallthru
        _
      // Predicated region
      $region33: #{pointwise_forward.1} parent=15 // pred_check
        %p668 = pneg %p165
      $region34: #{pointwise_forward.1} parent=15 // pred_check_branch
        %670 = sbr.rel (%p668) target = $region36
      $region35: #{pointwise_forward.1} parent=15 // pred_region
        %p671 = scmp.lt.s32.totalorder %s34, 1
        %s672 = scalar_select %p671, %s34, 1
        %s673 = scalar_lea.vmem %s4, %s672
      $region36: #{pointwise_forward.1} parent=15 // pred_fallthru
        _
      // Predicated region
      $region37: #{pointwise_forward.1} parent=15 // pred_check
        %p674 = pneg %p191
      $region38: #{pointwise_forward.1} parent=15 // pred_check_branch
        %676 = sbr.rel (%p674) target = $region40
      $region39: #{pointwise_forward.1} parent=15 // pred_region
        %p677 = scmp.lt.s32.totalorder %s34, 1
        %s678 = scalar_select %p677, %s34, 1
        %s679 = smul.addr %s678, 8
        %s680 = smul.addr %s679, 4
        %s681 = scalar_lea.vmem %s5, %s680
      $region40: #{pointwise_forward.1} parent=15 // pred_fallthru
        _
      // Predicated region
      $region41: #{pointwise_forward.1} parent=15 // pred_check
        %p682 = pneg %p217
      $region42: #{pointwise_forward.1} parent=15 // pred_check_branch
        %684 = sbr.rel (%p682) target = $region44
      $region43: #{pointwise_forward.1} parent=15 // pred_region
        %p685 = scmp.lt.s32.totalorder %s34, 1
        %s686 = scalar_select %p685, %s34, 1
        %s687 = scalar_lea.vmem %s6, %s686
      $region44: #{pointwise_forward.1} parent=15 // pred_fallthru
        _
      // Predicated region
      $region45: #{pointwise_forward.1} parent=15 // pred_check
        %p688 = pneg %p243
      $region46: #{pointwise_forward.1} parent=15 // pred_check_branch
        %690 = sbr.rel (%p688) target = $region48
      $region47: #{pointwise_forward.1} parent=15 // pred_region
        %p691 = scmp.lt.s32.totalorder %s34, 1
        %s692 = scalar_select %p691, %s34, 1
        %s693 = smul.addr %s692, 32
        %s694 = smul.addr %s693, 4
        %s695 = scalar_lea.vmem %s7, %s694
      $region48: #{pointwise_forward.1} parent=15 // pred_fallthru
        _
      // Predicated region
      $region49: #{pointwise_forward.1} parent=15 // pred_check
        %p696 = pneg %p269
      $region50: #{pointwise_forward.1} parent=15 // pred_check_branch
        %698 = sbr.rel (%p696) target = $region52
      $region51: #{pointwise_forward.1} parent=15 // pred_region
        %p699 = scmp.lt.s32.totalorder %s34, 1
        %s700 = scalar_select %p699, %s34, 1
        %s701 = smul.addr %s700, 2
        %s702 = scalar_lea.vmem %s8, %s701
      $region52: #{pointwise_forward.1} parent=15 // pred_fallthru
        _
      // Predicated region
      $region53: #{pointwise_forward.1} parent=15 // pred_check
        %p703 = pneg %p295
      $region54: #{pointwise_forward.1} parent=15 // pred_check_branch
        %705 = sbr.rel (%p703) target = $region56
      $region55: #{pointwise_forward.1} parent=15 // pred_region
        %p706 = scmp.lt.s32.totalorder %s34, 1
        %s707 = scalar_select %p706, %s34, 1
        %s708 = smul.addr %s707, 128
        %s709 = smul.addr %s708, 4
        %s710 = scalar_lea.vmem %s9, %s709
      $region56: #{pointwise_forward.1} parent=15 // pred_fallthru
        _
      // Predicated region
      $region57: #{pointwise_forward.1} parent=15 // pred_check
        %p711 = pneg %p321
      $region58: #{pointwise_forward.1} parent=15 // pred_check_branch
        %713 = sbr.rel (%p711) target = $region60
      $region59: #{pointwise_forward.1} parent=15 // pred_region
        %p714 = scmp.lt.s32.totalorder %s34, 1
        %s715 = scalar_select %p714, %s34, 1
        %s716 = smul.addr %s715, 4
        %s717 = scalar_lea.vmem %s10, %s716
      $region60: #{pointwise_forward.1} parent=15 // pred_fallthru
        _
      // Predicated region
      $region61: #{pointwise_forward.1} parent=15 // pred_check
        %p718 = pneg %p347
      $region62: #{pointwise_forward.1} parent=15 // pred_check_branch
        %720 = sbr.rel (%p718) target = $region64
      $region63: #{pointwise_forward.1} parent=15 // pred_region
        %p721 = scmp.lt.s32.totalorder %s34, 1
        %s722 = scalar_select %p721, %s34, 1
        %s723 = smul.addr %s722, 128
        %s724 = smul.addr %s723, 4
        %s725 = scalar_lea.vmem %s11, %s724
      $region64: #{pointwise_forward.1} parent=15 // pred_fallthru
        _
      // Predicated region
      $region65: #{pointwise_forward.1} parent=15 // pred_check
        %p726 = pneg %p373
      $region66: #{pointwise_forward.1} parent=15 // pred_check_branch
        %728 = sbr.rel (%p726) target = $region68
      $region67: #{pointwise_forward.1} parent=15 // pred_region
        %p729 = scmp.lt.s32.totalorder %s34, 1
        %s730 = scalar_select %p729, %s34, 1
        %s731 = smul.addr %s730, 2
        %s732 = scalar_lea.vmem %s12, %s731
      $region68: #{pointwise_forward.1} parent=15 // pred_fallthru
        _
      // Predicated region
      $region69: #{pointwise_forward.1} parent=15 // pred_check
        %p733 = pneg %p399
      $region70: #{pointwise_forward.1} parent=15 // pred_check_branch
        %735 = sbr.rel (%p733) target = $region72
      $region71: #{pointwise_forward.1} parent=15 // pred_region
        %p736 = scmp.lt.s32.totalorder %s34, 1
        %s737 = scalar_select %p736, %s34, 1
        %s738 = smul.addr %s737, 32
        %s739 = smul.addr %s738, 4
        %s740 = scalar_lea.vmem %s13, %s739
      $region72: #{pointwise_forward.1} parent=15 // pred_fallthru
        _
      // Predicated region
      $region73: #{pointwise_forward.1} parent=15 // pred_check
        %p741 = pneg %p425
      $region74: #{pointwise_forward.1} parent=15 // pred_check_branch
        %743 = sbr.rel (%p741) target = $region76
      $region75: #{pointwise_forward.1} parent=15 // pred_region
        %p744 = scmp.lt.s32.totalorder %s34, 1
        %s745 = scalar_select %p744, %s34, 1
        %s746 = scalar_lea.vmem %s14, %s745
      $region76: #{pointwise_forward.1} parent=15 // pred_fallthru
        _
      // Predicated region
      $region77: #{pointwise_forward.1} parent=15 // pred_check
        %p747 = pneg %p451
      $region78: #{pointwise_forward.1} parent=15 // pred_check_branch
        %749 = sbr.rel (%p747) target = $region80
      $region79: #{pointwise_forward.1} parent=15 // pred_region
        %p750 = scmp.lt.s32.totalorder %s34, 1
        %s751 = scalar_select %p750, %s34, 1
        %s752 = smul.addr %s751, 16
        %s753 = smul.addr %s752, 4
        %s754 = scalar_lea.vmem %s15, %s753
      $region80: #{pointwise_forward.1} parent=15 // pred_fallthru
        _
      // Predicated region
      $region81: #{pointwise_forward.1} parent=15 // pred_check
        %p755 = pneg %p477
      $region82: #{pointwise_forward.1} parent=15 // pred_check_branch
        %757 = sbr.rel (%p755) target = $region84
      $region83: #{pointwise_forward.1} parent=15 // pred_region
        %p758 = scmp.lt.s32.totalorder %s34, 1
        %s759 = scalar_select %p758, %s34, 1
        %s760 = scalar_lea.vmem %s16, %s759
      $region84: #{pointwise_forward.1} parent=15 // pred_fallthru
        _
      // Predicated region
      $region85: #{pointwise_forward.1} parent=15 // pred_check
        %p761 = pneg %p503
      $region86: #{pointwise_forward.1} parent=15 // pred_check_branch
        %763 = sbr.rel (%p761) target = $region88
      $region87: #{pointwise_forward.1} parent=15 // pred_region
        %p764 = scmp.lt.s32.totalorder %s34, 1
        %s765 = scalar_select %p764, %s34, 1
        %s766 = smul.addr %s765, 8
        %s767 = smul.addr %s766, 4
        %s768 = scalar_lea.vmem %s17, %s767
      $region88: #{pointwise_forward.1} parent=15 // pred_fallthru
        _
      // Predicated region
      $region89: #{pointwise_forward.1} parent=15 // pred_check
        %p769 = pneg %p529
      $region90: #{pointwise_forward.1} parent=15 // pred_check_branch
        %771 = sbr.rel (%p769) target = $region92
      $region91: #{pointwise_forward.1} parent=15 // pred_region
        %p772 = scmp.lt.s32.totalorder %s34, 1
        %s773 = scalar_select %p772, %s34, 1
        %s774 = scalar_lea.vmem %s18, %s773
      $region92: #{pointwise_forward.1} parent=15 // pred_fallthru
        _
      // Predicated region
      $region93: #{pointwise_forward.1} parent=15 // pred_check
        %p775 = pneg %p555
      $region94: #{pointwise_forward.1} parent=15 // pred_check_branch
        %777 = sbr.rel (%p775) target = $region96
      $region95: #{pointwise_forward.1} parent=15 // pred_region
        %p778 = scmp.lt.s32.totalorder %s34, 1
        %s779 = scalar_select %p778, %s34, 1
        %s780 = smul.addr %s779, 4
        %s781 = smul.addr %s780, 4
        %s782 = scalar_lea.vmem %s19, %s781
      $region96: #{pointwise_forward.1} parent=15 // pred_fallthru
        _
      // Predicated region
      $region97: #{pointwise_forward.1} parent=15 // pred_check
        %p783 = pneg %p581
      $region98: #{pointwise_forward.1} parent=15 // pred_check_branch
        %785 = sbr.rel (%p783) target = $region100
      $region99: #{pointwise_forward.1} parent=15 // pred_region
        %p786 = scmp.lt.s32.totalorder %s34, 1
        %s787 = scalar_select %p786, %s34, 1
        %s788 = scalar_lea.vmem %s20, %s787
      $region100: #{pointwise_forward.1} parent=15 // pred_fallthru
        _
    $region16: #{pointwise_forward.1} parent=5 // pred_fallthru
      _
    %p789 = scmp.le.s32.totalorder 1, %s27
    %p790 = scmp.lt.s32.totalorder %s27, 3
    %p791 = pnand %p789, %p790
    %p792 = pneg %p791
    // Predicated region
    $region101: #{pointwise_forward.1} parent=5 // pred_check
      _
    $region102: #{pointwise_forward.1} parent=5 // pred_check_branch
      %794 = sbr.rel (%p791) target = $region104
    $region103: #{pointwise_forward.1} parent=5 // pred_region
      %s795 = ssub.s32 %s27, 1
      %s796 = smul.u32 64, %s37
      %p797 = scmp.lt.s32.totalorder %s36, 1
      %s798 = scalar_select %p797, %s36, 1
      %p799 = scmp.lt.s32.totalorder %s796, 63
      %s800 = scalar_select %p799, %s796, 63
      %s801 = smul.addr %s798, 64
      %s802 = sadd.s32 %s800, %s801
      %s803 = smul.addr %s802, 8
      %s804 = scalar_lea.vmem %s0, %s803
      %p805 = pneg %p67
      %p806 = pneg %p64
      %p807 = scmp.lt.s32.totalorder %s36, 1
      %s808 = scalar_select %p807, %s36, 1
      %s809 = smul.addr %s808, 4
      %s810 = scalar_lea.vmem %s1, %s809
      %p811 = pneg %p93
      %p812 = pneg %p90
      %p813 = scmp.lt.s32.totalorder %s36, 1
      %s814 = scalar_select %p813, %s36, 1
      %s815 = scalar_lea.vmem %s2, %s814
      %p816 = pneg %p119
      %p817 = pneg %p116
      %p818 = scmp.lt.s32.totalorder %s36, 1
      %s819 = scalar_select %p818, %s36, 1
      %s820 = smul.addr %s819, 4
      %s821 = smul.addr %s820, 4
      %s822 = scalar_lea.vmem %s3, %s821
      %p823 = pneg %p145
      %p824 = pneg %p142
      %p825 = scmp.lt.s32.totalorder %s36, 1
      %s826 = scalar_select %p825, %s36, 1
      %s827 = scalar_lea.vmem %s4, %s826
      %p828 = pneg %p171
      %p829 = pneg %p168
      %p830 = scmp.lt.s32.totalorder %s36, 1
      %s831 = scalar_select %p830, %s36, 1
      %s832 = smul.addr %s831, 8
      %s833 = smul.addr %s832, 4
      %s834 = scalar_lea.vmem %s5, %s833
      %p835 = pneg %p197
      %p836 = pneg %p194
      %p837 = scmp.lt.s32.totalorder %s36, 1
      %s838 = scalar_select %p837, %s36, 1
      %s839 = scalar_lea.vmem %s6, %s838
      %p840 = pneg %p223
      %p841 = pneg %p220
      %p842 = scmp.lt.s32.totalorder %s36, 1
      %s843 = scalar_select %p842, %s36, 1
      %s844 = smul.addr %s843, 32
      %s845 = smul.addr %s844, 4
      %s846 = scalar_lea.vmem %s7, %s845
      %p847 = pneg %p249
      %p848 = pneg %p246
      %p849 = scmp.lt.s32.totalorder %s36, 1
      %s850 = scalar_select %p849, %s36, 1
      %s851 = smul.addr %s850, 2
      %s852 = scalar_lea.vmem %s8, %s851
      %p853 = pneg %p275
      %p854 = pneg %p272
      %p855 = scmp.lt.s32.totalorder %s36, 1
      %s856 = scalar_select %p855, %s36, 1
      %s857 = smul.addr %s856, 128
      %s858 = smul.addr %s857, 4
      %s859 = scalar_lea.vmem %s9, %s858
      %p860 = pneg %p301
      %p861 = pneg %p298
      %p862 = scmp.lt.s32.totalorder %s36, 1
      %s863 = scalar_select %p862, %s36, 1
      %s864 = smul.addr %s863, 4
      %s865 = scalar_lea.vmem %s10, %s864
      %p866 = pneg %p327
      %p867 = pneg %p324
      %p868 = scmp.lt.s32.totalorder %s36, 1
      %s869 = scalar_select %p868, %s36, 1
      %s870 = smul.addr %s869, 128
      %s871 = smul.addr %s870, 4
      %s872 = scalar_lea.vmem %s11, %s871
      %p873 = pneg %p353
      %p874 = pneg %p350
      %p875 = scmp.lt.s32.totalorder %s36, 1
      %s876 = scalar_select %p875, %s36, 1
      %s877 = smul.addr %s876, 2
      %s878 = scalar_lea.vmem %s12, %s877
      %p879 = pneg %p379
      %p880 = pneg %p376
      %p881 = scmp.lt.s32.totalorder %s36, 1
      %s882 = scalar_select %p881, %s36, 1
      %s883 = smul.addr %s882, 32
      %s884 = smul.addr %s883, 4
      %s885 = scalar_lea.vmem %s13, %s884
      %p886 = pneg %p405
      %p887 = pneg %p402
      %p888 = scmp.lt.s32.totalorder %s36, 1
      %s889 = scalar_select %p888, %s36, 1
      %s890 = scalar_lea.vmem %s14, %s889
      %p891 = pneg %p431
      %p892 = pneg %p428
      %p893 = scmp.lt.s32.totalorder %s36, 1
      %s894 = scalar_select %p893, %s36, 1
      %s895 = smul.addr %s894, 16
      %s896 = smul.addr %s895, 4
      %s897 = scalar_lea.vmem %s15, %s896
      %p898 = pneg %p457
      %p899 = pneg %p454
      %p900 = scmp.lt.s32.totalorder %s36, 1
      %s901 = scalar_select %p900, %s36, 1
      %s902 = scalar_lea.vmem %s16, %s901
      %p903 = pneg %p483
      %p904 = pneg %p480
      %p905 = scmp.lt.s32.totalorder %s36, 1
      %s906 = scalar_select %p905, %s36, 1
      %s907 = smul.addr %s906, 8
      %s908 = smul.addr %s907, 4
      %s909 = scalar_lea.vmem %s17, %s908
      %p910 = pneg %p509
      %p911 = pneg %p506
      %p912 = scmp.lt.s32.totalorder %s36, 1
      %s913 = scalar_select %p912, %s36, 1
      %s914 = scalar_lea.vmem %s18, %s913
      %p915 = pneg %p535
      %p916 = pneg %p532
      %p917 = scmp.lt.s32.totalorder %s36, 1
      %s918 = scalar_select %p917, %s36, 1
      %s919 = smul.addr %s918, 4
      %s920 = smul.addr %s919, 4
      %s921 = scalar_lea.vmem %s19, %s920
      %p922 = pneg %p561
      %p923 = pneg %p558
      %p924 = scmp.lt.s32.totalorder %s36, 1
      %s925 = scalar_select %p924, %s36, 1
      %s926 = scalar_lea.vmem %s20, %s925
      %p927 = pneg %p587
      %p928 = pneg %p584
      %p929 = pneg %p615
      %p930 = pneg %p612
      %s931 = smul.u32 64, %s37
      %p932 = scmp.lt.s32.totalorder %s36, 1
      %s933 = scalar_select %p932, %s36, 1
      %p934 = scmp.lt.s32.totalorder %s931, 63
      %s935 = scalar_select %p934, %s931, 63
      %s936 = smul.addr %s933, 64
      %s937 = sadd.s32 %s935, %s936
      %s938 = smul.addr %s937, 8
      %s939 = scalar_lea.vmem %s21, %s938
      %s940 = smul.u32 64, %s37
      %p941 = scmp.lt.s32.totalorder %s36, 1
      %s942 = scalar_select %p941, %s36, 1
      %p943 = scmp.lt.s32.totalorder %s940, 63
      %s944 = scalar_select %p943, %s940, 63
      %s945 = smul.addr %s942, 64
      %s946 = sadd.s32 %s944, %s945
      %s947 = smul.addr %s946, 8
      %s948 = scalar_lea.vmem %s0, %s947
      %s949 = smul.u32 64, %s37
      %p950 = scmp.lt.s32.totalorder %s36, 1
      %s951 = scalar_select %p950, %s36, 1
      %s952 = smul.addr %s951, 4
      %s953 = scalar_lea.vmem %s1, %s952
      %p954 = scmp.lt.s32.totalorder %s36, 1
      %s955 = scalar_select %p954, %s36, 1
      %s956 = scalar_lea.vmem %s2, %s955
      %p957 = scmp.lt.s32.totalorder %s36, 1
      %s958 = scalar_select %p957, %s36, 1
      %s959 = smul.addr %s958, 4
      %s960 = smul.addr %s959, 4
      %s961 = scalar_lea.vmem %s3, %s960
      %p962 = scmp.lt.s32.totalorder %s36, 1
      %s963 = scalar_select %p962, %s36, 1
      %s964 = scalar_lea.vmem %s4, %s963
      %p965 = scmp.lt.s32.totalorder %s36, 1
      %s966 = scalar_select %p965, %s36, 1
      %s967 = smul.addr %s966, 8
      %s968 = smul.addr %s967, 4
      %s969 = scalar_lea.vmem %s5, %s968
      %p970 = scmp.lt.s32.totalorder %s36, 1
      %s971 = scalar_select %p970, %s36, 1
      %s972 = scalar_lea.vmem %s6, %s971
      %p973 = scmp.lt.s32.totalorder %s36, 1
      %s974 = scalar_select %p973, %s36, 1
      %s975 = smul.addr %s974, 32
      %s976 = smul.addr %s975, 4
      %s977 = scalar_lea.vmem %s7, %s976
      %p978 = scmp.lt.s32.totalorder %s36, 1
      %s979 = scalar_select %p978, %s36, 1
      %s980 = smul.addr %s979, 2
      %s981 = scalar_lea.vmem %s8, %s980
      %p982 = scmp.lt.s32.totalorder %s36, 1
      %s983 = scalar_select %p982, %s36, 1
      %s984 = smul.addr %s983, 128
      %s985 = smul.addr %s984, 4
      %s986 = scalar_lea.vmem %s9, %s985
      %p987 = scmp.lt.s32.totalorder %s36, 1
      %s988 = scalar_select %p987, %s36, 1
      %s989 = smul.addr %s988, 4
      %s990 = scalar_lea.vmem %s10, %s989
      %p991 = scmp.lt.s32.totalorder %s36, 1
      %s992 = scalar_select %p991, %s36, 1
      %s993 = smul.addr %s992, 128
      %s994 = smul.addr %s993, 4
      %s995 = scalar_lea.vmem %s11, %s994
      %p996 = scmp.lt.s32.totalorder %s36, 1
      %s997 = scalar_select %p996, %s36, 1
      %s998 = smul.addr %s997, 2
      %s999 = scalar_lea.vmem %s12, %s998
      %p1000 = scmp.lt.s32.totalorder %s36, 1
      %s1001 = scalar_select %p1000, %s36, 1
      %s1002 = smul.addr %s1001, 32
      %s1003 = smul.addr %s1002, 4
      %s1004 = scalar_lea.vmem %s13, %s1003
      %p1005 = scmp.lt.s32.totalorder %s36, 1
      %s1006 = scalar_select %p1005, %s36, 1
      %s1007 = scalar_lea.vmem %s14, %s1006
      %p1008 = scmp.lt.s32.totalorder %s36, 1
      %s1009 = scalar_select %p1008, %s36, 1
      %s1010 = smul.addr %s1009, 16
      %s1011 = smul.addr %s1010, 4
      %s1012 = scalar_lea.vmem %s15, %s1011
      %p1013 = scmp.lt.s32.totalorder %s36, 1
      %s1014 = scalar_select %p1013, %s36, 1
      %s1015 = scalar_lea.vmem %s16, %s1014
      %p1016 = scmp.lt.s32.totalorder %s36, 1
      %s1017 = scalar_select %p1016, %s36, 1
      %s1018 = smul.addr %s1017, 8
      %s1019 = smul.addr %s1018, 4
      %s1020 = scalar_lea.vmem %s17, %s1019
      %p1021 = scmp.lt.s32.totalorder %s36, 1
      %s1022 = scalar_select %p1021, %s36, 1
      %s1023 = scalar_lea.vmem %s18, %s1022
      %p1024 = scmp.lt.s32.totalorder %s36, 1
      %s1025 = scalar_select %p1024, %s36, 1
      %s1026 = smul.addr %s1025, 4
      %s1027 = smul.addr %s1026, 4
      %s1028 = scalar_lea.vmem %s19, %s1027
      %p1029 = scmp.lt.s32.totalorder %s36, 1
      %s1030 = scalar_select %p1029, %s36, 1
      %s1031 = scalar_lea.vmem %s20, %s1030
      %s1032 = smul.u32 64, %s37
      %p1033 = scmp.lt.s32.totalorder %s36, 1
      %s1034 = scalar_select %p1033, %s36, 1
      %p1035 = scmp.lt.s32.totalorder %s1032, 63
      %s1036 = scalar_select %p1035, %s1032, 63
      %s1037 = smul.addr %s1034, 64
      %s1038 = sadd.s32 %s1036, %s1037
      %s1039 = smul.addr %s1038, 8
      %s1040 = scalar_lea.vmem %s21, %s1039
      %s1041 = smul.u32 64, %s37
      %v1043 = vld [vmem:[%s948] sm:$0xff]
      %v1044 = vld [vmem:[%s948 + $0x8] sm:$0xff]
      %v1045 = vld [vmem:[%s948 + $0x10] sm:$0xff]
      %v1046 = vld [vmem:[%s948 + $0x18] sm:$0xff]
      %v1047 = vld [vmem:[%s948 + $0x20] sm:$0xff]
      %v1048 = vld [vmem:[%s948 + $0x28] sm:$0xff]
      %v1049 = vld [vmem:[%s948 + $0x30] sm:$0xff]
      %v1050 = vld [vmem:[%s948 + $0x38] sm:$0xff]
      %v1051 = vld [vmem:[%s948 + $0x40] sm:$0xff]
      %v1052 = vld [vmem:[%s948 + $0x48] sm:$0xff]
      %v1053 = vld [vmem:[%s948 + $0x50] sm:$0xff]
      %v1054 = vld [vmem:[%s948 + $0x58] sm:$0xff]
      %v1055 = vld [vmem:[%s948 + $0x60] sm:$0xff]
      %v1056 = vld [vmem:[%s948 + $0x68] sm:$0xff]
      %v1057 = vld [vmem:[%s948 + $0x70] sm:$0xff]
      %v1058 = vld [vmem:[%s948 + $0x78] sm:$0xff]
      %v1059 = vld [vmem:[%s948 + $0x80] sm:$0xff]
      %v1060 = vld [vmem:[%s948 + $0x88] sm:$0xff]
      %v1061 = vld [vmem:[%s948 + $0x90] sm:$0xff]
      %v1062 = vld [vmem:[%s948 + $0x98] sm:$0xff]
      %v1063 = vld [vmem:[%s948 + $0xa0] sm:$0xff]
      %v1064 = vld [vmem:[%s948 + $0xa8] sm:$0xff]
      %v1065 = vld [vmem:[%s948 + $0xb0] sm:$0xff]
      %v1066 = vld [vmem:[%s948 + $0xb8] sm:$0xff]
      %v1067 = vld [vmem:[%s948 + $0xc0] sm:$0xff]
      %v1068 = vld [vmem:[%s948 + $0xc8] sm:$0xff]
      %v1069 = vld [vmem:[%s948 + $0xd0] sm:$0xff]
      %v1070 = vld [vmem:[%s948 + $0xd8] sm:$0xff]
      %v1071 = vld [vmem:[%s948 + $0xe0] sm:$0xff]
      %v1072 = vld [vmem:[%s948 + $0xe8] sm:$0xff]
      %v1073 = vld [vmem:[%s948 + $0xf0] sm:$0xff]
      %v1074 = vld [vmem:[%s948 + $0xf8] sm:$0xff]
      %v1075 = vld [vmem:[%s948 + $0x100] sm:$0xff]
      %v1076 = vld [vmem:[%s948 + $0x108] sm:$0xff]
      %v1077 = vld [vmem:[%s948 + $0x110] sm:$0xff]
      %v1078 = vld [vmem:[%s948 + $0x118] sm:$0xff]
      %v1079 = vld [vmem:[%s948 + $0x120] sm:$0xff]
      %v1080 = vld [vmem:[%s948 + $0x128] sm:$0xff]
      %v1081 = vld [vmem:[%s948 + $0x130] sm:$0xff]
      %v1082 = vld [vmem:[%s948 + $0x138] sm:$0xff]
      %v1083 = vld [vmem:[%s948 + $0x140] sm:$0xff]
      %v1084 = vld [vmem:[%s948 + $0x148] sm:$0xff]
      %v1085 = vld [vmem:[%s948 + $0x150] sm:$0xff]
      %v1086 = vld [vmem:[%s948 + $0x158] sm:$0xff]
      %v1087 = vld [vmem:[%s948 + $0x160] sm:$0xff]
      %v1088 = vld [vmem:[%s948 + $0x168] sm:$0xff]
      %v1089 = vld [vmem:[%s948 + $0x170] sm:$0xff]
      %v1090 = vld [vmem:[%s948 + $0x178] sm:$0xff]
      %v1091 = vld [vmem:[%s948 + $0x180] sm:$0xff]
      %v1092 = vld [vmem:[%s948 + $0x188] sm:$0xff]
      %v1093 = vld [vmem:[%s948 + $0x190] sm:$0xff]
      %v1094 = vld [vmem:[%s948 + $0x198] sm:$0xff]
      %v1095 = vld [vmem:[%s948 + $0x1a0] sm:$0xff]
      %v1096 = vld [vmem:[%s948 + $0x1a8] sm:$0xff]
      %v1097 = vld [vmem:[%s948 + $0x1b0] sm:$0xff]
      %v1098 = vld [vmem:[%s948 + $0x1b8] sm:$0xff]
      %v1099 = vld [vmem:[%s948 + $0x1c0] sm:$0xff]
      %v1100 = vld [vmem:[%s948 + $0x1c8] sm:$0xff]
      %v1101 = vld [vmem:[%s948 + $0x1d0] sm:$0xff]
      %v1102 = vld [vmem:[%s948 + $0x1d8] sm:$0xff]
      %v1103 = vld [vmem:[%s948 + $0x1e0] sm:$0xff]
      %v1104 = vld [vmem:[%s948 + $0x1e8] sm:$0xff]
      %v1105 = vld [vmem:[%s948 + $0x1f0] sm:$0xff]
      %v1106 = vld [vmem:[%s948 + $0x1f8] sm:$0xff]
      %v1107 = vld [vmem:[%s953] sm:$0xf]
      %v1108 = vld [vmem:[%s956] sm:$0x1]
      %v1109 = vpack.c.bf16 %v1044, %v1043
      %v1110 = vpack.c.bf16 %v1046, %v1045
      %v1111 = vpack.c.bf16 %v1048, %v1047
      %v1112 = vpack.c.bf16 %v1050, %v1049
      %v1113 = vpack.c.bf16 %v1052, %v1051
      %v1114 = vpack.c.bf16 %v1054, %v1053
      %v1115 = vpack.c.bf16 %v1056, %v1055
      %v1116 = vpack.c.bf16 %v1058, %v1057
      %v1117 = vpack.c.bf16 %v1060, %v1059
      %v1118 = vpack.c.bf16 %v1062, %v1061
      %v1119 = vpack.c.bf16 %v1064, %v1063
      %v1120 = vpack.c.bf16 %v1066, %v1065
      %v1121 = vpack.c.bf16 %v1068, %v1067
      %v1122 = vpack.c.bf16 %v1070, %v1069
      %v1123 = vpack.c.bf16 %v1072, %v1071
      %v1124 = vpack.c.bf16 %v1074, %v1073
      %v1125 = vpack.c.bf16 %v1076, %v1075
      %v1126 = vpack.c.bf16 %v1078, %v1077
      %v1127 = vpack.c.bf16 %v1080, %v1079
      %v1128 = vpack.c.bf16 %v1082, %v1081
      %v1129 = vpack.c.bf16 %v1084, %v1083
      %v1130 = vpack.c.bf16 %v1086, %v1085
      %v1131 = vpack.c.bf16 %v1088, %v1087
      %v1132 = vpack.c.bf16 %v1090, %v1089
      %v1133 = vpack.c.bf16 %v1092, %v1091
      %v1134 = vpack.c.bf16 %v1094, %v1093
      %v1135 = vpack.c.bf16 %v1096, %v1095
      %v1136 = vpack.c.bf16 %v1098, %v1097
      %v1137 = vpack.c.bf16 %v1100, %v1099
      %v1138 = vpack.c.bf16 %v1102, %v1101
      %v1139 = vpack.c.bf16 %v1104, %v1103
      %v1140 = vpack.c.bf16 %v1106, %v1105
      %v1142 = vlaneseq
      %v1143 = vshrl.u32 %v1142, 7
      %v1144 = vsub.s32 0, %v1143
      %v1145 = vrot.slane %v1108, %v1144
      %vm1147 = vcmask 64512
      %v1149 = vsel %vm1147, %v1109, 0
      %v1152 = vsel %vm1147, %v1110, 0
      %v1155 = vsel %vm1147, %v1111, 0
      %v1158 = vsel %vm1147, %v1112, 0
      %v1161 = vsel %vm1147, %v1113, 0
      %v1164 = vsel %vm1147, %v1114, 0
      %v1167 = vsel %vm1147, %v1115, 0
      %v1170 = vsel %vm1147, %v1116, 0
      %v1173 = vsel %vm1147, %v1117, 0
      %v1176 = vsel %vm1147, %v1118, 0
      %v1179 = vsel %vm1147, %v1119, 0
      %v1182 = vsel %vm1147, %v1120, 0
      %v1185 = vsel %vm1147, %v1121, 0
      %v1188 = vsel %vm1147, %v1122, 0
      %v1191 = vsel %vm1147, %v1123, 0
      %v1194 = vsel %vm1147, %v1124, 0
      %v1197 = vsel %vm1147, %v1125, 0
      %v1200 = vsel %vm1147, %v1126, 0
      %v1203 = vsel %vm1147, %v1127, 0
      %v1206 = vsel %vm1147, %v1128, 0
      %v1209 = vsel %vm1147, %v1129, 0
      %v1212 = vsel %vm1147, %v1130, 0
      %v1215 = vsel %vm1147, %v1131, 0
      %v1218 = vsel %vm1147, %v1132, 0
      %v1221 = vsel %vm1147, %v1133, 0
      %v1224 = vsel %vm1147, %v1134, 0
      %v1227 = vsel %vm1147, %v1135, 0
      %v1230 = vsel %vm1147, %v1136, 0
      %v1233 = vsel %vm1147, %v1137, 0
      %v1236 = vsel %vm1147, %v1138, 0
      %v1239 = vsel %vm1147, %v1139, 0
      %v1242 = vsel %vm1147, %v1140, 0
      %vm1244 = vcmask 1043456
      %v1246 = vsel %vm1244, %v1107, 0
      %1248 = vmatprep.subr.bf16.mxu0 0
      %1249 = vmatpush1.bf16.msra.mxu0 %v1246
      %1250 = vmatprep.subr.bf16.mxu0 0
      %1251 = vmatpush1.bf16.msra.mxu0 0
      %1252 = vmatprep.subr.bf16.mxu0 0
      %1253 = vmatpush1.bf16.msra.mxu0 0
      %1254 = vmatprep.subr.bf16.mxu0 0
      %1255 = vmatpush1.bf16.msra.mxu0 0
      %1256 = vmatprep.subr.bf16.mxu0 0
      %1257 = vmatpush1.bf16.msra.mxu0 0
      %1258 = vmatprep.subr.bf16.mxu0 0
      %1259 = vmatpush1.bf16.msra.mxu0 0
      %1260 = vmatprep.subr.bf16.mxu0 0
      %1261 = vmatpush1.bf16.msra.mxu0 0
      %1262 = vmatprep.subr.bf16.mxu0 0
      %1263 = vmatpush1.bf16.msra.mxu0 0
      %1264 = vmatprep.subr.bf16.mxu0 0
      %1265 = vmatpush1.bf16.msra.mxu0 0
      %1266 = vmatprep.subr.bf16.mxu0 0
      %1267 = vmatpush1.bf16.msra.mxu0 0
      %1268 = vmatprep.subr.bf16.mxu0 0
      %1269 = vmatpush1.bf16.msra.mxu0 0
      %1270 = vmatprep.subr.bf16.mxu0 0
      %1271 = vmatpush1.bf16.msra.mxu0 0
      %1272 = vmatprep.subr.bf16.mxu0 0
      %1273 = vmatpush1.bf16.msra.mxu0 0
      %1274 = vmatprep.subr.bf16.mxu0 0
      %1275 = vmatpush1.bf16.msra.mxu0 0
      %1276 = vmatprep.subr.bf16.mxu0 0
      %1277 = vmatpush1.bf16.msra.mxu0 0
      %1278 = vmatprep.subr.bf16.mxu0 0
      %1279 = vmatpush1.bf16.msra.mxu0 0
      %1280 = vmatprep.mubr.bf16.mxu0 0
      %1281 = vmatmul.mubr.bf16.gmra.mrb[0].mxu0 %v1149
      %v1282 = vpop.f32.mrb[0].mxu0
      %v1283 = vadd.f32 %v1145, %v1282
      %v1284 = vpop.f32.mrb[0].mxu0
      %v1285 = vpop.f32.mrb[0].mxu0
      %v1286 = vadd.f32 %v1145, %v1285
      %v1287 = vpop.f32.mrb[0].mxu0
      %1288 = vmatprep.mubr.bf16.mxu0 0
      %1289 = vmatmul.mubr.bf16.gmra.mrb[0].mxu0 %v1152
      %v1290 = vpop.f32.mrb[0].mxu0
      %v1291 = vadd.f32 %v1145, %v1290
      %v1292 = vpop.f32.mrb[0].mxu0
      %v1293 = vpop.f32.mrb[0].mxu0
      %v1294 = vadd.f32 %v1145, %v1293
      %v1295 = vpop.f32.mrb[0].mxu0
      %1296 = vmatprep.mubr.bf16.mxu0 0
      %1297 = vmatmul.mubr.bf16.gmra.mrb[0].mxu0 %v1155
      %v1298 = vpop.f32.mrb[0].mxu0
      %v1299 = vadd.f32 %v1145, %v1298
      %v1300 = vpop.f32.mrb[0].mxu0
      %v1301 = vpop.f32.mrb[0].mxu0
      %v1302 = vadd.f32 %v1145, %v1301
      %v1303 = vpop.f32.mrb[0].mxu0
      %1304 = vmatprep.mubr.bf16.mxu0 0
      %1305 = vmatmul.mubr.bf16.gmra.mrb[0].mxu0 %v1158
      %v1306 = vpop.f32.mrb[0].mxu0
      %v1307 = vadd.f32 %v1145, %v1306
      %v1308 = vpop.f32.mrb[0].mxu0
      %v1309 = vpop.f32.mrb[0].mxu0
      %v1310 = vadd.f32 %v1145, %v1309
      %v1311 = vpop.f32.mrb[0].mxu0
      %1312 = vmatprep.mubr.bf16.mxu0 0
      %1313 = vmatmul.mubr.bf16.gmra.mrb[0].mxu0 %v1161
      %v1314 = vpop.f32.mrb[0].mxu0
      %v1315 = vadd.f32 %v1145, %v1314
      %v1316 = vpop.f32.mrb[0].mxu0
      %v1317 = vpop.f32.mrb[0].mxu0
      %v1318 = vadd.f32 %v1145, %v1317
      %v1319 = vpop.f32.mrb[0].mxu0
      %1320 = vmatprep.mubr.bf16.mxu0 0
      %1321 = vmatmul.mubr.bf16.gmra.mrb[0].mxu0 %v1164
      %v1322 = vpop.f32.mrb[0].mxu0
      %v1323 = vadd.f32 %v1145, %v1322
      %v1324 = vpop.f32.mrb[0].mxu0
      %v1325 = vpop.f32.mrb[0].mxu0
      %v1326 = vadd.f32 %v1145, %v1325
      %v1327 = vpop.f32.mrb[0].mxu0
      %1328 = vmatprep.mubr.bf16.mxu0 0
      %1329 = vmatmul.mubr.bf16.gmra.mrb[0].mxu0 %v1167
      %v1330 = vpop.f32.mrb[0].mxu0
      %v1331 = vadd.f32 %v1145, %v1330
      %v1332 = vpop.f32.mrb[0].mxu0
      %v1333 = vpop.f32.mrb[0].mxu0
      %v1334 = vadd.f32 %v1145, %v1333
      %v1335 = vpop.f32.mrb[0].mxu0
      %1336 = vmatprep.mubr.bf16.mxu0 0
      %1337 = vmatmul.mubr.bf16.gmra.mrb[0].mxu0 %v1170
      %v1338 = vpop.f32.mrb[0].mxu0
      %v1339 = vadd.f32 %v1145, %v1338
      %v1340 = vpop.f32.mrb[0].mxu0
      %v1341 = vpop.f32.mrb[0].mxu0
      %v1342 = vadd.f32 %v1145, %v1341
      %v1343 = vpop.f32.mrb[0].mxu0
      %1344 = vmatprep.mubr.bf16.mxu0 0
      %1345 = vmatmul.mubr.bf16.gmra.mrb[0].mxu0 %v1173
      %v1346 = vpop.f32.mrb[0].mxu0
      %v1347 = vadd.f32 %v1145, %v1346
      %v1348 = vpop.f32.mrb[0].mxu0
      %v1349 = vpop.f32.mrb[0].mxu0
      %v1350 = vadd.f32 %v1145, %v1349
      %v1351 = vpop.f32.mrb[0].mxu0
      %1352 = vmatprep.mubr.bf16.mxu0 0
      %1353 = vmatmul.mubr.bf16.gmra.mrb[0].mxu0 %v1176
      %v1354 = vpop.f32.mrb[0].mxu0
      %v1355 = vadd.f32 %v1145, %v1354
      %v1356 = vpop.f32.mrb[0].mxu0
      %v1357 = vpop.f32.mrb[0].mxu0
      %v1358 = vadd.f32 %v1145, %v1357
      %v1359 = vpop.f32.mrb[0].mxu0
      %1360 = vmatprep.mubr.bf16.mxu0 0
      %1361 = vmatmul.mubr.bf16.gmra.mrb[0].mxu0 %v1179
      %v1362 = vpop.f32.mrb[0].mxu0
      %v1363 = vadd.f32 %v1145, %v1362
      %v1364 = vpop.f32.mrb[0].mxu0
      %v1365 = vpop.f32.mrb[0].mxu0
      %v1366 = vadd.f32 %v1145, %v1365
      %v1367 = vpop.f32.mrb[0].mxu0
      %1368 = vmatprep.mubr.bf16.mxu0 0
      %1369 = vmatmul.mubr.bf16.gmra.mrb[0].mxu0 %v1182
      %v1370 = vpop.f32.mrb[0].mxu0
      %v1371 = vadd.f32 %v1145, %v1370
      %v1372 = vpop.f32.mrb[0].mxu0
      %v1373 = vpop.f32.mrb[0].mxu0
      %v1374 = vadd.f32 %v1145, %v1373
      %v1375 = vpop.f32.mrb[0].mxu0
      %1376 = vmatprep.mubr.bf16.mxu0 0
      %1377 = vmatmul.mubr.bf16.gmra.mrb[0].mxu0 %v1185
      %v1378 = vpop.f32.mrb[0].mxu0
      %v1379 = vadd.f32 %v1145, %v1378
      %v1380 = vpop.f32.mrb[0].mxu0
      %v1381 = vpop.f32.mrb[0].mxu0
      %v1382 = vadd.f32 %v1145, %v1381
      %v1383 = vpop.f32.mrb[0].mxu0
      %1384 = vmatprep.mubr.bf16.mxu0 0
      %1385 = vmatmul.mubr.bf16.gmra.mrb[0].mxu0 %v1188
      %v1386 = vpop.f32.mrb[0].mxu0
      %v1387 = vadd.f32 %v1145, %v1386
      %v1388 = vpop.f32.mrb[0].mxu0
      %v1389 = vpop.f32.mrb[0].mxu0
      %v1390 = vadd.f32 %v1145, %v1389
      %v1391 = vpop.f32.mrb[0].mxu0
      %1392 = vmatprep.mubr.bf16.mxu0 0
      %1393 = vmatmul.mubr.bf16.gmra.mrb[0].mxu0 %v1191
      %v1394 = vpop.f32.mrb[0].mxu0
      %v1395 = vadd.f32 %v1145, %v1394
      %v1396 = vpop.f32.mrb[0].mxu0
      %v1397 = vpop.f32.mrb[0].mxu0
      %v1398 = vadd.f32 %v1145, %v1397
      %v1399 = vpop.f32.mrb[0].mxu0
      %1400 = vmatprep.mubr.bf16.mxu0 0
      %1401 = vmatmul.mubr.bf16.gmra.mrb[0].mxu0 %v1194
      %v1402 = vpop.f32.mrb[0].mxu0
      %v1403 = vadd.f32 %v1145, %v1402
      %v1404 = vpop.f32.mrb[0].mxu0
      %v1405 = vpop.f32.mrb[0].mxu0
      %v1406 = vadd.f32 %v1145, %v1405
      %v1407 = vpop.f32.mrb[0].mxu0
      %1408 = vmatprep.mubr.bf16.mxu0 0
      %1409 = vmatmul.mubr.bf16.gmra.mrb[0].mxu0 %v1197
      %v1410 = vpop.f32.mrb[0].mxu0
      %v1411 = vadd.f32 %v1145, %v1410
      %v1412 = vpop.f32.mrb[0].mxu0
      %v1413 = vpop.f32.mrb[0].mxu0
      %v1414 = vadd.f32 %v1145, %v1413
      %v1415 = vpop.f32.mrb[0].mxu0
      %1416 = vmatprep.mubr.bf16.mxu0 0
      %1417 = vmatmul.mubr.bf16.gmra.mrb[0].mxu0 %v1200
      %v1418 = vpop.f32.mrb[0].mxu0
      %v1419 = vadd.f32 %v1145, %v1418
      %v1420 = vpop.f32.mrb[0].mxu0
      %v1421 = vpop.f32.mrb[0].mxu0
      %v1422 = vadd.f32 %v1145, %v1421
      %v1423 = vpop.f32.mrb[0].mxu0
      %1424 = vmatprep.mubr.bf16.mxu0 0
      %1425 = vmatmul.mubr.bf16.gmra.mrb[0].mxu0 %v1203
      %v1426 = vpop.f32.mrb[0].mxu0
      %v1427 = vadd.f32 %v1145, %v1426
      %v1428 = vpop.f32.mrb[0].mxu0
      %v1429 = vpop.f32.mrb[0].mxu0
      %v1430 = vadd.f32 %v1145, %v1429
      %v1431 = vpop.f32.mrb[0].mxu0
      %1432 = vmatprep.mubr.bf16.mxu0 0
      %1433 = vmatmul.mubr.bf16.gmra.mrb[0].mxu0 %v1206
      %v1434 = vpop.f32.mrb[0].mxu0
      %v1435 = vadd.f32 %v1145, %v1434
      %v1436 = vpop.f32.mrb[0].mxu0
      %v1437 = vpop.f32.mrb[0].mxu0
      %v1438 = vadd.f32 %v1145, %v1437
      %v1439 = vpop.f32.mrb[0].mxu0
      %1440 = vmatprep.mubr.bf16.mxu0 0
      %1441 = vmatmul.mubr.bf16.gmra.mrb[0].mxu0 %v1209
      %v1442 = vpop.f32.mrb[0].mxu0
      %v1443 = vadd.f32 %v1145, %v1442
      %v1444 = vpop.f32.mrb[0].mxu0
      %v1445 = vpop.f32.mrb[0].mxu0
      %v1446 = vadd.f32 %v1145, %v1445
      %v1447 = vpop.f32.mrb[0].mxu0
      %1448 = vmatprep.mubr.bf16.mxu0 0
      %1449 = vmatmul.mubr.bf16.gmra.mrb[0].mxu0 %v1212
      %v1450 = vpop.f32.mrb[0].mxu0
      %v1451 = vadd.f32 %v1145, %v1450
      %v1452 = vpop.f32.mrb[0].mxu0
      %v1453 = vpop.f32.mrb[0].mxu0
      %v1454 = vadd.f32 %v1145, %v1453
      %v1455 = vpop.f32.mrb[0].mxu0
      %1456 = vmatprep.mubr.bf16.mxu0 0
      %1457 = vmatmul.mubr.bf16.gmra.mrb[0].mxu0 %v1215
      %v1458 = vpop.f32.mrb[0].mxu0
      %v1459 = vadd.f32 %v1145, %v1458
      %v1460 = vpop.f32.mrb[0].mxu0
      %v1461 = vpop.f32.mrb[0].mxu0
      %v1462 = vadd.f32 %v1145, %v1461
      %v1463 = vpop.f32.mrb[0].mxu0
      %1464 = vmatprep.mubr.bf16.mxu0 0
      %1465 = vmatmul.mubr.bf16.gmra.mrb[0].mxu0 %v1218
      %v1466 = vpop.f32.mrb[0].mxu0
      %v1467 = vadd.f32 %v1145, %v1466
      %v1468 = vpop.f32.mrb[0].mxu0
      %v1469 = vpop.f32.mrb[0].mxu0
      %v1470 = vadd.f32 %v1145, %v1469
      %v1471 = vpop.f32.mrb[0].mxu0
      %1472 = vmatprep.mubr.bf16.mxu0 0
      %1473 = vmatmul.mubr.bf16.gmra.mrb[0].mxu0 %v1221
      %v1474 = vpop.f32.mrb[0].mxu0
      %v1475 = vadd.f32 %v1145, %v1474
      %v1476 = vpop.f32.mrb[0].mxu0
      %v1477 = vpop.f32.mrb[0].mxu0
      %v1478 = vadd.f32 %v1145, %v1477
      %v1479 = vpop.f32.mrb[0].mxu0
      %1480 = vmatprep.mubr.bf16.mxu0 0
      %1481 = vmatmul.mubr.bf16.gmra.mrb[0].mxu0 %v1224
      %v1482 = vpop.f32.mrb[0].mxu0
      %v1483 = vadd.f32 %v1145, %v1482
      %v1484 = vpop.f32.mrb[0].mxu0
      %v1485 = vpop.f32.mrb[0].mxu0
      %v1486 = vadd.f32 %v1145, %v1485
      %v1487 = vpop.f32.mrb[0].mxu0
      %1488 = vmatprep.mubr.bf16.mxu0 0
      %1489 = vmatmul.mubr.bf16.gmra.mrb[0].mxu0 %v1227
      %v1490 = vpop.f32.mrb[0].mxu0
      %v1491 = vadd.f32 %v1145, %v1490
      %v1492 = vpop.f32.mrb[0].mxu0
      %v1493 = vpop.f32.mrb[0].mxu0
      %v1494 = vadd.f32 %v1145, %v1493
      %v1495 = vpop.f32.mrb[0].mxu0
      %1496 = vmatprep.mubr.bf16.mxu0 0
      %1497 = vmatmul.mubr.bf16.gmra.mrb[0].mxu0 %v1230
      %v1498 = vpop.f32.mrb[0].mxu0
      %v1499 = vadd.f32 %v1145, %v1498
      %v1500 = vpop.f32.mrb[0].mxu0
      %v1501 = vpop.f32.mrb[0].mxu0
      %v1502 = vadd.f32 %v1145, %v1501
      %v1503 = vpop.f32.mrb[0].mxu0
      %1504 = vmatprep.mubr.bf16.mxu0 0
      %1505 = vmatmul.mubr.bf16.gmra.mrb[0].mxu0 %v1233
      %v1506 = vpop.f32.mrb[0].mxu0
      %v1507 = vadd.f32 %v1145, %v1506
      %v1508 = vpop.f32.mrb[0].mxu0
      %v1509 = vpop.f32.mrb[0].mxu0
      %v1510 = vadd.f32 %v1145, %v1509
      %v1511 = vpop.f32.mrb[0].mxu0
      %1512 = vmatprep.mubr.bf16.mxu0 0
      %1513 = vmatmul.mubr.bf16.gmra.mrb[0].mxu0 %v1236
      %v1514 = vpop.f32.mrb[0].mxu0
      %v1515 = vadd.f32 %v1145, %v1514
      %v1516 = vpop.f32.mrb[0].mxu0
      %v1517 = vpop.f32.mrb[0].mxu0
      %v1518 = vadd.f32 %v1145, %v1517
      %v1519 = vpop.f32.mrb[0].mxu0
      %1520 = vmatprep.mubr.bf16.mxu0 0
      %1521 = vmatmul.mubr.bf16.gmra.mrb[0].mxu0 %v1239
      %v1522 = vpop.f32.mrb[0].mxu0
      %v1523 = vadd.f32 %v1145, %v1522
      %v1524 = vpop.f32.mrb[0].mxu0
      %v1525 = vpop.f32.mrb[0].mxu0
      %v1526 = vadd.f32 %v1145, %v1525
      %v1527 = vpop.f32.mrb[0].mxu0
      %1528 = vmatprep.mubr.bf16.mxu0 0
      %1529 = vmatmul.mubr.bf16.gmra.mrb[0].mxu0 %v1242
      %v1530 = vpop.f32.mrb[0].mxu0
      %v1531 = vadd.f32 %v1145, %v1530
      %v1532 = vpop.f32.mrb[0].mxu0
      %v1533 = vpop.f32.mrb[0].mxu0
      %v1534 = vadd.f32 %v1145, %v1533
      %v1535 = vpop.f32.mrb[0].mxu0
      %1536 = vdwg.mxu0
      %v1537 = vld [vmem:[%s961] sm:$0xf]
      %v1538 = vld [vmem:[%s961 + $0x4] sm:$0xf]
      %v1539 = vld [vmem:[%s961 + $0x8] sm:$0xf]
      %v1540 = vld [vmem:[%s961 + $0xc] sm:$0xf]
      %v1541 = vld [vmem:[%s964] sm:$0x1]
      %v1542 = vmax.f32 %v1283, 0.0
      %v1543 = vmax.f32 %v1286, 0.0
      %v1544 = vmax.f32 %v1291, 0.0
      %v1545 = vmax.f32 %v1294, 0.0
      %v1546 = vmax.f32 %v1299, 0.0
      %v1547 = vmax.f32 %v1302, 0.0
      %v1548 = vmax.f32 %v1307, 0.0
      %v1549 = vmax.f32 %v1310, 0.0
      %v1550 = vmax.f32 %v1315, 0.0
      %v1551 = vmax.f32 %v1318, 0.0
      %v1552 = vmax.f32 %v1323, 0.0
      %v1553 = vmax.f32 %v1326, 0.0
      %v1554 = vmax.f32 %v1331, 0.0
      %v1555 = vmax.f32 %v1334, 0.0
      %v1556 = vmax.f32 %v1339, 0.0
      %v1557 = vmax.f32 %v1342, 0.0
      %v1558 = vmax.f32 %v1347, 0.0
      %v1559 = vmax.f32 %v1350, 0.0
      %v1560 = vmax.f32 %v1355, 0.0
      %v1561 = vmax.f32 %v1358, 0.0
      %v1562 = vmax.f32 %v1363, 0.0
      %v1563 = vmax.f32 %v1366, 0.0
      %v1564 = vmax.f32 %v1371, 0.0
      %v1565 = vmax.f32 %v1374, 0.0
      %v1566 = vmax.f32 %v1379, 0.0
      %v1567 = vmax.f32 %v1382, 0.0
      %v1568 = vmax.f32 %v1387, 0.0
      %v1569 = vmax.f32 %v1390, 0.0
      %v1570 = vmax.f32 %v1395, 0.0
      %v1571 = vmax.f32 %v1398, 0.0
      %v1572 = vmax.f32 %v1403, 0.0
      %v1573 = vmax.f32 %v1406, 0.0
      %v1574 = vmax.f32 %v1411, 0.0
      %v1575 = vmax.f32 %v1414, 0.0
      %v1576 = vmax.f32 %v1419, 0.0
      %v1577 = vmax.f32 %v1422, 0.0
      %v1578 = vmax.f32 %v1427, 0.0
      %v1579 = vmax.f32 %v1430, 0.0
      %v1580 = vmax.f32 %v1435, 0.0
      %v1581 = vmax.f32 %v1438, 0.0
      %v1582 = vmax.f32 %v1443, 0.0
      %v1583 = vmax.f32 %v1446, 0.0
      %v1584 = vmax.f32 %v1451, 0.0
      %v1585 = vmax.f32 %v1454, 0.0
      %v1586 = vmax.f32 %v1459, 0.0
      %v1587 = vmax.f32 %v1462, 0.0
      %v1588 = vmax.f32 %v1467, 0.0
      %v1589 = vmax.f32 %v1470, 0.0
      %v1590 = vmax.f32 %v1475, 0.0
      %v1591 = vmax.f32 %v1478, 0.0
      %v1592 = vmax.f32 %v1483, 0.0
      %v1593 = vmax.f32 %v1486, 0.0
      %v1594 = vmax.f32 %v1491, 0.0
      %v1595 = vmax.f32 %v1494, 0.0
      %v1596 = vmax.f32 %v1499, 0.0
      %v1597 = vmax.f32 %v1502, 0.0
      %v1598 = vmax.f32 %v1507, 0.0
      %v1599 = vmax.f32 %v1510, 0.0
      %v1600 = vmax.f32 %v1515, 0.0
      %v1601 = vmax.f32 %v1518, 0.0
      %v1602 = vmax.f32 %v1523, 0.0
      %v1603 = vmax.f32 %v1526, 0.0
      %v1604 = vmax.f32 %v1531, 0.0
      %v1605 = vmax.f32 %v1534, 0.0
      %v1606 = vpack.c.bf16 %v1543, %v1542
      %v1607 = vpack.c.bf16 %v1545, %v1544
      %v1608 = vpack.c.bf16 %v1547, %v1546
      %v1609 = vpack.c.bf16 %v1549, %v1548
      %v1610 = vpack.c.bf16 %v1551, %v1550
      %v1611 = vpack.c.bf16 %v1553, %v1552
      %v1612 = vpack.c.bf16 %v1555, %v1554
      %v1613 = vpack.c.bf16 %v1557, %v1556
      %v1614 = vpack.c.bf16 %v1559, %v1558
      %v1615 = vpack.c.bf16 %v1561, %v1560
      %v1616 = vpack.c.bf16 %v1563, %v1562
      %v1617 = vpack.c.bf16 %v1565, %v1564
      %v1618 = vpack.c.bf16 %v1567, %v1566
      %v1619 = vpack.c.bf16 %v1569, %v1568
      %v1620 = vpack.c.bf16 %v1571, %v1570
      %v1621 = vpack.c.bf16 %v1573, %v1572
      %v1622 = vpack.c.bf16 %v1575, %v1574
      %v1623 = vpack.c.bf16 %v1577, %v1576
      %v1624 = vpack.c.bf16 %v1579, %v1578
      %v1625 = vpack.c.bf16 %v1581, %v1580
      %v1626 = vpack.c.bf16 %v1583, %v1582
      %v1627 = vpack.c.bf16 %v1585, %v1584
      %v1628 = vpack.c.bf16 %v1587, %v1586
      %v1629 = vpack.c.bf16 %v1589, %v1588
      %v1630 = vpack.c.bf16 %v1591, %v1590
      %v1631 = vpack.c.bf16 %v1593, %v1592
      %v1632 = vpack.c.bf16 %v1595, %v1594
      %v1633 = vpack.c.bf16 %v1597, %v1596
      %v1634 = vpack.c.bf16 %v1599, %v1598
      %v1635 = vpack.c.bf16 %v1601, %v1600
      %v1636 = vpack.c.bf16 %v1603, %v1602
      %v1637 = vpack.c.bf16 %v1605, %v1604
      %v1639 = vlaneseq
      %v1640 = vshrl.u32 %v1639, 7
      %v1641 = vsub.s32 0, %v1640
      %v1642 = vrot.slane %v1541, %v1641
      %v1648 = vunpack.c.l.b16 %v1537
      %v1649 = vunpack.c.l.b16 %v1538
      %v1650 = vunpack.c.l.b16 %v1539
      %v1651 = vunpack.c.l.b16 %v1540
      %v1652 = vpack.c.b16 %v1649, %v1648
      %v1653 = vpack.c.b16 %v1651, %v1650
      %vm1656 = vcmask 261120
      %v1658 = vsel %vm1656, %v1606, 0
      %v1661 = vsel %vm1656, %v1607, 0
      %v1664 = vsel %vm1656, %v1608, 0
      %v1667 = vsel %vm1656, %v1609, 0
      %v1670 = vsel %vm1656, %v1610, 0
      %v1673 = vsel %vm1656, %v1611, 0
      %v1676 = vsel %vm1656, %v1612, 0
      %v1679 = vsel %vm1656, %v1613, 0
      %v1682 = vsel %vm1656, %v1614, 0
      %v1685 = vsel %vm1656, %v1615, 0
      %v1688 = vsel %vm1656, %v1616, 0
      %v1691 = vsel %vm1656, %v1617, 0
      %v1694 = vsel %vm1656, %v1618, 0
      %v1697 = vsel %vm1656, %v1619, 0
      %v1700 = vsel %vm1656, %v1620, 0
      %v1703 = vsel %vm1656, %v1621, 0
      %v1706 = vsel %vm1656, %v1622, 0
      %v1709 = vsel %vm1656, %v1623, 0
      %v1712 = vsel %vm1656, %v1624, 0
      %v1715 = vsel %vm1656, %v1625, 0
      %v1718 = vsel %vm1656, %v1626, 0
      %v1721 = vsel %vm1656, %v1627, 0
      %v1724 = vsel %vm1656, %v1628, 0
      %v1727 = vsel %vm1656, %v1629, 0
      %v1730 = vsel %vm1656, %v1630, 0
      %v1733 = vsel %vm1656, %v1631, 0
      %v1736 = vsel %vm1656, %v1632, 0
      %v1739 = vsel %vm1656, %v1633, 0
      %v1742 = vsel %vm1656, %v1634, 0
      %v1745 = vsel %vm1656, %v1635, 0
      %v1748 = vsel %vm1656, %v1636, 0
      %v1751 = vsel %vm1656, %v1637, 0
      %1753 = vmatprep.subr.bf16.mxu0 0
      %1754 = vmatpush1.bf16.msra.mxu0 %v1652
      %1755 = vmatprep.subr.bf16.mxu0 0
      %1756 = vmatpush1.bf16.msra.mxu0 %v1653
      %1757 = vmatprep.subr.bf16.mxu0 0
      %1758 = vmatpush1.bf16.msra.mxu0 0
      %1759 = vmatprep.subr.bf16.mxu0 0
      %1760 = vmatpush1.bf16.msra.mxu0 0
      %1761 = vmatprep.subr.bf16.mxu0 0
      %1762 = vmatpush1.bf16.msra.mxu0 0
      %1763 = vmatprep.subr.bf16.mxu0 0
      %1764 = vmatpush1.bf16.msra.mxu0 0
      %1765 = vmatprep.subr.bf16.mxu0 0
      %1766 = vmatpush1.bf16.msra.mxu0 0
      %1767 = vmatprep.subr.bf16.mxu0 0
      %1768 = vmatpush1.bf16.msra.mxu0 0
      %1769 = vmatprep.subr.bf16.mxu0 0
      %1770 = vmatpush1.bf16.msra.mxu0 0
      %1771 = vmatprep.subr.bf16.mxu0 0
      %1772 = vmatpush1.bf16.msra.mxu0 0
      %1773 = vmatprep.subr.bf16.mxu0 0
      %1774 = vmatpush1.bf16.msra.mxu0 0
      %1775 = vmatprep.subr.bf16.mxu0 0
      %1776 = vmatpush1.bf16.msra.mxu0 0
      %1777 = vmatprep.subr.bf16.mxu0 0
      %1778 = vmatpush1.bf16.msra.mxu0 0
      %1779 = vmatprep.subr.bf16.mxu0 0
      %1780 = vmatpush1.bf16.msra.mxu0 0
      %1781 = vmatprep.subr.bf16.mxu0 0
      %1782 = vmatpush1.bf16.msra.mxu0 0
      %1783 = vmatprep.subr.bf16.mxu0 0
      %1784 = vmatpush1.bf16.msra.mxu0 0
      %1785 = vmatprep.mubr.bf16.mxu0 0
      %1786 = vmatmul.mubr.bf16.gmra.mrb[0].mxu0 %v1658
      %v1787 = vpop.f32.mrb[0].mxu0
      %v1788 = vadd.f32 %v1642, %v1787
      %v1789 = vpop.f32.mrb[0].mxu0
      %v1790 = vpop.f32.mrb[0].mxu0
      %v1791 = vadd.f32 %v1642, %v1790
      %v1792 = vpop.f32.mrb[0].mxu0
      %1793 = vmatprep.mubr.bf16.mxu0 0
      %1794 = vmatmul.mubr.bf16.gmra.mrb[0].mxu0 %v1661
      %v1795 = vpop.f32.mrb[0].mxu0
      %v1796 = vadd.f32 %v1642, %v1795
      %v1797 = vpop.f32.mrb[0].mxu0
      %v1798 = vpop.f32.mrb[0].mxu0
      %v1799 = vadd.f32 %v1642, %v1798
      %v1800 = vpop.f32.mrb[0].mxu0
      %1801 = vmatprep.mubr.bf16.mxu0 0
      %1802 = vmatmul.mubr.bf16.gmra.mrb[0].mxu0 %v1664
      %v1803 = vpop.f32.mrb[0].mxu0
      %v1804 = vadd.f32 %v1642, %v1803
      %v1805 = vpop.f32.mrb[0].mxu0
      %v1806 = vpop.f32.mrb[0].mxu0
      %v1807 = vadd.f32 %v1642, %v1806
      %v1808 = vpop.f32.mrb[0].mxu0
      %1809 = vmatprep.mubr.bf16.mxu0 0
      %1810 = vmatmul.mubr.bf16.gmra.mrb[0].mxu0 %v1667
      %v1811 = vpop.f32.mrb[0].mxu0
      %v1812 = vadd.f32 %v1642, %v1811
      %v1813 = vpop.f32.mrb[0].mxu0
      %v1814 = vpop.f32.mrb[0].mxu0
      %v1815 = vadd.f32 %v1642, %v1814
      %v1816 = vpop.f32.mrb[0].mxu0
      %1817 = vmatprep.mubr.bf16.mxu0 0
      %1818 = vmatmul.mubr.bf16.gmra.mrb[0].mxu0 %v1670
      %v1819 = vpop.f32.mrb[0].mxu0
      %v1820 = vadd.f32 %v1642, %v1819
      %v1821 = vpop.f32.mrb[0].mxu0
      %v1822 = vpop.f32.mrb[0].mxu0
      %v1823 = vadd.f32 %v1642, %v1822
      %v1824 = vpop.f32.mrb[0].mxu0
      %1825 = vmatprep.mubr.bf16.mxu0 0
      %1826 = vmatmul.mubr.bf16.gmra.mrb[0].mxu0 %v1673
      %v1827 = vpop.f32.mrb[0].mxu0
      %v1828 = vadd.f32 %v1642, %v1827
      %v1829 = vpop.f32.mrb[0].mxu0
      %v1830 = vpop.f32.mrb[0].mxu0
      %v1831 = vadd.f32 %v1642, %v1830
      %v1832 = vpop.f32.mrb[0].mxu0
      %1833 = vmatprep.mubr.bf16.mxu0 0
      %1834 = vmatmul.mubr.bf16.gmra.mrb[0].mxu0 %v1676
      %v1835 = vpop.f32.mrb[0].mxu0
      %v1836 = vadd.f32 %v1642, %v1835
      %v1837 = vpop.f32.mrb[0].mxu0
      %v1838 = vpop.f32.mrb[0].mxu0
      %v1839 = vadd.f32 %v1642, %v1838
      %v1840 = vpop.f32.mrb[0].mxu0
      %1841 = vmatprep.mubr.bf16.mxu0 0
      %1842 = vmatmul.mubr.bf16.gmra.mrb[0].mxu0 %v1679
      %v1843 = vpop.f32.mrb[0].mxu0
      %v1844 = vadd.f32 %v1642, %v1843
      %v1845 = vpop.f32.mrb[0].mxu0
      %v1846 = vpop.f32.mrb[0].mxu0
      %v1847 = vadd.f32 %v1642, %v1846
      %v1848 = vpop.f32.mrb[0].mxu0
      %1849 = vmatprep.mubr.bf16.mxu0 0
      %1850 = vmatmul.mubr.bf16.gmra.mrb[0].mxu0 %v1682
      %v1851 = vpop.f32.mrb[0].mxu0
      %v1852 = vadd.f32 %v1642, %v1851
      %v1853 = vpop.f32.mrb[0].mxu0
      %v1854 = vpop.f32.mrb[0].mxu0
      %v1855 = vadd.f32 %v1642, %v1854
      %v1856 = vpop.f32.mrb[0].mxu0
      %1857 = vmatprep.mubr.bf16.mxu0 0
      %1858 = vmatmul.mubr.bf16.gmra.mrb[0].mxu0 %v1685
      %v1859 = vpop.f32.mrb[0].mxu0
      %v1860 = vadd.f32 %v1642, %v1859
      %v1861 = vpop.f32.mrb[0].mxu0
      %v1862 = vpop.f32.mrb[0].mxu0
      %v1863 = vadd.f32 %v1642, %v1862
      %v1864 = vpop.f32.mrb[0].mxu0
      %1865 = vmatprep.mubr.bf16.mxu0 0
      %1866 = vmatmul.mubr.bf16.gmra.mrb[0].mxu0 %v1688
      %v1867 = vpop.f32.mrb[0].mxu0
      %v1868 = vadd.f32 %v1642, %v1867
      %v1869 = vpop.f32.mrb[0].mxu0
      %v1870 = vpop.f32.mrb[0].mxu0
      %v1871 = vadd.f32 %v1642, %v1870
      %v1872 = vpop.f32.mrb[0].mxu0
      %1873 = vmatprep.mubr.bf16.mxu0 0
      %1874 = vmatmul.mubr.bf16.gmra.mrb[0].mxu0 %v1691
      %v1875 = vpop.f32.mrb[0].mxu0
      %v1876 = vadd.f32 %v1642, %v1875
      %v1877 = vpop.f32.mrb[0].mxu0
      %v1878 = vpop.f32.mrb[0].mxu0
      %v1879 = vadd.f32 %v1642, %v1878
      %v1880 = vpop.f32.mrb[0].mxu0
      %1881 = vmatprep.mubr.bf16.mxu0 0
      %1882 = vmatmul.mubr.bf16.gmra.mrb[0].mxu0 %v1694
      %v1883 = vpop.f32.mrb[0].mxu0
      %v1884 = vadd.f32 %v1642, %v1883
      %v1885 = vpop.f32.mrb[0].mxu0
      %v1886 = vpop.f32.mrb[0].mxu0
      %v1887 = vadd.f32 %v1642, %v1886
      %v1888 = vpop.f32.mrb[0].mxu0
      %1889 = vmatprep.mubr.bf16.mxu0 0
      %1890 = vmatmul.mubr.bf16.gmra.mrb[0].mxu0 %v1697
      %v1891 = vpop.f32.mrb[0].mxu0
      %v1892 = vadd.f32 %v1642, %v1891
      %v1893 = vpop.f32.mrb[0].mxu0
      %v1894 = vpop.f32.mrb[0].mxu0
      %v1895 = vadd.f32 %v1642, %v1894
      %v1896 = vpop.f32.mrb[0].mxu0
      %1897 = vmatprep.mubr.bf16.mxu0 0
      %1898 = vmatmul.mubr.bf16.gmra.mrb[0].mxu0 %v1700
      %v1899 = vpop.f32.mrb[0].mxu0
      %v1900 = vadd.f32 %v1642, %v1899
      %v1901 = vpop.f32.mrb[0].mxu0
      %v1902 = vpop.f32.mrb[0].mxu0
      %v1903 = vadd.f32 %v1642, %v1902
      %v1904 = vpop.f32.mrb[0].mxu0
      %1905 = vmatprep.mubr.bf16.mxu0 0
      %1906 = vmatmul.mubr.bf16.gmra.mrb[0].mxu0 %v1703
      %v1907 = vpop.f32.mrb[0].mxu0
      %v1908 = vadd.f32 %v1642, %v1907
      %v1909 = vpop.f32.mrb[0].mxu0
      %v1910 = vpop.f32.mrb[0].mxu0
      %v1911 = vadd.f32 %v1642, %v1910
      %v1912 = vpop.f32.mrb[0].mxu0
      %1913 = vmatprep.mubr.bf16.mxu0 0
      %1914 = vmatmul.mubr.bf16.gmra.mrb[0].mxu0 %v1706
      %v1915 = vpop.f32.mrb[0].mxu0
      %v1916 = vadd.f32 %v1642, %v1915
      %v1917 = vpop.f32.mrb[0].mxu0
      %v1918 = vpop.f32.mrb[0].mxu0
      %v1919 = vadd.f32 %v1642, %v1918
      %v1920 = vpop.f32.mrb[0].mxu0
      %1921 = vmatprep.mubr.bf16.mxu0 0
      %1922 = vmatmul.mubr.bf16.gmra.mrb[0].mxu0 %v1709
      %v1923 = vpop.f32.mrb[0].mxu0
      %v1924 = vadd.f32 %v1642, %v1923
      %v1925 = vpop.f32.mrb[0].mxu0
      %v1926 = vpop.f32.mrb[0].mxu0
      %v1927 = vadd.f32 %v1642, %v1926
      %v1928 = vpop.f32.mrb[0].mxu0
      %1929 = vmatprep.mubr.bf16.mxu0 0
      %1930 = vmatmul.mubr.bf16.gmra.mrb[0].mxu0 %v1712
      %v1931 = vpop.f32.mrb[0].mxu0
      %v1932 = vadd.f32 %v1642, %v1931
      %v1933 = vpop.f32.mrb[0].mxu0
      %v1934 = vpop.f32.mrb[0].mxu0
      %v1935 = vadd.f32 %v1642, %v1934
      %v1936 = vpop.f32.mrb[0].mxu0
      %1937 = vmatprep.mubr.bf16.mxu0 0
      %1938 = vmatmul.mubr.bf16.gmra.mrb[0].mxu0 %v1715
      %v1939 = vpop.f32.mrb[0].mxu0
      %v1940 = vadd.f32 %v1642, %v1939
      %v1941 = vpop.f32.mrb[0].mxu0
      %v1942 = vpop.f32.mrb[0].mxu0
      %v1943 = vadd.f32 %v1642, %v1942
      %v1944 = vpop.f32.mrb[0].mxu0
      %1945 = vmatprep.mubr.bf16.mxu0 0
      %1946 = vmatmul.mubr.bf16.gmra.mrb[0].mxu0 %v1718
      %v1947 = vpop.f32.mrb[0].mxu0
      %v1948 = vadd.f32 %v1642, %v1947
      %v1949 = vpop.f32.mrb[0].mxu0
      %v1950 = vpop.f32.mrb[0].mxu0
      %v1951 = vadd.f32 %v1642, %v1950
      %v1952 = vpop.f32.mrb[0].mxu0
      %1953 = vmatprep.mubr.bf16.mxu0 0
      %1954 = vmatmul.mubr.bf16.gmra.mrb[0].mxu0 %v1721
      %v1955 = vpop.f32.mrb[0].mxu0
      %v1956 = vadd.f32 %v1642, %v1955
      %v1957 = vpop.f32.mrb[0].mxu0
      %v1958 = vpop.f32.mrb[0].mxu0
      %v1959 = vadd.f32 %v1642, %v1958
      %v1960 = vpop.f32.mrb[0].mxu0
      %1961 = vmatprep.mubr.bf16.mxu0 0
      %1962 = vmatmul.mubr.bf16.gmra.mrb[0].mxu0 %v1724
      %v1963 = vpop.f32.mrb[0].mxu0
      %v1964 = vadd.f32 %v1642, %v1963
      %v1965 = vpop.f32.mrb[0].mxu0
      %v1966 = vpop.f32.mrb[0].mxu0
      %v1967 = vadd.f32 %v1642, %v1966
      %v1968 = vpop.f32.mrb[0].mxu0
      %1969 = vmatprep.mubr.bf16.mxu0 0
      %1970 = vmatmul.mubr.bf16.gmra.mrb[0].mxu0 %v1727
      %v1971 = vpop.f32.mrb[0].mxu0
      %v1972 = vadd.f32 %v1642, %v1971
      %v1973 = vpop.f32.mrb[0].mxu0
      %v1974 = vpop.f32.mrb[0].mxu0
      %v1975 = vadd.f32 %v1642, %v1974
      %v1976 = vpop.f32.mrb[0].mxu0
      %1977 = vmatprep.mubr.bf16.mxu0 0
      %1978 = vmatmul.mubr.bf16.gmra.mrb[0].mxu0 %v1730
      %v1979 = vpop.f32.mrb[0].mxu0
      %v1980 = vadd.f32 %v1642, %v1979
      %v1981 = vpop.f32.mrb[0].mxu0
      %v1982 = vpop.f32.mrb[0].mxu0
      %v1983 = vadd.f32 %v1642, %v1982
      %v1984 = vpop.f32.mrb[0].mxu0
      %1985 = vmatprep.mubr.bf16.mxu0 0
      %1986 = vmatmul.mubr.bf16.gmra.mrb[0].mxu0 %v1733
      %v1987 = vpop.f32.mrb[0].mxu0
      %v1988 = vadd.f32 %v1642, %v1987
      %v1989 = vpop.f32.mrb[0].mxu0
      %v1990 = vpop.f32.mrb[0].mxu0
      %v1991 = vadd.f32 %v1642, %v1990
      %v1992 = vpop.f32.mrb[0].mxu0
      %1993 = vmatprep.mubr.bf16.mxu0 0
      %1994 = vmatmul.mubr.bf16.gmra.mrb[0].mxu0 %v1736
      %v1995 = vpop.f32.mrb[0].mxu0
      %v1996 = vadd.f32 %v1642, %v1995
      %v1997 = vpop.f32.mrb[0].mxu0
      %v1998 = vpop.f32.mrb[0].mxu0
      %v1999 = vadd.f32 %v1642, %v1998
      %v2000 = vpop.f32.mrb[0].mxu0
      %2001 = vmatprep.mubr.bf16.mxu0 0
      %2002 = vmatmul.mubr.bf16.gmra.mrb[0].mxu0 %v1739
      %v2003 = vpop.f32.mrb[0].mxu0
      %v2004 = vadd.f32 %v1642, %v2003
      %v2005 = vpop.f32.mrb[0].mxu0
      %v2006 = vpop.f32.mrb[0].mxu0
      %v2007 = vadd.f32 %v1642, %v2006
      %v2008 = vpop.f32.mrb[0].mxu0
      %2009 = vmatprep.mubr.bf16.mxu0 0
      %2010 = vmatmul.mubr.bf16.gmra.mrb[0].mxu0 %v1742
      %v2011 = vpop.f32.mrb[0].mxu0
      %v2012 = vadd.f32 %v1642, %v2011
      %v2013 = vpop.f32.mrb[0].mxu0
      %v2014 = vpop.f32.mrb[0].mxu0
      %v2015 = vadd.f32 %v1642, %v2014
      %v2016 = vpop.f32.mrb[0].mxu0
      %2017 = vmatprep.mubr.bf16.mxu0 0
      %2018 = vmatmul.mubr.bf16.gmra.mrb[0].mxu0 %v1745
      %v2019 = vpop.f32.mrb[0].mxu0
      %v2020 = vadd.f32 %v1642, %v2019
      %v2021 = vpop.f32.mrb[0].mxu0
      %v2022 = vpop.f32.mrb[0].mxu0
      %v2023 = vadd.f32 %v1642, %v2022
      %v2024 = vpop.f32.mrb[0].mxu0
      %2025 = vmatprep.mubr.bf16.mxu0 0
      %2026 = vmatmul.mubr.bf16.gmra.mrb[0].mxu0 %v1748
      %v2027 = vpop.f32.mrb[0].mxu0
      %v2028 = vadd.f32 %v1642, %v2027
      %v2029 = vpop.f32.mrb[0].mxu0
      %v2030 = vpop.f32.mrb[0].mxu0
      %v2031 = vadd.f32 %v1642, %v2030
      %v2032 = vpop.f32.mrb[0].mxu0
      %2033 = vmatprep.mubr.bf16.mxu0 0
      %2034 = vmatmul.mubr.bf16.gmra.mrb[0].mxu0 %v1751
      %v2035 = vpop.f32.mrb[0].mxu0
      %v2036 = vadd.f32 %v1642, %v2035
      %v2037 = vpop.f32.mrb[0].mxu0
      %v2038 = vpop.f32.mrb[0].mxu0
      %v2039 = vadd.f32 %v1642, %v2038
      %v2040 = vpop.f32.mrb[0].mxu0
      %2041 = vdwg.mxu0
      %v2042 = vld [vmem:[%s969] sm:$0xf]
      %v2043 = vld [vmem:[%s969 + $0x4] sm:$0xf]
      %v2044 = vld [vmem:[%s969 + $0x8] sm:$0xf]
      %v2045 = vld [vmem:[%s969 + $0xc] sm:$0xf]
      %v2046 = vld [vmem:[%s969 + $0x10] sm:$0xf]
      %v2047 = vld [vmem:[%s969 + $0x14] sm:$0xf]
      %v2048 = vld [vmem:[%s969 + $0x18] sm:$0xf]
      %v2049 = vld [vmem:[%s969 + $0x1c] sm:$0xf]
      %v2050 = vld [vmem:[%s972] sm:$0x1]
      %v2051 = vmax.f32 %v1788, 0.0
      %v2052 = vmax.f32 %v1791, 0.0
      %v2053 = vmax.f32 %v1796, 0.0
      %v2054 = vmax.f32 %v1799, 0.0
      %v2055 = vmax.f32 %v1804, 0.0
      %v2056 = vmax.f32 %v1807, 0.0
      %v2057 = vmax.f32 %v1812, 0.0
      %v2058 = vmax.f32 %v1815, 0.0
      %v2059 = vmax.f32 %v1820, 0.0
      %v2060 = vmax.f32 %v1823, 0.0
      %v2061 = vmax.f32 %v1828, 0.0
      %v2062 = vmax.f32 %v1831, 0.0
      %v2063 = vmax.f32 %v1836, 0.0
      %v2064 = vmax.f32 %v1839, 0.0
      %v2065 = vmax.f32 %v1844, 0.0
      %v2066 = vmax.f32 %v1847, 0.0
      %v2067 = vmax.f32 %v1852, 0.0
      %v2068 = vmax.f32 %v1855, 0.0
      %v2069 = vmax.f32 %v1860, 0.0
      %v2070 = vmax.f32 %v1863, 0.0
      %v2071 = vmax.f32 %v1868, 0.0
      %v2072 = vmax.f32 %v1871, 0.0
      %v2073 = vmax.f32 %v1876, 0.0
      %v2074 = vmax.f32 %v1879, 0.0
      %v2075 = vmax.f32 %v1884, 0.0
      %v2076 = vmax.f32 %v1887, 0.0
      %v2077 = vmax.f32 %v1892, 0.0
      %v2078 = vmax.f32 %v1895, 0.0
      %v2079 = vmax.f32 %v1900, 0.0
      %v2080 = vmax.f32 %v1903, 0.0
      %v2081 = vmax.f32 %v1908, 0.0
      %v2082 = vmax.f32 %v1911, 0.0
      %v2083 = vmax.f32 %v1916, 0.0
      %v2084 = vmax.f32 %v1919, 0.0
      %v2085 = vmax.f32 %v1924, 0.0
      %v2086 = vmax.f32 %v1927, 0.0
      %v2087 = vmax.f32 %v1932, 0.0
      %v2088 = vmax.f32 %v1935, 0.0
      %v2089 = vmax.f32 %v1940, 0.0
      %v2090 = vmax.f32 %v1943, 0.0
      %v2091 = vmax.f32 %v1948, 0.0
      %v2092 = vmax.f32 %v1951, 0.0
      %v2093 = vmax.f32 %v1956, 0.0
      %v2094 = vmax.f32 %v1959, 0.0
      %v2095 = vmax.f32 %v1964, 0.0
      %v2096 = vmax.f32 %v1967, 0.0
      %v2097 = vmax.f32 %v1972, 0.0
      %v2098 = vmax.f32 %v1975, 0.0
      %v2099 = vmax.f32 %v1980, 0.0
      %v2100 = vmax.f32 %v1983, 0.0
      %v2101 = vmax.f32 %v1988, 0.0
      %v2102 = vmax.f32 %v1991, 0.0
      %v2103 = vmax.f32 %v1996, 0.0
      %v2104 = vmax.f32 %v1999, 0.0
      %v2105 = vmax.f32 %v2004, 0.0
      %v2106 = vmax.f32 %v2007, 0.0
      %v2107 = vmax.f32 %v2012, 0.0
      %v2108 = vmax.f32 %v2015, 0.0
      %v2109 = vmax.f32 %v2020, 0.0
      %v2110 = vmax.f32 %v2023, 0.0
      %v2111 = vmax.f32 %v2028, 0.0
      %v2112 = vmax.f32 %v2031, 0.0
      %v2113 = vmax.f32 %v2036, 0.0
      %v2114 = vmax.f32 %v2039, 0.0
      %v2115 = vpack.c.bf16 %v2052, %v2051
      %v2116 = vpack.c.bf16 %v2054, %v2053
      %v2117 = vpack.c.bf16 %v2056, %v2055
      %v2118 = vpack.c.bf16 %v2058, %v2057
      %v2119 = vpack.c.bf16 %v2060, %v2059
      %v2120 = vpack.c.bf16 %v2062, %v2061
      %v2121 = vpack.c.bf16 %v2064, %v2063
      %v2122 = vpack.c.bf16 %v2066, %v2065
      %v2123 = vpack.c.bf16 %v2068, %v2067
      %v2124 = vpack.c.bf16 %v2070, %v2069
      %v2125 = vpack.c.bf16 %v2072, %v2071
      %v2126 = vpack.c.bf16 %v2074, %v2073
      %v2127 = vpack.c.bf16 %v2076, %v2075
      %v2128 = vpack.c.bf16 %v2078, %v2077
      %v2129 = vpack.c.bf16 %v2080, %v2079
      %v2130 = vpack.c.bf16 %v2082, %v2081
      %v2131 = vpack.c.bf16 %v2084, %v2083
      %v2132 = vpack.c.bf16 %v2086, %v2085
      %v2133 = vpack.c.bf16 %v2088, %v2087
      %v2134 = vpack.c.bf16 %v2090, %v2089
      %v2135 = vpack.c.bf16 %v2092, %v2091
      %v2136 = vpack.c.bf16 %v2094, %v2093
      %v2137 = vpack.c.bf16 %v2096, %v2095
      %v2138 = vpack.c.bf16 %v2098, %v2097
      %v2139 = vpack.c.bf16 %v2100, %v2099
      %v2140 = vpack.c.bf16 %v2102, %v2101
      %v2141 = vpack.c.bf16 %v2104, %v2103
      %v2142 = vpack.c.bf16 %v2106, %v2105
      %v2143 = vpack.c.bf16 %v2108, %v2107
      %v2144 = vpack.c.bf16 %v2110, %v2109
      %v2145 = vpack.c.bf16 %v2112, %v2111
      %v2146 = vpack.c.bf16 %v2114, %v2113
      %v2148 = vlaneseq
      %v2149 = vshrl.u32 %v2148, 7
      %v2150 = vsub.s32 0, %v2149
      %v2151 = vrot.slane %v2050, %v2150
      %v2161 = vunpack.c.l.b16 %v2042
      %v2162 = vunpack.c.l.b16 %v2043
      %v2163 = vunpack.c.l.b16 %v2044
      %v2164 = vunpack.c.l.b16 %v2045
      %v2165 = vunpack.c.l.b16 %v2046
      %v2166 = vunpack.c.l.b16 %v2047
      %v2167 = vunpack.c.l.b16 %v2048
      %v2168 = vunpack.c.l.b16 %v2049
      %v2169 = vpack.c.b16 %v2162, %v2161
      %v2170 = vpack.c.b16 %v2164, %v2163
      %v2171 = vpack.c.b16 %v2166, %v2165
      %v2172 = vpack.c.b16 %v2168, %v2167
      %vm2177 = vcmask 523264
      %v2179 = vsel %vm2177, %v2115, 0
      %v2182 = vsel %vm2177, %v2116, 0
      %v2185 = vsel %vm2177, %v2117, 0
      %v2188 = vsel %vm2177, %v2118, 0
      %v2191 = vsel %vm2177, %v2119, 0
      %v2194 = vsel %vm2177, %v2120, 0
      %v2197 = vsel %vm2177, %v2121, 0
      %v2200 = vsel %vm2177, %v2122, 0
      %v2203 = vsel %vm2177, %v2123, 0
      %v2206 = vsel %vm2177, %v2124, 0
      %v2209 = vsel %vm2177, %v2125, 0
      %v2212 = vsel %vm2177, %v2126, 0
      %v2215 = vsel %vm2177, %v2127, 0
      %v2218 = vsel %vm2177, %v2128, 0
      %v2221 = vsel %vm2177, %v2129, 0
      %v2224 = vsel %vm2177, %v2130, 0
      %v2227 = vsel %vm2177, %v2131, 0
      %v2230 = vsel %vm2177, %v2132, 0
      %v2233 = vsel %vm2177, %v2133, 0
      %v2236 = vsel %vm2177, %v2134, 0
      %v2239 = vsel %vm2177, %v2135, 0
      %v2242 = vsel %vm2177, %v2136, 0
      %v2245 = vsel %vm2177, %v2137, 0
      %v2248 = vsel %vm2177, %v2138, 0
      %v2251 = vsel %vm2177, %v2139, 0
      %v2254 = vsel %vm2177, %v2140, 0
      %v2257 = vsel %vm2177, %v2141, 0
      %v2260 = vsel %vm2177, %v2142, 0
      %v2263 = vsel %vm2177, %v2143, 0
      %v2266 = vsel %vm2177, %v2144, 0
      %v2269 = vsel %vm2177, %v2145, 0
      %v2272 = vsel %vm2177, %v2146, 0
      %2274 = vmatprep.subr.bf16.mxu0 0
      %2275 = vmatpush1.bf16.msra.mxu0 %v2169
      %2276 = vmatprep.subr.bf16.mxu0 0
      %2277 = vmatpush1.bf16.msra.mxu0 %v2170
      %2278 = vmatprep.subr.bf16.mxu0 0
      %2279 = vmatpush1.bf16.msra.mxu0 %v2171
      %2280 = vmatprep.subr.bf16.mxu0 0
      %2281 = vmatpush1.bf16.msra.mxu0 %v2172
      %2282 = vmatprep.subr.bf16.mxu0 0
      %2283 = vmatpush1.bf16.msra.mxu0 0
      %2284 = vmatprep.subr.bf16.mxu0 0
      %2285 = vmatpush1.bf16.msra.mxu0 0
      %2286 = vmatprep.subr.bf16.mxu0 0
      %2287 = vmatpush1.bf16.msra.mxu0 0
      %2288 = vmatprep.subr.bf16.mxu0 0
      %2289 = vmatpush1.bf16.msra.mxu0 0
      %2290 = vmatprep.subr.bf16.mxu0 0
      %2291 = vmatpush1.bf16.msra.mxu0 0
      %2292 = vmatprep.subr.bf16.mxu0 0
      %2293 = vmatpush1.bf16.msra.mxu0 0
      %2294 = vmatprep.subr.bf16.mxu0 0
      %2295 = vmatpush1.bf16.msra.mxu0 0
      %2296 = vmatprep.subr.bf16.mxu0 0
      %2297 = vmatpush1.bf16.msra.mxu0 0
      %2298 = vmatprep.subr.bf16.mxu0 0
      %2299 = vmatpush1.bf16.msra.mxu0 0
      %2300 = vmatprep.subr.bf16.mxu0 0
      %2301 = vmatpush1.bf16.msra.mxu0 0
      %2302 = vmatprep.subr.bf16.mxu0 0
      %2303 = vmatpush1.bf16.msra.mxu0 0
      %2304 = vmatprep.subr.bf16.mxu0 0
      %2305 = vmatpush1.bf16.msra.mxu0 0
      %2306 = vmatprep.mubr.bf16.mxu0 0
      %2307 = vmatmul.mubr.bf16.gmra.mrb[0].mxu0 %v2179
      %v2308 = vpop.f32.mrb[0].mxu0
      %v2309 = vadd.f32 %v2151, %v2308
      %v2310 = vpop.f32.mrb[0].mxu0
      %v2311 = vpop.f32.mrb[0].mxu0
      %v2312 = vadd.f32 %v2151, %v2311
      %v2313 = vpop.f32.mrb[0].mxu0
      %2314 = vmatprep.mubr.bf16.mxu0 0
      %2315 = vmatmul.mubr.bf16.gmra.mrb[0].mxu0 %v2182
      %v2316 = vpop.f32.mrb[0].mxu0
      %v2317 = vadd.f32 %v2151, %v2316
      %v2318 = vpop.f32.mrb[0].mxu0
      %v2319 = vpop.f32.mrb[0].mxu0
      %v2320 = vadd.f32 %v2151, %v2319
      %v2321 = vpop.f32.mrb[0].mxu0
      %2322 = vmatprep.mubr.bf16.mxu0 0
      %2323 = vmatmul.mubr.bf16.gmra.mrb[0].mxu0 %v2185
      %v2324 = vpop.f32.mrb[0].mxu0
      %v2325 = vadd.f32 %v2151, %v2324
      %v2326 = vpop.f32.mrb[0].mxu0
      %v2327 = vpop.f32.mrb[0].mxu0
      %v2328 = vadd.f32 %v2151, %v2327
      %v2329 = vpop.f32.mrb[0].mxu0
      %2330 = vmatprep.mubr.bf16.mxu0 0
      %2331 = vmatmul.mubr.bf16.gmra.mrb[0].mxu0 %v2188
      %v2332 = vpop.f32.mrb[0].mxu0
      %v2333 = vadd.f32 %v2151, %v2332
      %v2334 = vpop.f32.mrb[0].mxu0
      %v2335 = vpop.f32.mrb[0].mxu0
      %v2336 = vadd.f32 %v2151, %v2335
      %v2337 = vpop.f32.mrb[0].mxu0
      %2338 = vmatprep.mubr.bf16.mxu0 0
      %2339 = vmatmul.mubr.bf16.gmra.mrb[0].mxu0 %v2191
      %v2340 = vpop.f32.mrb[0].mxu0
      %v2341 = vadd.f32 %v2151, %v2340
      %v2342 = vpop.f32.mrb[0].mxu0
      %v2343 = vpop.f32.mrb[0].mxu0
      %v2344 = vadd.f32 %v2151, %v2343
      %v2345 = vpop.f32.mrb[0].mxu0
      %2346 = vmatprep.mubr.bf16.mxu0 0
      %2347 = vmatmul.mubr.bf16.gmra.mrb[0].mxu0 %v2194
      %v2348 = vpop.f32.mrb[0].mxu0
      %v2349 = vadd.f32 %v2151, %v2348
      %v2350 = vpop.f32.mrb[0].mxu0
      %v2351 = vpop.f32.mrb[0].mxu0
      %v2352 = vadd.f32 %v2151, %v2351
      %v2353 = vpop.f32.mrb[0].mxu0
      %2354 = vmatprep.mubr.bf16.mxu0 0
      %2355 = vmatmul.mubr.bf16.gmra.mrb[0].mxu0 %v2197
      %v2356 = vpop.f32.mrb[0].mxu0
      %v2357 = vadd.f32 %v2151, %v2356
      %v2358 = vpop.f32.mrb[0].mxu0
      %v2359 = vpop.f32.mrb[0].mxu0
      %v2360 = vadd.f32 %v2151, %v2359
      %v2361 = vpop.f32.mrb[0].mxu0
      %2362 = vmatprep.mubr.bf16.mxu0 0
      %2363 = vmatmul.mubr.bf16.gmra.mrb[0].mxu0 %v2200
      %v2364 = vpop.f32.mrb[0].mxu0
      %v2365 = vadd.f32 %v2151, %v2364
      %v2366 = vpop.f32.mrb[0].mxu0
      %v2367 = vpop.f32.mrb[0].mxu0
      %v2368 = vadd.f32 %v2151, %v2367
      %v2369 = vpop.f32.mrb[0].mxu0
      %2370 = vmatprep.mubr.bf16.mxu0 0
      %2371 = vmatmul.mubr.bf16.gmra.mrb[0].mxu0 %v2203
      %v2372 = vpop.f32.mrb[0].mxu0
      %v2373 = vadd.f32 %v2151, %v2372
      %v2374 = vpop.f32.mrb[0].mxu0
      %v2375 = vpop.f32.mrb[0].mxu0
      %v2376 = vadd.f32 %v2151, %v2375
      %v2377 = vpop.f32.mrb[0].mxu0
      %2378 = vmatprep.mubr.bf16.mxu0 0
      %2379 = vmatmul.mubr.bf16.gmra.mrb[0].mxu0 %v2206
      %v2380 = vpop.f32.mrb[0].mxu0
      %v2381 = vadd.f32 %v2151, %v2380
      %v2382 = vpop.f32.mrb[0].mxu0
      %v2383 = vpop.f32.mrb[0].mxu0
      %v2384 = vadd.f32 %v2151, %v2383
      %v2385 = vpop.f32.mrb[0].mxu0
      %2386 = vmatprep.mubr.bf16.mxu0 0
      %2387 = vmatmul.mubr.bf16.gmra.mrb[0].mxu0 %v2209
      %v2388 = vpop.f32.mrb[0].mxu0
      %v2389 = vadd.f32 %v2151, %v2388
      %v2390 = vpop.f32.mrb[0].mxu0
      %v2391 = vpop.f32.mrb[0].mxu0
      %v2392 = vadd.f32 %v2151, %v2391
      %v2393 = vpop.f32.mrb[0].mxu0
      %2394 = vmatprep.mubr.bf16.mxu0 0
      %2395 = vmatmul.mubr.bf16.gmra.mrb[0].mxu0 %v2212
      %v2396 = vpop.f32.mrb[0].mxu0
      %v2397 = vadd.f32 %v2151, %v2396
      %v2398 = vpop.f32.mrb[0].mxu0
      %v2399 = vpop.f32.mrb[0].mxu0
      %v2400 = vadd.f32 %v2151, %v2399
      %v2401 = vpop.f32.mrb[0].mxu0
      %2402 = vmatprep.mubr.bf16.mxu0 0
      %2403 = vmatmul.mubr.bf16.gmra.mrb[0].mxu0 %v2215
      %v2404 = vpop.f32.mrb[0].mxu0
      %v2405 = vadd.f32 %v2151, %v2404
      %v2406 = vpop.f32.mrb[0].mxu0
      %v2407 = vpop.f32.mrb[0].mxu0
      %v2408 = vadd.f32 %v2151, %v2407
      %v2409 = vpop.f32.mrb[0].mxu0
      %2410 = vmatprep.mubr.bf16.mxu0 0
      %2411 = vmatmul.mubr.bf16.gmra.mrb[0].mxu0 %v2218
      %v2412 = vpop.f32.mrb[0].mxu0
      %v2413 = vadd.f32 %v2151, %v2412
      %v2414 = vpop.f32.mrb[0].mxu0
      %v2415 = vpop.f32.mrb[0].mxu0
      %v2416 = vadd.f32 %v2151, %v2415
      %v2417 = vpop.f32.mrb[0].mxu0
      %2418 = vmatprep.mubr.bf16.mxu0 0
      %2419 = vmatmul.mubr.bf16.gmra.mrb[0].mxu0 %v2221
      %v2420 = vpop.f32.mrb[0].mxu0
      %v2421 = vadd.f32 %v2151, %v2420
      %v2422 = vpop.f32.mrb[0].mxu0
      %v2423 = vpop.f32.mrb[0].mxu0
      %v2424 = vadd.f32 %v2151, %v2423
      %v2425 = vpop.f32.mrb[0].mxu0
      %2426 = vmatprep.mubr.bf16.mxu0 0
      %2427 = vmatmul.mubr.bf16.gmra.mrb[0].mxu0 %v2224
      %v2428 = vpop.f32.mrb[0].mxu0
      %v2429 = vadd.f32 %v2151, %v2428
      %v2430 = vpop.f32.mrb[0].mxu0
      %v2431 = vpop.f32.mrb[0].mxu0
      %v2432 = vadd.f32 %v2151, %v2431
      %v2433 = vpop.f32.mrb[0].mxu0
      %2434 = vmatprep.mubr.bf16.mxu0 0
      %2435 = vmatmul.mubr.bf16.gmra.mrb[0].mxu0 %v2227
      %v2436 = vpop.f32.mrb[0].mxu0
      %v2437 = vadd.f32 %v2151, %v2436
      %v2438 = vpop.f32.mrb[0].mxu0
      %v2439 = vpop.f32.mrb[0].mxu0
      %v2440 = vadd.f32 %v2151, %v2439
      %v2441 = vpop.f32.mrb[0].mxu0
      %2442 = vmatprep.mubr.bf16.mxu0 0
      %2443 = vmatmul.mubr.bf16.gmra.mrb[0].mxu0 %v2230
      %v2444 = vpop.f32.mrb[0].mxu0
      %v2445 = vadd.f32 %v2151, %v2444
      %v2446 = vpop.f32.mrb[0].mxu0
      %v2447 = vpop.f32.mrb[0].mxu0
      %v2448 = vadd.f32 %v2151, %v2447
      %v2449 = vpop.f32.mrb[0].mxu0
      %2450 = vmatprep.mubr.bf16.mxu0 0
      %2451 = vmatmul.mubr.bf16.gmra.mrb[0].mxu0 %v2233
      %v2452 = vpop.f32.mrb[0].mxu0
      %v2453 = vadd.f32 %v2151, %v2452
      %v2454 = vpop.f32.mrb[0].mxu0
      %v2455 = vpop.f32.mrb[0].mxu0
      %v2456 = vadd.f32 %v2151, %v2455
      %v2457 = vpop.f32.mrb[0].mxu0
      %2458 = vmatprep.mubr.bf16.mxu0 0
      %2459 = vmatmul.mubr.bf16.gmra.mrb[0].mxu0 %v2236
      %v2460 = vpop.f32.mrb[0].mxu0
      %v2461 = vadd.f32 %v2151, %v2460
      %v2462 = vpop.f32.mrb[0].mxu0
      %v2463 = vpop.f32.mrb[0].mxu0
      %v2464 = vadd.f32 %v2151, %v2463
      %v2465 = vpop.f32.mrb[0].mxu0
      %2466 = vmatprep.mubr.bf16.mxu0 0
      %2467 = vmatmul.mubr.bf16.gmra.mrb[0].mxu0 %v2239
      %v2468 = vpop.f32.mrb[0].mxu0
      %v2469 = vadd.f32 %v2151, %v2468
      %v2470 = vpop.f32.mrb[0].mxu0
      %v2471 = vpop.f32.mrb[0].mxu0
      %v2472 = vadd.f32 %v2151, %v2471
      %v2473 = vpop.f32.mrb[0].mxu0
      %2474 = vmatprep.mubr.bf16.mxu0 0
      %2475 = vmatmul.mubr.bf16.gmra.mrb[0].mxu0 %v2242
      %v2476 = vpop.f32.mrb[0].mxu0
      %v2477 = vadd.f32 %v2151, %v2476
      %v2478 = vpop.f32.mrb[0].mxu0
      %v2479 = vpop.f32.mrb[0].mxu0
      %v2480 = vadd.f32 %v2151, %v2479
      %v2481 = vpop.f32.mrb[0].mxu0
      %2482 = vmatprep.mubr.bf16.mxu0 0
      %2483 = vmatmul.mubr.bf16.gmra.mrb[0].mxu0 %v2245
      %v2484 = vpop.f32.mrb[0].mxu0
      %v2485 = vadd.f32 %v2151, %v2484
      %v2486 = vpop.f32.mrb[0].mxu0
      %v2487 = vpop.f32.mrb[0].mxu0
      %v2488 = vadd.f32 %v2151, %v2487
      %v2489 = vpop.f32.mrb[0].mxu0
      %2490 = vmatprep.mubr.bf16.mxu0 0
      %2491 = vmatmul.mubr.bf16.gmra.mrb[0].mxu0 %v2248
      %v2492 = vpop.f32.mrb[0].mxu0
      %v2493 = vadd.f32 %v2151, %v2492
      %v2494 = vpop.f32.mrb[0].mxu0
      %v2495 = vpop.f32.mrb[0].mxu0
      %v2496 = vadd.f32 %v2151, %v2495
      %v2497 = vpop.f32.mrb[0].mxu0
      %2498 = vmatprep.mubr.bf16.mxu0 0
      %2499 = vmatmul.mubr.bf16.gmra.mrb[0].mxu0 %v2251
      %v2500 = vpop.f32.mrb[0].mxu0
      %v2501 = vadd.f32 %v2151, %v2500
      %v2502 = vpop.f32.mrb[0].mxu0
      %v2503 = vpop.f32.mrb[0].mxu0
      %v2504 = vadd.f32 %v2151, %v2503
      %v2505 = vpop.f32.mrb[0].mxu0
      %2506 = vmatprep.mubr.bf16.mxu0 0
      %2507 = vmatmul.mubr.bf16.gmra.mrb[0].mxu0 %v2254
      %v2508 = vpop.f32.mrb[0].mxu0
      %v2509 = vadd.f32 %v2151, %v2508
      %v2510 = vpop.f32.mrb[0].mxu0
      %v2511 = vpop.f32.mrb[0].mxu0
      %v2512 = vadd.f32 %v2151, %v2511
      %v2513 = vpop.f32.mrb[0].mxu0
      %2514 = vmatprep.mubr.bf16.mxu0 0
      %2515 = vmatmul.mubr.bf16.gmra.mrb[0].mxu0 %v2257
      %v2516 = vpop.f32.mrb[0].mxu0
      %v2517 = vadd.f32 %v2151, %v2516
      %v2518 = vpop.f32.mrb[0].mxu0
      %v2519 = vpop.f32.mrb[0].mxu0
      %v2520 = vadd.f32 %v2151, %v2519
      %v2521 = vpop.f32.mrb[0].mxu0
      %2522 = vmatprep.mubr.bf16.mxu0 0
      %2523 = vmatmul.mubr.bf16.gmra.mrb[0].mxu0 %v2260
      %v2524 = vpop.f32.mrb[0].mxu0
      %v2525 = vadd.f32 %v2151, %v2524
      %v2526 = vpop.f32.mrb[0].mxu0
      %v2527 = vpop.f32.mrb[0].mxu0
      %v2528 = vadd.f32 %v2151, %v2527
      %v2529 = vpop.f32.mrb[0].mxu0
      %2530 = vmatprep.mubr.bf16.mxu0 0
      %2531 = vmatmul.mubr.bf16.gmra.mrb[0].mxu0 %v2263
      %v2532 = vpop.f32.mrb[0].mxu0
      %v2533 = vadd.f32 %v2151, %v2532
      %v2534 = vpop.f32.mrb[0].mxu0
      %v2535 = vpop.f32.mrb[0].mxu0
      %v2536 = vadd.f32 %v2151, %v2535
      %v2537 = vpop.f32.mrb[0].mxu0
      %2538 = vmatprep.mubr.bf16.mxu0 0
      %2539 = vmatmul.mubr.bf16.gmra.mrb[0].mxu0 %v2266
      %v2540 = vpop.f32.mrb[0].mxu0
      %v2541 = vadd.f32 %v2151, %v2540
      %v2542 = vpop.f32.mrb[0].mxu0
      %v2543 = vpop.f32.mrb[0].mxu0
      %v2544 = vadd.f32 %v2151, %v2543
      %v2545 = vpop.f32.mrb[0].mxu0
      %2546 = vmatprep.mubr.bf16.mxu0 0
      %2547 = vmatmul.mubr.bf16.gmra.mrb[0].mxu0 %v2269
      %v2548 = vpop.f32.mrb[0].mxu0
      %v2549 = vadd.f32 %v2151, %v2548
      %v2550 = vpop.f32.mrb[0].mxu0
      %v2551 = vpop.f32.mrb[0].mxu0
      %v2552 = vadd.f32 %v2151, %v2551
      %v2553 = vpop.f32.mrb[0].mxu0
      %2554 = vmatprep.mubr.bf16.mxu0 0
      %2555 = vmatmul.mubr.bf16.gmra.mrb[0].mxu0 %v2272
      %v2556 = vpop.f32.mrb[0].mxu0
      %v2557 = vadd.f32 %v2151, %v2556
      %v2558 = vpop.f32.mrb[0].mxu0
      %v2559 = vpop.f32.mrb[0].mxu0
      %v2560 = vadd.f32 %v2151, %v2559
      %v2561 = vpop.f32.mrb[0].mxu0
      %2562 = vdwg.mxu0
      %v2563 = vld [vmem:[%s977] sm:$0xff]
      %v2564 = vld [vmem:[%s977 + $0x8] sm:$0xff]
      %v2565 = vld [vmem:[%s977 + $0x10] sm:$0xff]
      %v2566 = vld [vmem:[%s977 + $0x18] sm:$0xff]
      %v2567 = vld [vmem:[%s977 + $0x20] sm:$0xff]
      %v2568 = vld [vmem:[%s977 + $0x28] sm:$0xff]
      %v2569 = vld [vmem:[%s977 + $0x30] sm:$0xff]
      %v2570 = vld [vmem:[%s977 + $0x38] sm:$0xff]
      %v2571 = vld [vmem:[%s977 + $0x40] sm:$0xff]
      %v2572 = vld [vmem:[%s977 + $0x48] sm:$0xff]
      %v2573 = vld [vmem:[%s977 + $0x50] sm:$0xff]
      %v2574 = vld [vmem:[%s977 + $0x58] sm:$0xff]
      %v2575 = vld [vmem:[%s977 + $0x60] sm:$0xff]
      %v2576 = vld [vmem:[%s977 + $0x68] sm:$0xff]
      %v2577 = vld [vmem:[%s977 + $0x70] sm:$0xff]
      %v2578 = vld [vmem:[%s977 + $0x78] sm:$0xff]
      %v2579 = vld [vmem:[%s981] sm:$0x3]
      %v2580 = vmax.f32 %v2309, 0.0
      %v2581 = vmax.f32 %v2312, 0.0
      %v2582 = vmax.f32 %v2317, 0.0
      %v2583 = vmax.f32 %v2320, 0.0
      %v2584 = vmax.f32 %v2325, 0.0
      %v2585 = vmax.f32 %v2328, 0.0
      %v2586 = vmax.f32 %v2333, 0.0
      %v2587 = vmax.f32 %v2336, 0.0
      %v2588 = vmax.f32 %v2341, 0.0
      %v2589 = vmax.f32 %v2344, 0.0
      %v2590 = vmax.f32 %v2349, 0.0
      %v2591 = vmax.f32 %v2352, 0.0
      %v2592 = vmax.f32 %v2357, 0.0
      %v2593 = vmax.f32 %v2360, 0.0
      %v2594 = vmax.f32 %v2365, 0.0
      %v2595 = vmax.f32 %v2368, 0.0
      %v2596 = vmax.f32 %v2373, 0.0
      %v2597 = vmax.f32 %v2376, 0.0
      %v2598 = vmax.f32 %v2381, 0.0
      %v2599 = vmax.f32 %v2384, 0.0
      %v2600 = vmax.f32 %v2389, 0.0
      %v2601 = vmax.f32 %v2392, 0.0
      %v2602 = vmax.f32 %v2397, 0.0
      %v2603 = vmax.f32 %v2400, 0.0
      %v2604 = vmax.f32 %v2405, 0.0
      %v2605 = vmax.f32 %v2408, 0.0
      %v2606 = vmax.f32 %v2413, 0.0
      %v2607 = vmax.f32 %v2416, 0.0
      %v2608 = vmax.f32 %v2421, 0.0
      %v2609 = vmax.f32 %v2424, 0.0
      %v2610 = vmax.f32 %v2429, 0.0
      %v2611 = vmax.f32 %v2432, 0.0
      %v2612 = vmax.f32 %v2437, 0.0
      %v2613 = vmax.f32 %v2440, 0.0
      %v2614 = vmax.f32 %v2445, 0.0
      %v2615 = vmax.f32 %v2448, 0.0
      %v2616 = vmax.f32 %v2453, 0.0
      %v2617 = vmax.f32 %v2456, 0.0
      %v2618 = vmax.f32 %v2461, 0.0
      %v2619 = vmax.f32 %v2464, 0.0
      %v2620 = vmax.f32 %v2469, 0.0
      %v2621 = vmax.f32 %v2472, 0.0
      %v2622 = vmax.f32 %v2477, 0.0
      %v2623 = vmax.f32 %v2480, 0.0
      %v2624 = vmax.f32 %v2485, 0.0
      %v2625 = vmax.f32 %v2488, 0.0
      %v2626 = vmax.f32 %v2493, 0.0
      %v2627 = vmax.f32 %v2496, 0.0
      %v2628 = vmax.f32 %v2501, 0.0
      %v2629 = vmax.f32 %v2504, 0.0
      %v2630 = vmax.f32 %v2509, 0.0
      %v2631 = vmax.f32 %v2512, 0.0
      %v2632 = vmax.f32 %v2517, 0.0
      %v2633 = vmax.f32 %v2520, 0.0
      %v2634 = vmax.f32 %v2525, 0.0
      %v2635 = vmax.f32 %v2528, 0.0
      %v2636 = vmax.f32 %v2533, 0.0
      %v2637 = vmax.f32 %v2536, 0.0
      %v2638 = vmax.f32 %v2541, 0.0
      %v2639 = vmax.f32 %v2544, 0.0
      %v2640 = vmax.f32 %v2549, 0.0
      %v2641 = vmax.f32 %v2552, 0.0
      %v2642 = vmax.f32 %v2557, 0.0
      %v2643 = vmax.f32 %v2560, 0.0
      %v2644 = vpack.c.bf16 %v2581, %v2580
      %v2645 = vpack.c.bf16 %v2583, %v2582
      %v2646 = vpack.c.bf16 %v2585, %v2584
      %v2647 = vpack.c.bf16 %v2587, %v2586
      %v2648 = vpack.c.bf16 %v2589, %v2588
      %v2649 = vpack.c.bf16 %v2591, %v2590
      %v2650 = vpack.c.bf16 %v2593, %v2592
      %v2651 = vpack.c.bf16 %v2595, %v2594
      %v2652 = vpack.c.bf16 %v2597, %v2596
      %v2653 = vpack.c.bf16 %v2599, %v2598
      %v2654 = vpack.c.bf16 %v2601, %v2600
      %v2655 = vpack.c.bf16 %v2603, %v2602
      %v2656 = vpack.c.bf16 %v2605, %v2604
      %v2657 = vpack.c.bf16 %v2607, %v2606
      %v2658 = vpack.c.bf16 %v2609, %v2608
      %v2659 = vpack.c.bf16 %v2611, %v2610
      %v2660 = vpack.c.bf16 %v2613, %v2612
      %v2661 = vpack.c.bf16 %v2615, %v2614
      %v2662 = vpack.c.bf16 %v2617, %v2616
      %v2663 = vpack.c.bf16 %v2619, %v2618
      %v2664 = vpack.c.bf16 %v2621, %v2620
      %v2665 = vpack.c.bf16 %v2623, %v2622
      %v2666 = vpack.c.bf16 %v2625, %v2624
      %v2667 = vpack.c.bf16 %v2627, %v2626
      %v2668 = vpack.c.bf16 %v2629, %v2628
      %v2669 = vpack.c.bf16 %v2631, %v2630
      %v2670 = vpack.c.bf16 %v2633, %v2632
      %v2671 = vpack.c.bf16 %v2635, %v2634
      %v2672 = vpack.c.bf16 %v2637, %v2636
      %v2673 = vpack.c.bf16 %v2639, %v2638
      %v2674 = vpack.c.bf16 %v2641, %v2640
      %v2675 = vpack.c.bf16 %v2643, %v2642
      %v2677 = vlaneseq
      %v2678 = vshrl.u32 %v2677, 7
      %v2679 = vsub.s32 0, %v2678
      %v2680 = vrot.slane %v2579, %v2679
      %v2681 = vlaneseq
      %v2682 = vshrl.u32 %v2681, 7
      %v2683 = vsub.s32 1, %v2682
      %v2684 = vrot.slane %v2579, %v2683
      %v2703 = vunpack.c.l.b16 %v2563
      %v2704 = vunpack.c.h.b16 %v2563
      %v2705 = vunpack.c.l.b16 %v2564
      %v2706 = vunpack.c.h.b16 %v2564
      %v2707 = vunpack.c.l.b16 %v2565
      %v2708 = vunpack.c.h.b16 %v2565
      %v2709 = vunpack.c.l.b16 %v2566
      %v2710 = vunpack.c.h.b16 %v2566
      %v2711 = vunpack.c.l.b16 %v2567
      %v2712 = vunpack.c.h.b16 %v2567
      %v2713 = vunpack.c.l.b16 %v2568
      %v2714 = vunpack.c.h.b16 %v2568
      %v2715 = vunpack.c.l.b16 %v2569
      %v2716 = vunpack.c.h.b16 %v2569
      %v2717 = vunpack.c.l.b16 %v2570
      %v2718 = vunpack.c.h.b16 %v2570
      %v2719 = vunpack.c.l.b16 %v2571
      %v2720 = vunpack.c.h.b16 %v2571
      %v2721 = vunpack.c.l.b16 %v2572
      %v2722 = vunpack.c.h.b16 %v2572
      %v2723 = vunpack.c.l.b16 %v2573
      %v2724 = vunpack.c.h.b16 %v2573
      %v2725 = vunpack.c.l.b16 %v2574
      %v2726 = vunpack.c.h.b16 %v2574
      %v2727 = vunpack.c.l.b16 %v2575
      %v2728 = vunpack.c.h.b16 %v2575
      %v2729 = vunpack.c.l.b16 %v2576
      %v2730 = vunpack.c.h.b16 %v2576
      %v2731 = vunpack.c.l.b16 %v2577
      %v2732 = vunpack.c.h.b16 %v2577
      %v2733 = vunpack.c.l.b16 %v2578
      %v2734 = vunpack.c.h.b16 %v2578
      %v2735 = vpack.c.b16 %v2705, %v2703
      %v2736 = vpack.c.b16 %v2706, %v2704
      %v2737 = vpack.c.b16 %v2709, %v2707
      %v2738 = vpack.c.b16 %v2710, %v2708
      %v2739 = vpack.c.b16 %v2713, %v2711
      %v2740 = vpack.c.b16 %v2714, %v2712
      %v2741 = vpack.c.b16 %v2717, %v2715
      %v2742 = vpack.c.b16 %v2718, %v2716
      %v2743 = vpack.c.b16 %v2721, %v2719
      %v2744 = vpack.c.b16 %v2722, %v2720
      %v2745 = vpack.c.b16 %v2725, %v2723
      %v2746 = vpack.c.b16 %v2726, %v2724
      %v2747 = vpack.c.b16 %v2729, %v2727
      %v2748 = vpack.c.b16 %v2730, %v2728
      %v2749 = vpack.c.b16 %v2733, %v2731
      %v2750 = vpack.c.b16 %v2734, %v2732
      %2767 = vmatprep.subr.bf16.mxu0 %v2736
      %2768 = vmatpush1.bf16.msra.mxu0 %v2735
      %2769 = vmatprep.subr.bf16.mxu0 %v2738
      %2770 = vmatpush1.bf16.msra.mxu0 %v2737
      %2771 = vmatprep.subr.bf16.mxu0 %v2740
      %2772 = vmatpush1.bf16.msra.mxu0 %v2739
      %2773 = vmatprep.subr.bf16.mxu0 %v2742
      %2774 = vmatpush1.bf16.msra.mxu0 %v2741
      %2775 = vmatprep.subr.bf16.mxu0 %v2744
      %2776 = vmatpush1.bf16.msra.mxu0 %v2743
      %2777 = vmatprep.subr.bf16.mxu0 %v2746
      %2778 = vmatpush1.bf16.msra.mxu0 %v2745
      %2779 = vmatprep.subr.bf16.mxu0 %v2748
      %2780 = vmatpush1.bf16.msra.mxu0 %v2747
      %2781 = vmatprep.subr.bf16.mxu0 %v2750
      %2782 = vmatpush1.bf16.msra.mxu0 %v2749
      %2783 = vmatprep.subr.bf16.mxu0 0
      %2784 = vmatpush1.bf16.msra.mxu0 0
      %2785 = vmatprep.subr.bf16.mxu0 0
      %2786 = vmatpush1.bf16.msra.mxu0 0
      %2787 = vmatprep.subr.bf16.mxu0 0
      %2788 = vmatpush1.bf16.msra.mxu0 0
      %2789 = vmatprep.subr.bf16.mxu0 0
      %2790 = vmatpush1.bf16.msra.mxu0 0
      %2791 = vmatprep.subr.bf16.mxu0 0
      %2792 = vmatpush1.bf16.msra.mxu0 0
      %2793 = vmatprep.subr.bf16.mxu0 0
      %2794 = vmatpush1.bf16.msra.mxu0 0
      %2795 = vmatprep.subr.bf16.mxu0 0
      %2796 = vmatpush1.bf16.msra.mxu0 0
      %2797 = vmatprep.subr.bf16.mxu0 0
      %2798 = vmatpush1.bf16.msra.mxu0 0
      %2799 = vmatprep.mubr.bf16.mxu0 0
      %2800 = vmatmul.mubr.bf16.gmra.mrb[0].mxu0 %v2644
      %v2801 = vpop.f32.mrb[0].mxu0
      %v2802 = vadd.f32 %v2680, %v2801
      %v2803 = vpop.f32.mrb[0].mxu0
      %v2804 = vadd.f32 %v2684, %v2803
      %v2805 = vpop.f32.mrb[0].mxu0
      %v2806 = vadd.f32 %v2680, %v2805
      %v2807 = vpop.f32.mrb[0].mxu0
      %v2808 = vadd.f32 %v2684, %v2807
      %2809 = vmatprep.mubr.bf16.mxu0 0
      %2810 = vmatmul.mubr.bf16.gmra.mrb[0].mxu0 %v2645
      %v2811 = vpop.f32.mrb[0].mxu0
      %v2812 = vadd.f32 %v2680, %v2811
      %v2813 = vpop.f32.mrb[0].mxu0
      %v2814 = vadd.f32 %v2684, %v2813
      %v2815 = vpop.f32.mrb[0].mxu0
      %v2816 = vadd.f32 %v2680, %v2815
      %v2817 = vpop.f32.mrb[0].mxu0
      %v2818 = vadd.f32 %v2684, %v2817
      %2819 = vmatprep.mubr.bf16.mxu0 0
      %2820 = vmatmul.mubr.bf16.gmra.mrb[0].mxu0 %v2646
      %v2821 = vpop.f32.mrb[0].mxu0
      %v2822 = vadd.f32 %v2680, %v2821
      %v2823 = vpop.f32.mrb[0].mxu0
      %v2824 = vadd.f32 %v2684, %v2823
      %v2825 = vpop.f32.mrb[0].mxu0
      %v2826 = vadd.f32 %v2680, %v2825
      %v2827 = vpop.f32.mrb[0].mxu0
      %v2828 = vadd.f32 %v2684, %v2827
      %2829 = vmatprep.mubr.bf16.mxu0 0
      %2830 = vmatmul.mubr.bf16.gmra.mrb[0].mxu0 %v2647
      %v2831 = vpop.f32.mrb[0].mxu0
      %v2832 = vadd.f32 %v2680, %v2831
      %v2833 = vpop.f32.mrb[0].mxu0
      %v2834 = vadd.f32 %v2684, %v2833
      %v2835 = vpop.f32.mrb[0].mxu0
      %v2836 = vadd.f32 %v2680, %v2835
      %v2837 = vpop.f32.mrb[0].mxu0
      %v2838 = vadd.f32 %v2684, %v2837
      %2839 = vmatprep.mubr.bf16.mxu0 0
      %2840 = vmatmul.mubr.bf16.gmra.mrb[0].mxu0 %v2648
      %v2841 = vpop.f32.mrb[0].mxu0
      %v2842 = vadd.f32 %v2680, %v2841
      %v2843 = vpop.f32.mrb[0].mxu0
      %v2844 = vadd.f32 %v2684, %v2843
      %v2845 = vpop.f32.mrb[0].mxu0
      %v2846 = vadd.f32 %v2680, %v2845
      %v2847 = vpop.f32.mrb[0].mxu0
      %v2848 = vadd.f32 %v2684, %v2847
      %2849 = vmatprep.mubr.bf16.mxu0 0
      %2850 = vmatmul.mubr.bf16.gmra.mrb[0].mxu0 %v2649
      %v2851 = vpop.f32.mrb[0].mxu0
      %v2852 = vadd.f32 %v2680, %v2851
      %v2853 = vpop.f32.mrb[0].mxu0
      %v2854 = vadd.f32 %v2684, %v2853
      %v2855 = vpop.f32.mrb[0].mxu0
      %v2856 = vadd.f32 %v2680, %v2855
      %v2857 = vpop.f32.mrb[0].mxu0
      %v2858 = vadd.f32 %v2684, %v2857
      %2859 = vmatprep.mubr.bf16.mxu0 0
      %2860 = vmatmul.mubr.bf16.gmra.mrb[0].mxu0 %v2650
      %v2861 = vpop.f32.mrb[0].mxu0
      %v2862 = vadd.f32 %v2680, %v2861
      %v2863 = vpop.f32.mrb[0].mxu0
      %v2864 = vadd.f32 %v2684, %v2863
      %v2865 = vpop.f32.mrb[0].mxu0
      %v2866 = vadd.f32 %v2680, %v2865
      %v2867 = vpop.f32.mrb[0].mxu0
      %v2868 = vadd.f32 %v2684, %v2867
      %2869 = vmatprep.mubr.bf16.mxu0 0
      %2870 = vmatmul.mubr.bf16.gmra.mrb[0].mxu0 %v2651
      %v2871 = vpop.f32.mrb[0].mxu0
      %v2872 = vadd.f32 %v2680, %v2871
      %v2873 = vpop.f32.mrb[0].mxu0
      %v2874 = vadd.f32 %v2684, %v2873
      %v2875 = vpop.f32.mrb[0].mxu0
      %v2876 = vadd.f32 %v2680, %v2875
      %v2877 = vpop.f32.mrb[0].mxu0
      %v2878 = vadd.f32 %v2684, %v2877
      %2879 = vmatprep.mubr.bf16.mxu0 0
      %2880 = vmatmul.mubr.bf16.gmra.mrb[0].mxu0 %v2652
      %v2881 = vpop.f32.mrb[0].mxu0
      %v2882 = vadd.f32 %v2680, %v2881
      %v2883 = vpop.f32.mrb[0].mxu0
      %v2884 = vadd.f32 %v2684, %v2883
      %v2885 = vpop.f32.mrb[0].mxu0
      %v2886 = vadd.f32 %v2680, %v2885
      %v2887 = vpop.f32.mrb[0].mxu0
      %v2888 = vadd.f32 %v2684, %v2887
      %2889 = vmatprep.mubr.bf16.mxu0 0
      %2890 = vmatmul.mubr.bf16.gmra.mrb[0].mxu0 %v2653
      %v2891 = vpop.f32.mrb[0].mxu0
      %v2892 = vadd.f32 %v2680, %v2891
      %v2893 = vpop.f32.mrb[0].mxu0
      %v2894 = vadd.f32 %v2684, %v2893
      %v2895 = vpop.f32.mrb[0].mxu0
      %v2896 = vadd.f32 %v2680, %v2895
      %v2897 = vpop.f32.mrb[0].mxu0
      %v2898 = vadd.f32 %v2684, %v2897
      %2899 = vmatprep.mubr.bf16.mxu0 0
      %2900 = vmatmul.mubr.bf16.gmra.mrb[0].mxu0 %v2654
      %v2901 = vpop.f32.mrb[0].mxu0
      %v2902 = vadd.f32 %v2680, %v2901
      %v2903 = vpop.f32.mrb[0].mxu0
      %v2904 = vadd.f32 %v2684, %v2903
      %v2905 = vpop.f32.mrb[0].mxu0
      %v2906 = vadd.f32 %v2680, %v2905
      %v2907 = vpop.f32.mrb[0].mxu0
      %v2908 = vadd.f32 %v2684, %v2907
      %2909 = vmatprep.mubr.bf16.mxu0 0
      %2910 = vmatmul.mubr.bf16.gmra.mrb[0].mxu0 %v2655
      %v2911 = vpop.f32.mrb[0].mxu0
      %v2912 = vadd.f32 %v2680, %v2911
      %v2913 = vpop.f32.mrb[0].mxu0
      %v2914 = vadd.f32 %v2684, %v2913
      %v2915 = vpop.f32.mrb[0].mxu0
      %v2916 = vadd.f32 %v2680, %v2915
      %v2917 = vpop.f32.mrb[0].mxu0
      %v2918 = vadd.f32 %v2684, %v2917
      %2919 = vmatprep.mubr.bf16.mxu0 0
      %2920 = vmatmul.mubr.bf16.gmra.mrb[0].mxu0 %v2656
      %v2921 = vpop.f32.mrb[0].mxu0
      %v2922 = vadd.f32 %v2680, %v2921
      %v2923 = vpop.f32.mrb[0].mxu0
      %v2924 = vadd.f32 %v2684, %v2923
      %v2925 = vpop.f32.mrb[0].mxu0
      %v2926 = vadd.f32 %v2680, %v2925
      %v2927 = vpop.f32.mrb[0].mxu0
      %v2928 = vadd.f32 %v2684, %v2927
      %2929 = vmatprep.mubr.bf16.mxu0 0
      %2930 = vmatmul.mubr.bf16.gmra.mrb[0].mxu0 %v2657
      %v2931 = vpop.f32.mrb[0].mxu0
      %v2932 = vadd.f32 %v2680, %v2931
      %v2933 = vpop.f32.mrb[0].mxu0
      %v2934 = vadd.f32 %v2684, %v2933
      %v2935 = vpop.f32.mrb[0].mxu0
      %v2936 = vadd.f32 %v2680, %v2935
      %v2937 = vpop.f32.mrb[0].mxu0
      %v2938 = vadd.f32 %v2684, %v2937
      %2939 = vmatprep.mubr.bf16.mxu0 0
      %2940 = vmatmul.mubr.bf16.gmra.mrb[0].mxu0 %v2658
      %v2941 = vpop.f32.mrb[0].mxu0
      %v2942 = vadd.f32 %v2680, %v2941
      %v2943 = vpop.f32.mrb[0].mxu0
      %v2944 = vadd.f32 %v2684, %v2943
      %v2945 = vpop.f32.mrb[0].mxu0
      %v2946 = vadd.f32 %v2680, %v2945
      %v2947 = vpop.f32.mrb[0].mxu0
      %v2948 = vadd.f32 %v2684, %v2947
      %2949 = vmatprep.mubr.bf16.mxu0 0
      %2950 = vmatmul.mubr.bf16.gmra.mrb[0].mxu0 %v2659
      %v2951 = vpop.f32.mrb[0].mxu0
      %v2952 = vadd.f32 %v2680, %v2951
      %v2953 = vpop.f32.mrb[0].mxu0
      %v2954 = vadd.f32 %v2684, %v2953
      %v2955 = vpop.f32.mrb[0].mxu0
      %v2956 = vadd.f32 %v2680, %v2955
      %v2957 = vpop.f32.mrb[0].mxu0
      %v2958 = vadd.f32 %v2684, %v2957
      %2959 = vmatprep.mubr.bf16.mxu0 0
      %2960 = vmatmul.mubr.bf16.gmra.mrb[0].mxu0 %v2660
      %v2961 = vpop.f32.mrb[0].mxu0
      %v2962 = vadd.f32 %v2680, %v2961
      %v2963 = vpop.f32.mrb[0].mxu0
      %v2964 = vadd.f32 %v2684, %v2963
      %v2965 = vpop.f32.mrb[0].mxu0
      %v2966 = vadd.f32 %v2680, %v2965
      %v2967 = vpop.f32.mrb[0].mxu0
      %v2968 = vadd.f32 %v2684, %v2967
      %2969 = vmatprep.mubr.bf16.mxu0 0
      %2970 = vmatmul.mubr.bf16.gmra.mrb[0].mxu0 %v2661
      %v2971 = vpop.f32.mrb[0].mxu0
      %v2972 = vadd.f32 %v2680, %v2971
      %v2973 = vpop.f32.mrb[0].mxu0
      %v2974 = vadd.f32 %v2684, %v2973
      %v2975 = vpop.f32.mrb[0].mxu0
      %v2976 = vadd.f32 %v2680, %v2975
      %v2977 = vpop.f32.mrb[0].mxu0
      %v2978 = vadd.f32 %v2684, %v2977
      %2979 = vmatprep.mubr.bf16.mxu0 0
      %2980 = vmatmul.mubr.bf16.gmra.mrb[0].mxu0 %v2662
      %v2981 = vpop.f32.mrb[0].mxu0
      %v2982 = vadd.f32 %v2680, %v2981
      %v2983 = vpop.f32.mrb[0].mxu0
      %v2984 = vadd.f32 %v2684, %v2983
      %v2985 = vpop.f32.mrb[0].mxu0
      %v2986 = vadd.f32 %v2680, %v2985
      %v2987 = vpop.f32.mrb[0].mxu0
      %v2988 = vadd.f32 %v2684, %v2987
      %2989 = vmatprep.mubr.bf16.mxu0 0
      %2990 = vmatmul.mubr.bf16.gmra.mrb[0].mxu0 %v2663
      %v2991 = vpop.f32.mrb[0].mxu0
      %v2992 = vadd.f32 %v2680, %v2991
      %v2993 = vpop.f32.mrb[0].mxu0
      %v2994 = vadd.f32 %v2684, %v2993
      %v2995 = vpop.f32.mrb[0].mxu0
      %v2996 = vadd.f32 %v2680, %v2995
      %v2997 = vpop.f32.mrb[0].mxu0
      %v2998 = vadd.f32 %v2684, %v2997
      %2999 = vmatprep.mubr.bf16.mxu0 0
      %3000 = vmatmul.mubr.bf16.gmra.mrb[0].mxu0 %v2664
      %v3001 = vpop.f32.mrb[0].mxu0
      %v3002 = vadd.f32 %v2680, %v3001
      %v3003 = vpop.f32.mrb[0].mxu0
      %v3004 = vadd.f32 %v2684, %v3003
      %v3005 = vpop.f32.mrb[0].mxu0
      %v3006 = vadd.f32 %v2680, %v3005
      %v3007 = vpop.f32.mrb[0].mxu0
      %v3008 = vadd.f32 %v2684, %v3007
      %3009 = vmatprep.mubr.bf16.mxu0 0
      %3010 = vmatmul.mubr.bf16.gmra.mrb[0].mxu0 %v2665
      %v3011 = vpop.f32.mrb[0].mxu0
      %v3012 = vadd.f32 %v2680, %v3011
      %v3013 = vpop.f32.mrb[0].mxu0
      %v3014 = vadd.f32 %v2684, %v3013
      %v3015 = vpop.f32.mrb[0].mxu0
      %v3016 = vadd.f32 %v2680, %v3015
      %v3017 = vpop.f32.mrb[0].mxu0
      %v3018 = vadd.f32 %v2684, %v3017
      %3019 = vmatprep.mubr.bf16.mxu0 0
      %3020 = vmatmul.mubr.bf16.gmra.mrb[0].mxu0 %v2666
      %v3021 = vpop.f32.mrb[0].mxu0
      %v3022 = vadd.f32 %v2680, %v3021
      %v3023 = vpop.f32.mrb[0].mxu0
      %v3024 = vadd.f32 %v2684, %v3023
      %v3025 = vpop.f32.mrb[0].mxu0
      %v3026 = vadd.f32 %v2680, %v3025
      %v3027 = vpop.f32.mrb[0].mxu0
      %v3028 = vadd.f32 %v2684, %v3027
      %3029 = vmatprep.mubr.bf16.mxu0 0
      %3030 = vmatmul.mubr.bf16.gmra.mrb[0].mxu0 %v2667
      %v3031 = vpop.f32.mrb[0].mxu0
      %v3032 = vadd.f32 %v2680, %v3031
      %v3033 = vpop.f32.mrb[0].mxu0
      %v3034 = vadd.f32 %v2684, %v3033
      %v3035 = vpop.f32.mrb[0].mxu0
      %v3036 = vadd.f32 %v2680, %v3035
      %v3037 = vpop.f32.mrb[0].mxu0
      %v3038 = vadd.f32 %v2684, %v3037
      %3039 = vmatprep.mubr.bf16.mxu0 0
      %3040 = vmatmul.mubr.bf16.gmra.mrb[0].mxu0 %v2668
      %v3041 = vpop.f32.mrb[0].mxu0
      %v3042 = vadd.f32 %v2680, %v3041
      %v3043 = vpop.f32.mrb[0].mxu0
      %v3044 = vadd.f32 %v2684, %v3043
      %v3045 = vpop.f32.mrb[0].mxu0
      %v3046 = vadd.f32 %v2680, %v3045
      %v3047 = vpop.f32.mrb[0].mxu0
      %v3048 = vadd.f32 %v2684, %v3047
      %3049 = vmatprep.mubr.bf16.mxu0 0
      %3050 = vmatmul.mubr.bf16.gmra.mrb[0].mxu0 %v2669
      %v3051 = vpop.f32.mrb[0].mxu0
      %v3052 = vadd.f32 %v2680, %v3051
      %v3053 = vpop.f32.mrb[0].mxu0
      %v3054 = vadd.f32 %v2684, %v3053
      %v3055 = vpop.f32.mrb[0].mxu0
      %v3056 = vadd.f32 %v2680, %v3055
      %v3057 = vpop.f32.mrb[0].mxu0
      %v3058 = vadd.f32 %v2684, %v3057
      %3059 = vmatprep.mubr.bf16.mxu0 0
      %3060 = vmatmul.mubr.bf16.gmra.mrb[0].mxu0 %v2670
      %v3061 = vpop.f32.mrb[0].mxu0
      %v3062 = vadd.f32 %v2680, %v3061
      %v3063 = vpop.f32.mrb[0].mxu0
      %v3064 = vadd.f32 %v2684, %v3063
      %v3065 = vpop.f32.mrb[0].mxu0
      %v3066 = vadd.f32 %v2680, %v3065
      %v3067 = vpop.f32.mrb[0].mxu0
      %v3068 = vadd.f32 %v2684, %v3067
      %3069 = vmatprep.mubr.bf16.mxu0 0
      %3070 = vmatmul.mubr.bf16.gmra.mrb[0].mxu0 %v2671
      %v3071 = vpop.f32.mrb[0].mxu0
      %v3072 = vadd.f32 %v2680, %v3071
      %v3073 = vpop.f32.mrb[0].mxu0
      %v3074 = vadd.f32 %v2684, %v3073
      %v3075 = vpop.f32.mrb[0].mxu0
      %v3076 = vadd.f32 %v2680, %v3075
      %v3077 = vpop.f32.mrb[0].mxu0
      %v3078 = vadd.f32 %v2684, %v3077
      %3079 = vmatprep.mubr.bf16.mxu0 0
      %3080 = vmatmul.mubr.bf16.gmra.mrb[0].mxu0 %v2672
      %v3081 = vpop.f32.mrb[0].mxu0
      %v3082 = vadd.f32 %v2680, %v3081
      %v3083 = vpop.f32.mrb[0].mxu0
      %v3084 = vadd.f32 %v2684, %v3083
      %v3085 = vpop.f32.mrb[0].mxu0
      %v3086 = vadd.f32 %v2680, %v3085
      %v3087 = vpop.f32.mrb[0].mxu0
      %v3088 = vadd.f32 %v2684, %v3087
      %3089 = vmatprep.mubr.bf16.mxu0 0
      %3090 = vmatmul.mubr.bf16.gmra.mrb[0].mxu0 %v2673
      %v3091 = vpop.f32.mrb[0].mxu0
      %v3092 = vadd.f32 %v2680, %v3091
      %v3093 = vpop.f32.mrb[0].mxu0
      %v3094 = vadd.f32 %v2684, %v3093
      %v3095 = vpop.f32.mrb[0].mxu0
      %v3096 = vadd.f32 %v2680, %v3095
      %v3097 = vpop.f32.mrb[0].mxu0
      %v3098 = vadd.f32 %v2684, %v3097
      %3099 = vmatprep.mubr.bf16.mxu0 0
      %3100 = vmatmul.mubr.bf16.gmra.mrb[0].mxu0 %v2674
      %v3101 = vpop.f32.mrb[0].mxu0
      %v3102 = vadd.f32 %v2680, %v3101
      %v3103 = vpop.f32.mrb[0].mxu0
      %v3104 = vadd.f32 %v2684, %v3103
      %v3105 = vpop.f32.mrb[0].mxu0
      %v3106 = vadd.f32 %v2680, %v3105
      %v3107 = vpop.f32.mrb[0].mxu0
      %v3108 = vadd.f32 %v2684, %v3107
      %3109 = vmatprep.mubr.bf16.mxu0 0
      %3110 = vmatmul.mubr.bf16.gmra.mrb[0].mxu0 %v2675
      %v3111 = vpop.f32.mrb[0].mxu0
      %v3112 = vadd.f32 %v2680, %v3111
      %v3113 = vpop.f32.mrb[0].mxu0
      %v3114 = vadd.f32 %v2684, %v3113
      %v3115 = vpop.f32.mrb[0].mxu0
      %v3116 = vadd.f32 %v2680, %v3115
      %v3117 = vpop.f32.mrb[0].mxu0
      %v3118 = vadd.f32 %v2684, %v3117
      %3119 = vdwg.mxu0
      %v3120 = vld [vmem:[%s986] sm:$0xff]
      %v3121 = vld [vmem:[%s986 + $0x8] sm:$0xff]
      %v3122 = vld [vmem:[%s986 + $0x10] sm:$0xff]
      %v3123 = vld [vmem:[%s986 + $0x18] sm:$0xff]
      %v3124 = vld [vmem:[%s986 + $0x20] sm:$0xff]
      %v3125 = vld [vmem:[%s986 + $0x28] sm:$0xff]
      %v3126 = vld [vmem:[%s986 + $0x30] sm:$0xff]
      %v3127 = vld [vmem:[%s986 + $0x38] sm:$0xff]
      %v3128 = vld [vmem:[%s986 + $0x40] sm:$0xff]
      %v3129 = vld [vmem:[%s986 + $0x48] sm:$0xff]
      %v3130 = vld [vmem:[%s986 + $0x50] sm:$0xff]
      %v3131 = vld [vmem:[%s986 + $0x58] sm:$0xff]
      %v3132 = vld [vmem:[%s986 + $0x60] sm:$0xff]
      %v3133 = vld [vmem:[%s986 + $0x68] sm:$0xff]
      %v3134 = vld [vmem:[%s986 + $0x70] sm:$0xff]
      %v3135 = vld [vmem:[%s986 + $0x78] sm:$0xff]
      %v3136 = vld [vmem:[%s986 + $0x80] sm:$0xff]
      %v3137 = vld [vmem:[%s986 + $0x88] sm:$0xff]
      %v3138 = vld [vmem:[%s986 + $0x90] sm:$0xff]
      %v3139 = vld [vmem:[%s986 + $0x98] sm:$0xff]
      %v3140 = vld [vmem:[%s986 + $0xa0] sm:$0xff]
      %v3141 = vld [vmem:[%s986 + $0xa8] sm:$0xff]
      %v3142 = vld [vmem:[%s986 + $0xb0] sm:$0xff]
      %v3143 = vld [vmem:[%s986 + $0xb8] sm:$0xff]
      %v3144 = vld [vmem:[%s986 + $0xc0] sm:$0xff]
      %v3145 = vld [vmem:[%s986 + $0xc8] sm:$0xff]
      %v3146 = vld [vmem:[%s986 + $0xd0] sm:$0xff]
      %v3147 = vld [vmem:[%s986 + $0xd8] sm:$0xff]
      %v3148 = vld [vmem:[%s986 + $0xe0] sm:$0xff]
      %v3149 = vld [vmem:[%s986 + $0xe8] sm:$0xff]
      %v3150 = vld [vmem:[%s986 + $0xf0] sm:$0xff]
      %v3151 = vld [vmem:[%s986 + $0xf8] sm:$0xff]
      %v3152 = vld [vmem:[%s986 + $0x100] sm:$0xff]
      %v3153 = vld [vmem:[%s986 + $0x108] sm:$0xff]
      %v3154 = vld [vmem:[%s986 + $0x110] sm:$0xff]
      %v3155 = vld [vmem:[%s986 + $0x118] sm:$0xff]
      %v3156 = vld [vmem:[%s986 + $0x120] sm:$0xff]
      %v3157 = vld [vmem:[%s986 + $0x128] sm:$0xff]
      %v3158 = vld [vmem:[%s986 + $0x130] sm:$0xff]
      %v3159 = vld [vmem:[%s986 + $0x138] sm:$0xff]
      %v3160 = vld [vmem:[%s986 + $0x140] sm:$0xff]
      %v3161 = vld [vmem:[%s986 + $0x148] sm:$0xff]
      %v3162 = vld [vmem:[%s986 + $0x150] sm:$0xff]
      %v3163 = vld [vmem:[%s986 + $0x158] sm:$0xff]
      %v3164 = vld [vmem:[%s986 + $0x160] sm:$0xff]
      %v3165 = vld [vmem:[%s986 + $0x168] sm:$0xff]
      %v3166 = vld [vmem:[%s986 + $0x170] sm:$0xff]
      %v3167 = vld [vmem:[%s986 + $0x178] sm:$0xff]
      %v3168 = vld [vmem:[%s986 + $0x180] sm:$0xff]
      %v3169 = vld [vmem:[%s986 + $0x188] sm:$0xff]
      %v3170 = vld [vmem:[%s986 + $0x190] sm:$0xff]
      %v3171 = vld [vmem:[%s986 + $0x198] sm:$0xff]
      %v3172 = vld [vmem:[%s986 + $0x1a0] sm:$0xff]
      %v3173 = vld [vmem:[%s986 + $0x1a8] sm:$0xff]
      %v3174 = vld [vmem:[%s986 + $0x1b0] sm:$0xff]
      %v3175 = vld [vmem:[%s986 + $0x1b8] sm:$0xff]
      %v3176 = vld [vmem:[%s986 + $0x1c0] sm:$0xff]
      %v3177 = vld [vmem:[%s986 + $0x1c8] sm:$0xff]
      %v3178 = vld [vmem:[%s986 + $0x1d0] sm:$0xff]
      %v3179 = vld [vmem:[%s986 + $0x1d8] sm:$0xff]
      %v3180 = vld [vmem:[%s986 + $0x1e0] sm:$0xff]
      %v3181 = vld [vmem:[%s986 + $0x1e8] sm:$0xff]
      %v3182 = vld [vmem:[%s986 + $0x1f0] sm:$0xff]
      %v3183 = vld [vmem:[%s986 + $0x1f8] sm:$0xff]
      %v3184 = vld [vmem:[%s990] sm:$0xf]
      %v3185 = vmax.f32 %v2802, 0.0
      %v3186 = vmax.f32 %v2804, 0.0
      %v3187 = vmax.f32 %v2806, 0.0
      %v3188 = vmax.f32 %v2808, 0.0
      %v3189 = vmax.f32 %v2812, 0.0
      %v3190 = vmax.f32 %v2814, 0.0
      %v3191 = vmax.f32 %v2816, 0.0
      %v3192 = vmax.f32 %v2818, 0.0
      %v3193 = vmax.f32 %v2822, 0.0
      %v3194 = vmax.f32 %v2824, 0.0
      %v3195 = vmax.f32 %v2826, 0.0
      %v3196 = vmax.f32 %v2828, 0.0
      %v3197 = vmax.f32 %v2832, 0.0
      %v3198 = vmax.f32 %v2834, 0.0
      %v3199 = vmax.f32 %v2836, 0.0
      %v3200 = vmax.f32 %v2838, 0.0
      %v3201 = vmax.f32 %v2842, 0.0
      %v3202 = vmax.f32 %v2844, 0.0
      %v3203 = vmax.f32 %v2846, 0.0
      %v3204 = vmax.f32 %v2848, 0.0
      %v3205 = vmax.f32 %v2852, 0.0
      %v3206 = vmax.f32 %v2854, 0.0
      %v3207 = vmax.f32 %v2856, 0.0
      %v3208 = vmax.f32 %v2858, 0.0
      %v3209 = vmax.f32 %v2862, 0.0
      %v3210 = vmax.f32 %v2864, 0.0
      %v3211 = vmax.f32 %v2866, 0.0
      %v3212 = vmax.f32 %v2868, 0.0
      %v3213 = vmax.f32 %v2872, 0.0
      %v3214 = vmax.f32 %v2874, 0.0
      %v3215 = vmax.f32 %v2876, 0.0
      %v3216 = vmax.f32 %v2878, 0.0
      %v3217 = vmax.f32 %v2882, 0.0
      %v3218 = vmax.f32 %v2884, 0.0
      %v3219 = vmax.f32 %v2886, 0.0
      %v3220 = vmax.f32 %v2888, 0.0
      %v3221 = vmax.f32 %v2892, 0.0
      %v3222 = vmax.f32 %v2894, 0.0
      %v3223 = vmax.f32 %v2896, 0.0
      %v3224 = vmax.f32 %v2898, 0.0
      %v3225 = vmax.f32 %v2902, 0.0
      %v3226 = vmax.f32 %v2904, 0.0
      %v3227 = vmax.f32 %v2906, 0.0
      %v3228 = vmax.f32 %v2908, 0.0
      %v3229 = vmax.f32 %v2912, 0.0
      %v3230 = vmax.f32 %v2914, 0.0
      %v3231 = vmax.f32 %v2916, 0.0
      %v3232 = vmax.f32 %v2918, 0.0
      %v3233 = vmax.f32 %v2922, 0.0
      %v3234 = vmax.f32 %v2924, 0.0
      %v3235 = vmax.f32 %v2926, 0.0
      %v3236 = vmax.f32 %v2928, 0.0
      %v3237 = vmax.f32 %v2932, 0.0
      %v3238 = vmax.f32 %v2934, 0.0
      %v3239 = vmax.f32 %v2936, 0.0
      %v3240 = vmax.f32 %v2938, 0.0
      %v3241 = vmax.f32 %v2942, 0.0
      %v3242 = vmax.f32 %v2944, 0.0
      %v3243 = vmax.f32 %v2946, 0.0
      %v3244 = vmax.f32 %v2948, 0.0
      %v3245 = vmax.f32 %v2952, 0.0
      %v3246 = vmax.f32 %v2954, 0.0
      %v3247 = vmax.f32 %v2956, 0.0
      %v3248 = vmax.f32 %v2958, 0.0
      %v3249 = vmax.f32 %v2962, 0.0
      %v3250 = vmax.f32 %v2964, 0.0
      %v3251 = vmax.f32 %v2966, 0.0
      %v3252 = vmax.f32 %v2968, 0.0
      %v3253 = vmax.f32 %v2972, 0.0
      %v3254 = vmax.f32 %v2974, 0.0
      %v3255 = vmax.f32 %v2976, 0.0
      %v3256 = vmax.f32 %v2978, 0.0
      %v3257 = vmax.f32 %v2982, 0.0
      %v3258 = vmax.f32 %v2984, 0.0
      %v3259 = vmax.f32 %v2986, 0.0
      %v3260 = vmax.f32 %v2988, 0.0
      %v3261 = vmax.f32 %v2992, 0.0
      %v3262 = vmax.f32 %v2994, 0.0
      %v3263 = vmax.f32 %v2996, 0.0
      %v3264 = vmax.f32 %v2998, 0.0
      %v3265 = vmax.f32 %v3002, 0.0
      %v3266 = vmax.f32 %v3004, 0.0
      %v3267 = vmax.f32 %v3006, 0.0
      %v3268 = vmax.f32 %v3008, 0.0
      %v3269 = vmax.f32 %v3012, 0.0
      %v3270 = vmax.f32 %v3014, 0.0
      %v3271 = vmax.f32 %v3016, 0.0
      %v3272 = vmax.f32 %v3018, 0.0
      %v3273 = vmax.f32 %v3022, 0.0
      %v3274 = vmax.f32 %v3024, 0.0
      %v3275 = vmax.f32 %v3026, 0.0
      %v3276 = vmax.f32 %v3028, 0.0
      %v3277 = vmax.f32 %v3032, 0.0
      %v3278 = vmax.f32 %v3034, 0.0
      %v3279 = vmax.f32 %v3036, 0.0
      %v3280 = vmax.f32 %v3038, 0.0
      %v3281 = vmax.f32 %v3042, 0.0
      %v3282 = vmax.f32 %v3044, 0.0
      %v3283 = vmax.f32 %v3046, 0.0
      %v3284 = vmax.f32 %v3048, 0.0
      %v3285 = vmax.f32 %v3052, 0.0
      %v3286 = vmax.f32 %v3054, 0.0
      %v3287 = vmax.f32 %v3056, 0.0
      %v3288 = vmax.f32 %v3058, 0.0
      %v3289 = vmax.f32 %v3062, 0.0
      %v3290 = vmax.f32 %v3064, 0.0
      %v3291 = vmax.f32 %v3066, 0.0
      %v3292 = vmax.f32 %v3068, 0.0
      %v3293 = vmax.f32 %v3072, 0.0
      %v3294 = vmax.f32 %v3074, 0.0
      %v3295 = vmax.f32 %v3076, 0.0
      %v3296 = vmax.f32 %v3078, 0.0
      %v3297 = vmax.f32 %v3082, 0.0
      %v3298 = vmax.f32 %v3084, 0.0
      %v3299 = vmax.f32 %v3086, 0.0
      %v3300 = vmax.f32 %v3088, 0.0
      %v3301 = vmax.f32 %v3092, 0.0
      %v3302 = vmax.f32 %v3094, 0.0
      %v3303 = vmax.f32 %v3096, 0.0
      %v3304 = vmax.f32 %v3098, 0.0
      %v3305 = vmax.f32 %v3102, 0.0
      %v3306 = vmax.f32 %v3104, 0.0
      %v3307 = vmax.f32 %v3106, 0.0
      %v3308 = vmax.f32 %v3108, 0.0
      %v3309 = vmax.f32 %v3112, 0.0
      %v3310 = vmax.f32 %v3114, 0.0
      %v3311 = vmax.f32 %v3116, 0.0
      %v3312 = vmax.f32 %v3118, 0.0
      %v3313 = vpack.c.bf16 %v3187, %v3185
      %v3314 = vpack.c.bf16 %v3188, %v3186
      %v3315 = vpack.c.bf16 %v3191, %v3189
      %v3316 = vpack.c.bf16 %v3192, %v3190
      %v3317 = vpack.c.bf16 %v3195, %v3193
      %v3318 = vpack.c.bf16 %v3196, %v3194
      %v3319 = vpack.c.bf16 %v3199, %v3197
      %v3320 = vpack.c.bf16 %v3200, %v3198
      %v3321 = vpack.c.bf16 %v3203, %v3201
      %v3322 = vpack.c.bf16 %v3204, %v3202
      %v3323 = vpack.c.bf16 %v3207, %v3205
      %v3324 = vpack.c.bf16 %v3208, %v3206
      %v3325 = vpack.c.bf16 %v3211, %v3209
      %v3326 = vpack.c.bf16 %v3212, %v3210
      %v3327 = vpack.c.bf16 %v3215, %v3213
      %v3328 = vpack.c.bf16 %v3216, %v3214
      %v3329 = vpack.c.bf16 %v3219, %v3217
      %v3330 = vpack.c.bf16 %v3220, %v3218
      %v3331 = vpack.c.bf16 %v3223, %v3221
      %v3332 = vpack.c.bf16 %v3224, %v3222
      %v3333 = vpack.c.bf16 %v3227, %v3225
      %v3334 = vpack.c.bf16 %v3228, %v3226
      %v3335 = vpack.c.bf16 %v3231, %v3229
      %v3336 = vpack.c.bf16 %v3232, %v3230
      %v3337 = vpack.c.bf16 %v3235, %v3233
      %v3338 = vpack.c.bf16 %v3236, %v3234
      %v3339 = vpack.c.bf16 %v3239, %v3237
      %v3340 = vpack.c.bf16 %v3240, %v3238
      %v3341 = vpack.c.bf16 %v3243, %v3241
      %v3342 = vpack.c.bf16 %v3244, %v3242
      %v3343 = vpack.c.bf16 %v3247, %v3245
      %v3344 = vpack.c.bf16 %v3248, %v3246
      %v3345 = vpack.c.bf16 %v3251, %v3249
      %v3346 = vpack.c.bf16 %v3252, %v3250
      %v3347 = vpack.c.bf16 %v3255, %v3253
      %v3348 = vpack.c.bf16 %v3256, %v3254
      %v3349 = vpack.c.bf16 %v3259, %v3257
      %v3350 = vpack.c.bf16 %v3260, %v3258
      %v3351 = vpack.c.bf16 %v3263, %v3261
      %v3352 = vpack.c.bf16 %v3264, %v3262
      %v3353 = vpack.c.bf16 %v3267, %v3265
      %v3354 = vpack.c.bf16 %v3268, %v3266
      %v3355 = vpack.c.bf16 %v3271, %v3269
      %v3356 = vpack.c.bf16 %v3272, %v3270
      %v3357 = vpack.c.bf16 %v3275, %v3273
      %v3358 = vpack.c.bf16 %v3276, %v3274
      %v3359 = vpack.c.bf16 %v3279, %v3277
      %v3360 = vpack.c.bf16 %v3280, %v3278
      %v3361 = vpack.c.bf16 %v3283, %v3281
      %v3362 = vpack.c.bf16 %v3284, %v3282
      %v3363 = vpack.c.bf16 %v3287, %v3285
      %v3364 = vpack.c.bf16 %v3288, %v3286
      %v3365 = vpack.c.bf16 %v3291, %v3289
      %v3366 = vpack.c.bf16 %v3292, %v3290
      %v3367 = vpack.c.bf16 %v3295, %v3293
      %v3368 = vpack.c.bf16 %v3296, %v3294
      %v3369 = vpack.c.bf16 %v3299, %v3297
      %v3370 = vpack.c.bf16 %v3300, %v3298
      %v3371 = vpack.c.bf16 %v3303, %v3301
      %v3372 = vpack.c.bf16 %v3304, %v3302
      %v3373 = vpack.c.bf16 %v3307, %v3305
      %v3374 = vpack.c.bf16 %v3308, %v3306
      %v3375 = vpack.c.bf16 %v3311, %v3309
      %v3376 = vpack.c.bf16 %v3312, %v3310
      %v3378 = vlaneseq
      %v3379 = vshrl.u32 %v3378, 7
      %v3380 = vsub.s32 0, %v3379
      %v3381 = vrot.slane %v3184, %v3380
      %v3382 = vlaneseq
      %v3383 = vshrl.u32 %v3382, 7
      %v3384 = vsub.s32 1, %v3383
      %v3385 = vrot.slane %v3184, %v3384
      %v3386 = vlaneseq
      %v3387 = vshrl.u32 %v3386, 7
      %v3388 = vsub.s32 2, %v3387
      %v3389 = vrot.slane %v3184, %v3388
      %v3390 = vlaneseq
      %v3391 = vshrl.u32 %v3390, 7
      %v3392 = vsub.s32 3, %v3391
      %v3393 = vrot.slane %v3184, %v3392
      %v3462 = vunpack.c.l.b16 %v3120
      %v3463 = vunpack.c.h.b16 %v3120
      %v3464 = vunpack.c.l.b16 %v3121
      %v3465 = vunpack.c.h.b16 %v3121
      %v3466 = vunpack.c.l.b16 %v3122
      %v3467 = vunpack.c.h.b16 %v3122
      %v3468 = vunpack.c.l.b16 %v3123
      %v3469 = vunpack.c.h.b16 %v3123
      %v3470 = vunpack.c.l.b16 %v3124
      %v3471 = vunpack.c.h.b16 %v3124
      %v3472 = vunpack.c.l.b16 %v3125
      %v3473 = vunpack.c.h.b16 %v3125
      %v3474 = vunpack.c.l.b16 %v3126
      %v3475 = vunpack.c.h.b16 %v3126
      %v3476 = vunpack.c.l.b16 %v3127
      %v3477 = vunpack.c.h.b16 %v3127
      %v3478 = vunpack.c.l.b16 %v3128
      %v3479 = vunpack.c.h.b16 %v3128
      %v3480 = vunpack.c.l.b16 %v3129
      %v3481 = vunpack.c.h.b16 %v3129
      %v3482 = vunpack.c.l.b16 %v3130
      %v3483 = vunpack.c.h.b16 %v3130
      %v3484 = vunpack.c.l.b16 %v3131
      %v3485 = vunpack.c.h.b16 %v3131
      %v3486 = vunpack.c.l.b16 %v3132
      %v3487 = vunpack.c.h.b16 %v3132
      %v3488 = vunpack.c.l.b16 %v3133
      %v3489 = vunpack.c.h.b16 %v3133
      %v3490 = vunpack.c.l.b16 %v3134
      %v3491 = vunpack.c.h.b16 %v3134
      %v3492 = vunpack.c.l.b16 %v3135
      %v3493 = vunpack.c.h.b16 %v3135
      %v3494 = vunpack.c.l.b16 %v3136
      %v3495 = vunpack.c.h.b16 %v3136
      %v3496 = vunpack.c.l.b16 %v3137
      %v3497 = vunpack.c.h.b16 %v3137
      %v3498 = vunpack.c.l.b16 %v3138
      %v3499 = vunpack.c.h.b16 %v3138
      %v3500 = vunpack.c.l.b16 %v3139
      %v3501 = vunpack.c.h.b16 %v3139
      %v3502 = vunpack.c.l.b16 %v3140
      %v3503 = vunpack.c.h.b16 %v3140
      %v3504 = vunpack.c.l.b16 %v3141
      %v3505 = vunpack.c.h.b16 %v3141
      %v3506 = vunpack.c.l.b16 %v3142
      %v3507 = vunpack.c.h.b16 %v3142
      %v3508 = vunpack.c.l.b16 %v3143
      %v3509 = vunpack.c.h.b16 %v3143
      %v3510 = vunpack.c.l.b16 %v3144
      %v3511 = vunpack.c.h.b16 %v3144
      %v3512 = vunpack.c.l.b16 %v3145
      %v3513 = vunpack.c.h.b16 %v3145
      %v3514 = vunpack.c.l.b16 %v3146
      %v3515 = vunpack.c.h.b16 %v3146
      %v3516 = vunpack.c.l.b16 %v3147
      %v3517 = vunpack.c.h.b16 %v3147
      %v3518 = vunpack.c.l.b16 %v3148
      %v3519 = vunpack.c.h.b16 %v3148
      %v3520 = vunpack.c.l.b16 %v3149
      %v3521 = vunpack.c.h.b16 %v3149
      %v3522 = vunpack.c.l.b16 %v3150
      %v3523 = vunpack.c.h.b16 %v3150
      %v3524 = vunpack.c.l.b16 %v3151
      %v3525 = vunpack.c.h.b16 %v3151
      %v3526 = vunpack.c.l.b16 %v3152
      %v3527 = vunpack.c.h.b16 %v3152
      %v3528 = vunpack.c.l.b16 %v3153
      %v3529 = vunpack.c.h.b16 %v3153
      %v3530 = vunpack.c.l.b16 %v3154
      %v3531 = vunpack.c.h.b16 %v3154
      %v3532 = vunpack.c.l.b16 %v3155
      %v3533 = vunpack.c.h.b16 %v3155
      %v3534 = vunpack.c.l.b16 %v3156
      %v3535 = vunpack.c.h.b16 %v3156
      %v3536 = vunpack.c.l.b16 %v3157
      %v3537 = vunpack.c.h.b16 %v3157
      %v3538 = vunpack.c.l.b16 %v3158
      %v3539 = vunpack.c.h.b16 %v3158
      %v3540 = vunpack.c.l.b16 %v3159
      %v3541 = vunpack.c.h.b16 %v3159
      %v3542 = vunpack.c.l.b16 %v3160
      %v3543 = vunpack.c.h.b16 %v3160
      %v3544 = vunpack.c.l.b16 %v3161
      %v3545 = vunpack.c.h.b16 %v3161
      %v3546 = vunpack.c.l.b16 %v3162
      %v3547 = vunpack.c.h.b16 %v3162
      %v3548 = vunpack.c.l.b16 %v3163
      %v3549 = vunpack.c.h.b16 %v3163
      %v3550 = vunpack.c.l.b16 %v3164
      %v3551 = vunpack.c.h.b16 %v3164
      %v3552 = vunpack.c.l.b16 %v3165
      %v3553 = vunpack.c.h.b16 %v3165
      %v3554 = vunpack.c.l.b16 %v3166
      %v3555 = vunpack.c.h.b16 %v3166
      %v3556 = vunpack.c.l.b16 %v3167
      %v3557 = vunpack.c.h.b16 %v3167
      %v3558 = vunpack.c.l.b16 %v3168
      %v3559 = vunpack.c.h.b16 %v3168
      %v3560 = vunpack.c.l.b16 %v3169
      %v3561 = vunpack.c.h.b16 %v3169
      %v3562 = vunpack.c.l.b16 %v3170
      %v3563 = vunpack.c.h.b16 %v3170
      %v3564 = vunpack.c.l.b16 %v3171
      %v3565 = vunpack.c.h.b16 %v3171
      %v3566 = vunpack.c.l.b16 %v3172
      %v3567 = vunpack.c.h.b16 %v3172
      %v3568 = vunpack.c.l.b16 %v3173
      %v3569 = vunpack.c.h.b16 %v3173
      %v3570 = vunpack.c.l.b16 %v3174
      %v3571 = vunpack.c.h.b16 %v3174
      %v3572 = vunpack.c.l.b16 %v3175
      %v3573 = vunpack.c.h.b16 %v3175
      %v3574 = vunpack.c.l.b16 %v3176
      %v3575 = vunpack.c.h.b16 %v3176
      %v3576 = vunpack.c.l.b16 %v3177
      %v3577 = vunpack.c.h.b16 %v3177
      %v3578 = vunpack.c.l.b16 %v3178
      %v3579 = vunpack.c.h.b16 %v3178
      %v3580 = vunpack.c.l.b16 %v3179
      %v3581 = vunpack.c.h.b16 %v3179
      %v3582 = vunpack.c.l.b16 %v3180
      %v3583 = vunpack.c.h.b16 %v3180
      %v3584 = vunpack.c.l.b16 %v3181
      %v3585 = vunpack.c.h.b16 %v3181
      %v3586 = vunpack.c.l.b16 %v3182
      %v3587 = vunpack.c.h.b16 %v3182
      %v3588 = vunpack.c.l.b16 %v3183
      %v3589 = vunpack.c.h.b16 %v3183
      %v3590 = vpack.c.b16 %v3466, %v3462
      %v3591 = vpack.c.b16 %v3467, %v3463
      %v3592 = vpack.c.b16 %v3468, %v3464
      %v3593 = vpack.c.b16 %v3469, %v3465
      %v3594 = vpack.c.b16 %v3474, %v3470
      %v3595 = vpack.c.b16 %v3475, %v3471
      %v3596 = vpack.c.b16 %v3476, %v3472
      %v3597 = vpack.c.b16 %v3477, %v3473
      %v3598 = vpack.c.b16 %v3482, %v3478
      %v3599 = vpack.c.b16 %v3483, %v3479
      %v3600 = vpack.c.b16 %v3484, %v3480
      %v3601 = vpack.c.b16 %v3485, %v3481
      %v3602 = vpack.c.b16 %v3490, %v3486
      %v3603 = vpack.c.b16 %v3491, %v3487
      %v3604 = vpack.c.b16 %v3492, %v3488
      %v3605 = vpack.c.b16 %v3493, %v3489
      %v3606 = vpack.c.b16 %v3498, %v3494
      %v3607 = vpack.c.b16 %v3499, %v3495
      %v3608 = vpack.c.b16 %v3500, %v3496
      %v3609 = vpack.c.b16 %v3501, %v3497
      %v3610 = vpack.c.b16 %v3506, %v3502
      %v3611 = vpack.c.b16 %v3507, %v3503
      %v3612 = vpack.c.b16 %v3508, %v3504
      %v3613 = vpack.c.b16 %v3509, %v3505
      %v3614 = vpack.c.b16 %v3514, %v3510
      %v3615 = vpack.c.b16 %v3515, %v3511
      %v3616 = vpack.c.b16 %v3516, %v3512
      %v3617 = vpack.c.b16 %v3517, %v3513
      %v3618 = vpack.c.b16 %v3522, %v3518
      %v3619 = vpack.c.b16 %v3523, %v3519
      %v3620 = vpack.c.b16 %v3524, %v3520
      %v3621 = vpack.c.b16 %v3525, %v3521
      %v3622 = vpack.c.b16 %v3530, %v3526
      %v3623 = vpack.c.b16 %v3531, %v3527
      %v3624 = vpack.c.b16 %v3532, %v3528
      %v3625 = vpack.c.b16 %v3533, %v3529
      %v3626 = vpack.c.b16 %v3538, %v3534
      %v3627 = vpack.c.b16 %v3539, %v3535
      %v3628 = vpack.c.b16 %v3540, %v3536
      %v3629 = vpack.c.b16 %v3541, %v3537
      %v3630 = vpack.c.b16 %v3546, %v3542
      %v3631 = vpack.c.b16 %v3547, %v3543
      %v3632 = vpack.c.b16 %v3548, %v3544
      %v3633 = vpack.c.b16 %v3549, %v3545
      %v3634 = vpack.c.b16 %v3554, %v3550
      %v3635 = vpack.c.b16 %v3555, %v3551
      %v3636 = vpack.c.b16 %v3556, %v3552
      %v3637 = vpack.c.b16 %v3557, %v3553
      %v3638 = vpack.c.b16 %v3562, %v3558
      %v3639 = vpack.c.b16 %v3563, %v3559
      %v3640 = vpack.c.b16 %v3564, %v3560
      %v3641 = vpack.c.b16 %v3565, %v3561
      %v3642 = vpack.c.b16 %v3570, %v3566
      %v3643 = vpack.c.b16 %v3571, %v3567
      %v3644 = vpack.c.b16 %v3572, %v3568
      %v3645 = vpack.c.b16 %v3573, %v3569
      %v3646 = vpack.c.b16 %v3578, %v3574
      %v3647 = vpack.c.b16 %v3579, %v3575
      %v3648 = vpack.c.b16 %v3580, %v3576
      %v3649 = vpack.c.b16 %v3581, %v3577
      %v3650 = vpack.c.b16 %v3586, %v3582
      %v3651 = vpack.c.b16 %v3587, %v3583
      %v3652 = vpack.c.b16 %v3588, %v3584
      %v3653 = vpack.c.b16 %v3589, %v3585
      %3718 = vmatprep.subr.bf16.mxu0 %v3591
      %3719 = vmatpush1.bf16.msra.mxu0 %v3590
      %3720 = vmatprep.subr.bf16.mxu0 %v3595
      %3721 = vmatpush1.bf16.msra.mxu0 %v3594
      %3722 = vmatprep.subr.bf16.mxu0 %v3599
      %3723 = vmatpush1.bf16.msra.mxu0 %v3598
      %3724 = vmatprep.subr.bf16.mxu0 %v3603
      %3725 = vmatpush1.bf16.msra.mxu0 %v3602
      %3726 = vmatprep.subr.bf16.mxu0 %v3607
      %3727 = vmatpush1.bf16.msra.mxu0 %v3606
      %3728 = vmatprep.subr.bf16.mxu0 %v3611
      %3729 = vmatpush1.bf16.msra.mxu0 %v3610
      %3730 = vmatprep.subr.bf16.mxu0 %v3615
      %3731 = vmatpush1.bf16.msra.mxu0 %v3614
      %3732 = vmatprep.subr.bf16.mxu0 %v3619
      %3733 = vmatpush1.bf16.msra.mxu0 %v3618
      %3734 = vmatprep.subr.bf16.mxu0 %v3623
      %3735 = vmatpush1.bf16.msra.mxu0 %v3622
      %3736 = vmatprep.subr.bf16.mxu0 %v3627
      %3737 = vmatpush1.bf16.msra.mxu0 %v3626
      %3738 = vmatprep.subr.bf16.mxu0 %v3631
      %3739 = vmatpush1.bf16.msra.mxu0 %v3630
      %3740 = vmatprep.subr.bf16.mxu0 %v3635
      %3741 = vmatpush1.bf16.msra.mxu0 %v3634
      %3742 = vmatprep.subr.bf16.mxu0 %v3639
      %3743 = vmatpush1.bf16.msra.mxu0 %v3638
      %3744 = vmatprep.subr.bf16.mxu0 %v3643
      %3745 = vmatpush1.bf16.msra.mxu0 %v3642
      %3746 = vmatprep.subr.bf16.mxu0 %v3647
      %3747 = vmatpush1.bf16.msra.mxu0 %v3646
      %3748 = vmatprep.subr.bf16.mxu0 %v3651
      %3749 = vmatpush1.bf16.msra.mxu0 %v3650
      %3750 = vmatprep.mubr.bf16.mxu0 %v3314
      %3751 = vmatmul.mubr.bf16.gmra.mrb[0].mxu0 %v3313
      %v3752 = vpop.f32.mrb[0].mxu0
      %v3753 = vadd.f32 %v3381, %v3752
      %v3754 = vpop.f32.mrb[0].mxu0
      %v3755 = vadd.f32 %v3385, %v3754
      %v3756 = vpop.f32.mrb[0].mxu0
      %v3757 = vadd.f32 %v3381, %v3756
      %v3758 = vpop.f32.mrb[0].mxu0
      %v3759 = vadd.f32 %v3385, %v3758
      %3760 = vmatprep.mubr.bf16.mxu0 %v3316
      %3761 = vmatmul.mubr.bf16.gmra.mrb[0].mxu0 %v3315
      %v3762 = vpop.f32.mrb[0].mxu0
      %v3763 = vadd.f32 %v3381, %v3762
      %v3764 = vpop.f32.mrb[0].mxu0
      %v3765 = vadd.f32 %v3385, %v3764
      %v3766 = vpop.f32.mrb[0].mxu0
      %v3767 = vadd.f32 %v3381, %v3766
      %v3768 = vpop.f32.mrb[0].mxu0
      %v3769 = vadd.f32 %v3385, %v3768
      %3770 = vmatprep.mubr.bf16.mxu0 %v3318
      %3771 = vmatmul.mubr.bf16.gmra.mrb[0].mxu0 %v3317
      %v3772 = vpop.f32.mrb[0].mxu0
      %v3773 = vadd.f32 %v3381, %v3772
      %v3774 = vpop.f32.mrb[0].mxu0
      %v3775 = vadd.f32 %v3385, %v3774
      %v3776 = vpop.f32.mrb[0].mxu0
      %v3777 = vadd.f32 %v3381, %v3776
      %v3778 = vpop.f32.mrb[0].mxu0
      %v3779 = vadd.f32 %v3385, %v3778
      %3780 = vmatprep.mubr.bf16.mxu0 %v3320
      %3781 = vmatmul.mubr.bf16.gmra.mrb[0].mxu0 %v3319
      %v3782 = vpop.f32.mrb[0].mxu0
      %v3783 = vadd.f32 %v3381, %v3782
      %v3784 = vpop.f32.mrb[0].mxu0
      %v3785 = vadd.f32 %v3385, %v3784
      %v3786 = vpop.f32.mrb[0].mxu0
      %v3787 = vadd.f32 %v3381, %v3786
      %v3788 = vpop.f32.mrb[0].mxu0
      %v3789 = vadd.f32 %v3385, %v3788
      %3790 = vmatprep.mubr.bf16.mxu0 %v3322
      %3791 = vmatmul.mubr.bf16.gmra.mrb[0].mxu0 %v3321
      %v3792 = vpop.f32.mrb[0].mxu0
      %v3793 = vadd.f32 %v3381, %v3792
      %v3794 = vpop.f32.mrb[0].mxu0
      %v3795 = vadd.f32 %v3385, %v3794
      %v3796 = vpop.f32.mrb[0].mxu0
      %v3797 = vadd.f32 %v3381, %v3796
      %v3798 = vpop.f32.mrb[0].mxu0
      %v3799 = vadd.f32 %v3385, %v3798
      %3800 = vmatprep.mubr.bf16.mxu0 %v3324
      %3801 = vmatmul.mubr.bf16.gmra.mrb[0].mxu0 %v3323
      %v3802 = vpop.f32.mrb[0].mxu0
      %v3803 = vadd.f32 %v3381, %v3802
      %v3804 = vpop.f32.mrb[0].mxu0
      %v3805 = vadd.f32 %v3385, %v3804
      %v3806 = vpop.f32.mrb[0].mxu0
      %v3807 = vadd.f32 %v3381, %v3806
      %v3808 = vpop.f32.mrb[0].mxu0
      %v3809 = vadd.f32 %v3385, %v3808
      %3810 = vmatprep.mubr.bf16.mxu0 %v3326
      %3811 = vmatmul.mubr.bf16.gmra.mrb[0].mxu0 %v3325
      %v3812 = vpop.f32.mrb[0].mxu0
      %v3813 = vadd.f32 %v3381, %v3812
      %v3814 = vpop.f32.mrb[0].mxu0
      %v3815 = vadd.f32 %v3385, %v3814
      %v3816 = vpop.f32.mrb[0].mxu0
      %v3817 = vadd.f32 %v3381, %v3816
      %v3818 = vpop.f32.mrb[0].mxu0
      %v3819 = vadd.f32 %v3385, %v3818
      %3820 = vmatprep.mubr.bf16.mxu0 %v3328
      %3821 = vmatmul.mubr.bf16.gmra.mrb[0].mxu0 %v3327
      %v3822 = vpop.f32.mrb[0].mxu0
      %v3823 = vadd.f32 %v3381, %v3822
      %v3824 = vpop.f32.mrb[0].mxu0
      %v3825 = vadd.f32 %v3385, %v3824
      %v3826 = vpop.f32.mrb[0].mxu0
      %v3827 = vadd.f32 %v3381, %v3826
      %v3828 = vpop.f32.mrb[0].mxu0
      %v3829 = vadd.f32 %v3385, %v3828
      %3830 = vmatprep.mubr.bf16.mxu0 %v3330
      %3831 = vmatmul.mubr.bf16.gmra.mrb[0].mxu0 %v3329
      %v3832 = vpop.f32.mrb[0].mxu0
      %v3833 = vadd.f32 %v3381, %v3832
      %v3834 = vpop.f32.mrb[0].mxu0
      %v3835 = vadd.f32 %v3385, %v3834
      %v3836 = vpop.f32.mrb[0].mxu0
      %v3837 = vadd.f32 %v3381, %v3836
      %v3838 = vpop.f32.mrb[0].mxu0
      %v3839 = vadd.f32 %v3385, %v3838
      %3840 = vmatprep.mubr.bf16.mxu0 %v3332
      %3841 = vmatmul.mubr.bf16.gmra.mrb[0].mxu0 %v3331
      %v3842 = vpop.f32.mrb[0].mxu0
      %v3843 = vadd.f32 %v3381, %v3842
      %v3844 = vpop.f32.mrb[0].mxu0
      %v3845 = vadd.f32 %v3385, %v3844
      %v3846 = vpop.f32.mrb[0].mxu0
      %v3847 = vadd.f32 %v3381, %v3846
      %v3848 = vpop.f32.mrb[0].mxu0
      %v3849 = vadd.f32 %v3385, %v3848
      %3850 = vmatprep.mubr.bf16.mxu0 %v3334
      %3851 = vmatmul.mubr.bf16.gmra.mrb[0].mxu0 %v3333
      %v3852 = vpop.f32.mrb[0].mxu0
      %v3853 = vadd.f32 %v3381, %v3852
      %v3854 = vpop.f32.mrb[0].mxu0
      %v3855 = vadd.f32 %v3385, %v3854
      %v3856 = vpop.f32.mrb[0].mxu0
      %v3857 = vadd.f32 %v3381, %v3856
      %v3858 = vpop.f32.mrb[0].mxu0
      %v3859 = vadd.f32 %v3385, %v3858
      %3860 = vmatprep.mubr.bf16.mxu0 %v3336
      %3861 = vmatmul.mubr.bf16.gmra.mrb[0].mxu0 %v3335
      %v3862 = vpop.f32.mrb[0].mxu0
      %v3863 = vadd.f32 %v3381, %v3862
      %v3864 = vpop.f32.mrb[0].mxu0
      %v3865 = vadd.f32 %v3385, %v3864
      %v3866 = vpop.f32.mrb[0].mxu0
      %v3867 = vadd.f32 %v3381, %v3866
      %v3868 = vpop.f32.mrb[0].mxu0
      %v3869 = vadd.f32 %v3385, %v3868
      %3870 = vmatprep.mubr.bf16.mxu0 %v3338
      %3871 = vmatmul.mubr.bf16.gmra.mrb[0].mxu0 %v3337
      %v3872 = vpop.f32.mrb[0].mxu0
      %v3873 = vadd.f32 %v3381, %v3872
      %v3874 = vpop.f32.mrb[0].mxu0
      %v3875 = vadd.f32 %v3385, %v3874
      %v3876 = vpop.f32.mrb[0].mxu0
      %v3877 = vadd.f32 %v3381, %v3876
      %v3878 = vpop.f32.mrb[0].mxu0
      %v3879 = vadd.f32 %v3385, %v3878
      %3880 = vmatprep.mubr.bf16.mxu0 %v3340
      %3881 = vmatmul.mubr.bf16.gmra.mrb[0].mxu0 %v3339
      %v3882 = vpop.f32.mrb[0].mxu0
      %v3883 = vadd.f32 %v3381, %v3882
      %v3884 = vpop.f32.mrb[0].mxu0
      %v3885 = vadd.f32 %v3385, %v3884
      %v3886 = vpop.f32.mrb[0].mxu0
      %v3887 = vadd.f32 %v3381, %v3886
      %v3888 = vpop.f32.mrb[0].mxu0
      %v3889 = vadd.f32 %v3385, %v3888
      %3890 = vmatprep.mubr.bf16.mxu0 %v3342
      %3891 = vmatmul.mubr.bf16.gmra.mrb[0].mxu0 %v3341
      %v3892 = vpop.f32.mrb[0].mxu0
      %v3893 = vadd.f32 %v3381, %v3892
      %v3894 = vpop.f32.mrb[0].mxu0
      %v3895 = vadd.f32 %v3385, %v3894
      %v3896 = vpop.f32.mrb[0].mxu0
      %v3897 = vadd.f32 %v3381, %v3896
      %v3898 = vpop.f32.mrb[0].mxu0
      %v3899 = vadd.f32 %v3385, %v3898
      %3900 = vmatprep.mubr.bf16.mxu0 %v3344
      %3901 = vmatmul.mubr.bf16.gmra.mrb[0].mxu0 %v3343
      %v3902 = vpop.f32.mrb[0].mxu0
      %v3903 = vadd.f32 %v3381, %v3902
      %v3904 = vpop.f32.mrb[0].mxu0
      %v3905 = vadd.f32 %v3385, %v3904
      %v3906 = vpop.f32.mrb[0].mxu0
      %v3907 = vadd.f32 %v3381, %v3906
      %v3908 = vpop.f32.mrb[0].mxu0
      %v3909 = vadd.f32 %v3385, %v3908
      %3910 = vmatprep.mubr.bf16.mxu0 %v3346
      %3911 = vmatmul.mubr.bf16.gmra.mrb[0].mxu0 %v3345
      %v3912 = vpop.f32.mrb[0].mxu0
      %v3913 = vadd.f32 %v3381, %v3912
      %v3914 = vpop.f32.mrb[0].mxu0
      %v3915 = vadd.f32 %v3385, %v3914
      %v3916 = vpop.f32.mrb[0].mxu0
      %v3917 = vadd.f32 %v3381, %v3916
      %v3918 = vpop.f32.mrb[0].mxu0
      %v3919 = vadd.f32 %v3385, %v3918
      %3920 = vmatprep.mubr.bf16.mxu0 %v3348
      %3921 = vmatmul.mubr.bf16.gmra.mrb[0].mxu0 %v3347
      %v3922 = vpop.f32.mrb[0].mxu0
      %v3923 = vadd.f32 %v3381, %v3922
      %v3924 = vpop.f32.mrb[0].mxu0
      %v3925 = vadd.f32 %v3385, %v3924
      %v3926 = vpop.f32.mrb[0].mxu0
      %v3927 = vadd.f32 %v3381, %v3926
      %v3928 = vpop.f32.mrb[0].mxu0
      %v3929 = vadd.f32 %v3385, %v3928
      %3930 = vmatprep.mubr.bf16.mxu0 %v3350
      %3931 = vmatmul.mubr.bf16.gmra.mrb[0].mxu0 %v3349
      %v3932 = vpop.f32.mrb[0].mxu0
      %v3933 = vadd.f32 %v3381, %v3932
      %v3934 = vpop.f32.mrb[0].mxu0
      %v3935 = vadd.f32 %v3385, %v3934
      %v3936 = vpop.f32.mrb[0].mxu0
      %v3937 = vadd.f32 %v3381, %v3936
      %v3938 = vpop.f32.mrb[0].mxu0
      %v3939 = vadd.f32 %v3385, %v3938
      %3940 = vmatprep.mubr.bf16.mxu0 %v3352
      %3941 = vmatmul.mubr.bf16.gmra.mrb[0].mxu0 %v3351
      %v3942 = vpop.f32.mrb[0].mxu0
      %v3943 = vadd.f32 %v3381, %v3942
      %v3944 = vpop.f32.mrb[0].mxu0
      %v3945 = vadd.f32 %v3385, %v3944
      %v3946 = vpop.f32.mrb[0].mxu0
      %v3947 = vadd.f32 %v3381, %v3946
      %v3948 = vpop.f32.mrb[0].mxu0
      %v3949 = vadd.f32 %v3385, %v3948
      %3950 = vmatprep.mubr.bf16.mxu0 %v3354
      %3951 = vmatmul.mubr.bf16.gmra.mrb[0].mxu0 %v3353
      %v3952 = vpop.f32.mrb[0].mxu0
      %v3953 = vadd.f32 %v3381, %v3952
      %v3954 = vpop.f32.mrb[0].mxu0
      %v3955 = vadd.f32 %v3385, %v3954
      %v3956 = vpop.f32.mrb[0].mxu0
      %v3957 = vadd.f32 %v3381, %v3956
      %v3958 = vpop.f32.mrb[0].mxu0
      %v3959 = vadd.f32 %v3385, %v3958
      %3960 = vmatprep.mubr.bf16.mxu0 %v3356
      %3961 = vmatmul.mubr.bf16.gmra.mrb[0].mxu0 %v3355
      %v3962 = vpop.f32.mrb[0].mxu0
      %v3963 = vadd.f32 %v3381, %v3962
      %v3964 = vpop.f32.mrb[0].mxu0
      %v3965 = vadd.f32 %v3385, %v3964
      %v3966 = vpop.f32.mrb[0].mxu0
      %v3967 = vadd.f32 %v3381, %v3966
      %v3968 = vpop.f32.mrb[0].mxu0
      %v3969 = vadd.f32 %v3385, %v3968
      %3970 = vmatprep.mubr.bf16.mxu0 %v3358
      %3971 = vmatmul.mubr.bf16.gmra.mrb[0].mxu0 %v3357
      %v3972 = vpop.f32.mrb[0].mxu0
      %v3973 = vadd.f32 %v3381, %v3972
      %v3974 = vpop.f32.mrb[0].mxu0
      %v3975 = vadd.f32 %v3385, %v3974
      %v3976 = vpop.f32.mrb[0].mxu0
      %v3977 = vadd.f32 %v3381, %v3976
      %v3978 = vpop.f32.mrb[0].mxu0
      %v3979 = vadd.f32 %v3385, %v3978
      %3980 = vmatprep.mubr.bf16.mxu0 %v3360
      %3981 = vmatmul.mubr.bf16.gmra.mrb[0].mxu0 %v3359
      %v3982 = vpop.f32.mrb[0].mxu0
      %v3983 = vadd.f32 %v3381, %v3982
      %v3984 = vpop.f32.mrb[0].mxu0
      %v3985 = vadd.f32 %v3385, %v3984
      %v3986 = vpop.f32.mrb[0].mxu0
      %v3987 = vadd.f32 %v3381, %v3986
      %v3988 = vpop.f32.mrb[0].mxu0
      %v3989 = vadd.f32 %v3385, %v3988
      %3990 = vmatprep.mubr.bf16.mxu0 %v3362
      %3991 = vmatmul.mubr.bf16.gmra.mrb[0].mxu0 %v3361
      %v3992 = vpop.f32.mrb[0].mxu0
      %v3993 = vadd.f32 %v3381, %v3992
      %v3994 = vpop.f32.mrb[0].mxu0
      %v3995 = vadd.f32 %v3385, %v3994
      %v3996 = vpop.f32.mrb[0].mxu0
      %v3997 = vadd.f32 %v3381, %v3996
      %v3998 = vpop.f32.mrb[0].mxu0
      %v3999 = vadd.f32 %v3385, %v3998
      %4000 = vmatprep.mubr.bf16.mxu0 %v3364
      %4001 = vmatmul.mubr.bf16.gmra.mrb[0].mxu0 %v3363
      %v4002 = vpop.f32.mrb[0].mxu0
      %v4003 = vadd.f32 %v3381, %v4002
      %v4004 = vpop.f32.mrb[0].mxu0
      %v4005 = vadd.f32 %v3385, %v4004
      %v4006 = vpop.f32.mrb[0].mxu0
      %v4007 = vadd.f32 %v3381, %v4006
      %v4008 = vpop.f32.mrb[0].mxu0
      %v4009 = vadd.f32 %v3385, %v4008
      %4010 = vmatprep.mubr.bf16.mxu0 %v3366
      %4011 = vmatmul.mubr.bf16.gmra.mrb[0].mxu0 %v3365
      %v4012 = vpop.f32.mrb[0].mxu0
      %v4013 = vadd.f32 %v3381, %v4012
      %v4014 = vpop.f32.mrb[0].mxu0
      %v4015 = vadd.f32 %v3385, %v4014
      %v4016 = vpop.f32.mrb[0].mxu0
      %v4017 = vadd.f32 %v3381, %v4016
      %v4018 = vpop.f32.mrb[0].mxu0
      %v4019 = vadd.f32 %v3385, %v4018
      %4020 = vmatprep.mubr.bf16.mxu0 %v3368
      %4021 = vmatmul.mubr.bf16.gmra.mrb[0].mxu0 %v3367
      %v4022 = vpop.f32.mrb[0].mxu0
      %v4023 = vadd.f32 %v3381, %v4022
      %v4024 = vpop.f32.mrb[0].mxu0
      %v4025 = vadd.f32 %v3385, %v4024
      %v4026 = vpop.f32.mrb[0].mxu0
      %v4027 = vadd.f32 %v3381, %v4026
      %v4028 = vpop.f32.mrb[0].mxu0
      %v4029 = vadd.f32 %v3385, %v4028
      %4030 = vmatprep.mubr.bf16.mxu0 %v3370
      %4031 = vmatmul.mubr.bf16.gmra.mrb[0].mxu0 %v3369
      %v4032 = vpop.f32.mrb[0].mxu0
      %v4033 = vadd.f32 %v3381, %v4032
      %v4034 = vpop.f32.mrb[0].mxu0
      %v4035 = vadd.f32 %v3385, %v4034
      %v4036 = vpop.f32.mrb[0].mxu0
      %v4037 = vadd.f32 %v3381, %v4036
      %v4038 = vpop.f32.mrb[0].mxu0
      %v4039 = vadd.f32 %v3385, %v4038
      %4040 = vmatprep.mubr.bf16.mxu0 %v3372
      %4041 = vmatmul.mubr.bf16.gmra.mrb[0].mxu0 %v3371
      %v4042 = vpop.f32.mrb[0].mxu0
      %v4043 = vadd.f32 %v3381, %v4042
      %v4044 = vpop.f32.mrb[0].mxu0
      %v4045 = vadd.f32 %v3385, %v4044
      %v4046 = vpop.f32.mrb[0].mxu0
      %v4047 = vadd.f32 %v3381, %v4046
      %v4048 = vpop.f32.mrb[0].mxu0
      %v4049 = vadd.f32 %v3385, %v4048
      %4050 = vmatprep.mubr.bf16.mxu0 %v3374
      %4051 = vmatmul.mubr.bf16.gmra.mrb[0].mxu0 %v3373
      %v4052 = vpop.f32.mrb[0].mxu0
      %v4053 = vadd.f32 %v3381, %v4052
      %v4054 = vpop.f32.mrb[0].mxu0
      %v4055 = vadd.f32 %v3385, %v4054
      %v4056 = vpop.f32.mrb[0].mxu0
      %v4057 = vadd.f32 %v3381, %v4056
      %v4058 = vpop.f32.mrb[0].mxu0
      %v4059 = vadd.f32 %v3385, %v4058
      %4060 = vmatprep.mubr.bf16.mxu0 %v3376
      %4061 = vmatmul.mubr.bf16.gmra.mrb[0].mxu0 %v3375
      %v4062 = vpop.f32.mrb[0].mxu0
      %v4063 = vadd.f32 %v3381, %v4062
      %v4064 = vpop.f32.mrb[0].mxu0
      %v4065 = vadd.f32 %v3385, %v4064
      %v4066 = vpop.f32.mrb[0].mxu0
      %v4067 = vadd.f32 %v3381, %v4066
      %v4068 = vpop.f32.mrb[0].mxu0
      %v4069 = vadd.f32 %v3385, %v4068
      %4070 = vdwg.mxu0
      %4071 = vmatprep.subr.bf16.mxu0 %v3593
      %4072 = vmatpush1.bf16.msra.mxu0 %v3592
      %4073 = vmatprep.subr.bf16.mxu0 %v3597
      %4074 = vmatpush1.bf16.msra.mxu0 %v3596
      %4075 = vmatprep.subr.bf16.mxu0 %v3601
      %4076 = vmatpush1.bf16.msra.mxu0 %v3600
      %4077 = vmatprep.subr.bf16.mxu0 %v3605
      %4078 = vmatpush1.bf16.msra.mxu0 %v3604
      %4079 = vmatprep.subr.bf16.mxu0 %v3609
      %4080 = vmatpush1.bf16.msra.mxu0 %v3608
      %4081 = vmatprep.subr.bf16.mxu0 %v3613
      %4082 = vmatpush1.bf16.msra.mxu0 %v3612
      %4083 = vmatprep.subr.bf16.mxu0 %v3617
      %4084 = vmatpush1.bf16.msra.mxu0 %v3616
      %4085 = vmatprep.subr.bf16.mxu0 %v3621
      %4086 = vmatpush1.bf16.msra.mxu0 %v3620
      %4087 = vmatprep.subr.bf16.mxu0 %v3625
      %4088 = vmatpush1.bf16.msra.mxu0 %v3624
      %4089 = vmatprep.subr.bf16.mxu0 %v3629
      %4090 = vmatpush1.bf16.msra.mxu0 %v3628
      %4091 = vmatprep.subr.bf16.mxu0 %v3633
      %4092 = vmatpush1.bf16.msra.mxu0 %v3632
      %4093 = vmatprep.subr.bf16.mxu0 %v3637
      %4094 = vmatpush1.bf16.msra.mxu0 %v3636
      %4095 = vmatprep.subr.bf16.mxu0 %v3641
      %4096 = vmatpush1.bf16.msra.mxu0 %v3640
      %4097 = vmatprep.subr.bf16.mxu0 %v3645
      %4098 = vmatpush1.bf16.msra.mxu0 %v3644
      %4099 = vmatprep.subr.bf16.mxu0 %v3649
      %4100 = vmatpush1.bf16.msra.mxu0 %v3648
      %4101 = vmatprep.subr.bf16.mxu0 %v3653
      %4102 = vmatpush1.bf16.msra.mxu0 %v3652
      %4103 = vmatprep.mubr.bf16.mxu0 %v3314
      %4104 = vmatmul.mubr.bf16.gmra.mrb[0].mxu0 %v3313
      %v4105 = vpop.f32.mrb[0].mxu0
      %v4106 = vadd.f32 %v3389, %v4105
      %v4107 = vpop.f32.mrb[0].mxu0
      %v4108 = vadd.f32 %v3393, %v4107
      %v4109 = vpop.f32.mrb[0].mxu0
      %v4110 = vadd.f32 %v3389, %v4109
      %v4111 = vpop.f32.mrb[0].mxu0
      %v4112 = vadd.f32 %v3393, %v4111
      %4113 = vmatprep.mubr.bf16.mxu0 %v3316
      %4114 = vmatmul.mubr.bf16.gmra.mrb[0].mxu0 %v3315
      %v4115 = vpop.f32.mrb[0].mxu0
      %v4116 = vadd.f32 %v3389, %v4115
      %v4117 = vpop.f32.mrb[0].mxu0
      %v4118 = vadd.f32 %v3393, %v4117
      %v4119 = vpop.f32.mrb[0].mxu0
      %v4120 = vadd.f32 %v3389, %v4119
      %v4121 = vpop.f32.mrb[0].mxu0
      %v4122 = vadd.f32 %v3393, %v4121
      %4123 = vmatprep.mubr.bf16.mxu0 %v3318
      %4124 = vmatmul.mubr.bf16.gmra.mrb[0].mxu0 %v3317
      %v4125 = vpop.f32.mrb[0].mxu0
      %v4126 = vadd.f32 %v3389, %v4125
      %v4127 = vpop.f32.mrb[0].mxu0
      %v4128 = vadd.f32 %v3393, %v4127
      %v4129 = vpop.f32.mrb[0].mxu0
      %v4130 = vadd.f32 %v3389, %v4129
      %v4131 = vpop.f32.mrb[0].mxu0
      %v4132 = vadd.f32 %v3393, %v4131
      %4133 = vmatprep.mubr.bf16.mxu0 %v3320
      %4134 = vmatmul.mubr.bf16.gmra.mrb[0].mxu0 %v3319
      %v4135 = vpop.f32.mrb[0].mxu0
      %v4136 = vadd.f32 %v3389, %v4135
      %v4137 = vpop.f32.mrb[0].mxu0
      %v4138 = vadd.f32 %v3393, %v4137
      %v4139 = vpop.f32.mrb[0].mxu0
      %v4140 = vadd.f32 %v3389, %v4139
      %v4141 = vpop.f32.mrb[0].mxu0
      %v4142 = vadd.f32 %v3393, %v4141
      %4143 = vmatprep.mubr.bf16.mxu0 %v3322
      %4144 = vmatmul.mubr.bf16.gmra.mrb[0].mxu0 %v3321
      %v4145 = vpop.f32.mrb[0].mxu0
      %v4146 = vadd.f32 %v3389, %v4145
      %v4147 = vpop.f32.mrb[0].mxu0
      %v4148 = vadd.f32 %v3393, %v4147
      %v4149 = vpop.f32.mrb[0].mxu0
      %v4150 = vadd.f32 %v3389, %v4149
      %v4151 = vpop.f32.mrb[0].mxu0
      %v4152 = vadd.f32 %v3393, %v4151
      %4153 = vmatprep.mubr.bf16.mxu0 %v3324
      %4154 = vmatmul.mubr.bf16.gmra.mrb[0].mxu0 %v3323
      %v4155 = vpop.f32.mrb[0].mxu0
      %v4156 = vadd.f32 %v3389, %v4155
      %v4157 = vpop.f32.mrb[0].mxu0
      %v4158 = vadd.f32 %v3393, %v4157
      %v4159 = vpop.f32.mrb[0].mxu0
      %v4160 = vadd.f32 %v3389, %v4159
      %v4161 = vpop.f32.mrb[0].mxu0
      %v4162 = vadd.f32 %v3393, %v4161
      %4163 = vmatprep.mubr.bf16.mxu0 %v3326
      %4164 = vmatmul.mubr.bf16.gmra.mrb[0].mxu0 %v3325
      %v4165 = vpop.f32.mrb[0].mxu0
      %v4166 = vadd.f32 %v3389, %v4165
      %v4167 = vpop.f32.mrb[0].mxu0
      %v4168 = vadd.f32 %v3393, %v4167
      %v4169 = vpop.f32.mrb[0].mxu0
      %v4170 = vadd.f32 %v3389, %v4169
      %v4171 = vpop.f32.mrb[0].mxu0
      %v4172 = vadd.f32 %v3393, %v4171
      %4173 = vmatprep.mubr.bf16.mxu0 %v3328
      %4174 = vmatmul.mubr.bf16.gmra.mrb[0].mxu0 %v3327
      %v4175 = vpop.f32.mrb[0].mxu0
      %v4176 = vadd.f32 %v3389, %v4175
      %v4177 = vpop.f32.mrb[0].mxu0
      %v4178 = vadd.f32 %v3393, %v4177
      %v4179 = vpop.f32.mrb[0].mxu0
      %v4180 = vadd.f32 %v3389, %v4179
      %v4181 = vpop.f32.mrb[0].mxu0
      %v4182 = vadd.f32 %v3393, %v4181
      %4183 = vmatprep.mubr.bf16.mxu0 %v3330
      %4184 = vmatmul.mubr.bf16.gmra.mrb[0].mxu0 %v3329
      %v4185 = vpop.f32.mrb[0].mxu0
      %v4186 = vadd.f32 %v3389, %v4185
      %v4187 = vpop.f32.mrb[0].mxu0
      %v4188 = vadd.f32 %v3393, %v4187
      %v4189 = vpop.f32.mrb[0].mxu0
      %v4190 = vadd.f32 %v3389, %v4189
      %v4191 = vpop.f32.mrb[0].mxu0
      %v4192 = vadd.f32 %v3393, %v4191
      %4193 = vmatprep.mubr.bf16.mxu0 %v3332
      %4194 = vmatmul.mubr.bf16.gmra.mrb[0].mxu0 %v3331
      %v4195 = vpop.f32.mrb[0].mxu0
      %v4196 = vadd.f32 %v3389, %v4195
      %v4197 = vpop.f32.mrb[0].mxu0
      %v4198 = vadd.f32 %v3393, %v4197
      %v4199 = vpop.f32.mrb[0].mxu0
      %v4200 = vadd.f32 %v3389, %v4199
      %v4201 = vpop.f32.mrb[0].mxu0
      %v4202 = vadd.f32 %v3393, %v4201
      %4203 = vmatprep.mubr.bf16.mxu0 %v3334
      %4204 = vmatmul.mubr.bf16.gmra.mrb[0].mxu0 %v3333
      %v4205 = vpop.f32.mrb[0].mxu0
      %v4206 = vadd.f32 %v3389, %v4205
      %v4207 = vpop.f32.mrb[0].mxu0
      %v4208 = vadd.f32 %v3393, %v4207
      %v4209 = vpop.f32.mrb[0].mxu0
      %v4210 = vadd.f32 %v3389, %v4209
      %v4211 = vpop.f32.mrb[0].mxu0
      %v4212 = vadd.f32 %v3393, %v4211
      %4213 = vmatprep.mubr.bf16.mxu0 %v3336
      %4214 = vmatmul.mubr.bf16.gmra.mrb[0].mxu0 %v3335
      %v4215 = vpop.f32.mrb[0].mxu0
      %v4216 = vadd.f32 %v3389, %v4215
      %v4217 = vpop.f32.mrb[0].mxu0
      %v4218 = vadd.f32 %v3393, %v4217
      %v4219 = vpop.f32.mrb[0].mxu0
      %v4220 = vadd.f32 %v3389, %v4219
      %v4221 = vpop.f32.mrb[0].mxu0
      %v4222 = vadd.f32 %v3393, %v4221
      %4223 = vmatprep.mubr.bf16.mxu0 %v3338
      %4224 = vmatmul.mubr.bf16.gmra.mrb[0].mxu0 %v3337
      %v4225 = vpop.f32.mrb[0].mxu0
      %v4226 = vadd.f32 %v3389, %v4225
      %v4227 = vpop.f32.mrb[0].mxu0
      %v4228 = vadd.f32 %v3393, %v4227
      %v4229 = vpop.f32.mrb[0].mxu0
      %v4230 = vadd.f32 %v3389, %v4229
      %v4231 = vpop.f32.mrb[0].mxu0
      %v4232 = vadd.f32 %v3393, %v4231
      %4233 = vmatprep.mubr.bf16.mxu0 %v3340
      %4234 = vmatmul.mubr.bf16.gmra.mrb[0].mxu0 %v3339
      %v4235 = vpop.f32.mrb[0].mxu0
      %v4236 = vadd.f32 %v3389, %v4235
      %v4237 = vpop.f32.mrb[0].mxu0
      %v4238 = vadd.f32 %v3393, %v4237
      %v4239 = vpop.f32.mrb[0].mxu0
      %v4240 = vadd.f32 %v3389, %v4239
      %v4241 = vpop.f32.mrb[0].mxu0
      %v4242 = vadd.f32 %v3393, %v4241
      %4243 = vmatprep.mubr.bf16.mxu0 %v3342
      %4244 = vmatmul.mubr.bf16.gmra.mrb[0].mxu0 %v3341
      %v4245 = vpop.f32.mrb[0].mxu0
      %v4246 = vadd.f32 %v3389, %v4245
      %v4247 = vpop.f32.mrb[0].mxu0
      %v4248 = vadd.f32 %v3393, %v4247
      %v4249 = vpop.f32.mrb[0].mxu0
      %v4250 = vadd.f32 %v3389, %v4249
      %v4251 = vpop.f32.mrb[0].mxu0
      %v4252 = vadd.f32 %v3393, %v4251
      %4253 = vmatprep.mubr.bf16.mxu0 %v3344
      %4254 = vmatmul.mubr.bf16.gmra.mrb[0].mxu0 %v3343
      %v4255 = vpop.f32.mrb[0].mxu0
      %v4256 = vadd.f32 %v3389, %v4255
      %v4257 = vpop.f32.mrb[0].mxu0
      %v4258 = vadd.f32 %v3393, %v4257
      %v4259 = vpop.f32.mrb[0].mxu0
      %v4260 = vadd.f32 %v3389, %v4259
      %v4261 = vpop.f32.mrb[0].mxu0
      %v4262 = vadd.f32 %v3393, %v4261
      %4263 = vmatprep.mubr.bf16.mxu0 %v3346
      %4264 = vmatmul.mubr.bf16.gmra.mrb[0].mxu0 %v3345
      %v4265 = vpop.f32.mrb[0].mxu0
      %v4266 = vadd.f32 %v3389, %v4265
      %v4267 = vpop.f32.mrb[0].mxu0
      %v4268 = vadd.f32 %v3393, %v4267
      %v4269 = vpop.f32.mrb[0].mxu0
      %v4270 = vadd.f32 %v3389, %v4269
      %v4271 = vpop.f32.mrb[0].mxu0
      %v4272 = vadd.f32 %v3393, %v4271
      %4273 = vmatprep.mubr.bf16.mxu0 %v3348
      %4274 = vmatmul.mubr.bf16.gmra.mrb[0].mxu0 %v3347
      %v4275 = vpop.f32.mrb[0].mxu0
      %v4276 = vadd.f32 %v3389, %v4275
      %v4277 = vpop.f32.mrb[0].mxu0
      %v4278 = vadd.f32 %v3393, %v4277
      %v4279 = vpop.f32.mrb[0].mxu0
      %v4280 = vadd.f32 %v3389, %v4279
      %v4281 = vpop.f32.mrb[0].mxu0
      %v4282 = vadd.f32 %v3393, %v4281
      %4283 = vmatprep.mubr.bf16.mxu0 %v3350
      %4284 = vmatmul.mubr.bf16.gmra.mrb[0].mxu0 %v3349
      %v4285 = vpop.f32.mrb[0].mxu0
      %v4286 = vadd.f32 %v3389, %v4285
      %v4287 = vpop.f32.mrb[0].mxu0
      %v4288 = vadd.f32 %v3393, %v4287
      %v4289 = vpop.f32.mrb[0].mxu0
      %v4290 = vadd.f32 %v3389, %v4289
      %v4291 = vpop.f32.mrb[0].mxu0
      %v4292 = vadd.f32 %v3393, %v4291
      %4293 = vmatprep.mubr.bf16.mxu0 %v3352
      %4294 = vmatmul.mubr.bf16.gmra.mrb[0].mxu0 %v3351
      %v4295 = vpop.f32.mrb[0].mxu0
      %v4296 = vadd.f32 %v3389, %v4295
      %v4297 = vpop.f32.mrb[0].mxu0
      %v4298 = vadd.f32 %v3393, %v4297
      %v4299 = vpop.f32.mrb[0].mxu0
      %v4300 = vadd.f32 %v3389, %v4299
      %v4301 = vpop.f32.mrb[0].mxu0
      %v4302 = vadd.f32 %v3393, %v4301
      %4303 = vmatprep.mubr.bf16.mxu0 %v3354
      %4304 = vmatmul.mubr.bf16.gmra.mrb[0].mxu0 %v3353
      %v4305 = vpop.f32.mrb[0].mxu0
      %v4306 = vadd.f32 %v3389, %v4305
      %v4307 = vpop.f32.mrb[0].mxu0
      %v4308 = vadd.f32 %v3393, %v4307
      %v4309 = vpop.f32.mrb[0].mxu0
      %v4310 = vadd.f32 %v3389, %v4309
      %v4311 = vpop.f32.mrb[0].mxu0
      %v4312 = vadd.f32 %v3393, %v4311
      %4313 = vmatprep.mubr.bf16.mxu0 %v3356
      %4314 = vmatmul.mubr.bf16.gmra.mrb[0].mxu0 %v3355
      %v4315 = vpop.f32.mrb[0].mxu0
      %v4316 = vadd.f32 %v3389, %v4315
      %v4317 = vpop.f32.mrb[0].mxu0
      %v4318 = vadd.f32 %v3393, %v4317
      %v4319 = vpop.f32.mrb[0].mxu0
      %v4320 = vadd.f32 %v3389, %v4319
      %v4321 = vpop.f32.mrb[0].mxu0
      %v4322 = vadd.f32 %v3393, %v4321
      %4323 = vmatprep.mubr.bf16.mxu0 %v3358
      %4324 = vmatmul.mubr.bf16.gmra.mrb[0].mxu0 %v3357
      %v4325 = vpop.f32.mrb[0].mxu0
      %v4326 = vadd.f32 %v3389, %v4325
      %v4327 = vpop.f32.mrb[0].mxu0
      %v4328 = vadd.f32 %v3393, %v4327
      %v4329 = vpop.f32.mrb[0].mxu0
      %v4330 = vadd.f32 %v3389, %v4329
      %v4331 = vpop.f32.mrb[0].mxu0
      %v4332 = vadd.f32 %v3393, %v4331
      %4333 = vmatprep.mubr.bf16.mxu0 %v3360
      %4334 = vmatmul.mubr.bf16.gmra.mrb[0].mxu0 %v3359
      %v4335 = vpop.f32.mrb[0].mxu0
      %v4336 = vadd.f32 %v3389, %v4335
      %v4337 = vpop.f32.mrb[0].mxu0
      %v4338 = vadd.f32 %v3393, %v4337
      %v4339 = vpop.f32.mrb[0].mxu0
      %v4340 = vadd.f32 %v3389, %v4339
      %v4341 = vpop.f32.mrb[0].mxu0
      %v4342 = vadd.f32 %v3393, %v4341
      %4343 = vmatprep.mubr.bf16.mxu0 %v3362
      %4344 = vmatmul.mubr.bf16.gmra.mrb[0].mxu0 %v3361
      %v4345 = vpop.f32.mrb[0].mxu0
      %v4346 = vadd.f32 %v3389, %v4345
      %v4347 = vpop.f32.mrb[0].mxu0
      %v4348 = vadd.f32 %v3393, %v4347
      %v4349 = vpop.f32.mrb[0].mxu0
      %v4350 = vadd.f32 %v3389, %v4349
      %v4351 = vpop.f32.mrb[0].mxu0
      %v4352 = vadd.f32 %v3393, %v4351
      %4353 = vmatprep.mubr.bf16.mxu0 %v3364
      %4354 = vmatmul.mubr.bf16.gmra.mrb[0].mxu0 %v3363
      %v4355 = vpop.f32.mrb[0].mxu0
      %v4356 = vadd.f32 %v3389, %v4355
      %v4357 = vpop.f32.mrb[0].mxu0
      %v4358 = vadd.f32 %v3393, %v4357
      %v4359 = vpop.f32.mrb[0].mxu0
      %v4360 = vadd.f32 %v3389, %v4359
      %v4361 = vpop.f32.mrb[0].mxu0
      %v4362 = vadd.f32 %v3393, %v4361
      %4363 = vmatprep.mubr.bf16.mxu0 %v3366
      %4364 = vmatmul.mubr.bf16.gmra.mrb[0].mxu0 %v3365
      %v4365 = vpop.f32.mrb[0].mxu0
      %v4366 = vadd.f32 %v3389, %v4365
      %v4367 = vpop.f32.mrb[0].mxu0
      %v4368 = vadd.f32 %v3393, %v4367
      %v4369 = vpop.f32.mrb[0].mxu0
      %v4370 = vadd.f32 %v3389, %v4369
      %v4371 = vpop.f32.mrb[0].mxu0
      %v4372 = vadd.f32 %v3393, %v4371
      %4373 = vmatprep.mubr.bf16.mxu0 %v3368
      %4374 = vmatmul.mubr.bf16.gmra.mrb[0].mxu0 %v3367
      %v4375 = vpop.f32.mrb[0].mxu0
      %v4376 = vadd.f32 %v3389, %v4375
      %v4377 = vpop.f32.mrb[0].mxu0
      %v4378 = vadd.f32 %v3393, %v4377
      %v4379 = vpop.f32.mrb[0].mxu0
      %v4380 = vadd.f32 %v3389, %v4379
      %v4381 = vpop.f32.mrb[0].mxu0
      %v4382 = vadd.f32 %v3393, %v4381
      %4383 = vmatprep.mubr.bf16.mxu0 %v3370
      %4384 = vmatmul.mubr.bf16.gmra.mrb[0].mxu0 %v3369
      %v4385 = vpop.f32.mrb[0].mxu0
      %v4386 = vadd.f32 %v3389, %v4385
      %v4387 = vpop.f32.mrb[0].mxu0
      %v4388 = vadd.f32 %v3393, %v4387
      %v4389 = vpop.f32.mrb[0].mxu0
      %v4390 = vadd.f32 %v3389, %v4389
      %v4391 = vpop.f32.mrb[0].mxu0
      %v4392 = vadd.f32 %v3393, %v4391
      %4393 = vmatprep.mubr.bf16.mxu0 %v3372
      %4394 = vmatmul.mubr.bf16.gmra.mrb[0].mxu0 %v3371
      %v4395 = vpop.f32.mrb[0].mxu0
      %v4396 = vadd.f32 %v3389, %v4395
      %v4397 = vpop.f32.mrb[0].mxu0
      %v4398 = vadd.f32 %v3393, %v4397
      %v4399 = vpop.f32.mrb[0].mxu0
      %v4400 = vadd.f32 %v3389, %v4399
      %v4401 = vpop.f32.mrb[0].mxu0
      %v4402 = vadd.f32 %v3393, %v4401
      %4403 = vmatprep.mubr.bf16.mxu0 %v3374
      %4404 = vmatmul.mubr.bf16.gmra.mrb[0].mxu0 %v3373
      %v4405 = vpop.f32.mrb[0].mxu0
      %v4406 = vadd.f32 %v3389, %v4405
      %v4407 = vpop.f32.mrb[0].mxu0
      %v4408 = vadd.f32 %v3393, %v4407
      %v4409 = vpop.f32.mrb[0].mxu0
      %v4410 = vadd.f32 %v3389, %v4409
      %v4411 = vpop.f32.mrb[0].mxu0
      %v4412 = vadd.f32 %v3393, %v4411
      %4413 = vmatprep.mubr.bf16.mxu0 %v3376
      %4414 = vmatmul.mubr.bf16.gmra.mrb[0].mxu0 %v3375
      %v4415 = vpop.f32.mrb[0].mxu0
      %v4416 = vadd.f32 %v3389, %v4415
      %v4417 = vpop.f32.mrb[0].mxu0
      %v4418 = vadd.f32 %v3393, %v4417
      %v4419 = vpop.f32.mrb[0].mxu0
      %v4420 = vadd.f32 %v3389, %v4419
      %v4421 = vpop.f32.mrb[0].mxu0
      %v4422 = vadd.f32 %v3393, %v4421
      %4423 = vdwg.mxu0
      %v4424 = vld [vmem:[%s995] sm:$0xff]
      %v4425 = vld [vmem:[%s995 + $0x8] sm:$0xff]
      %v4426 = vld [vmem:[%s995 + $0x10] sm:$0xff]
      %v4427 = vld [vmem:[%s995 + $0x18] sm:$0xff]
      %v4428 = vld [vmem:[%s995 + $0x20] sm:$0xff]
      %v4429 = vld [vmem:[%s995 + $0x28] sm:$0xff]
      %v4430 = vld [vmem:[%s995 + $0x30] sm:$0xff]
      %v4431 = vld [vmem:[%s995 + $0x38] sm:$0xff]
      %v4432 = vld [vmem:[%s995 + $0x40] sm:$0xff]
      %v4433 = vld [vmem:[%s995 + $0x48] sm:$0xff]
      %v4434 = vld [vmem:[%s995 + $0x50] sm:$0xff]
      %v4435 = vld [vmem:[%s995 + $0x58] sm:$0xff]
      %v4436 = vld [vmem:[%s995 + $0x60] sm:$0xff]
      %v4437 = vld [vmem:[%s995 + $0x68] sm:$0xff]
      %v4438 = vld [vmem:[%s995 + $0x70] sm:$0xff]
      %v4439 = vld [vmem:[%s995 + $0x78] sm:$0xff]
      %v4440 = vld [vmem:[%s995 + $0x80] sm:$0xff]
      %v4441 = vld [vmem:[%s995 + $0x88] sm:$0xff]
      %v4442 = vld [vmem:[%s995 + $0x90] sm:$0xff]
      %v4443 = vld [vmem:[%s995 + $0x98] sm:$0xff]
      %v4444 = vld [vmem:[%s995 + $0xa0] sm:$0xff]
      %v4445 = vld [vmem:[%s995 + $0xa8] sm:$0xff]
      %v4446 = vld [vmem:[%s995 + $0xb0] sm:$0xff]
      %v4447 = vld [vmem:[%s995 + $0xb8] sm:$0xff]
      %v4448 = vld [vmem:[%s995 + $0xc0] sm:$0xff]
      %v4449 = vld [vmem:[%s995 + $0xc8] sm:$0xff]
      %v4450 = vld [vmem:[%s995 + $0xd0] sm:$0xff]
      %v4451 = vld [vmem:[%s995 + $0xd8] sm:$0xff]
      %v4452 = vld [vmem:[%s995 + $0xe0] sm:$0xff]
      %v4453 = vld [vmem:[%s995 + $0xe8] sm:$0xff]
      %v4454 = vld [vmem:[%s995 + $0xf0] sm:$0xff]
      %v4455 = vld [vmem:[%s995 + $0xf8] sm:$0xff]
      %v4456 = vld [vmem:[%s995 + $0x100] sm:$0xff]
      %v4457 = vld [vmem:[%s995 + $0x108] sm:$0xff]
      %v4458 = vld [vmem:[%s995 + $0x110] sm:$0xff]
      %v4459 = vld [vmem:[%s995 + $0x118] sm:$0xff]
      %v4460 = vld [vmem:[%s995 + $0x120] sm:$0xff]
      %v4461 = vld [vmem:[%s995 + $0x128] sm:$0xff]
      %v4462 = vld [vmem:[%s995 + $0x130] sm:$0xff]
      %v4463 = vld [vmem:[%s995 + $0x138] sm:$0xff]
      %v4464 = vld [vmem:[%s995 + $0x140] sm:$0xff]
      %v4465 = vld [vmem:[%s995 + $0x148] sm:$0xff]
      %v4466 = vld [vmem:[%s995 + $0x150] sm:$0xff]
      %v4467 = vld [vmem:[%s995 + $0x158] sm:$0xff]
      %v4468 = vld [vmem:[%s995 + $0x160] sm:$0xff]
      %v4469 = vld [vmem:[%s995 + $0x168] sm:$0xff]
      %v4470 = vld [vmem:[%s995 + $0x170] sm:$0xff]
      %v4471 = vld [vmem:[%s995 + $0x178] sm:$0xff]
      %v4472 = vld [vmem:[%s995 + $0x180] sm:$0xff]
      %v4473 = vld [vmem:[%s995 + $0x188] sm:$0xff]
      %v4474 = vld [vmem:[%s995 + $0x190] sm:$0xff]
      %v4475 = vld [vmem:[%s995 + $0x198] sm:$0xff]
      %v4476 = vld [vmem:[%s995 + $0x1a0] sm:$0xff]
      %v4477 = vld [vmem:[%s995 + $0x1a8] sm:$0xff]
      %v4478 = vld [vmem:[%s995 + $0x1b0] sm:$0xff]
      %v4479 = vld [vmem:[%s995 + $0x1b8] sm:$0xff]
      %v4480 = vld [vmem:[%s995 + $0x1c0] sm:$0xff]
      %v4481 = vld [vmem:[%s995 + $0x1c8] sm:$0xff]
      %v4482 = vld [vmem:[%s995 + $0x1d0] sm:$0xff]
      %v4483 = vld [vmem:[%s995 + $0x1d8] sm:$0xff]
      %v4484 = vld [vmem:[%s995 + $0x1e0] sm:$0xff]
      %v4485 = vld [vmem:[%s995 + $0x1e8] sm:$0xff]
      %v4486 = vld [vmem:[%s995 + $0x1f0] sm:$0xff]
      %v4487 = vld [vmem:[%s995 + $0x1f8] sm:$0xff]
      %v4488 = vld [vmem:[%s999] sm:$0x3]
      %v4489 = vmax.f32 %v3753, 0.0
      %v4490 = vmax.f32 %v3755, 0.0
      %v4491 = vmax.f32 %v4106, 0.0
      %v4492 = vmax.f32 %v4108, 0.0
      %v4493 = vmax.f32 %v3757, 0.0
      %v4494 = vmax.f32 %v3759, 0.0
      %v4495 = vmax.f32 %v4110, 0.0
      %v4496 = vmax.f32 %v4112, 0.0
      %v4497 = vmax.f32 %v3763, 0.0
      %v4498 = vmax.f32 %v3765, 0.0
      %v4499 = vmax.f32 %v4116, 0.0
      %v4500 = vmax.f32 %v4118, 0.0
      %v4501 = vmax.f32 %v3767, 0.0
      %v4502 = vmax.f32 %v3769, 0.0
      %v4503 = vmax.f32 %v4120, 0.0
      %v4504 = vmax.f32 %v4122, 0.0
      %v4505 = vmax.f32 %v3773, 0.0
      %v4506 = vmax.f32 %v3775, 0.0
      %v4507 = vmax.f32 %v4126, 0.0
      %v4508 = vmax.f32 %v4128, 0.0
      %v4509 = vmax.f32 %v3777, 0.0
      %v4510 = vmax.f32 %v3779, 0.0
      %v4511 = vmax.f32 %v4130, 0.0
      %v4512 = vmax.f32 %v4132, 0.0
      %v4513 = vmax.f32 %v3783, 0.0
      %v4514 = vmax.f32 %v3785, 0.0
      %v4515 = vmax.f32 %v4136, 0.0
      %v4516 = vmax.f32 %v4138, 0.0
      %v4517 = vmax.f32 %v3787, 0.0
      %v4518 = vmax.f32 %v3789, 0.0
      %v4519 = vmax.f32 %v4140, 0.0
      %v4520 = vmax.f32 %v4142, 0.0
      %v4521 = vmax.f32 %v3793, 0.0
      %v4522 = vmax.f32 %v3795, 0.0
      %v4523 = vmax.f32 %v4146, 0.0
      %v4524 = vmax.f32 %v4148, 0.0
      %v4525 = vmax.f32 %v3797, 0.0
      %v4526 = vmax.f32 %v3799, 0.0
      %v4527 = vmax.f32 %v4150, 0.0
      %v4528 = vmax.f32 %v4152, 0.0
      %v4529 = vmax.f32 %v3803, 0.0
      %v4530 = vmax.f32 %v3805, 0.0
      %v4531 = vmax.f32 %v4156, 0.0
      %v4532 = vmax.f32 %v4158, 0.0
      %v4533 = vmax.f32 %v3807, 0.0
      %v4534 = vmax.f32 %v3809, 0.0
      %v4535 = vmax.f32 %v4160, 0.0
      %v4536 = vmax.f32 %v4162, 0.0
      %v4537 = vmax.f32 %v3813, 0.0
      %v4538 = vmax.f32 %v3815, 0.0
      %v4539 = vmax.f32 %v4166, 0.0
      %v4540 = vmax.f32 %v4168, 0.0
      %v4541 = vmax.f32 %v3817, 0.0
      %v4542 = vmax.f32 %v3819, 0.0
      %v4543 = vmax.f32 %v4170, 0.0
      %v4544 = vmax.f32 %v4172, 0.0
      %v4545 = vmax.f32 %v3823, 0.0
      %v4546 = vmax.f32 %v3825, 0.0
      %v4547 = vmax.f32 %v4176, 0.0
      %v4548 = vmax.f32 %v4178, 0.0
      %v4549 = vmax.f32 %v3827, 0.0
      %v4550 = vmax.f32 %v3829, 0.0
      %v4551 = vmax.f32 %v4180, 0.0
      %v4552 = vmax.f32 %v4182, 0.0
      %v4553 = vmax.f32 %v3833, 0.0
      %v4554 = vmax.f32 %v3835, 0.0
      %v4555 = vmax.f32 %v4186, 0.0
      %v4556 = vmax.f32 %v4188, 0.0
      %v4557 = vmax.f32 %v3837, 0.0
      %v4558 = vmax.f32 %v3839, 0.0
      %v4559 = vmax.f32 %v4190, 0.0
      %v4560 = vmax.f32 %v4192, 0.0
      %v4561 = vmax.f32 %v3843, 0.0
      %v4562 = vmax.f32 %v3845, 0.0
      %v4563 = vmax.f32 %v4196, 0.0
      %v4564 = vmax.f32 %v4198, 0.0
      %v4565 = vmax.f32 %v3847, 0.0
      %v4566 = vmax.f32 %v3849, 0.0
      %v4567 = vmax.f32 %v4200, 0.0
      %v4568 = vmax.f32 %v4202, 0.0
      %v4569 = vmax.f32 %v3853, 0.0
      %v4570 = vmax.f32 %v3855, 0.0
      %v4571 = vmax.f32 %v4206, 0.0
      %v4572 = vmax.f32 %v4208, 0.0
      %v4573 = vmax.f32 %v3857, 0.0
      %v4574 = vmax.f32 %v3859, 0.0
      %v4575 = vmax.f32 %v4210, 0.0
      %v4576 = vmax.f32 %v4212, 0.0
      %v4577 = vmax.f32 %v3863, 0.0
      %v4578 = vmax.f32 %v3865, 0.0
      %v4579 = vmax.f32 %v4216, 0.0
      %v4580 = vmax.f32 %v4218, 0.0
      %v4581 = vmax.f32 %v3867, 0.0
      %v4582 = vmax.f32 %v3869, 0.0
      %v4583 = vmax.f32 %v4220, 0.0
      %v4584 = vmax.f32 %v4222, 0.0
      %v4585 = vmax.f32 %v3873, 0.0
      %v4586 = vmax.f32 %v3875, 0.0
      %v4587 = vmax.f32 %v4226, 0.0
      %v4588 = vmax.f32 %v4228, 0.0
      %v4589 = vmax.f32 %v3877, 0.0
      %v4590 = vmax.f32 %v3879, 0.0
      %v4591 = vmax.f32 %v4230, 0.0
      %v4592 = vmax.f32 %v4232, 0.0
      %v4593 = vmax.f32 %v3883, 0.0
      %v4594 = vmax.f32 %v3885, 0.0
      %v4595 = vmax.f32 %v4236, 0.0
      %v4596 = vmax.f32 %v4238, 0.0
      %v4597 = vmax.f32 %v3887, 0.0
      %v4598 = vmax.f32 %v3889, 0.0
      %v4599 = vmax.f32 %v4240, 0.0
      %v4600 = vmax.f32 %v4242, 0.0
      %v4601 = vmax.f32 %v3893, 0.0
      %v4602 = vmax.f32 %v3895, 0.0
      %v4603 = vmax.f32 %v4246, 0.0
      %v4604 = vmax.f32 %v4248, 0.0
      %v4605 = vmax.f32 %v3897, 0.0
      %v4606 = vmax.f32 %v3899, 0.0
      %v4607 = vmax.f32 %v4250, 0.0
      %v4608 = vmax.f32 %v4252, 0.0
      %v4609 = vmax.f32 %v3903, 0.0
      %v4610 = vmax.f32 %v3905, 0.0
      %v4611 = vmax.f32 %v4256, 0.0
      %v4612 = vmax.f32 %v4258, 0.0
      %v4613 = vmax.f32 %v3907, 0.0
      %v4614 = vmax.f32 %v3909, 0.0
      %v4615 = vmax.f32 %v4260, 0.0
      %v4616 = vmax.f32 %v4262, 0.0
      %v4617 = vmax.f32 %v3913, 0.0
      %v4618 = vmax.f32 %v3915, 0.0
      %v4619 = vmax.f32 %v4266, 0.0
      %v4620 = vmax.f32 %v4268, 0.0
      %v4621 = vmax.f32 %v3917, 0.0
      %v4622 = vmax.f32 %v3919, 0.0
      %v4623 = vmax.f32 %v4270, 0.0
      %v4624 = vmax.f32 %v4272, 0.0
      %v4625 = vmax.f32 %v3923, 0.0
      %v4626 = vmax.f32 %v3925, 0.0
      %v4627 = vmax.f32 %v4276, 0.0
      %v4628 = vmax.f32 %v4278, 0.0
      %v4629 = vmax.f32 %v3927, 0.0
      %v4630 = vmax.f32 %v3929, 0.0
      %v4631 = vmax.f32 %v4280, 0.0
      %v4632 = vmax.f32 %v4282, 0.0
      %v4633 = vmax.f32 %v3933, 0.0
      %v4634 = vmax.f32 %v3935, 0.0
      %v4635 = vmax.f32 %v4286, 0.0
      %v4636 = vmax.f32 %v4288, 0.0
      %v4637 = vmax.f32 %v3937, 0.0
      %v4638 = vmax.f32 %v3939, 0.0
      %v4639 = vmax.f32 %v4290, 0.0
      %v4640 = vmax.f32 %v4292, 0.0
      %v4641 = vmax.f32 %v3943, 0.0
      %v4642 = vmax.f32 %v3945, 0.0
      %v4643 = vmax.f32 %v4296, 0.0
      %v4644 = vmax.f32 %v4298, 0.0
      %v4645 = vmax.f32 %v3947, 0.0
      %v4646 = vmax.f32 %v3949, 0.0
      %v4647 = vmax.f32 %v4300, 0.0
      %v4648 = vmax.f32 %v4302, 0.0
      %v4649 = vmax.f32 %v3953, 0.0
      %v4650 = vmax.f32 %v3955, 0.0
      %v4651 = vmax.f32 %v4306, 0.0
      %v4652 = vmax.f32 %v4308, 0.0
      %v4653 = vmax.f32 %v3957, 0.0
      %v4654 = vmax.f32 %v3959, 0.0
      %v4655 = vmax.f32 %v4310, 0.0
      %v4656 = vmax.f32 %v4312, 0.0
      %v4657 = vmax.f32 %v3963, 0.0
      %v4658 = vmax.f32 %v3965, 0.0
      %v4659 = vmax.f32 %v4316, 0.0
      %v4660 = vmax.f32 %v4318, 0.0
      %v4661 = vmax.f32 %v3967, 0.0
      %v4662 = vmax.f32 %v3969, 0.0
      %v4663 = vmax.f32 %v4320, 0.0
      %v4664 = vmax.f32 %v4322, 0.0
      %v4665 = vmax.f32 %v3973, 0.0
      %v4666 = vmax.f32 %v3975, 0.0
      %v4667 = vmax.f32 %v4326, 0.0
      %v4668 = vmax.f32 %v4328, 0.0
      %v4669 = vmax.f32 %v3977, 0.0
      %v4670 = vmax.f32 %v3979, 0.0
      %v4671 = vmax.f32 %v4330, 0.0
      %v4672 = vmax.f32 %v4332, 0.0
      %v4673 = vmax.f32 %v3983, 0.0
      %v4674 = vmax.f32 %v3985, 0.0
      %v4675 = vmax.f32 %v4336, 0.0
      %v4676 = vmax.f32 %v4338, 0.0
      %v4677 = vmax.f32 %v3987, 0.0
      %v4678 = vmax.f32 %v3989, 0.0
      %v4679 = vmax.f32 %v4340, 0.0
      %v4680 = vmax.f32 %v4342, 0.0
      %v4681 = vmax.f32 %v3993, 0.0
      %v4682 = vmax.f32 %v3995, 0.0
      %v4683 = vmax.f32 %v4346, 0.0
      %v4684 = vmax.f32 %v4348, 0.0
      %v4685 = vmax.f32 %v3997, 0.0
      %v4686 = vmax.f32 %v3999, 0.0
      %v4687 = vmax.f32 %v4350, 0.0
      %v4688 = vmax.f32 %v4352, 0.0
      %v4689 = vmax.f32 %v4003, 0.0
      %v4690 = vmax.f32 %v4005, 0.0
      %v4691 = vmax.f32 %v4356, 0.0
      %v4692 = vmax.f32 %v4358, 0.0
      %v4693 = vmax.f32 %v4007, 0.0
      %v4694 = vmax.f32 %v4009, 0.0
      %v4695 = vmax.f32 %v4360, 0.0
      %v4696 = vmax.f32 %v4362, 0.0
      %v4697 = vmax.f32 %v4013, 0.0
      %v4698 = vmax.f32 %v4015, 0.0
      %v4699 = vmax.f32 %v4366, 0.0
      %v4700 = vmax.f32 %v4368, 0.0
      %v4701 = vmax.f32 %v4017, 0.0
      %v4702 = vmax.f32 %v4019, 0.0
      %v4703 = vmax.f32 %v4370, 0.0
      %v4704 = vmax.f32 %v4372, 0.0
      %v4705 = vmax.f32 %v4023, 0.0
      %v4706 = vmax.f32 %v4025, 0.0
      %v4707 = vmax.f32 %v4376, 0.0
      %v4708 = vmax.f32 %v4378, 0.0
      %v4709 = vmax.f32 %v4027, 0.0
      %v4710 = vmax.f32 %v4029, 0.0
      %v4711 = vmax.f32 %v4380, 0.0
      %v4712 = vmax.f32 %v4382, 0.0
      %v4713 = vmax.f32 %v4033, 0.0
      %v4714 = vmax.f32 %v4035, 0.0
      %v4715 = vmax.f32 %v4386, 0.0
      %v4716 = vmax.f32 %v4388, 0.0
      %v4717 = vmax.f32 %v4037, 0.0
      %v4718 = vmax.f32 %v4039, 0.0
      %v4719 = vmax.f32 %v4390, 0.0
      %v4720 = vmax.f32 %v4392, 0.0
      %v4721 = vmax.f32 %v4043, 0.0
      %v4722 = vmax.f32 %v4045, 0.0
      %v4723 = vmax.f32 %v4396, 0.0
      %v4724 = vmax.f32 %v4398, 0.0
      %v4725 = vmax.f32 %v4047, 0.0
      %v4726 = vmax.f32 %v4049, 0.0
      %v4727 = vmax.f32 %v4400, 0.0
      %v4728 = vmax.f32 %v4402, 0.0
      %v4729 = vmax.f32 %v4053, 0.0
      %v4730 = vmax.f32 %v4055, 0.0
      %v4731 = vmax.f32 %v4406, 0.0
      %v4732 = vmax.f32 %v4408, 0.0
      %v4733 = vmax.f32 %v4057, 0.0
      %v4734 = vmax.f32 %v4059, 0.0
      %v4735 = vmax.f32 %v4410, 0.0
      %v4736 = vmax.f32 %v4412, 0.0
      %v4737 = vmax.f32 %v4063, 0.0
      %v4738 = vmax.f32 %v4065, 0.0
      %v4739 = vmax.f32 %v4416, 0.0
      %v4740 = vmax.f32 %v4418, 0.0
      %v4741 = vmax.f32 %v4067, 0.0
      %v4742 = vmax.f32 %v4069, 0.0
      %v4743 = vmax.f32 %v4420, 0.0
      %v4744 = vmax.f32 %v4422, 0.0
      %v4745 = vpack.c.bf16 %v4493, %v4489
      %v4746 = vpack.c.bf16 %v4494, %v4490
      %v4747 = vpack.c.bf16 %v4495, %v4491
      %v4748 = vpack.c.bf16 %v4496, %v4492
      %v4749 = vpack.c.bf16 %v4501, %v4497
      %v4750 = vpack.c.bf16 %v4502, %v4498
      %v4751 = vpack.c.bf16 %v4503, %v4499
      %v4752 = vpack.c.bf16 %v4504, %v4500
      %v4753 = vpack.c.bf16 %v4509, %v4505
      %v4754 = vpack.c.bf16 %v4510, %v4506
      %v4755 = vpack.c.bf16 %v4511, %v4507
      %v4756 = vpack.c.bf16 %v4512, %v4508
      %v4757 = vpack.c.bf16 %v4517, %v4513
      %v4758 = vpack.c.bf16 %v4518, %v4514
      %v4759 = vpack.c.bf16 %v4519, %v4515
      %v4760 = vpack.c.bf16 %v4520, %v4516
      %v4761 = vpack.c.bf16 %v4525, %v4521
      %v4762 = vpack.c.bf16 %v4526, %v4522
      %v4763 = vpack.c.bf16 %v4527, %v4523
      %v4764 = vpack.c.bf16 %v4528, %v4524
      %v4765 = vpack.c.bf16 %v4533, %v4529
      %v4766 = vpack.c.bf16 %v4534, %v4530
      %v4767 = vpack.c.bf16 %v4535, %v4531
      %v4768 = vpack.c.bf16 %v4536, %v4532
      %v4769 = vpack.c.bf16 %v4541, %v4537
      %v4770 = vpack.c.bf16 %v4542, %v4538
      %v4771 = vpack.c.bf16 %v4543, %v4539
      %v4772 = vpack.c.bf16 %v4544, %v4540
      %v4773 = vpack.c.bf16 %v4549, %v4545
      %v4774 = vpack.c.bf16 %v4550, %v4546
      %v4775 = vpack.c.bf16 %v4551, %v4547
      %v4776 = vpack.c.bf16 %v4552, %v4548
      %v4777 = vpack.c.bf16 %v4557, %v4553
      %v4778 = vpack.c.bf16 %v4558, %v4554
      %v4779 = vpack.c.bf16 %v4559, %v4555
      %v4780 = vpack.c.bf16 %v4560, %v4556
      %v4781 = vpack.c.bf16 %v4565, %v4561
      %v4782 = vpack.c.bf16 %v4566, %v4562
      %v4783 = vpack.c.bf16 %v4567, %v4563
      %v4784 = vpack.c.bf16 %v4568, %v4564
      %v4785 = vpack.c.bf16 %v4573, %v4569
      %v4786 = vpack.c.bf16 %v4574, %v4570
      %v4787 = vpack.c.bf16 %v4575, %v4571
      %v4788 = vpack.c.bf16 %v4576, %v4572
      %v4789 = vpack.c.bf16 %v4581, %v4577
      %v4790 = vpack.c.bf16 %v4582, %v4578
      %v4791 = vpack.c.bf16 %v4583, %v4579
      %v4792 = vpack.c.bf16 %v4584, %v4580
      %v4793 = vpack.c.bf16 %v4589, %v4585
      %v4794 = vpack.c.bf16 %v4590, %v4586
      %v4795 = vpack.c.bf16 %v4591, %v4587
      %v4796 = vpack.c.bf16 %v4592, %v4588
      %v4797 = vpack.c.bf16 %v4597, %v4593
      %v4798 = vpack.c.bf16 %v4598, %v4594
      %v4799 = vpack.c.bf16 %v4599, %v4595
      %v4800 = vpack.c.bf16 %v4600, %v4596
      %v4801 = vpack.c.bf16 %v4605, %v4601
      %v4802 = vpack.c.bf16 %v4606, %v4602
      %v4803 = vpack.c.bf16 %v4607, %v4603
      %v4804 = vpack.c.bf16 %v4608, %v4604
      %v4805 = vpack.c.bf16 %v4613, %v4609
      %v4806 = vpack.c.bf16 %v4614, %v4610
      %v4807 = vpack.c.bf16 %v4615, %v4611
      %v4808 = vpack.c.bf16 %v4616, %v4612
      %v4809 = vpack.c.bf16 %v4621, %v4617
      %v4810 = vpack.c.bf16 %v4622, %v4618
      %v4811 = vpack.c.bf16 %v4623, %v4619
      %v4812 = vpack.c.bf16 %v4624, %v4620
      %v4813 = vpack.c.bf16 %v4629, %v4625
      %v4814 = vpack.c.bf16 %v4630, %v4626
      %v4815 = vpack.c.bf16 %v4631, %v4627
      %v4816 = vpack.c.bf16 %v4632, %v4628
      %v4817 = vpack.c.bf16 %v4637, %v4633
      %v4818 = vpack.c.bf16 %v4638, %v4634
      %v4819 = vpack.c.bf16 %v4639, %v4635
      %v4820 = vpack.c.bf16 %v4640, %v4636
      %v4821 = vpack.c.bf16 %v4645, %v4641
      %v4822 = vpack.c.bf16 %v4646, %v4642
      %v4823 = vpack.c.bf16 %v4647, %v4643
      %v4824 = vpack.c.bf16 %v4648, %v4644
      %v4825 = vpack.c.bf16 %v4653, %v4649
      %v4826 = vpack.c.bf16 %v4654, %v4650
      %v4827 = vpack.c.bf16 %v4655, %v4651
      %v4828 = vpack.c.bf16 %v4656, %v4652
      %v4829 = vpack.c.bf16 %v4661, %v4657
      %v4830 = vpack.c.bf16 %v4662, %v4658
      %v4831 = vpack.c.bf16 %v4663, %v4659
      %v4832 = vpack.c.bf16 %v4664, %v4660
      %v4833 = vpack.c.bf16 %v4669, %v4665
      %v4834 = vpack.c.bf16 %v4670, %v4666
      %v4835 = vpack.c.bf16 %v4671, %v4667
      %v4836 = vpack.c.bf16 %v4672, %v4668
      %v4837 = vpack.c.bf16 %v4677, %v4673
      %v4838 = vpack.c.bf16 %v4678, %v4674
      %v4839 = vpack.c.bf16 %v4679, %v4675
      %v4840 = vpack.c.bf16 %v4680, %v4676
      %v4841 = vpack.c.bf16 %v4685, %v4681
      %v4842 = vpack.c.bf16 %v4686, %v4682
      %v4843 = vpack.c.bf16 %v4687, %v4683
      %v4844 = vpack.c.bf16 %v4688, %v4684
      %v4845 = vpack.c.bf16 %v4693, %v4689
      %v4846 = vpack.c.bf16 %v4694, %v4690
      %v4847 = vpack.c.bf16 %v4695, %v4691
      %v4848 = vpack.c.bf16 %v4696, %v4692
      %v4849 = vpack.c.bf16 %v4701, %v4697
      %v4850 = vpack.c.bf16 %v4702, %v4698
      %v4851 = vpack.c.bf16 %v4703, %v4699
      %v4852 = vpack.c.bf16 %v4704, %v4700
      %v4853 = vpack.c.bf16 %v4709, %v4705
      %v4854 = vpack.c.bf16 %v4710, %v4706
      %v4855 = vpack.c.bf16 %v4711, %v4707
      %v4856 = vpack.c.bf16 %v4712, %v4708
      %v4857 = vpack.c.bf16 %v4717, %v4713
      %v4858 = vpack.c.bf16 %v4718, %v4714
      %v4859 = vpack.c.bf16 %v4719, %v4715
      %v4860 = vpack.c.bf16 %v4720, %v4716
      %v4861 = vpack.c.bf16 %v4725, %v4721
      %v4862 = vpack.c.bf16 %v4726, %v4722
      %v4863 = vpack.c.bf16 %v4727, %v4723
      %v4864 = vpack.c.bf16 %v4728, %v4724
      %v4865 = vpack.c.bf16 %v4733, %v4729
      %v4866 = vpack.c.bf16 %v4734, %v4730
      %v4867 = vpack.c.bf16 %v4735, %v4731
      %v4868 = vpack.c.bf16 %v4736, %v4732
      %v4869 = vpack.c.bf16 %v4741, %v4737
      %v4870 = vpack.c.bf16 %v4742, %v4738
      %v4871 = vpack.c.bf16 %v4743, %v4739
      %v4872 = vpack.c.bf16 %v4744, %v4740
      %v4874 = vlaneseq
      %v4875 = vshrl.u32 %v4874, 7
      %v4876 = vsub.s32 0, %v4875
      %v4877 = vrot.slane %v4488, %v4876
      %v4878 = vlaneseq
      %v4879 = vshrl.u32 %v4878, 7
      %v4880 = vsub.s32 1, %v4879
      %v4881 = vrot.slane %v4488, %v4880
      %v4948 = vunpack.c.l.b16 %v4424
      %v4949 = vunpack.c.h.b16 %v4424
      %v4950 = vunpack.c.l.b16 %v4425
      %v4951 = vunpack.c.h.b16 %v4425
      %v4952 = vunpack.c.l.b16 %v4426
      %v4953 = vunpack.c.h.b16 %v4426
      %v4954 = vunpack.c.l.b16 %v4427
      %v4955 = vunpack.c.h.b16 %v4427
      %v4956 = vunpack.c.l.b16 %v4428
      %v4957 = vunpack.c.h.b16 %v4428
      %v4958 = vunpack.c.l.b16 %v4429
      %v4959 = vunpack.c.h.b16 %v4429
      %v4960 = vunpack.c.l.b16 %v4430
      %v4961 = vunpack.c.h.b16 %v4430
      %v4962 = vunpack.c.l.b16 %v4431
      %v4963 = vunpack.c.h.b16 %v4431
      %v4964 = vunpack.c.l.b16 %v4432
      %v4965 = vunpack.c.h.b16 %v4432
      %v4966 = vunpack.c.l.b16 %v4433
      %v4967 = vunpack.c.h.b16 %v4433
      %v4968 = vunpack.c.l.b16 %v4434
      %v4969 = vunpack.c.h.b16 %v4434
      %v4970 = vunpack.c.l.b16 %v4435
      %v4971 = vunpack.c.h.b16 %v4435
      %v4972 = vunpack.c.l.b16 %v4436
      %v4973 = vunpack.c.h.b16 %v4436
      %v4974 = vunpack.c.l.b16 %v4437
      %v4975 = vunpack.c.h.b16 %v4437
      %v4976 = vunpack.c.l.b16 %v4438
      %v4977 = vunpack.c.h.b16 %v4438
      %v4978 = vunpack.c.l.b16 %v4439
      %v4979 = vunpack.c.h.b16 %v4439
      %v4980 = vunpack.c.l.b16 %v4440
      %v4981 = vunpack.c.h.b16 %v4440
      %v4982 = vunpack.c.l.b16 %v4441
      %v4983 = vunpack.c.h.b16 %v4441
      %v4984 = vunpack.c.l.b16 %v4442
      %v4985 = vunpack.c.h.b16 %v4442
      %v4986 = vunpack.c.l.b16 %v4443
      %v4987 = vunpack.c.h.b16 %v4443
      %v4988 = vunpack.c.l.b16 %v4444
      %v4989 = vunpack.c.h.b16 %v4444
      %v4990 = vunpack.c.l.b16 %v4445
      %v4991 = vunpack.c.h.b16 %v4445
      %v4992 = vunpack.c.l.b16 %v4446
      %v4993 = vunpack.c.h.b16 %v4446
      %v4994 = vunpack.c.l.b16 %v4447
      %v4995 = vunpack.c.h.b16 %v4447
      %v4996 = vunpack.c.l.b16 %v4448
      %v4997 = vunpack.c.h.b16 %v4448
      %v4998 = vunpack.c.l.b16 %v4449
      %v4999 = vunpack.c.h.b16 %v4449
      %v5000 = vunpack.c.l.b16 %v4450
      %v5001 = vunpack.c.h.b16 %v4450
      %v5002 = vunpack.c.l.b16 %v4451
      %v5003 = vunpack.c.h.b16 %v4451
      %v5004 = vunpack.c.l.b16 %v4452
      %v5005 = vunpack.c.h.b16 %v4452
      %v5006 = vunpack.c.l.b16 %v4453
      %v5007 = vunpack.c.h.b16 %v4453
      %v5008 = vunpack.c.l.b16 %v4454
      %v5009 = vunpack.c.h.b16 %v4454
      %v5010 = vunpack.c.l.b16 %v4455
      %v5011 = vunpack.c.h.b16 %v4455
      %v5012 = vunpack.c.l.b16 %v4456
      %v5013 = vunpack.c.h.b16 %v4456
      %v5014 = vunpack.c.l.b16 %v4457
      %v5015 = vunpack.c.h.b16 %v4457
      %v5016 = vunpack.c.l.b16 %v4458
      %v5017 = vunpack.c.h.b16 %v4458
      %v5018 = vunpack.c.l.b16 %v4459
      %v5019 = vunpack.c.h.b16 %v4459
      %v5020 = vunpack.c.l.b16 %v4460
      %v5021 = vunpack.c.h.b16 %v4460
      %v5022 = vunpack.c.l.b16 %v4461
      %v5023 = vunpack.c.h.b16 %v4461
      %v5024 = vunpack.c.l.b16 %v4462
      %v5025 = vunpack.c.h.b16 %v4462
      %v5026 = vunpack.c.l.b16 %v4463
      %v5027 = vunpack.c.h.b16 %v4463
      %v5028 = vunpack.c.l.b16 %v4464
      %v5029 = vunpack.c.h.b16 %v4464
      %v5030 = vunpack.c.l.b16 %v4465
      %v5031 = vunpack.c.h.b16 %v4465
      %v5032 = vunpack.c.l.b16 %v4466
      %v5033 = vunpack.c.h.b16 %v4466
      %v5034 = vunpack.c.l.b16 %v4467
      %v5035 = vunpack.c.h.b16 %v4467
      %v5036 = vunpack.c.l.b16 %v4468
      %v5037 = vunpack.c.h.b16 %v4468
      %v5038 = vunpack.c.l.b16 %v4469
      %v5039 = vunpack.c.h.b16 %v4469
      %v5040 = vunpack.c.l.b16 %v4470
      %v5041 = vunpack.c.h.b16 %v4470
      %v5042 = vunpack.c.l.b16 %v4471
      %v5043 = vunpack.c.h.b16 %v4471
      %v5044 = vunpack.c.l.b16 %v4472
      %v5045 = vunpack.c.h.b16 %v4472
      %v5046 = vunpack.c.l.b16 %v4473
      %v5047 = vunpack.c.h.b16 %v4473
      %v5048 = vunpack.c.l.b16 %v4474
      %v5049 = vunpack.c.h.b16 %v4474
      %v5050 = vunpack.c.l.b16 %v4475
      %v5051 = vunpack.c.h.b16 %v4475
      %v5052 = vunpack.c.l.b16 %v4476
      %v5053 = vunpack.c.h.b16 %v4476
      %v5054 = vunpack.c.l.b16 %v4477
      %v5055 = vunpack.c.h.b16 %v4477
      %v5056 = vunpack.c.l.b16 %v4478
      %v5057 = vunpack.c.h.b16 %v4478
      %v5058 = vunpack.c.l.b16 %v4479
      %v5059 = vunpack.c.h.b16 %v4479
      %v5060 = vunpack.c.l.b16 %v4480
      %v5061 = vunpack.c.h.b16 %v4480
      %v5062 = vunpack.c.l.b16 %v4481
      %v5063 = vunpack.c.h.b16 %v4481
      %v5064 = vunpack.c.l.b16 %v4482
      %v5065 = vunpack.c.h.b16 %v4482
      %v5066 = vunpack.c.l.b16 %v4483
      %v5067 = vunpack.c.h.b16 %v4483
      %v5068 = vunpack.c.l.b16 %v4484
      %v5069 = vunpack.c.h.b16 %v4484
      %v5070 = vunpack.c.l.b16 %v4485
      %v5071 = vunpack.c.h.b16 %v4485
      %v5072 = vunpack.c.l.b16 %v4486
      %v5073 = vunpack.c.h.b16 %v4486
      %v5074 = vunpack.c.l.b16 %v4487
      %v5075 = vunpack.c.h.b16 %v4487
      %v5076 = vpack.c.b16 %v4950, %v4948
      %v5077 = vpack.c.b16 %v4951, %v4949
      %v5078 = vpack.c.b16 %v4954, %v4952
      %v5079 = vpack.c.b16 %v4955, %v4953
      %v5080 = vpack.c.b16 %v4958, %v4956
      %v5081 = vpack.c.b16 %v4959, %v4957
      %v5082 = vpack.c.b16 %v4962, %v4960
      %v5083 = vpack.c.b16 %v4963, %v4961
      %v5084 = vpack.c.b16 %v4966, %v4964
      %v5085 = vpack.c.b16 %v4967, %v4965
      %v5086 = vpack.c.b16 %v4970, %v4968
      %v5087 = vpack.c.b16 %v4971, %v4969
      %v5088 = vpack.c.b16 %v4974, %v4972
      %v5089 = vpack.c.b16 %v4975, %v4973
      %v5090 = vpack.c.b16 %v4978, %v4976
      %v5091 = vpack.c.b16 %v4979, %v4977
      %v5092 = vpack.c.b16 %v4982, %v4980
      %v5093 = vpack.c.b16 %v4983, %v4981
      %v5094 = vpack.c.b16 %v4986, %v4984
      %v5095 = vpack.c.b16 %v4987, %v4985
      %v5096 = vpack.c.b16 %v4990, %v4988
      %v5097 = vpack.c.b16 %v4991, %v4989
      %v5098 = vpack.c.b16 %v4994, %v4992
      %v5099 = vpack.c.b16 %v4995, %v4993
      %v5100 = vpack.c.b16 %v4998, %v4996
      %v5101 = vpack.c.b16 %v4999, %v4997
      %v5102 = vpack.c.b16 %v5002, %v5000
      %v5103 = vpack.c.b16 %v5003, %v5001
      %v5104 = vpack.c.b16 %v5006, %v5004
      %v5105 = vpack.c.b16 %v5007, %v5005
      %v5106 = vpack.c.b16 %v5010, %v5008
      %v5107 = vpack.c.b16 %v5011, %v5009
      %v5108 = vpack.c.b16 %v5014, %v5012
      %v5109 = vpack.c.b16 %v5015, %v5013
      %v5110 = vpack.c.b16 %v5018, %v5016
      %v5111 = vpack.c.b16 %v5019, %v5017
      %v5112 = vpack.c.b16 %v5022, %v5020
      %v5113 = vpack.c.b16 %v5023, %v5021
      %v5114 = vpack.c.b16 %v5026, %v5024
      %v5115 = vpack.c.b16 %v5027, %v5025
      %v5116 = vpack.c.b16 %v5030, %v5028
      %v5117 = vpack.c.b16 %v5031, %v5029
      %v5118 = vpack.c.b16 %v5034, %v5032
      %v5119 = vpack.c.b16 %v5035, %v5033
      %v5120 = vpack.c.b16 %v5038, %v5036
      %v5121 = vpack.c.b16 %v5039, %v5037
      %v5122 = vpack.c.b16 %v5042, %v5040
      %v5123 = vpack.c.b16 %v5043, %v5041
      %v5124 = vpack.c.b16 %v5046, %v5044
      %v5125 = vpack.c.b16 %v5047, %v5045
      %v5126 = vpack.c.b16 %v5050, %v5048
      %v5127 = vpack.c.b16 %v5051, %v5049
      %v5128 = vpack.c.b16 %v5054, %v5052
      %v5129 = vpack.c.b16 %v5055, %v5053
      %v5130 = vpack.c.b16 %v5058, %v5056
      %v5131 = vpack.c.b16 %v5059, %v5057
      %v5132 = vpack.c.b16 %v5062, %v5060
      %v5133 = vpack.c.b16 %v5063, %v5061
      %v5134 = vpack.c.b16 %v5066, %v5064
      %v5135 = vpack.c.b16 %v5067, %v5065
      %v5136 = vpack.c.b16 %v5070, %v5068
      %v5137 = vpack.c.b16 %v5071, %v5069
      %v5138 = vpack.c.b16 %v5074, %v5072
      %v5139 = vpack.c.b16 %v5075, %v5073
      %5204 = vmatprep.subr.bf16.mxu0 %v5077
      %5205 = vmatpush1.bf16.msra.mxu0 %v5076
      %5206 = vmatprep.subr.bf16.mxu0 %v5079
      %5207 = vmatpush1.bf16.msra.mxu0 %v5078
      %5208 = vmatprep.subr.bf16.mxu0 %v5081
      %5209 = vmatpush1.bf16.msra.mxu0 %v5080
      %5210 = vmatprep.subr.bf16.mxu0 %v5083
      %5211 = vmatpush1.bf16.msra.mxu0 %v5082
      %5212 = vmatprep.subr.bf16.mxu0 %v5085
      %5213 = vmatpush1.bf16.msra.mxu0 %v5084
      %5214 = vmatprep.subr.bf16.mxu0 %v5087
      %5215 = vmatpush1.bf16.msra.mxu0 %v5086
      %5216 = vmatprep.subr.bf16.mxu0 %v5089
      %5217 = vmatpush1.bf16.msra.mxu0 %v5088
      %5218 = vmatprep.subr.bf16.mxu0 %v5091
      %5219 = vmatpush1.bf16.msra.mxu0 %v5090
      %5220 = vmatprep.subr.bf16.mxu0 %v5093
      %5221 = vmatpush1.bf16.msra.mxu0 %v5092
      %5222 = vmatprep.subr.bf16.mxu0 %v5095
      %5223 = vmatpush1.bf16.msra.mxu0 %v5094
      %5224 = vmatprep.subr.bf16.mxu0 %v5097
      %5225 = vmatpush1.bf16.msra.mxu0 %v5096
      %5226 = vmatprep.subr.bf16.mxu0 %v5099
      %5227 = vmatpush1.bf16.msra.mxu0 %v5098
      %5228 = vmatprep.subr.bf16.mxu0 %v5101
      %5229 = vmatpush1.bf16.msra.mxu0 %v5100
      %5230 = vmatprep.subr.bf16.mxu0 %v5103
      %5231 = vmatpush1.bf16.msra.mxu0 %v5102
      %5232 = vmatprep.subr.bf16.mxu0 %v5105
      %5233 = vmatpush1.bf16.msra.mxu0 %v5104
      %5234 = vmatprep.subr.bf16.mxu0 %v5107
      %5235 = vmatpush1.bf16.msra.mxu0 %v5106
      %5236 = vmatprep.mubr.bf16.mxu0 %v4746
      %5237 = vmatmul.mubr.bf16.gmra.mrb[0].mxu0 %v4745
      %v5238 = vpop.f32.mrb[0].mxu0
      %v5239 = vadd.f32 %v4877, %v5238
      %v5240 = vpop.f32.mrb[0].mxu0
      %v5241 = vadd.f32 %v4881, %v5240
      %v5242 = vpop.f32.mrb[0].mxu0
      %v5243 = vadd.f32 %v4877, %v5242
      %v5244 = vpop.f32.mrb[0].mxu0
      %v5245 = vadd.f32 %v4881, %v5244
      %5246 = vmatprep.mubr.bf16.mxu0 %v4750
      %5247 = vmatmul.mubr.bf16.gmra.mrb[0].mxu0 %v4749
      %v5248 = vpop.f32.mrb[0].mxu0
      %v5249 = vadd.f32 %v4877, %v5248
      %v5250 = vpop.f32.mrb[0].mxu0
      %v5251 = vadd.f32 %v4881, %v5250
      %v5252 = vpop.f32.mrb[0].mxu0
      %v5253 = vadd.f32 %v4877, %v5252
      %v5254 = vpop.f32.mrb[0].mxu0
      %v5255 = vadd.f32 %v4881, %v5254
      %5256 = vmatprep.mubr.bf16.mxu0 %v4754
      %5257 = vmatmul.mubr.bf16.gmra.mrb[0].mxu0 %v4753
      %v5258 = vpop.f32.mrb[0].mxu0
      %v5259 = vadd.f32 %v4877, %v5258
      %v5260 = vpop.f32.mrb[0].mxu0
      %v5261 = vadd.f32 %v4881, %v5260
      %v5262 = vpop.f32.mrb[0].mxu0
      %v5263 = vadd.f32 %v4877, %v5262
      %v5264 = vpop.f32.mrb[0].mxu0
      %v5265 = vadd.f32 %v4881, %v5264
      %5266 = vmatprep.mubr.bf16.mxu0 %v4758
      %5267 = vmatmul.mubr.bf16.gmra.mrb[0].mxu0 %v4757
      %v5268 = vpop.f32.mrb[0].mxu0
      %v5269 = vadd.f32 %v4877, %v5268
      %v5270 = vpop.f32.mrb[0].mxu0
      %v5271 = vadd.f32 %v4881, %v5270
      %v5272 = vpop.f32.mrb[0].mxu0
      %v5273 = vadd.f32 %v4877, %v5272
      %v5274 = vpop.f32.mrb[0].mxu0
      %v5275 = vadd.f32 %v4881, %v5274
      %5276 = vmatprep.mubr.bf16.mxu0 %v4762
      %5277 = vmatmul.mubr.bf16.gmra.mrb[0].mxu0 %v4761
      %v5278 = vpop.f32.mrb[0].mxu0
      %v5279 = vadd.f32 %v4877, %v5278
      %v5280 = vpop.f32.mrb[0].mxu0
      %v5281 = vadd.f32 %v4881, %v5280
      %v5282 = vpop.f32.mrb[0].mxu0
      %v5283 = vadd.f32 %v4877, %v5282
      %v5284 = vpop.f32.mrb[0].mxu0
      %v5285 = vadd.f32 %v4881, %v5284
      %5286 = vmatprep.mubr.bf16.mxu0 %v4766
      %5287 = vmatmul.mubr.bf16.gmra.mrb[0].mxu0 %v4765
      %v5288 = vpop.f32.mrb[0].mxu0
      %v5289 = vadd.f32 %v4877, %v5288
      %v5290 = vpop.f32.mrb[0].mxu0
      %v5291 = vadd.f32 %v4881, %v5290
      %v5292 = vpop.f32.mrb[0].mxu0
      %v5293 = vadd.f32 %v4877, %v5292
      %v5294 = vpop.f32.mrb[0].mxu0
      %v5295 = vadd.f32 %v4881, %v5294
      %5296 = vmatprep.mubr.bf16.mxu0 %v4770
      %5297 = vmatmul.mubr.bf16.gmra.mrb[0].mxu0 %v4769
      %v5298 = vpop.f32.mrb[0].mxu0
      %v5299 = vadd.f32 %v4877, %v5298
      %v5300 = vpop.f32.mrb[0].mxu0
      %v5301 = vadd.f32 %v4881, %v5300
      %v5302 = vpop.f32.mrb[0].mxu0
      %v5303 = vadd.f32 %v4877, %v5302
      %v5304 = vpop.f32.mrb[0].mxu0
      %v5305 = vadd.f32 %v4881, %v5304
      %5306 = vmatprep.mubr.bf16.mxu0 %v4774
      %5307 = vmatmul.mubr.bf16.gmra.mrb[0].mxu0 %v4773
      %v5308 = vpop.f32.mrb[0].mxu0
      %v5309 = vadd.f32 %v4877, %v5308
      %v5310 = vpop.f32.mrb[0].mxu0
      %v5311 = vadd.f32 %v4881, %v5310
      %v5312 = vpop.f32.mrb[0].mxu0
      %v5313 = vadd.f32 %v4877, %v5312
      %v5314 = vpop.f32.mrb[0].mxu0
      %v5315 = vadd.f32 %v4881, %v5314
      %5316 = vmatprep.mubr.bf16.mxu0 %v4778
      %5317 = vmatmul.mubr.bf16.gmra.mrb[0].mxu0 %v4777
      %v5318 = vpop.f32.mrb[0].mxu0
      %v5319 = vadd.f32 %v4877, %v5318
      %v5320 = vpop.f32.mrb[0].mxu0
      %v5321 = vadd.f32 %v4881, %v5320
      %v5322 = vpop.f32.mrb[0].mxu0
      %v5323 = vadd.f32 %v4877, %v5322
      %v5324 = vpop.f32.mrb[0].mxu0
      %v5325 = vadd.f32 %v4881, %v5324
      %5326 = vmatprep.mubr.bf16.mxu0 %v4782
      %5327 = vmatmul.mubr.bf16.gmra.mrb[0].mxu0 %v4781
      %v5328 = vpop.f32.mrb[0].mxu0
      %v5329 = vadd.f32 %v4877, %v5328
      %v5330 = vpop.f32.mrb[0].mxu0
      %v5331 = vadd.f32 %v4881, %v5330
      %v5332 = vpop.f32.mrb[0].mxu0
      %v5333 = vadd.f32 %v4877, %v5332
      %v5334 = vpop.f32.mrb[0].mxu0
      %v5335 = vadd.f32 %v4881, %v5334
      %5336 = vmatprep.mubr.bf16.mxu0 %v4786
      %5337 = vmatmul.mubr.bf16.gmra.mrb[0].mxu0 %v4785
      %v5338 = vpop.f32.mrb[0].mxu0
      %v5339 = vadd.f32 %v4877, %v5338
      %v5340 = vpop.f32.mrb[0].mxu0
      %v5341 = vadd.f32 %v4881, %v5340
      %v5342 = vpop.f32.mrb[0].mxu0
      %v5343 = vadd.f32 %v4877, %v5342
      %v5344 = vpop.f32.mrb[0].mxu0
      %v5345 = vadd.f32 %v4881, %v5344
      %5346 = vmatprep.mubr.bf16.mxu0 %v4790
      %5347 = vmatmul.mubr.bf16.gmra.mrb[0].mxu0 %v4789
      %v5348 = vpop.f32.mrb[0].mxu0
      %v5349 = vadd.f32 %v4877, %v5348
      %v5350 = vpop.f32.mrb[0].mxu0
      %v5351 = vadd.f32 %v4881, %v5350
      %v5352 = vpop.f32.mrb[0].mxu0
      %v5353 = vadd.f32 %v4877, %v5352
      %v5354 = vpop.f32.mrb[0].mxu0
      %v5355 = vadd.f32 %v4881, %v5354
      %5356 = vmatprep.mubr.bf16.mxu0 %v4794
      %5357 = vmatmul.mubr.bf16.gmra.mrb[0].mxu0 %v4793
      %v5358 = vpop.f32.mrb[0].mxu0
      %v5359 = vadd.f32 %v4877, %v5358
      %v5360 = vpop.f32.mrb[0].mxu0
      %v5361 = vadd.f32 %v4881, %v5360
      %v5362 = vpop.f32.mrb[0].mxu0
      %v5363 = vadd.f32 %v4877, %v5362
      %v5364 = vpop.f32.mrb[0].mxu0
      %v5365 = vadd.f32 %v4881, %v5364
      %5366 = vmatprep.mubr.bf16.mxu0 %v4798
      %5367 = vmatmul.mubr.bf16.gmra.mrb[0].mxu0 %v4797
      %v5368 = vpop.f32.mrb[0].mxu0
      %v5369 = vadd.f32 %v4877, %v5368
      %v5370 = vpop.f32.mrb[0].mxu0
      %v5371 = vadd.f32 %v4881, %v5370
      %v5372 = vpop.f32.mrb[0].mxu0
      %v5373 = vadd.f32 %v4877, %v5372
      %v5374 = vpop.f32.mrb[0].mxu0
      %v5375 = vadd.f32 %v4881, %v5374
      %5376 = vmatprep.mubr.bf16.mxu0 %v4802
      %5377 = vmatmul.mubr.bf16.gmra.mrb[0].mxu0 %v4801
      %v5378 = vpop.f32.mrb[0].mxu0
      %v5379 = vadd.f32 %v4877, %v5378
      %v5380 = vpop.f32.mrb[0].mxu0
      %v5381 = vadd.f32 %v4881, %v5380
      %v5382 = vpop.f32.mrb[0].mxu0
      %v5383 = vadd.f32 %v4877, %v5382
      %v5384 = vpop.f32.mrb[0].mxu0
      %v5385 = vadd.f32 %v4881, %v5384
      %5386 = vmatprep.mubr.bf16.mxu0 %v4806
      %5387 = vmatmul.mubr.bf16.gmra.mrb[0].mxu0 %v4805
      %v5388 = vpop.f32.mrb[0].mxu0
      %v5389 = vadd.f32 %v4877, %v5388
      %v5390 = vpop.f32.mrb[0].mxu0
      %v5391 = vadd.f32 %v4881, %v5390
      %v5392 = vpop.f32.mrb[0].mxu0
      %v5393 = vadd.f32 %v4877, %v5392
      %v5394 = vpop.f32.mrb[0].mxu0
      %v5395 = vadd.f32 %v4881, %v5394
      %5396 = vmatprep.mubr.bf16.mxu0 %v4810
      %5397 = vmatmul.mubr.bf16.gmra.mrb[0].mxu0 %v4809
      %v5398 = vpop.f32.mrb[0].mxu0
      %v5399 = vadd.f32 %v4877, %v5398
      %v5400 = vpop.f32.mrb[0].mxu0
      %v5401 = vadd.f32 %v4881, %v5400
      %v5402 = vpop.f32.mrb[0].mxu0
      %v5403 = vadd.f32 %v4877, %v5402
      %v5404 = vpop.f32.mrb[0].mxu0
      %v5405 = vadd.f32 %v4881, %v5404
      %5406 = vmatprep.mubr.bf16.mxu0 %v4814
      %5407 = vmatmul.mubr.bf16.gmra.mrb[0].mxu0 %v4813
      %v5408 = vpop.f32.mrb[0].mxu0
      %v5409 = vadd.f32 %v4877, %v5408
      %v5410 = vpop.f32.mrb[0].mxu0
      %v5411 = vadd.f32 %v4881, %v5410
      %v5412 = vpop.f32.mrb[0].mxu0
      %v5413 = vadd.f32 %v4877, %v5412
      %v5414 = vpop.f32.mrb[0].mxu0
      %v5415 = vadd.f32 %v4881, %v5414
      %5416 = vmatprep.mubr.bf16.mxu0 %v4818
      %5417 = vmatmul.mubr.bf16.gmra.mrb[0].mxu0 %v4817
      %v5418 = vpop.f32.mrb[0].mxu0
      %v5419 = vadd.f32 %v4877, %v5418
      %v5420 = vpop.f32.mrb[0].mxu0
      %v5421 = vadd.f32 %v4881, %v5420
      %v5422 = vpop.f32.mrb[0].mxu0
      %v5423 = vadd.f32 %v4877, %v5422
      %v5424 = vpop.f32.mrb[0].mxu0
      %v5425 = vadd.f32 %v4881, %v5424
      %5426 = vmatprep.mubr.bf16.mxu0 %v4822
      %5427 = vmatmul.mubr.bf16.gmra.mrb[0].mxu0 %v4821
      %v5428 = vpop.f32.mrb[0].mxu0
      %v5429 = vadd.f32 %v4877, %v5428
      %v5430 = vpop.f32.mrb[0].mxu0
      %v5431 = vadd.f32 %v4881, %v5430
      %v5432 = vpop.f32.mrb[0].mxu0
      %v5433 = vadd.f32 %v4877, %v5432
      %v5434 = vpop.f32.mrb[0].mxu0
      %v5435 = vadd.f32 %v4881, %v5434
      %5436 = vmatprep.mubr.bf16.mxu0 %v4826
      %5437 = vmatmul.mubr.bf16.gmra.mrb[0].mxu0 %v4825
      %v5438 = vpop.f32.mrb[0].mxu0
      %v5439 = vadd.f32 %v4877, %v5438
      %v5440 = vpop.f32.mrb[0].mxu0
      %v5441 = vadd.f32 %v4881, %v5440
      %v5442 = vpop.f32.mrb[0].mxu0
      %v5443 = vadd.f32 %v4877, %v5442
      %v5444 = vpop.f32.mrb[0].mxu0
      %v5445 = vadd.f32 %v4881, %v5444
      %5446 = vmatprep.mubr.bf16.mxu0 %v4830
      %5447 = vmatmul.mubr.bf16.gmra.mrb[0].mxu0 %v4829
      %v5448 = vpop.f32.mrb[0].mxu0
      %v5449 = vadd.f32 %v4877, %v5448
      %v5450 = vpop.f32.mrb[0].mxu0
      %v5451 = vadd.f32 %v4881, %v5450
      %v5452 = vpop.f32.mrb[0].mxu0
      %v5453 = vadd.f32 %v4877, %v5452
      %v5454 = vpop.f32.mrb[0].mxu0
      %v5455 = vadd.f32 %v4881, %v5454
      %5456 = vmatprep.mubr.bf16.mxu0 %v4834
      %5457 = vmatmul.mubr.bf16.gmra.mrb[0].mxu0 %v4833
      %v5458 = vpop.f32.mrb[0].mxu0
      %v5459 = vadd.f32 %v4877, %v5458
      %v5460 = vpop.f32.mrb[0].mxu0
      %v5461 = vadd.f32 %v4881, %v5460
      %v5462 = vpop.f32.mrb[0].mxu0
      %v5463 = vadd.f32 %v4877, %v5462
      %v5464 = vpop.f32.mrb[0].mxu0
      %v5465 = vadd.f32 %v4881, %v5464
      %5466 = vmatprep.mubr.bf16.mxu0 %v4838
      %5467 = vmatmul.mubr.bf16.gmra.mrb[0].mxu0 %v4837
      %v5468 = vpop.f32.mrb[0].mxu0
      %v5469 = vadd.f32 %v4877, %v5468
      %v5470 = vpop.f32.mrb[0].mxu0
      %v5471 = vadd.f32 %v4881, %v5470
      %v5472 = vpop.f32.mrb[0].mxu0
      %v5473 = vadd.f32 %v4877, %v5472
      %v5474 = vpop.f32.mrb[0].mxu0
      %v5475 = vadd.f32 %v4881, %v5474
      %5476 = vmatprep.mubr.bf16.mxu0 %v4842
      %5477 = vmatmul.mubr.bf16.gmra.mrb[0].mxu0 %v4841
      %v5478 = vpop.f32.mrb[0].mxu0
      %v5479 = vadd.f32 %v4877, %v5478
      %v5480 = vpop.f32.mrb[0].mxu0
      %v5481 = vadd.f32 %v4881, %v5480
      %v5482 = vpop.f32.mrb[0].mxu0
      %v5483 = vadd.f32 %v4877, %v5482
      %v5484 = vpop.f32.mrb[0].mxu0
      %v5485 = vadd.f32 %v4881, %v5484
      %5486 = vmatprep.mubr.bf16.mxu0 %v4846
      %5487 = vmatmul.mubr.bf16.gmra.mrb[0].mxu0 %v4845
      %v5488 = vpop.f32.mrb[0].mxu0
      %v5489 = vadd.f32 %v4877, %v5488
      %v5490 = vpop.f32.mrb[0].mxu0
      %v5491 = vadd.f32 %v4881, %v5490
      %v5492 = vpop.f32.mrb[0].mxu0
      %v5493 = vadd.f32 %v4877, %v5492
      %v5494 = vpop.f32.mrb[0].mxu0
      %v5495 = vadd.f32 %v4881, %v5494
      %5496 = vmatprep.mubr.bf16.mxu0 %v4850
      %5497 = vmatmul.mubr.bf16.gmra.mrb[0].mxu0 %v4849
      %v5498 = vpop.f32.mrb[0].mxu0
      %v5499 = vadd.f32 %v4877, %v5498
      %v5500 = vpop.f32.mrb[0].mxu0
      %v5501 = vadd.f32 %v4881, %v5500
      %v5502 = vpop.f32.mrb[0].mxu0
      %v5503 = vadd.f32 %v4877, %v5502
      %v5504 = vpop.f32.mrb[0].mxu0
      %v5505 = vadd.f32 %v4881, %v5504
      %5506 = vmatprep.mubr.bf16.mxu0 %v4854
      %5507 = vmatmul.mubr.bf16.gmra.mrb[0].mxu0 %v4853
      %v5508 = vpop.f32.mrb[0].mxu0
      %v5509 = vadd.f32 %v4877, %v5508
      %v5510 = vpop.f32.mrb[0].mxu0
      %v5511 = vadd.f32 %v4881, %v5510
      %v5512 = vpop.f32.mrb[0].mxu0
      %v5513 = vadd.f32 %v4877, %v5512
      %v5514 = vpop.f32.mrb[0].mxu0
      %v5515 = vadd.f32 %v4881, %v5514
      %5516 = vmatprep.mubr.bf16.mxu0 %v4858
      %5517 = vmatmul.mubr.bf16.gmra.mrb[0].mxu0 %v4857
      %v5518 = vpop.f32.mrb[0].mxu0
      %v5519 = vadd.f32 %v4877, %v5518
      %v5520 = vpop.f32.mrb[0].mxu0
      %v5521 = vadd.f32 %v4881, %v5520
      %v5522 = vpop.f32.mrb[0].mxu0
      %v5523 = vadd.f32 %v4877, %v5522
      %v5524 = vpop.f32.mrb[0].mxu0
      %v5525 = vadd.f32 %v4881, %v5524
      %5526 = vmatprep.mubr.bf16.mxu0 %v4862
      %5527 = vmatmul.mubr.bf16.gmra.mrb[0].mxu0 %v4861
      %v5528 = vpop.f32.mrb[0].mxu0
      %v5529 = vadd.f32 %v4877, %v5528
      %v5530 = vpop.f32.mrb[0].mxu0
      %v5531 = vadd.f32 %v4881, %v5530
      %v5532 = vpop.f32.mrb[0].mxu0
      %v5533 = vadd.f32 %v4877, %v5532
      %v5534 = vpop.f32.mrb[0].mxu0
      %v5535 = vadd.f32 %v4881, %v5534
      %5536 = vmatprep.mubr.bf16.mxu0 %v4866
      %5537 = vmatmul.mubr.bf16.gmra.mrb[0].mxu0 %v4865
      %v5538 = vpop.f32.mrb[0].mxu0
      %v5539 = vadd.f32 %v4877, %v5538
      %v5540 = vpop.f32.mrb[0].mxu0
      %v5541 = vadd.f32 %v4881, %v5540
      %v5542 = vpop.f32.mrb[0].mxu0
      %v5543 = vadd.f32 %v4877, %v5542
      %v5544 = vpop.f32.mrb[0].mxu0
      %v5545 = vadd.f32 %v4881, %v5544
      %5546 = vmatprep.mubr.bf16.mxu0 %v4870
      %5547 = vmatmul.mubr.bf16.gmra.mrb[0].mxu0 %v4869
      %v5548 = vpop.f32.mrb[0].mxu0
      %v5549 = vadd.f32 %v4877, %v5548
      %v5550 = vpop.f32.mrb[0].mxu0
      %v5551 = vadd.f32 %v4881, %v5550
      %v5552 = vpop.f32.mrb[0].mxu0
      %v5553 = vadd.f32 %v4877, %v5552
      %v5554 = vpop.f32.mrb[0].mxu0
      %v5555 = vadd.f32 %v4881, %v5554
      %5556 = vdwg.mxu0
      %5557 = vmatprep.subr.bf16.mxu0 %v5109
      %5558 = vmatpush1.bf16.msra.mxu0 %v5108
      %5559 = vmatprep.subr.bf16.mxu0 %v5111
      %5560 = vmatpush1.bf16.msra.mxu0 %v5110
      %5561 = vmatprep.subr.bf16.mxu0 %v5113
      %5562 = vmatpush1.bf16.msra.mxu0 %v5112
      %5563 = vmatprep.subr.bf16.mxu0 %v5115
      %5564 = vmatpush1.bf16.msra.mxu0 %v5114
      %5565 = vmatprep.subr.bf16.mxu0 %v5117
      %5566 = vmatpush1.bf16.msra.mxu0 %v5116
      %5567 = vmatprep.subr.bf16.mxu0 %v5119
      %5568 = vmatpush1.bf16.msra.mxu0 %v5118
      %5569 = vmatprep.subr.bf16.mxu0 %v5121
      %5570 = vmatpush1.bf16.msra.mxu0 %v5120
      %5571 = vmatprep.subr.bf16.mxu0 %v5123
      %5572 = vmatpush1.bf16.msra.mxu0 %v5122
      %5573 = vmatprep.subr.bf16.mxu0 %v5125
      %5574 = vmatpush1.bf16.msra.mxu0 %v5124
      %5575 = vmatprep.subr.bf16.mxu0 %v5127
      %5576 = vmatpush1.bf16.msra.mxu0 %v5126
      %5577 = vmatprep.subr.bf16.mxu0 %v5129
      %5578 = vmatpush1.bf16.msra.mxu0 %v5128
      %5579 = vmatprep.subr.bf16.mxu0 %v5131
      %5580 = vmatpush1.bf16.msra.mxu0 %v5130
      %5581 = vmatprep.subr.bf16.mxu0 %v5133
      %5582 = vmatpush1.bf16.msra.mxu0 %v5132
      %5583 = vmatprep.subr.bf16.mxu0 %v5135
      %5584 = vmatpush1.bf16.msra.mxu0 %v5134
      %5585 = vmatprep.subr.bf16.mxu0 %v5137
      %5586 = vmatpush1.bf16.msra.mxu0 %v5136
      %5587 = vmatprep.subr.bf16.mxu0 %v5139
      %5588 = vmatpush1.bf16.msra.mxu0 %v5138
      %5589 = vmatprep.mubr.bf16.mxu0 %v4748
      %5590 = vmatmul.mubr.bf16.gmra.mrb[0].mxu0 %v4747
      %v5591 = vpop.f32.mrb[0].mxu0
      %v5592 = vadd.f32 %v5239, %v5591
      %v5593 = vpop.f32.mrb[0].mxu0
      %v5594 = vadd.f32 %v5241, %v5593
      %v5595 = vpop.f32.mrb[0].mxu0
      %v5596 = vadd.f32 %v5243, %v5595
      %v5597 = vpop.f32.mrb[0].mxu0
      %v5598 = vadd.f32 %v5245, %v5597
      %5599 = vmatprep.mubr.bf16.mxu0 %v4752
      %5600 = vmatmul.mubr.bf16.gmra.mrb[0].mxu0 %v4751
      %v5601 = vpop.f32.mrb[0].mxu0
      %v5602 = vadd.f32 %v5249, %v5601
      %v5603 = vpop.f32.mrb[0].mxu0
      %v5604 = vadd.f32 %v5251, %v5603
      %v5605 = vpop.f32.mrb[0].mxu0
      %v5606 = vadd.f32 %v5253, %v5605
      %v5607 = vpop.f32.mrb[0].mxu0
      %v5608 = vadd.f32 %v5255, %v5607
      %5609 = vmatprep.mubr.bf16.mxu0 %v4756
      %5610 = vmatmul.mubr.bf16.gmra.mrb[0].mxu0 %v4755
      %v5611 = vpop.f32.mrb[0].mxu0
      %v5612 = vadd.f32 %v5259, %v5611
      %v5613 = vpop.f32.mrb[0].mxu0
      %v5614 = vadd.f32 %v5261, %v5613
      %v5615 = vpop.f32.mrb[0].mxu0
      %v5616 = vadd.f32 %v5263, %v5615
      %v5617 = vpop.f32.mrb[0].mxu0
      %v5618 = vadd.f32 %v5265, %v5617
      %5619 = vmatprep.mubr.bf16.mxu0 %v4760
      %5620 = vmatmul.mubr.bf16.gmra.mrb[0].mxu0 %v4759
      %v5621 = vpop.f32.mrb[0].mxu0
      %v5622 = vadd.f32 %v5269, %v5621
      %v5623 = vpop.f32.mrb[0].mxu0
      %v5624 = vadd.f32 %v5271, %v5623
      %v5625 = vpop.f32.mrb[0].mxu0
      %v5626 = vadd.f32 %v5273, %v5625
      %v5627 = vpop.f32.mrb[0].mxu0
      %v5628 = vadd.f32 %v5275, %v5627
      %5629 = vmatprep.mubr.bf16.mxu0 %v4764
      %5630 = vmatmul.mubr.bf16.gmra.mrb[0].mxu0 %v4763
      %v5631 = vpop.f32.mrb[0].mxu0
      %v5632 = vadd.f32 %v5279, %v5631
      %v5633 = vpop.f32.mrb[0].mxu0
      %v5634 = vadd.f32 %v5281, %v5633
      %v5635 = vpop.f32.mrb[0].mxu0
      %v5636 = vadd.f32 %v5283, %v5635
      %v5637 = vpop.f32.mrb[0].mxu0
      %v5638 = vadd.f32 %v5285, %v5637
      %5639 = vmatprep.mubr.bf16.mxu0 %v4768
      %5640 = vmatmul.mubr.bf16.gmra.mrb[0].mxu0 %v4767
      %v5641 = vpop.f32.mrb[0].mxu0
      %v5642 = vadd.f32 %v5289, %v5641
      %v5643 = vpop.f32.mrb[0].mxu0
      %v5644 = vadd.f32 %v5291, %v5643
      %v5645 = vpop.f32.mrb[0].mxu0
      %v5646 = vadd.f32 %v5293, %v5645
      %v5647 = vpop.f32.mrb[0].mxu0
      %v5648 = vadd.f32 %v5295, %v5647
      %5649 = vmatprep.mubr.bf16.mxu0 %v4772
      %5650 = vmatmul.mubr.bf16.gmra.mrb[0].mxu0 %v4771
      %v5651 = vpop.f32.mrb[0].mxu0
      %v5652 = vadd.f32 %v5299, %v5651
      %v5653 = vpop.f32.mrb[0].mxu0
      %v5654 = vadd.f32 %v5301, %v5653
      %v5655 = vpop.f32.mrb[0].mxu0
      %v5656 = vadd.f32 %v5303, %v5655
      %v5657 = vpop.f32.mrb[0].mxu0
      %v5658 = vadd.f32 %v5305, %v5657
      %5659 = vmatprep.mubr.bf16.mxu0 %v4776
      %5660 = vmatmul.mubr.bf16.gmra.mrb[0].mxu0 %v4775
      %v5661 = vpop.f32.mrb[0].mxu0
      %v5662 = vadd.f32 %v5309, %v5661
      %v5663 = vpop.f32.mrb[0].mxu0
      %v5664 = vadd.f32 %v5311, %v5663
      %v5665 = vpop.f32.mrb[0].mxu0
      %v5666 = vadd.f32 %v5313, %v5665
      %v5667 = vpop.f32.mrb[0].mxu0
      %v5668 = vadd.f32 %v5315, %v5667
      %5669 = vmatprep.mubr.bf16.mxu0 %v4780
      %5670 = vmatmul.mubr.bf16.gmra.mrb[0].mxu0 %v4779
      %v5671 = vpop.f32.mrb[0].mxu0
      %v5672 = vadd.f32 %v5319, %v5671
      %v5673 = vpop.f32.mrb[0].mxu0
      %v5674 = vadd.f32 %v5321, %v5673
      %v5675 = vpop.f32.mrb[0].mxu0
      %v5676 = vadd.f32 %v5323, %v5675
      %v5677 = vpop.f32.mrb[0].mxu0
      %v5678 = vadd.f32 %v5325, %v5677
      %5679 = vmatprep.mubr.bf16.mxu0 %v4784
      %5680 = vmatmul.mubr.bf16.gmra.mrb[0].mxu0 %v4783
      %v5681 = vpop.f32.mrb[0].mxu0
      %v5682 = vadd.f32 %v5329, %v5681
      %v5683 = vpop.f32.mrb[0].mxu0
      %v5684 = vadd.f32 %v5331, %v5683
      %v5685 = vpop.f32.mrb[0].mxu0
      %v5686 = vadd.f32 %v5333, %v5685
      %v5687 = vpop.f32.mrb[0].mxu0
      %v5688 = vadd.f32 %v5335, %v5687
      %5689 = vmatprep.mubr.bf16.mxu0 %v4788
      %5690 = vmatmul.mubr.bf16.gmra.mrb[0].mxu0 %v4787
      %v5691 = vpop.f32.mrb[0].mxu0
      %v5692 = vadd.f32 %v5339, %v5691
      %v5693 = vpop.f32.mrb[0].mxu0
      %v5694 = vadd.f32 %v5341, %v5693
      %v5695 = vpop.f32.mrb[0].mxu0
      %v5696 = vadd.f32 %v5343, %v5695
      %v5697 = vpop.f32.mrb[0].mxu0
      %v5698 = vadd.f32 %v5345, %v5697
      %5699 = vmatprep.mubr.bf16.mxu0 %v4792
      %5700 = vmatmul.mubr.bf16.gmra.mrb[0].mxu0 %v4791
      %v5701 = vpop.f32.mrb[0].mxu0
      %v5702 = vadd.f32 %v5349, %v5701
      %v5703 = vpop.f32.mrb[0].mxu0
      %v5704 = vadd.f32 %v5351, %v5703
      %v5705 = vpop.f32.mrb[0].mxu0
      %v5706 = vadd.f32 %v5353, %v5705
      %v5707 = vpop.f32.mrb[0].mxu0
      %v5708 = vadd.f32 %v5355, %v5707
      %5709 = vmatprep.mubr.bf16.mxu0 %v4796
      %5710 = vmatmul.mubr.bf16.gmra.mrb[0].mxu0 %v4795
      %v5711 = vpop.f32.mrb[0].mxu0
      %v5712 = vadd.f32 %v5359, %v5711
      %v5713 = vpop.f32.mrb[0].mxu0
      %v5714 = vadd.f32 %v5361, %v5713
      %v5715 = vpop.f32.mrb[0].mxu0
      %v5716 = vadd.f32 %v5363, %v5715
      %v5717 = vpop.f32.mrb[0].mxu0
      %v5718 = vadd.f32 %v5365, %v5717
      %5719 = vmatprep.mubr.bf16.mxu0 %v4800
      %5720 = vmatmul.mubr.bf16.gmra.mrb[0].mxu0 %v4799
      %v5721 = vpop.f32.mrb[0].mxu0
      %v5722 = vadd.f32 %v5369, %v5721
      %v5723 = vpop.f32.mrb[0].mxu0
      %v5724 = vadd.f32 %v5371, %v5723
      %v5725 = vpop.f32.mrb[0].mxu0
      %v5726 = vadd.f32 %v5373, %v5725
      %v5727 = vpop.f32.mrb[0].mxu0
      %v5728 = vadd.f32 %v5375, %v5727
      %5729 = vmatprep.mubr.bf16.mxu0 %v4804
      %5730 = vmatmul.mubr.bf16.gmra.mrb[0].mxu0 %v4803
      %v5731 = vpop.f32.mrb[0].mxu0
      %v5732 = vadd.f32 %v5379, %v5731
      %v5733 = vpop.f32.mrb[0].mxu0
      %v5734 = vadd.f32 %v5381, %v5733
      %v5735 = vpop.f32.mrb[0].mxu0
      %v5736 = vadd.f32 %v5383, %v5735
      %v5737 = vpop.f32.mrb[0].mxu0
      %v5738 = vadd.f32 %v5385, %v5737
      %5739 = vmatprep.mubr.bf16.mxu0 %v4808
      %5740 = vmatmul.mubr.bf16.gmra.mrb[0].mxu0 %v4807
      %v5741 = vpop.f32.mrb[0].mxu0
      %v5742 = vadd.f32 %v5389, %v5741
      %v5743 = vpop.f32.mrb[0].mxu0
      %v5744 = vadd.f32 %v5391, %v5743
      %v5745 = vpop.f32.mrb[0].mxu0
      %v5746 = vadd.f32 %v5393, %v5745
      %v5747 = vpop.f32.mrb[0].mxu0
      %v5748 = vadd.f32 %v5395, %v5747
      %5749 = vmatprep.mubr.bf16.mxu0 %v4812
      %5750 = vmatmul.mubr.bf16.gmra.mrb[0].mxu0 %v4811
      %v5751 = vpop.f32.mrb[0].mxu0
      %v5752 = vadd.f32 %v5399, %v5751
      %v5753 = vpop.f32.mrb[0].mxu0
      %v5754 = vadd.f32 %v5401, %v5753
      %v5755 = vpop.f32.mrb[0].mxu0
      %v5756 = vadd.f32 %v5403, %v5755
      %v5757 = vpop.f32.mrb[0].mxu0
      %v5758 = vadd.f32 %v5405, %v5757
      %5759 = vmatprep.mubr.bf16.mxu0 %v4816
      %5760 = vmatmul.mubr.bf16.gmra.mrb[0].mxu0 %v4815
      %v5761 = vpop.f32.mrb[0].mxu0
      %v5762 = vadd.f32 %v5409, %v5761
      %v5763 = vpop.f32.mrb[0].mxu0
      %v5764 = vadd.f32 %v5411, %v5763
      %v5765 = vpop.f32.mrb[0].mxu0
      %v5766 = vadd.f32 %v5413, %v5765
      %v5767 = vpop.f32.mrb[0].mxu0
      %v5768 = vadd.f32 %v5415, %v5767
      %5769 = vmatprep.mubr.bf16.mxu0 %v4820
      %5770 = vmatmul.mubr.bf16.gmra.mrb[0].mxu0 %v4819
      %v5771 = vpop.f32.mrb[0].mxu0
      %v5772 = vadd.f32 %v5419, %v5771
      %v5773 = vpop.f32.mrb[0].mxu0
      %v5774 = vadd.f32 %v5421, %v5773
      %v5775 = vpop.f32.mrb[0].mxu0
      %v5776 = vadd.f32 %v5423, %v5775
      %v5777 = vpop.f32.mrb[0].mxu0
      %v5778 = vadd.f32 %v5425, %v5777
      %5779 = vmatprep.mubr.bf16.mxu0 %v4824
      %5780 = vmatmul.mubr.bf16.gmra.mrb[0].mxu0 %v4823
      %v5781 = vpop.f32.mrb[0].mxu0
      %v5782 = vadd.f32 %v5429, %v5781
      %v5783 = vpop.f32.mrb[0].mxu0
      %v5784 = vadd.f32 %v5431, %v5783
      %v5785 = vpop.f32.mrb[0].mxu0
      %v5786 = vadd.f32 %v5433, %v5785
      %v5787 = vpop.f32.mrb[0].mxu0
      %v5788 = vadd.f32 %v5435, %v5787
      %5789 = vmatprep.mubr.bf16.mxu0 %v4828
      %5790 = vmatmul.mubr.bf16.gmra.mrb[0].mxu0 %v4827
      %v5791 = vpop.f32.mrb[0].mxu0
      %v5792 = vadd.f32 %v5439, %v5791
      %v5793 = vpop.f32.mrb[0].mxu0
      %v5794 = vadd.f32 %v5441, %v5793
      %v5795 = vpop.f32.mrb[0].mxu0
      %v5796 = vadd.f32 %v5443, %v5795
      %v5797 = vpop.f32.mrb[0].mxu0
      %v5798 = vadd.f32 %v5445, %v5797
      %5799 = vmatprep.mubr.bf16.mxu0 %v4832
      %5800 = vmatmul.mubr.bf16.gmra.mrb[0].mxu0 %v4831
      %v5801 = vpop.f32.mrb[0].mxu0
      %v5802 = vadd.f32 %v5449, %v5801
      %v5803 = vpop.f32.mrb[0].mxu0
      %v5804 = vadd.f32 %v5451, %v5803
      %v5805 = vpop.f32.mrb[0].mxu0
      %v5806 = vadd.f32 %v5453, %v5805
      %v5807 = vpop.f32.mrb[0].mxu0
      %v5808 = vadd.f32 %v5455, %v5807
      %5809 = vmatprep.mubr.bf16.mxu0 %v4836
      %5810 = vmatmul.mubr.bf16.gmra.mrb[0].mxu0 %v4835
      %v5811 = vpop.f32.mrb[0].mxu0
      %v5812 = vadd.f32 %v5459, %v5811
      %v5813 = vpop.f32.mrb[0].mxu0
      %v5814 = vadd.f32 %v5461, %v5813
      %v5815 = vpop.f32.mrb[0].mxu0
      %v5816 = vadd.f32 %v5463, %v5815
      %v5817 = vpop.f32.mrb[0].mxu0
      %v5818 = vadd.f32 %v5465, %v5817
      %5819 = vmatprep.mubr.bf16.mxu0 %v4840
      %5820 = vmatmul.mubr.bf16.gmra.mrb[0].mxu0 %v4839
      %v5821 = vpop.f32.mrb[0].mxu0
      %v5822 = vadd.f32 %v5469, %v5821
      %v5823 = vpop.f32.mrb[0].mxu0
      %v5824 = vadd.f32 %v5471, %v5823
      %v5825 = vpop.f32.mrb[0].mxu0
      %v5826 = vadd.f32 %v5473, %v5825
      %v5827 = vpop.f32.mrb[0].mxu0
      %v5828 = vadd.f32 %v5475, %v5827
      %5829 = vmatprep.mubr.bf16.mxu0 %v4844
      %5830 = vmatmul.mubr.bf16.gmra.mrb[0].mxu0 %v4843
      %v5831 = vpop.f32.mrb[0].mxu0
      %v5832 = vadd.f32 %v5479, %v5831
      %v5833 = vpop.f32.mrb[0].mxu0
      %v5834 = vadd.f32 %v5481, %v5833
      %v5835 = vpop.f32.mrb[0].mxu0
      %v5836 = vadd.f32 %v5483, %v5835
      %v5837 = vpop.f32.mrb[0].mxu0
      %v5838 = vadd.f32 %v5485, %v5837
      %5839 = vmatprep.mubr.bf16.mxu0 %v4848
      %5840 = vmatmul.mubr.bf16.gmra.mrb[0].mxu0 %v4847
      %v5841 = vpop.f32.mrb[0].mxu0
      %v5842 = vadd.f32 %v5489, %v5841
      %v5843 = vpop.f32.mrb[0].mxu0
      %v5844 = vadd.f32 %v5491, %v5843
      %v5845 = vpop.f32.mrb[0].mxu0
      %v5846 = vadd.f32 %v5493, %v5845
      %v5847 = vpop.f32.mrb[0].mxu0
      %v5848 = vadd.f32 %v5495, %v5847
      %5849 = vmatprep.mubr.bf16.mxu0 %v4852
      %5850 = vmatmul.mubr.bf16.gmra.mrb[0].mxu0 %v4851
      %v5851 = vpop.f32.mrb[0].mxu0
      %v5852 = vadd.f32 %v5499, %v5851
      %v5853 = vpop.f32.mrb[0].mxu0
      %v5854 = vadd.f32 %v5501, %v5853
      %v5855 = vpop.f32.mrb[0].mxu0
      %v5856 = vadd.f32 %v5503, %v5855
      %v5857 = vpop.f32.mrb[0].mxu0
      %v5858 = vadd.f32 %v5505, %v5857
      %5859 = vmatprep.mubr.bf16.mxu0 %v4856
      %5860 = vmatmul.mubr.bf16.gmra.mrb[0].mxu0 %v4855
      %v5861 = vpop.f32.mrb[0].mxu0
      %v5862 = vadd.f32 %v5509, %v5861
      %v5863 = vpop.f32.mrb[0].mxu0
      %v5864 = vadd.f32 %v5511, %v5863
      %v5865 = vpop.f32.mrb[0].mxu0
      %v5866 = vadd.f32 %v5513, %v5865
      %v5867 = vpop.f32.mrb[0].mxu0
      %v5868 = vadd.f32 %v5515, %v5867
      %5869 = vmatprep.mubr.bf16.mxu0 %v4860
      %5870 = vmatmul.mubr.bf16.gmra.mrb[0].mxu0 %v4859
      %v5871 = vpop.f32.mrb[0].mxu0
      %v5872 = vadd.f32 %v5519, %v5871
      %v5873 = vpop.f32.mrb[0].mxu0
      %v5874 = vadd.f32 %v5521, %v5873
      %v5875 = vpop.f32.mrb[0].mxu0
      %v5876 = vadd.f32 %v5523, %v5875
      %v5877 = vpop.f32.mrb[0].mxu0
      %v5878 = vadd.f32 %v5525, %v5877
      %5879 = vmatprep.mubr.bf16.mxu0 %v4864
      %5880 = vmatmul.mubr.bf16.gmra.mrb[0].mxu0 %v4863
      %v5881 = vpop.f32.mrb[0].mxu0
      %v5882 = vadd.f32 %v5529, %v5881
      %v5883 = vpop.f32.mrb[0].mxu0
      %v5884 = vadd.f32 %v5531, %v5883
      %v5885 = vpop.f32.mrb[0].mxu0
      %v5886 = vadd.f32 %v5533, %v5885
      %v5887 = vpop.f32.mrb[0].mxu0
      %v5888 = vadd.f32 %v5535, %v5887
      %5889 = vmatprep.mubr.bf16.mxu0 %v4868
      %5890 = vmatmul.mubr.bf16.gmra.mrb[0].mxu0 %v4867
      %v5891 = vpop.f32.mrb[0].mxu0
      %v5892 = vadd.f32 %v5539, %v5891
      %v5893 = vpop.f32.mrb[0].mxu0
      %v5894 = vadd.f32 %v5541, %v5893
      %v5895 = vpop.f32.mrb[0].mxu0
      %v5896 = vadd.f32 %v5543, %v5895
      %v5897 = vpop.f32.mrb[0].mxu0
      %v5898 = vadd.f32 %v5545, %v5897
      %5899 = vmatprep.mubr.bf16.mxu0 %v4872
      %5900 = vmatmul.mubr.bf16.gmra.mrb[0].mxu0 %v4871
      %v5901 = vpop.f32.mrb[0].mxu0
      %v5902 = vadd.f32 %v5549, %v5901
      %v5903 = vpop.f32.mrb[0].mxu0
      %v5904 = vadd.f32 %v5551, %v5903
      %v5905 = vpop.f32.mrb[0].mxu0
      %v5906 = vadd.f32 %v5553, %v5905
      %v5907 = vpop.f32.mrb[0].mxu0
      %v5908 = vadd.f32 %v5555, %v5907
      %5909 = vdwg.mxu0
      %v5910 = vld [vmem:[%s1004] sm:$0xf]
      %v5911 = vld [vmem:[%s1004 + $0x4] sm:$0xf]
      %v5912 = vld [vmem:[%s1004 + $0x8] sm:$0xf]
      %v5913 = vld [vmem:[%s1004 + $0xc] sm:$0xf]
      %v5914 = vld [vmem:[%s1004 + $0x10] sm:$0xf]
      %v5915 = vld [vmem:[%s1004 + $0x14] sm:$0xf]
      %v5916 = vld [vmem:[%s1004 + $0x18] sm:$0xf]
      %v5917 = vld [vmem:[%s1004 + $0x1c] sm:$0xf]
      %v5918 = vld [vmem:[%s1004 + $0x20] sm:$0xf]
      %v5919 = vld [vmem:[%s1004 + $0x24] sm:$0xf]
      %v5920 = vld [vmem:[%s1004 + $0x28] sm:$0xf]
      %v5921 = vld [vmem:[%s1004 + $0x2c] sm:$0xf]
      %v5922 = vld [vmem:[%s1004 + $0x30] sm:$0xf]
      %v5923 = vld [vmem:[%s1004 + $0x34] sm:$0xf]
      %v5924 = vld [vmem:[%s1004 + $0x38] sm:$0xf]
      %v5925 = vld [vmem:[%s1004 + $0x3c] sm:$0xf]
      %v5926 = vld [vmem:[%s1004 + $0x40] sm:$0xf]
      %v5927 = vld [vmem:[%s1004 + $0x44] sm:$0xf]
      %v5928 = vld [vmem:[%s1004 + $0x48] sm:$0xf]
      %v5929 = vld [vmem:[%s1004 + $0x4c] sm:$0xf]
      %v5930 = vld [vmem:[%s1004 + $0x50] sm:$0xf]
      %v5931 = vld [vmem:[%s1004 + $0x54] sm:$0xf]
      %v5932 = vld [vmem:[%s1004 + $0x58] sm:$0xf]
      %v5933 = vld [vmem:[%s1004 + $0x5c] sm:$0xf]
      %v5934 = vld [vmem:[%s1004 + $0x60] sm:$0xf]
      %v5935 = vld [vmem:[%s1004 + $0x64] sm:$0xf]
      %v5936 = vld [vmem:[%s1004 + $0x68] sm:$0xf]
      %v5937 = vld [vmem:[%s1004 + $0x6c] sm:$0xf]
      %v5938 = vld [vmem:[%s1004 + $0x70] sm:$0xf]
      %v5939 = vld [vmem:[%s1004 + $0x74] sm:$0xf]
      %v5940 = vld [vmem:[%s1004 + $0x78] sm:$0xf]
      %v5941 = vld [vmem:[%s1004 + $0x7c] sm:$0xf]
      %v5942 = vld [vmem:[%s1007] sm:$0x1]
      %v5943 = vmax.f32 %v5592, 0.0
      %v5944 = vmax.f32 %v5594, 0.0
      %v5945 = vmax.f32 %v5596, 0.0
      %v5946 = vmax.f32 %v5598, 0.0
      %v5947 = vmax.f32 %v5602, 0.0
      %v5948 = vmax.f32 %v5604, 0.0
      %v5949 = vmax.f32 %v5606, 0.0
      %v5950 = vmax.f32 %v5608, 0.0
      %v5951 = vmax.f32 %v5612, 0.0
      %v5952 = vmax.f32 %v5614, 0.0
      %v5953 = vmax.f32 %v5616, 0.0
      %v5954 = vmax.f32 %v5618, 0.0
      %v5955 = vmax.f32 %v5622, 0.0
      %v5956 = vmax.f32 %v5624, 0.0
      %v5957 = vmax.f32 %v5626, 0.0
      %v5958 = vmax.f32 %v5628, 0.0
      %v5959 = vmax.f32 %v5632, 0.0
      %v5960 = vmax.f32 %v5634, 0.0
      %v5961 = vmax.f32 %v5636, 0.0
      %v5962 = vmax.f32 %v5638, 0.0
      %v5963 = vmax.f32 %v5642, 0.0
      %v5964 = vmax.f32 %v5644, 0.0
      %v5965 = vmax.f32 %v5646, 0.0
      %v5966 = vmax.f32 %v5648, 0.0
      %v5967 = vmax.f32 %v5652, 0.0
      %v5968 = vmax.f32 %v5654, 0.0
      %v5969 = vmax.f32 %v5656, 0.0
      %v5970 = vmax.f32 %v5658, 0.0
      %v5971 = vmax.f32 %v5662, 0.0
      %v5972 = vmax.f32 %v5664, 0.0
      %v5973 = vmax.f32 %v5666, 0.0
      %v5974 = vmax.f32 %v5668, 0.0
      %v5975 = vmax.f32 %v5672, 0.0
      %v5976 = vmax.f32 %v5674, 0.0
      %v5977 = vmax.f32 %v5676, 0.0
      %v5978 = vmax.f32 %v5678, 0.0
      %v5979 = vmax.f32 %v5682, 0.0
      %v5980 = vmax.f32 %v5684, 0.0
      %v5981 = vmax.f32 %v5686, 0.0
      %v5982 = vmax.f32 %v5688, 0.0
      %v5983 = vmax.f32 %v5692, 0.0
      %v5984 = vmax.f32 %v5694, 0.0
      %v5985 = vmax.f32 %v5696, 0.0
      %v5986 = vmax.f32 %v5698, 0.0
      %v5987 = vmax.f32 %v5702, 0.0
      %v5988 = vmax.f32 %v5704, 0.0
      %v5989 = vmax.f32 %v5706, 0.0
      %v5990 = vmax.f32 %v5708, 0.0
      %v5991 = vmax.f32 %v5712, 0.0
      %v5992 = vmax.f32 %v5714, 0.0
      %v5993 = vmax.f32 %v5716, 0.0
      %v5994 = vmax.f32 %v5718, 0.0
      %v5995 = vmax.f32 %v5722, 0.0
      %v5996 = vmax.f32 %v5724, 0.0
      %v5997 = vmax.f32 %v5726, 0.0
      %v5998 = vmax.f32 %v5728, 0.0
      %v5999 = vmax.f32 %v5732, 0.0
      %v6000 = vmax.f32 %v5734, 0.0
      %v6001 = vmax.f32 %v5736, 0.0
      %v6002 = vmax.f32 %v5738, 0.0
      %v6003 = vmax.f32 %v5742, 0.0
      %v6004 = vmax.f32 %v5744, 0.0
      %v6005 = vmax.f32 %v5746, 0.0
      %v6006 = vmax.f32 %v5748, 0.0
      %v6007 = vmax.f32 %v5752, 0.0
      %v6008 = vmax.f32 %v5754, 0.0
      %v6009 = vmax.f32 %v5756, 0.0
      %v6010 = vmax.f32 %v5758, 0.0
      %v6011 = vmax.f32 %v5762, 0.0
      %v6012 = vmax.f32 %v5764, 0.0
      %v6013 = vmax.f32 %v5766, 0.0
      %v6014 = vmax.f32 %v5768, 0.0
      %v6015 = vmax.f32 %v5772, 0.0
      %v6016 = vmax.f32 %v5774, 0.0
      %v6017 = vmax.f32 %v5776, 0.0
      %v6018 = vmax.f32 %v5778, 0.0
      %v6019 = vmax.f32 %v5782, 0.0
      %v6020 = vmax.f32 %v5784, 0.0
      %v6021 = vmax.f32 %v5786, 0.0
      %v6022 = vmax.f32 %v5788, 0.0
      %v6023 = vmax.f32 %v5792, 0.0
      %v6024 = vmax.f32 %v5794, 0.0
      %v6025 = vmax.f32 %v5796, 0.0
      %v6026 = vmax.f32 %v5798, 0.0
      %v6027 = vmax.f32 %v5802, 0.0
      %v6028 = vmax.f32 %v5804, 0.0
      %v6029 = vmax.f32 %v5806, 0.0
      %v6030 = vmax.f32 %v5808, 0.0
      %v6031 = vmax.f32 %v5812, 0.0
      %v6032 = vmax.f32 %v5814, 0.0
      %v6033 = vmax.f32 %v5816, 0.0
      %v6034 = vmax.f32 %v5818, 0.0
      %v6035 = vmax.f32 %v5822, 0.0
      %v6036 = vmax.f32 %v5824, 0.0
      %v6037 = vmax.f32 %v5826, 0.0
      %v6038 = vmax.f32 %v5828, 0.0
      %v6039 = vmax.f32 %v5832, 0.0
      %v6040 = vmax.f32 %v5834, 0.0
      %v6041 = vmax.f32 %v5836, 0.0
      %v6042 = vmax.f32 %v5838, 0.0
      %v6043 = vmax.f32 %v5842, 0.0
      %v6044 = vmax.f32 %v5844, 0.0
      %v6045 = vmax.f32 %v5846, 0.0
      %v6046 = vmax.f32 %v5848, 0.0
      %v6047 = vmax.f32 %v5852, 0.0
      %v6048 = vmax.f32 %v5854, 0.0
      %v6049 = vmax.f32 %v5856, 0.0
      %v6050 = vmax.f32 %v5858, 0.0
      %v6051 = vmax.f32 %v5862, 0.0
      %v6052 = vmax.f32 %v5864, 0.0
      %v6053 = vmax.f32 %v5866, 0.0
      %v6054 = vmax.f32 %v5868, 0.0
      %v6055 = vmax.f32 %v5872, 0.0
      %v6056 = vmax.f32 %v5874, 0.0
      %v6057 = vmax.f32 %v5876, 0.0
      %v6058 = vmax.f32 %v5878, 0.0
      %v6059 = vmax.f32 %v5882, 0.0
      %v6060 = vmax.f32 %v5884, 0.0
      %v6061 = vmax.f32 %v5886, 0.0
      %v6062 = vmax.f32 %v5888, 0.0
      %v6063 = vmax.f32 %v5892, 0.0
      %v6064 = vmax.f32 %v5894, 0.0
      %v6065 = vmax.f32 %v5896, 0.0
      %v6066 = vmax.f32 %v5898, 0.0
      %v6067 = vmax.f32 %v5902, 0.0
      %v6068 = vmax.f32 %v5904, 0.0
      %v6069 = vmax.f32 %v5906, 0.0
      %v6070 = vmax.f32 %v5908, 0.0
      %v6071 = vpack.c.bf16 %v5945, %v5943
      %v6072 = vpack.c.bf16 %v5946, %v5944
      %v6073 = vpack.c.bf16 %v5949, %v5947
      %v6074 = vpack.c.bf16 %v5950, %v5948
      %v6075 = vpack.c.bf16 %v5953, %v5951
      %v6076 = vpack.c.bf16 %v5954, %v5952
      %v6077 = vpack.c.bf16 %v5957, %v5955
      %v6078 = vpack.c.bf16 %v5958, %v5956
      %v6079 = vpack.c.bf16 %v5961, %v5959
      %v6080 = vpack.c.bf16 %v5962, %v5960
      %v6081 = vpack.c.bf16 %v5965, %v5963
      %v6082 = vpack.c.bf16 %v5966, %v5964
      %v6083 = vpack.c.bf16 %v5969, %v5967
      %v6084 = vpack.c.bf16 %v5970, %v5968
      %v6085 = vpack.c.bf16 %v5973, %v5971
      %v6086 = vpack.c.bf16 %v5974, %v5972
      %v6087 = vpack.c.bf16 %v5977, %v5975
      %v6088 = vpack.c.bf16 %v5978, %v5976
      %v6089 = vpack.c.bf16 %v5981, %v5979
      %v6090 = vpack.c.bf16 %v5982, %v5980
      %v6091 = vpack.c.bf16 %v5985, %v5983
      %v6092 = vpack.c.bf16 %v5986, %v5984
      %v6093 = vpack.c.bf16 %v5989, %v5987
      %v6094 = vpack.c.bf16 %v5990, %v5988
      %v6095 = vpack.c.bf16 %v5993, %v5991
      %v6096 = vpack.c.bf16 %v5994, %v5992
      %v6097 = vpack.c.bf16 %v5997, %v5995
      %v6098 = vpack.c.bf16 %v5998, %v5996
      %v6099 = vpack.c.bf16 %v6001, %v5999
      %v6100 = vpack.c.bf16 %v6002, %v6000
      %v6101 = vpack.c.bf16 %v6005, %v6003
      %v6102 = vpack.c.bf16 %v6006, %v6004
      %v6103 = vpack.c.bf16 %v6009, %v6007
      %v6104 = vpack.c.bf16 %v6010, %v6008
      %v6105 = vpack.c.bf16 %v6013, %v6011
      %v6106 = vpack.c.bf16 %v6014, %v6012
      %v6107 = vpack.c.bf16 %v6017, %v6015
      %v6108 = vpack.c.bf16 %v6018, %v6016
      %v6109 = vpack.c.bf16 %v6021, %v6019
      %v6110 = vpack.c.bf16 %v6022, %v6020
      %v6111 = vpack.c.bf16 %v6025, %v6023
      %v6112 = vpack.c.bf16 %v6026, %v6024
      %v6113 = vpack.c.bf16 %v6029, %v6027
      %v6114 = vpack.c.bf16 %v6030, %v6028
      %v6115 = vpack.c.bf16 %v6033, %v6031
      %v6116 = vpack.c.bf16 %v6034, %v6032
      %v6117 = vpack.c.bf16 %v6037, %v6035
      %v6118 = vpack.c.bf16 %v6038, %v6036
      %v6119 = vpack.c.bf16 %v6041, %v6039
      %v6120 = vpack.c.bf16 %v6042, %v6040
      %v6121 = vpack.c.bf16 %v6045, %v6043
      %v6122 = vpack.c.bf16 %v6046, %v6044
      %v6123 = vpack.c.bf16 %v6049, %v6047
      %v6124 = vpack.c.bf16 %v6050, %v6048
      %v6125 = vpack.c.bf16 %v6053, %v6051
      %v6126 = vpack.c.bf16 %v6054, %v6052
      %v6127 = vpack.c.bf16 %v6057, %v6055
      %v6128 = vpack.c.bf16 %v6058, %v6056
      %v6129 = vpack.c.bf16 %v6061, %v6059
      %v6130 = vpack.c.bf16 %v6062, %v6060
      %v6131 = vpack.c.bf16 %v6065, %v6063
      %v6132 = vpack.c.bf16 %v6066, %v6064
      %v6133 = vpack.c.bf16 %v6069, %v6067
      %v6134 = vpack.c.bf16 %v6070, %v6068
      %v6136 = vlaneseq
      %v6137 = vshrl.u32 %v6136, 7
      %v6138 = vsub.s32 0, %v6137
      %v6139 = vrot.slane %v5942, %v6138
      %v6173 = vunpack.c.l.b16 %v5910
      %v6174 = vunpack.c.l.b16 %v5911
      %v6175 = vunpack.c.l.b16 %v5912
      %v6176 = vunpack.c.l.b16 %v5913
      %v6177 = vunpack.c.l.b16 %v5914
      %v6178 = vunpack.c.l.b16 %v5915
      %v6179 = vunpack.c.l.b16 %v5916
      %v6180 = vunpack.c.l.b16 %v5917
      %v6181 = vunpack.c.l.b16 %v5918
      %v6182 = vunpack.c.l.b16 %v5919
      %v6183 = vunpack.c.l.b16 %v5920
      %v6184 = vunpack.c.l.b16 %v5921
      %v6185 = vunpack.c.l.b16 %v5922
      %v6186 = vunpack.c.l.b16 %v5923
      %v6187 = vunpack.c.l.b16 %v5924
      %v6188 = vunpack.c.l.b16 %v5925
      %v6189 = vunpack.c.l.b16 %v5926
      %v6190 = vunpack.c.l.b16 %v5927
      %v6191 = vunpack.c.l.b16 %v5928
      %v6192 = vunpack.c.l.b16 %v5929
      %v6193 = vunpack.c.l.b16 %v5930
      %v6194 = vunpack.c.l.b16 %v5931
      %v6195 = vunpack.c.l.b16 %v5932
      %v6196 = vunpack.c.l.b16 %v5933
      %v6197 = vunpack.c.l.b16 %v5934
      %v6198 = vunpack.c.l.b16 %v5935
      %v6199 = vunpack.c.l.b16 %v5936
      %v6200 = vunpack.c.l.b16 %v5937
      %v6201 = vunpack.c.l.b16 %v5938
      %v6202 = vunpack.c.l.b16 %v5939
      %v6203 = vunpack.c.l.b16 %v5940
      %v6204 = vunpack.c.l.b16 %v5941
      %v6205 = vpack.c.b16 %v6174, %v6173
      %v6206 = vpack.c.b16 %v6176, %v6175
      %v6207 = vpack.c.b16 %v6178, %v6177
      %v6208 = vpack.c.b16 %v6180, %v6179
      %v6209 = vpack.c.b16 %v6182, %v6181
      %v6210 = vpack.c.b16 %v6184, %v6183
      %v6211 = vpack.c.b16 %v6186, %v6185
      %v6212 = vpack.c.b16 %v6188, %v6187
      %v6213 = vpack.c.b16 %v6190, %v6189
      %v6214 = vpack.c.b16 %v6192, %v6191
      %v6215 = vpack.c.b16 %v6194, %v6193
      %v6216 = vpack.c.b16 %v6196, %v6195
      %v6217 = vpack.c.b16 %v6198, %v6197
      %v6218 = vpack.c.b16 %v6200, %v6199
      %v6219 = vpack.c.b16 %v6202, %v6201
      %v6220 = vpack.c.b16 %v6204, %v6203
      %6237 = vmatprep.subr.bf16.mxu0 0
      %6238 = vmatpush1.bf16.msra.mxu0 %v6205
      %6239 = vmatprep.subr.bf16.mxu0 0
      %6240 = vmatpush1.bf16.msra.mxu0 %v6206
      %6241 = vmatprep.subr.bf16.mxu0 0
      %6242 = vmatpush1.bf16.msra.mxu0 %v6207
      %6243 = vmatprep.subr.bf16.mxu0 0
      %6244 = vmatpush1.bf16.msra.mxu0 %v6208
      %6245 = vmatprep.subr.bf16.mxu0 0
      %6246 = vmatpush1.bf16.msra.mxu0 %v6209
      %6247 = vmatprep.subr.bf16.mxu0 0
      %6248 = vmatpush1.bf16.msra.mxu0 %v6210
      %6249 = vmatprep.subr.bf16.mxu0 0
      %6250 = vmatpush1.bf16.msra.mxu0 %v6211
      %6251 = vmatprep.subr.bf16.mxu0 0
      %6252 = vmatpush1.bf16.msra.mxu0 %v6212
      %6253 = vmatprep.subr.bf16.mxu0 0
      %6254 = vmatpush1.bf16.msra.mxu0 %v6213
      %6255 = vmatprep.subr.bf16.mxu0 0
      %6256 = vmatpush1.bf16.msra.mxu0 %v6214
      %6257 = vmatprep.subr.bf16.mxu0 0
      %6258 = vmatpush1.bf16.msra.mxu0 %v6215
      %6259 = vmatprep.subr.bf16.mxu0 0
      %6260 = vmatpush1.bf16.msra.mxu0 %v6216
      %6261 = vmatprep.subr.bf16.mxu0 0
      %6262 = vmatpush1.bf16.msra.mxu0 %v6217
      %6263 = vmatprep.subr.bf16.mxu0 0
      %6264 = vmatpush1.bf16.msra.mxu0 %v6218
      %6265 = vmatprep.subr.bf16.mxu0 0
      %6266 = vmatpush1.bf16.msra.mxu0 %v6219
      %6267 = vmatprep.subr.bf16.mxu0 0
      %6268 = vmatpush1.bf16.msra.mxu0 %v6220
      %6269 = vmatprep.mubr.bf16.mxu0 %v6072
      %6270 = vmatmul.mubr.bf16.gmra.mrb[0].mxu0 %v6071
      %v6271 = vpop.f32.mrb[0].mxu0
      %v6272 = vadd.f32 %v6139, %v6271
      %v6273 = vpop.f32.mrb[0].mxu0
      %v6274 = vpop.f32.mrb[0].mxu0
      %v6275 = vadd.f32 %v6139, %v6274
      %v6276 = vpop.f32.mrb[0].mxu0
      %6277 = vmatprep.mubr.bf16.mxu0 %v6074
      %6278 = vmatmul.mubr.bf16.gmra.mrb[0].mxu0 %v6073
      %v6279 = vpop.f32.mrb[0].mxu0
      %v6280 = vadd.f32 %v6139, %v6279
      %v6281 = vpop.f32.mrb[0].mxu0
      %v6282 = vpop.f32.mrb[0].mxu0
      %v6283 = vadd.f32 %v6139, %v6282
      %v6284 = vpop.f32.mrb[0].mxu0
      %6285 = vmatprep.mubr.bf16.mxu0 %v6076
      %6286 = vmatmul.mubr.bf16.gmra.mrb[0].mxu0 %v6075
      %v6287 = vpop.f32.mrb[0].mxu0
      %v6288 = vadd.f32 %v6139, %v6287
      %v6289 = vpop.f32.mrb[0].mxu0
      %v6290 = vpop.f32.mrb[0].mxu0
      %v6291 = vadd.f32 %v6139, %v6290
      %v6292 = vpop.f32.mrb[0].mxu0
      %6293 = vmatprep.mubr.bf16.mxu0 %v6078
      %6294 = vmatmul.mubr.bf16.gmra.mrb[0].mxu0 %v6077
      %v6295 = vpop.f32.mrb[0].mxu0
      %v6296 = vadd.f32 %v6139, %v6295
      %v6297 = vpop.f32.mrb[0].mxu0
      %v6298 = vpop.f32.mrb[0].mxu0
      %v6299 = vadd.f32 %v6139, %v6298
      %v6300 = vpop.f32.mrb[0].mxu0
      %6301 = vmatprep.mubr.bf16.mxu0 %v6080
      %6302 = vmatmul.mubr.bf16.gmra.mrb[0].mxu0 %v6079
      %v6303 = vpop.f32.mrb[0].mxu0
      %v6304 = vadd.f32 %v6139, %v6303
      %v6305 = vpop.f32.mrb[0].mxu0
      %v6306 = vpop.f32.mrb[0].mxu0
      %v6307 = vadd.f32 %v6139, %v6306
      %v6308 = vpop.f32.mrb[0].mxu0
      %6309 = vmatprep.mubr.bf16.mxu0 %v6082
      %6310 = vmatmul.mubr.bf16.gmra.mrb[0].mxu0 %v6081
      %v6311 = vpop.f32.mrb[0].mxu0
      %v6312 = vadd.f32 %v6139, %v6311
      %v6313 = vpop.f32.mrb[0].mxu0
      %v6314 = vpop.f32.mrb[0].mxu0
      %v6315 = vadd.f32 %v6139, %v6314
      %v6316 = vpop.f32.mrb[0].mxu0
      %6317 = vmatprep.mubr.bf16.mxu0 %v6084
      %6318 = vmatmul.mubr.bf16.gmra.mrb[0].mxu0 %v6083
      %v6319 = vpop.f32.mrb[0].mxu0
      %v6320 = vadd.f32 %v6139, %v6319
      %v6321 = vpop.f32.mrb[0].mxu0
      %v6322 = vpop.f32.mrb[0].mxu0
      %v6323 = vadd.f32 %v6139, %v6322
      %v6324 = vpop.f32.mrb[0].mxu0
      %6325 = vmatprep.mubr.bf16.mxu0 %v6086
      %6326 = vmatmul.mubr.bf16.gmra.mrb[0].mxu0 %v6085
      %v6327 = vpop.f32.mrb[0].mxu0
      %v6328 = vadd.f32 %v6139, %v6327
      %v6329 = vpop.f32.mrb[0].mxu0
      %v6330 = vpop.f32.mrb[0].mxu0
      %v6331 = vadd.f32 %v6139, %v6330
      %v6332 = vpop.f32.mrb[0].mxu0
      %6333 = vmatprep.mubr.bf16.mxu0 %v6088
      %6334 = vmatmul.mubr.bf16.gmra.mrb[0].mxu0 %v6087
      %v6335 = vpop.f32.mrb[0].mxu0
      %v6336 = vadd.f32 %v6139, %v6335
      %v6337 = vpop.f32.mrb[0].mxu0
      %v6338 = vpop.f32.mrb[0].mxu0
      %v6339 = vadd.f32 %v6139, %v6338
      %v6340 = vpop.f32.mrb[0].mxu0
      %6341 = vmatprep.mubr.bf16.mxu0 %v6090
      %6342 = vmatmul.mubr.bf16.gmra.mrb[0].mxu0 %v6089
      %v6343 = vpop.f32.mrb[0].mxu0
      %v6344 = vadd.f32 %v6139, %v6343
      %v6345 = vpop.f32.mrb[0].mxu0
      %v6346 = vpop.f32.mrb[0].mxu0
      %v6347 = vadd.f32 %v6139, %v6346
      %v6348 = vpop.f32.mrb[0].mxu0
      %6349 = vmatprep.mubr.bf16.mxu0 %v6092
      %6350 = vmatmul.mubr.bf16.gmra.mrb[0].mxu0 %v6091
      %v6351 = vpop.f32.mrb[0].mxu0
      %v6352 = vadd.f32 %v6139, %v6351
      %v6353 = vpop.f32.mrb[0].mxu0
      %v6354 = vpop.f32.mrb[0].mxu0
      %v6355 = vadd.f32 %v6139, %v6354
      %v6356 = vpop.f32.mrb[0].mxu0
      %6357 = vmatprep.mubr.bf16.mxu0 %v6094
      %6358 = vmatmul.mubr.bf16.gmra.mrb[0].mxu0 %v6093
      %v6359 = vpop.f32.mrb[0].mxu0
      %v6360 = vadd.f32 %v6139, %v6359
      %v6361 = vpop.f32.mrb[0].mxu0
      %v6362 = vpop.f32.mrb[0].mxu0
      %v6363 = vadd.f32 %v6139, %v6362
      %v6364 = vpop.f32.mrb[0].mxu0
      %6365 = vmatprep.mubr.bf16.mxu0 %v6096
      %6366 = vmatmul.mubr.bf16.gmra.mrb[0].mxu0 %v6095
      %v6367 = vpop.f32.mrb[0].mxu0
      %v6368 = vadd.f32 %v6139, %v6367
      %v6369 = vpop.f32.mrb[0].mxu0
      %v6370 = vpop.f32.mrb[0].mxu0
      %v6371 = vadd.f32 %v6139, %v6370
      %v6372 = vpop.f32.mrb[0].mxu0
      %6373 = vmatprep.mubr.bf16.mxu0 %v6098
      %6374 = vmatmul.mubr.bf16.gmra.mrb[0].mxu0 %v6097
      %v6375 = vpop.f32.mrb[0].mxu0
      %v6376 = vadd.f32 %v6139, %v6375
      %v6377 = vpop.f32.mrb[0].mxu0
      %v6378 = vpop.f32.mrb[0].mxu0
      %v6379 = vadd.f32 %v6139, %v6378
      %v6380 = vpop.f32.mrb[0].mxu0
      %6381 = vmatprep.mubr.bf16.mxu0 %v6100
      %6382 = vmatmul.mubr.bf16.gmra.mrb[0].mxu0 %v6099
      %v6383 = vpop.f32.mrb[0].mxu0
      %v6384 = vadd.f32 %v6139, %v6383
      %v6385 = vpop.f32.mrb[0].mxu0
      %v6386 = vpop.f32.mrb[0].mxu0
      %v6387 = vadd.f32 %v6139, %v6386
      %v6388 = vpop.f32.mrb[0].mxu0
      %6389 = vmatprep.mubr.bf16.mxu0 %v6102
      %6390 = vmatmul.mubr.bf16.gmra.mrb[0].mxu0 %v6101
      %v6391 = vpop.f32.mrb[0].mxu0
      %v6392 = vadd.f32 %v6139, %v6391
      %v6393 = vpop.f32.mrb[0].mxu0
      %v6394 = vpop.f32.mrb[0].mxu0
      %v6395 = vadd.f32 %v6139, %v6394
      %v6396 = vpop.f32.mrb[0].mxu0
      %6397 = vmatprep.mubr.bf16.mxu0 %v6104
      %6398 = vmatmul.mubr.bf16.gmra.mrb[0].mxu0 %v6103
      %v6399 = vpop.f32.mrb[0].mxu0
      %v6400 = vadd.f32 %v6139, %v6399
      %v6401 = vpop.f32.mrb[0].mxu0
      %v6402 = vpop.f32.mrb[0].mxu0
      %v6403 = vadd.f32 %v6139, %v6402
      %v6404 = vpop.f32.mrb[0].mxu0
      %6405 = vmatprep.mubr.bf16.mxu0 %v6106
      %6406 = vmatmul.mubr.bf16.gmra.mrb[0].mxu0 %v6105
      %v6407 = vpop.f32.mrb[0].mxu0
      %v6408 = vadd.f32 %v6139, %v6407
      %v6409 = vpop.f32.mrb[0].mxu0
      %v6410 = vpop.f32.mrb[0].mxu0
      %v6411 = vadd.f32 %v6139, %v6410
      %v6412 = vpop.f32.mrb[0].mxu0
      %6413 = vmatprep.mubr.bf16.mxu0 %v6108
      %6414 = vmatmul.mubr.bf16.gmra.mrb[0].mxu0 %v6107
      %v6415 = vpop.f32.mrb[0].mxu0
      %v6416 = vadd.f32 %v6139, %v6415
      %v6417 = vpop.f32.mrb[0].mxu0
      %v6418 = vpop.f32.mrb[0].mxu0
      %v6419 = vadd.f32 %v6139, %v6418
      %v6420 = vpop.f32.mrb[0].mxu0
      %6421 = vmatprep.mubr.bf16.mxu0 %v6110
      %6422 = vmatmul.mubr.bf16.gmra.mrb[0].mxu0 %v6109
      %v6423 = vpop.f32.mrb[0].mxu0
      %v6424 = vadd.f32 %v6139, %v6423
      %v6425 = vpop.f32.mrb[0].mxu0
      %v6426 = vpop.f32.mrb[0].mxu0
      %v6427 = vadd.f32 %v6139, %v6426
      %v6428 = vpop.f32.mrb[0].mxu0
      %6429 = vmatprep.mubr.bf16.mxu0 %v6112
      %6430 = vmatmul.mubr.bf16.gmra.mrb[0].mxu0 %v6111
      %v6431 = vpop.f32.mrb[0].mxu0
      %v6432 = vadd.f32 %v6139, %v6431
      %v6433 = vpop.f32.mrb[0].mxu0
      %v6434 = vpop.f32.mrb[0].mxu0
      %v6435 = vadd.f32 %v6139, %v6434
      %v6436 = vpop.f32.mrb[0].mxu0
      %6437 = vmatprep.mubr.bf16.mxu0 %v6114
      %6438 = vmatmul.mubr.bf16.gmra.mrb[0].mxu0 %v6113
      %v6439 = vpop.f32.mrb[0].mxu0
      %v6440 = vadd.f32 %v6139, %v6439
      %v6441 = vpop.f32.mrb[0].mxu0
      %v6442 = vpop.f32.mrb[0].mxu0
      %v6443 = vadd.f32 %v6139, %v6442
      %v6444 = vpop.f32.mrb[0].mxu0
      %6445 = vmatprep.mubr.bf16.mxu0 %v6116
      %6446 = vmatmul.mubr.bf16.gmra.mrb[0].mxu0 %v6115
      %v6447 = vpop.f32.mrb[0].mxu0
      %v6448 = vadd.f32 %v6139, %v6447
      %v6449 = vpop.f32.mrb[0].mxu0
      %v6450 = vpop.f32.mrb[0].mxu0
      %v6451 = vadd.f32 %v6139, %v6450
      %v6452 = vpop.f32.mrb[0].mxu0
      %6453 = vmatprep.mubr.bf16.mxu0 %v6118
      %6454 = vmatmul.mubr.bf16.gmra.mrb[0].mxu0 %v6117
      %v6455 = vpop.f32.mrb[0].mxu0
      %v6456 = vadd.f32 %v6139, %v6455
      %v6457 = vpop.f32.mrb[0].mxu0
      %v6458 = vpop.f32.mrb[0].mxu0
      %v6459 = vadd.f32 %v6139, %v6458
      %v6460 = vpop.f32.mrb[0].mxu0
      %6461 = vmatprep.mubr.bf16.mxu0 %v6120
      %6462 = vmatmul.mubr.bf16.gmra.mrb[0].mxu0 %v6119
      %v6463 = vpop.f32.mrb[0].mxu0
      %v6464 = vadd.f32 %v6139, %v6463
      %v6465 = vpop.f32.mrb[0].mxu0
      %v6466 = vpop.f32.mrb[0].mxu0
      %v6467 = vadd.f32 %v6139, %v6466
      %v6468 = vpop.f32.mrb[0].mxu0
      %6469 = vmatprep.mubr.bf16.mxu0 %v6122
      %6470 = vmatmul.mubr.bf16.gmra.mrb[0].mxu0 %v6121
      %v6471 = vpop.f32.mrb[0].mxu0
      %v6472 = vadd.f32 %v6139, %v6471
      %v6473 = vpop.f32.mrb[0].mxu0
      %v6474 = vpop.f32.mrb[0].mxu0
      %v6475 = vadd.f32 %v6139, %v6474
      %v6476 = vpop.f32.mrb[0].mxu0
      %6477 = vmatprep.mubr.bf16.mxu0 %v6124
      %6478 = vmatmul.mubr.bf16.gmra.mrb[0].mxu0 %v6123
      %v6479 = vpop.f32.mrb[0].mxu0
      %v6480 = vadd.f32 %v6139, %v6479
      %v6481 = vpop.f32.mrb[0].mxu0
      %v6482 = vpop.f32.mrb[0].mxu0
      %v6483 = vadd.f32 %v6139, %v6482
      %v6484 = vpop.f32.mrb[0].mxu0
      %6485 = vmatprep.mubr.bf16.mxu0 %v6126
      %6486 = vmatmul.mubr.bf16.gmra.mrb[0].mxu0 %v6125
      %v6487 = vpop.f32.mrb[0].mxu0
      %v6488 = vadd.f32 %v6139, %v6487
      %v6489 = vpop.f32.mrb[0].mxu0
      %v6490 = vpop.f32.mrb[0].mxu0
      %v6491 = vadd.f32 %v6139, %v6490
      %v6492 = vpop.f32.mrb[0].mxu0
      %6493 = vmatprep.mubr.bf16.mxu0 %v6128
      %6494 = vmatmul.mubr.bf16.gmra.mrb[0].mxu0 %v6127
      %v6495 = vpop.f32.mrb[0].mxu0
      %v6496 = vadd.f32 %v6139, %v6495
      %v6497 = vpop.f32.mrb[0].mxu0
      %v6498 = vpop.f32.mrb[0].mxu0
      %v6499 = vadd.f32 %v6139, %v6498
      %v6500 = vpop.f32.mrb[0].mxu0
      %6501 = vmatprep.mubr.bf16.mxu0 %v6130
      %6502 = vmatmul.mubr.bf16.gmra.mrb[0].mxu0 %v6129
      %v6503 = vpop.f32.mrb[0].mxu0
      %v6504 = vadd.f32 %v6139, %v6503
      %v6505 = vpop.f32.mrb[0].mxu0
      %v6506 = vpop.f32.mrb[0].mxu0
      %v6507 = vadd.f32 %v6139, %v6506
      %v6508 = vpop.f32.mrb[0].mxu0
      %6509 = vmatprep.mubr.bf16.mxu0 %v6132
      %6510 = vmatmul.mubr.bf16.gmra.mrb[0].mxu0 %v6131
      %v6511 = vpop.f32.mrb[0].mxu0
      %v6512 = vadd.f32 %v6139, %v6511
      %v6513 = vpop.f32.mrb[0].mxu0
      %v6514 = vpop.f32.mrb[0].mxu0
      %v6515 = vadd.f32 %v6139, %v6514
      %v6516 = vpop.f32.mrb[0].mxu0
      %6517 = vmatprep.mubr.bf16.mxu0 %v6134
      %6518 = vmatmul.mubr.bf16.gmra.mrb[0].mxu0 %v6133
      %v6519 = vpop.f32.mrb[0].mxu0
      %v6520 = vadd.f32 %v6139, %v6519
      %v6521 = vpop.f32.mrb[0].mxu0
      %v6522 = vpop.f32.mrb[0].mxu0
      %v6523 = vadd.f32 %v6139, %v6522
      %v6524 = vpop.f32.mrb[0].mxu0
      %6525 = vdwg.mxu0
      %v6526 = vld [vmem:[%s1012] sm:$0xf]
      %v6527 = vld [vmem:[%s1012 + $0x4] sm:$0xf]
      %v6528 = vld [vmem:[%s1012 + $0x8] sm:$0xf]
      %v6529 = vld [vmem:[%s1012 + $0xc] sm:$0xf]
      %v6530 = vld [vmem:[%s1012 + $0x10] sm:$0xf]
      %v6531 = vld [vmem:[%s1012 + $0x14] sm:$0xf]
      %v6532 = vld [vmem:[%s1012 + $0x18] sm:$0xf]
      %v6533 = vld [vmem:[%s1012 + $0x1c] sm:$0xf]
      %v6534 = vld [vmem:[%s1012 + $0x20] sm:$0xf]
      %v6535 = vld [vmem:[%s1012 + $0x24] sm:$0xf]
      %v6536 = vld [vmem:[%s1012 + $0x28] sm:$0xf]
      %v6537 = vld [vmem:[%s1012 + $0x2c] sm:$0xf]
      %v6538 = vld [vmem:[%s1012 + $0x30] sm:$0xf]
      %v6539 = vld [vmem:[%s1012 + $0x34] sm:$0xf]
      %v6540 = vld [vmem:[%s1012 + $0x38] sm:$0xf]
      %v6541 = vld [vmem:[%s1012 + $0x3c] sm:$0xf]
      %v6542 = vld [vmem:[%s1015] sm:$0x1]
      %v6543 = vmax.f32 %v6272, 0.0
      %v6544 = vmax.f32 %v6275, 0.0
      %v6545 = vmax.f32 %v6280, 0.0
      %v6546 = vmax.f32 %v6283, 0.0
      %v6547 = vmax.f32 %v6288, 0.0
      %v6548 = vmax.f32 %v6291, 0.0
      %v6549 = vmax.f32 %v6296, 0.0
      %v6550 = vmax.f32 %v6299, 0.0
      %v6551 = vmax.f32 %v6304, 0.0
      %v6552 = vmax.f32 %v6307, 0.0
      %v6553 = vmax.f32 %v6312, 0.0
      %v6554 = vmax.f32 %v6315, 0.0
      %v6555 = vmax.f32 %v6320, 0.0
      %v6556 = vmax.f32 %v6323, 0.0
      %v6557 = vmax.f32 %v6328, 0.0
      %v6558 = vmax.f32 %v6331, 0.0
      %v6559 = vmax.f32 %v6336, 0.0
      %v6560 = vmax.f32 %v6339, 0.0
      %v6561 = vmax.f32 %v6344, 0.0
      %v6562 = vmax.f32 %v6347, 0.0
      %v6563 = vmax.f32 %v6352, 0.0
      %v6564 = vmax.f32 %v6355, 0.0
      %v6565 = vmax.f32 %v6360, 0.0
      %v6566 = vmax.f32 %v6363, 0.0
      %v6567 = vmax.f32 %v6368, 0.0
      %v6568 = vmax.f32 %v6371, 0.0
      %v6569 = vmax.f32 %v6376, 0.0
      %v6570 = vmax.f32 %v6379, 0.0
      %v6571 = vmax.f32 %v6384, 0.0
      %v6572 = vmax.f32 %v6387, 0.0
      %v6573 = vmax.f32 %v6392, 0.0
      %v6574 = vmax.f32 %v6395, 0.0
      %v6575 = vmax.f32 %v6400, 0.0
      %v6576 = vmax.f32 %v6403, 0.0
      %v6577 = vmax.f32 %v6408, 0.0
      %v6578 = vmax.f32 %v6411, 0.0
      %v6579 = vmax.f32 %v6416, 0.0
      %v6580 = vmax.f32 %v6419, 0.0
      %v6581 = vmax.f32 %v6424, 0.0
      %v6582 = vmax.f32 %v6427, 0.0
      %v6583 = vmax.f32 %v6432, 0.0
      %v6584 = vmax.f32 %v6435, 0.0
      %v6585 = vmax.f32 %v6440, 0.0
      %v6586 = vmax.f32 %v6443, 0.0
      %v6587 = vmax.f32 %v6448, 0.0
      %v6588 = vmax.f32 %v6451, 0.0
      %v6589 = vmax.f32 %v6456, 0.0
      %v6590 = vmax.f32 %v6459, 0.0
      %v6591 = vmax.f32 %v6464, 0.0
      %v6592 = vmax.f32 %v6467, 0.0
      %v6593 = vmax.f32 %v6472, 0.0
      %v6594 = vmax.f32 %v6475, 0.0
      %v6595 = vmax.f32 %v6480, 0.0
      %v6596 = vmax.f32 %v6483, 0.0
      %v6597 = vmax.f32 %v6488, 0.0
      %v6598 = vmax.f32 %v6491, 0.0
      %v6599 = vmax.f32 %v6496, 0.0
      %v6600 = vmax.f32 %v6499, 0.0
      %v6601 = vmax.f32 %v6504, 0.0
      %v6602 = vmax.f32 %v6507, 0.0
      %v6603 = vmax.f32 %v6512, 0.0
      %v6604 = vmax.f32 %v6515, 0.0
      %v6605 = vmax.f32 %v6520, 0.0
      %v6606 = vmax.f32 %v6523, 0.0
      %v6607 = vpack.c.bf16 %v6544, %v6543
      %v6608 = vpack.c.bf16 %v6546, %v6545
      %v6609 = vpack.c.bf16 %v6548, %v6547
      %v6610 = vpack.c.bf16 %v6550, %v6549
      %v6611 = vpack.c.bf16 %v6552, %v6551
      %v6612 = vpack.c.bf16 %v6554, %v6553
      %v6613 = vpack.c.bf16 %v6556, %v6555
      %v6614 = vpack.c.bf16 %v6558, %v6557
      %v6615 = vpack.c.bf16 %v6560, %v6559
      %v6616 = vpack.c.bf16 %v6562, %v6561
      %v6617 = vpack.c.bf16 %v6564, %v6563
      %v6618 = vpack.c.bf16 %v6566, %v6565
      %v6619 = vpack.c.bf16 %v6568, %v6567
      %v6620 = vpack.c.bf16 %v6570, %v6569
      %v6621 = vpack.c.bf16 %v6572, %v6571
      %v6622 = vpack.c.bf16 %v6574, %v6573
      %v6623 = vpack.c.bf16 %v6576, %v6575
      %v6624 = vpack.c.bf16 %v6578, %v6577
      %v6625 = vpack.c.bf16 %v6580, %v6579
      %v6626 = vpack.c.bf16 %v6582, %v6581
      %v6627 = vpack.c.bf16 %v6584, %v6583
      %v6628 = vpack.c.bf16 %v6586, %v6585
      %v6629 = vpack.c.bf16 %v6588, %v6587
      %v6630 = vpack.c.bf16 %v6590, %v6589
      %v6631 = vpack.c.bf16 %v6592, %v6591
      %v6632 = vpack.c.bf16 %v6594, %v6593
      %v6633 = vpack.c.bf16 %v6596, %v6595
      %v6634 = vpack.c.bf16 %v6598, %v6597
      %v6635 = vpack.c.bf16 %v6600, %v6599
      %v6636 = vpack.c.bf16 %v6602, %v6601
      %v6637 = vpack.c.bf16 %v6604, %v6603
      %v6638 = vpack.c.bf16 %v6606, %v6605
      %v6640 = vlaneseq
      %v6641 = vshrl.u32 %v6640, 7
      %v6642 = vsub.s32 0, %v6641
      %v6643 = vrot.slane %v6542, %v6642
      %v6661 = vunpack.c.l.b16 %v6526
      %v6662 = vunpack.c.l.b16 %v6527
      %v6663 = vunpack.c.l.b16 %v6528
      %v6664 = vunpack.c.l.b16 %v6529
      %v6665 = vunpack.c.l.b16 %v6530
      %v6666 = vunpack.c.l.b16 %v6531
      %v6667 = vunpack.c.l.b16 %v6532
      %v6668 = vunpack.c.l.b16 %v6533
      %v6669 = vunpack.c.l.b16 %v6534
      %v6670 = vunpack.c.l.b16 %v6535
      %v6671 = vunpack.c.l.b16 %v6536
      %v6672 = vunpack.c.l.b16 %v6537
      %v6673 = vunpack.c.l.b16 %v6538
      %v6674 = vunpack.c.l.b16 %v6539
      %v6675 = vunpack.c.l.b16 %v6540
      %v6676 = vunpack.c.l.b16 %v6541
      %v6677 = vpack.c.b16 %v6662, %v6661
      %v6678 = vpack.c.b16 %v6664, %v6663
      %v6679 = vpack.c.b16 %v6666, %v6665
      %v6680 = vpack.c.b16 %v6668, %v6667
      %v6681 = vpack.c.b16 %v6670, %v6669
      %v6682 = vpack.c.b16 %v6672, %v6671
      %v6683 = vpack.c.b16 %v6674, %v6673
      %v6684 = vpack.c.b16 %v6676, %v6675
      %6693 = vmatprep.subr.bf16.mxu0 0
      %6694 = vmatpush1.bf16.msra.mxu0 %v6677
      %6695 = vmatprep.subr.bf16.mxu0 0
      %6696 = vmatpush1.bf16.msra.mxu0 %v6678
      %6697 = vmatprep.subr.bf16.mxu0 0
      %6698 = vmatpush1.bf16.msra.mxu0 %v6679
      %6699 = vmatprep.subr.bf16.mxu0 0
      %6700 = vmatpush1.bf16.msra.mxu0 %v6680
      %6701 = vmatprep.subr.bf16.mxu0 0
      %6702 = vmatpush1.bf16.msra.mxu0 %v6681
      %6703 = vmatprep.subr.bf16.mxu0 0
      %6704 = vmatpush1.bf16.msra.mxu0 %v6682
      %6705 = vmatprep.subr.bf16.mxu0 0
      %6706 = vmatpush1.bf16.msra.mxu0 %v6683
      %6707 = vmatprep.subr.bf16.mxu0 0
      %6708 = vmatpush1.bf16.msra.mxu0 %v6684
      %6709 = vmatprep.subr.bf16.mxu0 0
      %6710 = vmatpush1.bf16.msra.mxu0 0
      %6711 = vmatprep.subr.bf16.mxu0 0
      %6712 = vmatpush1.bf16.msra.mxu0 0
      %6713 = vmatprep.subr.bf16.mxu0 0
      %6714 = vmatpush1.bf16.msra.mxu0 0
      %6715 = vmatprep.subr.bf16.mxu0 0
      %6716 = vmatpush1.bf16.msra.mxu0 0
      %6717 = vmatprep.subr.bf16.mxu0 0
      %6718 = vmatpush1.bf16.msra.mxu0 0
      %6719 = vmatprep.subr.bf16.mxu0 0
      %6720 = vmatpush1.bf16.msra.mxu0 0
      %6721 = vmatprep.subr.bf16.mxu0 0
      %6722 = vmatpush1.bf16.msra.mxu0 0
      %6723 = vmatprep.subr.bf16.mxu0 0
      %6724 = vmatpush1.bf16.msra.mxu0 0
      %6725 = vmatprep.mubr.bf16.mxu0 0
      %6726 = vmatmul.mubr.bf16.gmra.mrb[0].mxu0 %v6607
      %v6727 = vpop.f32.mrb[0].mxu0
      %v6728 = vadd.f32 %v6643, %v6727
      %v6729 = vpop.f32.mrb[0].mxu0
      %v6730 = vpop.f32.mrb[0].mxu0
      %v6731 = vadd.f32 %v6643, %v6730
      %v6732 = vpop.f32.mrb[0].mxu0
      %6733 = vmatprep.mubr.bf16.mxu0 0
      %6734 = vmatmul.mubr.bf16.gmra.mrb[0].mxu0 %v6608
      %v6735 = vpop.f32.mrb[0].mxu0
      %v6736 = vadd.f32 %v6643, %v6735
      %v6737 = vpop.f32.mrb[0].mxu0
      %v6738 = vpop.f32.mrb[0].mxu0
      %v6739 = vadd.f32 %v6643, %v6738
      %v6740 = vpop.f32.mrb[0].mxu0
      %6741 = vmatprep.mubr.bf16.mxu0 0
      %6742 = vmatmul.mubr.bf16.gmra.mrb[0].mxu0 %v6609
      %v6743 = vpop.f32.mrb[0].mxu0
      %v6744 = vadd.f32 %v6643, %v6743
      %v6745 = vpop.f32.mrb[0].mxu0
      %v6746 = vpop.f32.mrb[0].mxu0
      %v6747 = vadd.f32 %v6643, %v6746
      %v6748 = vpop.f32.mrb[0].mxu0
      %6749 = vmatprep.mubr.bf16.mxu0 0
      %6750 = vmatmul.mubr.bf16.gmra.mrb[0].mxu0 %v6610
      %v6751 = vpop.f32.mrb[0].mxu0
      %v6752 = vadd.f32 %v6643, %v6751
      %v6753 = vpop.f32.mrb[0].mxu0
      %v6754 = vpop.f32.mrb[0].mxu0
      %v6755 = vadd.f32 %v6643, %v6754
      %v6756 = vpop.f32.mrb[0].mxu0
      %6757 = vmatprep.mubr.bf16.mxu0 0
      %6758 = vmatmul.mubr.bf16.gmra.mrb[0].mxu0 %v6611
      %v6759 = vpop.f32.mrb[0].mxu0
      %v6760 = vadd.f32 %v6643, %v6759
      %v6761 = vpop.f32.mrb[0].mxu0
      %v6762 = vpop.f32.mrb[0].mxu0
      %v6763 = vadd.f32 %v6643, %v6762
      %v6764 = vpop.f32.mrb[0].mxu0
      %6765 = vmatprep.mubr.bf16.mxu0 0
      %6766 = vmatmul.mubr.bf16.gmra.mrb[0].mxu0 %v6612
      %v6767 = vpop.f32.mrb[0].mxu0
      %v6768 = vadd.f32 %v6643, %v6767
      %v6769 = vpop.f32.mrb[0].mxu0
      %v6770 = vpop.f32.mrb[0].mxu0
      %v6771 = vadd.f32 %v6643, %v6770
      %v6772 = vpop.f32.mrb[0].mxu0
      %6773 = vmatprep.mubr.bf16.mxu0 0
      %6774 = vmatmul.mubr.bf16.gmra.mrb[0].mxu0 %v6613
      %v6775 = vpop.f32.mrb[0].mxu0
      %v6776 = vadd.f32 %v6643, %v6775
      %v6777 = vpop.f32.mrb[0].mxu0
      %v6778 = vpop.f32.mrb[0].mxu0
      %v6779 = vadd.f32 %v6643, %v6778
      %v6780 = vpop.f32.mrb[0].mxu0
      %6781 = vmatprep.mubr.bf16.mxu0 0
      %6782 = vmatmul.mubr.bf16.gmra.mrb[0].mxu0 %v6614
      %v6783 = vpop.f32.mrb[0].mxu0
      %v6784 = vadd.f32 %v6643, %v6783
      %v6785 = vpop.f32.mrb[0].mxu0
      %v6786 = vpop.f32.mrb[0].mxu0
      %v6787 = vadd.f32 %v6643, %v6786
      %v6788 = vpop.f32.mrb[0].mxu0
      %6789 = vmatprep.mubr.bf16.mxu0 0
      %6790 = vmatmul.mubr.bf16.gmra.mrb[0].mxu0 %v6615
      %v6791 = vpop.f32.mrb[0].mxu0
      %v6792 = vadd.f32 %v6643, %v6791
      %v6793 = vpop.f32.mrb[0].mxu0
      %v6794 = vpop.f32.mrb[0].mxu0
      %v6795 = vadd.f32 %v6643, %v6794
      %v6796 = vpop.f32.mrb[0].mxu0
      %6797 = vmatprep.mubr.bf16.mxu0 0
      %6798 = vmatmul.mubr.bf16.gmra.mrb[0].mxu0 %v6616
      %v6799 = vpop.f32.mrb[0].mxu0
      %v6800 = vadd.f32 %v6643, %v6799
      %v6801 = vpop.f32.mrb[0].mxu0
      %v6802 = vpop.f32.mrb[0].mxu0
      %v6803 = vadd.f32 %v6643, %v6802
      %v6804 = vpop.f32.mrb[0].mxu0
      %6805 = vmatprep.mubr.bf16.mxu0 0
      %6806 = vmatmul.mubr.bf16.gmra.mrb[0].mxu0 %v6617
      %v6807 = vpop.f32.mrb[0].mxu0
      %v6808 = vadd.f32 %v6643, %v6807
      %v6809 = vpop.f32.mrb[0].mxu0
      %v6810 = vpop.f32.mrb[0].mxu0
      %v6811 = vadd.f32 %v6643, %v6810
      %v6812 = vpop.f32.mrb[0].mxu0
      %6813 = vmatprep.mubr.bf16.mxu0 0
      %6814 = vmatmul.mubr.bf16.gmra.mrb[0].mxu0 %v6618
      %v6815 = vpop.f32.mrb[0].mxu0
      %v6816 = vadd.f32 %v6643, %v6815
      %v6817 = vpop.f32.mrb[0].mxu0
      %v6818 = vpop.f32.mrb[0].mxu0
      %v6819 = vadd.f32 %v6643, %v6818
      %v6820 = vpop.f32.mrb[0].mxu0
      %6821 = vmatprep.mubr.bf16.mxu0 0
      %6822 = vmatmul.mubr.bf16.gmra.mrb[0].mxu0 %v6619
      %v6823 = vpop.f32.mrb[0].mxu0
      %v6824 = vadd.f32 %v6643, %v6823
      %v6825 = vpop.f32.mrb[0].mxu0
      %v6826 = vpop.f32.mrb[0].mxu0
      %v6827 = vadd.f32 %v6643, %v6826
      %v6828 = vpop.f32.mrb[0].mxu0
      %6829 = vmatprep.mubr.bf16.mxu0 0
      %6830 = vmatmul.mubr.bf16.gmra.mrb[0].mxu0 %v6620
      %v6831 = vpop.f32.mrb[0].mxu0
      %v6832 = vadd.f32 %v6643, %v6831
      %v6833 = vpop.f32.mrb[0].mxu0
      %v6834 = vpop.f32.mrb[0].mxu0
      %v6835 = vadd.f32 %v6643, %v6834
      %v6836 = vpop.f32.mrb[0].mxu0
      %6837 = vmatprep.mubr.bf16.mxu0 0
      %6838 = vmatmul.mubr.bf16.gmra.mrb[0].mxu0 %v6621
      %v6839 = vpop.f32.mrb[0].mxu0
      %v6840 = vadd.f32 %v6643, %v6839
      %v6841 = vpop.f32.mrb[0].mxu0
      %v6842 = vpop.f32.mrb[0].mxu0
      %v6843 = vadd.f32 %v6643, %v6842
      %v6844 = vpop.f32.mrb[0].mxu0
      %6845 = vmatprep.mubr.bf16.mxu0 0
      %6846 = vmatmul.mubr.bf16.gmra.mrb[0].mxu0 %v6622
      %v6847 = vpop.f32.mrb[0].mxu0
      %v6848 = vadd.f32 %v6643, %v6847
      %v6849 = vpop.f32.mrb[0].mxu0
      %v6850 = vpop.f32.mrb[0].mxu0
      %v6851 = vadd.f32 %v6643, %v6850
      %v6852 = vpop.f32.mrb[0].mxu0
      %6853 = vmatprep.mubr.bf16.mxu0 0
      %6854 = vmatmul.mubr.bf16.gmra.mrb[0].mxu0 %v6623
      %v6855 = vpop.f32.mrb[0].mxu0
      %v6856 = vadd.f32 %v6643, %v6855
      %v6857 = vpop.f32.mrb[0].mxu0
      %v6858 = vpop.f32.mrb[0].mxu0
      %v6859 = vadd.f32 %v6643, %v6858
      %v6860 = vpop.f32.mrb[0].mxu0
      %6861 = vmatprep.mubr.bf16.mxu0 0
      %6862 = vmatmul.mubr.bf16.gmra.mrb[0].mxu0 %v6624
      %v6863 = vpop.f32.mrb[0].mxu0
      %v6864 = vadd.f32 %v6643, %v6863
      %v6865 = vpop.f32.mrb[0].mxu0
      %v6866 = vpop.f32.mrb[0].mxu0
      %v6867 = vadd.f32 %v6643, %v6866
      %v6868 = vpop.f32.mrb[0].mxu0
      %6869 = vmatprep.mubr.bf16.mxu0 0
      %6870 = vmatmul.mubr.bf16.gmra.mrb[0].mxu0 %v6625
      %v6871 = vpop.f32.mrb[0].mxu0
      %v6872 = vadd.f32 %v6643, %v6871
      %v6873 = vpop.f32.mrb[0].mxu0
      %v6874 = vpop.f32.mrb[0].mxu0
      %v6875 = vadd.f32 %v6643, %v6874
      %v6876 = vpop.f32.mrb[0].mxu0
      %6877 = vmatprep.mubr.bf16.mxu0 0
      %6878 = vmatmul.mubr.bf16.gmra.mrb[0].mxu0 %v6626
      %v6879 = vpop.f32.mrb[0].mxu0
      %v6880 = vadd.f32 %v6643, %v6879
      %v6881 = vpop.f32.mrb[0].mxu0
      %v6882 = vpop.f32.mrb[0].mxu0
      %v6883 = vadd.f32 %v6643, %v6882
      %v6884 = vpop.f32.mrb[0].mxu0
      %6885 = vmatprep.mubr.bf16.mxu0 0
      %6886 = vmatmul.mubr.bf16.gmra.mrb[0].mxu0 %v6627
      %v6887 = vpop.f32.mrb[0].mxu0
      %v6888 = vadd.f32 %v6643, %v6887
      %v6889 = vpop.f32.mrb[0].mxu0
      %v6890 = vpop.f32.mrb[0].mxu0
      %v6891 = vadd.f32 %v6643, %v6890
      %v6892 = vpop.f32.mrb[0].mxu0
      %6893 = vmatprep.mubr.bf16.mxu0 0
      %6894 = vmatmul.mubr.bf16.gmra.mrb[0].mxu0 %v6628
      %v6895 = vpop.f32.mrb[0].mxu0
      %v6896 = vadd.f32 %v6643, %v6895
      %v6897 = vpop.f32.mrb[0].mxu0
      %v6898 = vpop.f32.mrb[0].mxu0
      %v6899 = vadd.f32 %v6643, %v6898
      %v6900 = vpop.f32.mrb[0].mxu0
      %6901 = vmatprep.mubr.bf16.mxu0 0
      %6902 = vmatmul.mubr.bf16.gmra.mrb[0].mxu0 %v6629
      %v6903 = vpop.f32.mrb[0].mxu0
      %v6904 = vadd.f32 %v6643, %v6903
      %v6905 = vpop.f32.mrb[0].mxu0
      %v6906 = vpop.f32.mrb[0].mxu0
      %v6907 = vadd.f32 %v6643, %v6906
      %v6908 = vpop.f32.mrb[0].mxu0
      %6909 = vmatprep.mubr.bf16.mxu0 0
      %6910 = vmatmul.mubr.bf16.gmra.mrb[0].mxu0 %v6630
      %v6911 = vpop.f32.mrb[0].mxu0
      %v6912 = vadd.f32 %v6643, %v6911
      %v6913 = vpop.f32.mrb[0].mxu0
      %v6914 = vpop.f32.mrb[0].mxu0
      %v6915 = vadd.f32 %v6643, %v6914
      %v6916 = vpop.f32.mrb[0].mxu0
      %6917 = vmatprep.mubr.bf16.mxu0 0
      %6918 = vmatmul.mubr.bf16.gmra.mrb[0].mxu0 %v6631
      %v6919 = vpop.f32.mrb[0].mxu0
      %v6920 = vadd.f32 %v6643, %v6919
      %v6921 = vpop.f32.mrb[0].mxu0
      %v6922 = vpop.f32.mrb[0].mxu0
      %v6923 = vadd.f32 %v6643, %v6922
      %v6924 = vpop.f32.mrb[0].mxu0
      %6925 = vmatprep.mubr.bf16.mxu0 0
      %6926 = vmatmul.mubr.bf16.gmra.mrb[0].mxu0 %v6632
      %v6927 = vpop.f32.mrb[0].mxu0
      %v6928 = vadd.f32 %v6643, %v6927
      %v6929 = vpop.f32.mrb[0].mxu0
      %v6930 = vpop.f32.mrb[0].mxu0
      %v6931 = vadd.f32 %v6643, %v6930
      %v6932 = vpop.f32.mrb[0].mxu0
      %6933 = vmatprep.mubr.bf16.mxu0 0
      %6934 = vmatmul.mubr.bf16.gmra.mrb[0].mxu0 %v6633
      %v6935 = vpop.f32.mrb[0].mxu0
      %v6936 = vadd.f32 %v6643, %v6935
      %v6937 = vpop.f32.mrb[0].mxu0
      %v6938 = vpop.f32.mrb[0].mxu0
      %v6939 = vadd.f32 %v6643, %v6938
      %v6940 = vpop.f32.mrb[0].mxu0
      %6941 = vmatprep.mubr.bf16.mxu0 0
      %6942 = vmatmul.mubr.bf16.gmra.mrb[0].mxu0 %v6634
      %v6943 = vpop.f32.mrb[0].mxu0
      %v6944 = vadd.f32 %v6643, %v6943
      %v6945 = vpop.f32.mrb[0].mxu0
      %v6946 = vpop.f32.mrb[0].mxu0
      %v6947 = vadd.f32 %v6643, %v6946
      %v6948 = vpop.f32.mrb[0].mxu0
      %6949 = vmatprep.mubr.bf16.mxu0 0
      %6950 = vmatmul.mubr.bf16.gmra.mrb[0].mxu0 %v6635
      %v6951 = vpop.f32.mrb[0].mxu0
      %v6952 = vadd.f32 %v6643, %v6951
      %v6953 = vpop.f32.mrb[0].mxu0
      %v6954 = vpop.f32.mrb[0].mxu0
      %v6955 = vadd.f32 %v6643, %v6954
      %v6956 = vpop.f32.mrb[0].mxu0
      %6957 = vmatprep.mubr.bf16.mxu0 0
      %6958 = vmatmul.mubr.bf16.gmra.mrb[0].mxu0 %v6636
      %v6959 = vpop.f32.mrb[0].mxu0
      %v6960 = vadd.f32 %v6643, %v6959
      %v6961 = vpop.f32.mrb[0].mxu0
      %v6962 = vpop.f32.mrb[0].mxu0
      %v6963 = vadd.f32 %v6643, %v6962
      %v6964 = vpop.f32.mrb[0].mxu0
      %6965 = vmatprep.mubr.bf16.mxu0 0
      %6966 = vmatmul.mubr.bf16.gmra.mrb[0].mxu0 %v6637
      %v6967 = vpop.f32.mrb[0].mxu0
      %v6968 = vadd.f32 %v6643, %v6967
      %v6969 = vpop.f32.mrb[0].mxu0
      %v6970 = vpop.f32.mrb[0].mxu0
      %v6971 = vadd.f32 %v6643, %v6970
      %v6972 = vpop.f32.mrb[0].mxu0
      %6973 = vmatprep.mubr.bf16.mxu0 0
      %6974 = vmatmul.mubr.bf16.gmra.mrb[0].mxu0 %v6638
      %v6975 = vpop.f32.mrb[0].mxu0
      %v6976 = vadd.f32 %v6643, %v6975
      %v6977 = vpop.f32.mrb[0].mxu0
      %v6978 = vpop.f32.mrb[0].mxu0
      %v6979 = vadd.f32 %v6643, %v6978
      %v6980 = vpop.f32.mrb[0].mxu0
      %6981 = vdwg.mxu0
      %v6982 = vld [vmem:[%s1020] sm:$0xf]
      %v6983 = vld [vmem:[%s1020 + $0x4] sm:$0xf]
      %v6984 = vld [vmem:[%s1020 + $0x8] sm:$0xf]
      %v6985 = vld [vmem:[%s1020 + $0xc] sm:$0xf]
      %v6986 = vld [vmem:[%s1020 + $0x10] sm:$0xf]
      %v6987 = vld [vmem:[%s1020 + $0x14] sm:$0xf]
      %v6988 = vld [vmem:[%s1020 + $0x18] sm:$0xf]
      %v6989 = vld [vmem:[%s1020 + $0x1c] sm:$0xf]
      %v6990 = vld [vmem:[%s1023] sm:$0x1]
      %v6991 = vmax.f32 %v6728, 0.0
      %v6992 = vmax.f32 %v6731, 0.0
      %v6993 = vmax.f32 %v6736, 0.0
      %v6994 = vmax.f32 %v6739, 0.0
      %v6995 = vmax.f32 %v6744, 0.0
      %v6996 = vmax.f32 %v6747, 0.0
      %v6997 = vmax.f32 %v6752, 0.0
      %v6998 = vmax.f32 %v6755, 0.0
      %v6999 = vmax.f32 %v6760, 0.0
      %v7000 = vmax.f32 %v6763, 0.0
      %v7001 = vmax.f32 %v6768, 0.0
      %v7002 = vmax.f32 %v6771, 0.0
      %v7003 = vmax.f32 %v6776, 0.0
      %v7004 = vmax.f32 %v6779, 0.0
      %v7005 = vmax.f32 %v6784, 0.0
      %v7006 = vmax.f32 %v6787, 0.0
      %v7007 = vmax.f32 %v6792, 0.0
      %v7008 = vmax.f32 %v6795, 0.0
      %v7009 = vmax.f32 %v6800, 0.0
      %v7010 = vmax.f32 %v6803, 0.0
      %v7011 = vmax.f32 %v6808, 0.0
      %v7012 = vmax.f32 %v6811, 0.0
      %v7013 = vmax.f32 %v6816, 0.0
      %v7014 = vmax.f32 %v6819, 0.0
      %v7015 = vmax.f32 %v6824, 0.0
      %v7016 = vmax.f32 %v6827, 0.0
      %v7017 = vmax.f32 %v6832, 0.0
      %v7018 = vmax.f32 %v6835, 0.0
      %v7019 = vmax.f32 %v6840, 0.0
      %v7020 = vmax.f32 %v6843, 0.0
      %v7021 = vmax.f32 %v6848, 0.0
      %v7022 = vmax.f32 %v6851, 0.0
      %v7023 = vmax.f32 %v6856, 0.0
      %v7024 = vmax.f32 %v6859, 0.0
      %v7025 = vmax.f32 %v6864, 0.0
      %v7026 = vmax.f32 %v6867, 0.0
      %v7027 = vmax.f32 %v6872, 0.0
      %v7028 = vmax.f32 %v6875, 0.0
      %v7029 = vmax.f32 %v6880, 0.0
      %v7030 = vmax.f32 %v6883, 0.0
      %v7031 = vmax.f32 %v6888, 0.0
      %v7032 = vmax.f32 %v6891, 0.0
      %v7033 = vmax.f32 %v6896, 0.0
      %v7034 = vmax.f32 %v6899, 0.0
      %v7035 = vmax.f32 %v6904, 0.0
      %v7036 = vmax.f32 %v6907, 0.0
      %v7037 = vmax.f32 %v6912, 0.0
      %v7038 = vmax.f32 %v6915, 0.0
      %v7039 = vmax.f32 %v6920, 0.0
      %v7040 = vmax.f32 %v6923, 0.0
      %v7041 = vmax.f32 %v6928, 0.0
      %v7042 = vmax.f32 %v6931, 0.0
      %v7043 = vmax.f32 %v6936, 0.0
      %v7044 = vmax.f32 %v6939, 0.0
      %v7045 = vmax.f32 %v6944, 0.0
      %v7046 = vmax.f32 %v6947, 0.0
      %v7047 = vmax.f32 %v6952, 0.0
      %v7048 = vmax.f32 %v6955, 0.0
      %v7049 = vmax.f32 %v6960, 0.0
      %v7050 = vmax.f32 %v6963, 0.0
      %v7051 = vmax.f32 %v6968, 0.0
      %v7052 = vmax.f32 %v6971, 0.0
      %v7053 = vmax.f32 %v6976, 0.0
      %v7054 = vmax.f32 %v6979, 0.0
      %v7055 = vpack.c.bf16 %v6992, %v6991
      %v7056 = vpack.c.bf16 %v6994, %v6993
      %v7057 = vpack.c.bf16 %v6996, %v6995
      %v7058 = vpack.c.bf16 %v6998, %v6997
      %v7059 = vpack.c.bf16 %v7000, %v6999
      %v7060 = vpack.c.bf16 %v7002, %v7001
      %v7061 = vpack.c.bf16 %v7004, %v7003
      %v7062 = vpack.c.bf16 %v7006, %v7005
      %v7063 = vpack.c.bf16 %v7008, %v7007
      %v7064 = vpack.c.bf16 %v7010, %v7009
      %v7065 = vpack.c.bf16 %v7012, %v7011
      %v7066 = vpack.c.bf16 %v7014, %v7013
      %v7067 = vpack.c.bf16 %v7016, %v7015
      %v7068 = vpack.c.bf16 %v7018, %v7017
      %v7069 = vpack.c.bf16 %v7020, %v7019
      %v7070 = vpack.c.bf16 %v7022, %v7021
      %v7071 = vpack.c.bf16 %v7024, %v7023
      %v7072 = vpack.c.bf16 %v7026, %v7025
      %v7073 = vpack.c.bf16 %v7028, %v7027
      %v7074 = vpack.c.bf16 %v7030, %v7029
      %v7075 = vpack.c.bf16 %v7032, %v7031
      %v7076 = vpack.c.bf16 %v7034, %v7033
      %v7077 = vpack.c.bf16 %v7036, %v7035
      %v7078 = vpack.c.bf16 %v7038, %v7037
      %v7079 = vpack.c.bf16 %v7040, %v7039
      %v7080 = vpack.c.bf16 %v7042, %v7041
      %v7081 = vpack.c.bf16 %v7044, %v7043
      %v7082 = vpack.c.bf16 %v7046, %v7045
      %v7083 = vpack.c.bf16 %v7048, %v7047
      %v7084 = vpack.c.bf16 %v7050, %v7049
      %v7085 = vpack.c.bf16 %v7052, %v7051
      %v7086 = vpack.c.bf16 %v7054, %v7053
      %v7088 = vlaneseq
      %v7089 = vshrl.u32 %v7088, 7
      %v7090 = vsub.s32 0, %v7089
      %v7091 = vrot.slane %v6990, %v7090
      %v7101 = vunpack.c.l.b16 %v6982
      %v7102 = vunpack.c.l.b16 %v6983
      %v7103 = vunpack.c.l.b16 %v6984
      %v7104 = vunpack.c.l.b16 %v6985
      %v7105 = vunpack.c.l.b16 %v6986
      %v7106 = vunpack.c.l.b16 %v6987
      %v7107 = vunpack.c.l.b16 %v6988
      %v7108 = vunpack.c.l.b16 %v6989
      %v7109 = vpack.c.b16 %v7102, %v7101
      %v7110 = vpack.c.b16 %v7104, %v7103
      %v7111 = vpack.c.b16 %v7106, %v7105
      %v7112 = vpack.c.b16 %v7108, %v7107
      %v7118 = vsel %vm2177, %v7055, 0
      %v7121 = vsel %vm2177, %v7056, 0
      %v7124 = vsel %vm2177, %v7057, 0
      %v7127 = vsel %vm2177, %v7058, 0
      %v7130 = vsel %vm2177, %v7059, 0
      %v7133 = vsel %vm2177, %v7060, 0
      %v7136 = vsel %vm2177, %v7061, 0
      %v7139 = vsel %vm2177, %v7062, 0
      %v7142 = vsel %vm2177, %v7063, 0
      %v7145 = vsel %vm2177, %v7064, 0
      %v7148 = vsel %vm2177, %v7065, 0
      %v7151 = vsel %vm2177, %v7066, 0
      %v7154 = vsel %vm2177, %v7067, 0
      %v7157 = vsel %vm2177, %v7068, 0
      %v7160 = vsel %vm2177, %v7069, 0
      %v7163 = vsel %vm2177, %v7070, 0
      %v7166 = vsel %vm2177, %v7071, 0
      %v7169 = vsel %vm2177, %v7072, 0
      %v7172 = vsel %vm2177, %v7073, 0
      %v7175 = vsel %vm2177, %v7074, 0
      %v7178 = vsel %vm2177, %v7075, 0
      %v7181 = vsel %vm2177, %v7076, 0
      %v7184 = vsel %vm2177, %v7077, 0
      %v7187 = vsel %vm2177, %v7078, 0
      %v7190 = vsel %vm2177, %v7079, 0
      %v7193 = vsel %vm2177, %v7080, 0
      %v7196 = vsel %vm2177, %v7081, 0
      %v7199 = vsel %vm2177, %v7082, 0
      %v7202 = vsel %vm2177, %v7083, 0
      %v7205 = vsel %vm2177, %v7084, 0
      %v7208 = vsel %vm2177, %v7085, 0
      %v7211 = vsel %vm2177, %v7086, 0
      %7213 = vmatprep.subr.bf16.mxu0 0
      %7214 = vmatpush1.bf16.msra.mxu0 %v7109
      %7215 = vmatprep.subr.bf16.mxu0 0
      %7216 = vmatpush1.bf16.msra.mxu0 %v7110
      %7217 = vmatprep.subr.bf16.mxu0 0
      %7218 = vmatpush1.bf16.msra.mxu0 %v7111
      %7219 = vmatprep.subr.bf16.mxu0 0
      %7220 = vmatpush1.bf16.msra.mxu0 %v7112
      %7221 = vmatprep.subr.bf16.mxu0 0
      %7222 = vmatpush1.bf16.msra.mxu0 0
      %7223 = vmatprep.subr.bf16.mxu0 0
      %7224 = vmatpush1.bf16.msra.mxu0 0
      %7225 = vmatprep.subr.bf16.mxu0 0
      %7226 = vmatpush1.bf16.msra.mxu0 0
      %7227 = vmatprep.subr.bf16.mxu0 0
      %7228 = vmatpush1.bf16.msra.mxu0 0
      %7229 = vmatprep.subr.bf16.mxu0 0
      %7230 = vmatpush1.bf16.msra.mxu0 0
      %7231 = vmatprep.subr.bf16.mxu0 0
      %7232 = vmatpush1.bf16.msra.mxu0 0
      %7233 = vmatprep.subr.bf16.mxu0 0
      %7234 = vmatpush1.bf16.msra.mxu0 0
      %7235 = vmatprep.subr.bf16.mxu0 0
      %7236 = vmatpush1.bf16.msra.mxu0 0
      %7237 = vmatprep.subr.bf16.mxu0 0
      %7238 = vmatpush1.bf16.msra.mxu0 0
      %7239 = vmatprep.subr.bf16.mxu0 0
      %7240 = vmatpush1.bf16.msra.mxu0 0
      %7241 = vmatprep.subr.bf16.mxu0 0
      %7242 = vmatpush1.bf16.msra.mxu0 0
      %7243 = vmatprep.subr.bf16.mxu0 0
      %7244 = vmatpush1.bf16.msra.mxu0 0
      %7245 = vmatprep.mubr.bf16.mxu0 0
      %7246 = vmatmul.mubr.bf16.gmra.mrb[0].mxu0 %v7118
      %v7247 = vpop.f32.mrb[0].mxu0
      %v7248 = vadd.f32 %v7091, %v7247
      %v7249 = vpop.f32.mrb[0].mxu0
      %v7250 = vpop.f32.mrb[0].mxu0
      %v7251 = vadd.f32 %v7091, %v7250
      %v7252 = vpop.f32.mrb[0].mxu0
      %7253 = vmatprep.mubr.bf16.mxu0 0
      %7254 = vmatmul.mubr.bf16.gmra.mrb[0].mxu0 %v7121
      %v7255 = vpop.f32.mrb[0].mxu0
      %v7256 = vadd.f32 %v7091, %v7255
      %v7257 = vpop.f32.mrb[0].mxu0
      %v7258 = vpop.f32.mrb[0].mxu0
      %v7259 = vadd.f32 %v7091, %v7258
      %v7260 = vpop.f32.mrb[0].mxu0
      %7261 = vmatprep.mubr.bf16.mxu0 0
      %7262 = vmatmul.mubr.bf16.gmra.mrb[0].mxu0 %v7124
      %v7263 = vpop.f32.mrb[0].mxu0
      %v7264 = vadd.f32 %v7091, %v7263
      %v7265 = vpop.f32.mrb[0].mxu0
      %v7266 = vpop.f32.mrb[0].mxu0
      %v7267 = vadd.f32 %v7091, %v7266
      %v7268 = vpop.f32.mrb[0].mxu0
      %7269 = vmatprep.mubr.bf16.mxu0 0
      %7270 = vmatmul.mubr.bf16.gmra.mrb[0].mxu0 %v7127
      %v7271 = vpop.f32.mrb[0].mxu0
      %v7272 = vadd.f32 %v7091, %v7271
      %v7273 = vpop.f32.mrb[0].mxu0
      %v7274 = vpop.f32.mrb[0].mxu0
      %v7275 = vadd.f32 %v7091, %v7274
      %v7276 = vpop.f32.mrb[0].mxu0
      %7277 = vmatprep.mubr.bf16.mxu0 0
      %7278 = vmatmul.mubr.bf16.gmra.mrb[0].mxu0 %v7130
      %v7279 = vpop.f32.mrb[0].mxu0
      %v7280 = vadd.f32 %v7091, %v7279
      %v7281 = vpop.f32.mrb[0].mxu0
      %v7282 = vpop.f32.mrb[0].mxu0
      %v7283 = vadd.f32 %v7091, %v7282
      %v7284 = vpop.f32.mrb[0].mxu0
      %7285 = vmatprep.mubr.bf16.mxu0 0
      %7286 = vmatmul.mubr.bf16.gmra.mrb[0].mxu0 %v7133
      %v7287 = vpop.f32.mrb[0].mxu0
      %v7288 = vadd.f32 %v7091, %v7287
      %v7289 = vpop.f32.mrb[0].mxu0
      %v7290 = vpop.f32.mrb[0].mxu0
      %v7291 = vadd.f32 %v7091, %v7290
      %v7292 = vpop.f32.mrb[0].mxu0
      %7293 = vmatprep.mubr.bf16.mxu0 0
      %7294 = vmatmul.mubr.bf16.gmra.mrb[0].mxu0 %v7136
      %v7295 = vpop.f32.mrb[0].mxu0
      %v7296 = vadd.f32 %v7091, %v7295
      %v7297 = vpop.f32.mrb[0].mxu0
      %v7298 = vpop.f32.mrb[0].mxu0
      %v7299 = vadd.f32 %v7091, %v7298
      %v7300 = vpop.f32.mrb[0].mxu0
      %7301 = vmatprep.mubr.bf16.mxu0 0
      %7302 = vmatmul.mubr.bf16.gmra.mrb[0].mxu0 %v7139
      %v7303 = vpop.f32.mrb[0].mxu0
      %v7304 = vadd.f32 %v7091, %v7303
      %v7305 = vpop.f32.mrb[0].mxu0
      %v7306 = vpop.f32.mrb[0].mxu0
      %v7307 = vadd.f32 %v7091, %v7306
      %v7308 = vpop.f32.mrb[0].mxu0
      %7309 = vmatprep.mubr.bf16.mxu0 0
      %7310 = vmatmul.mubr.bf16.gmra.mrb[0].mxu0 %v7142
      %v7311 = vpop.f32.mrb[0].mxu0
      %v7312 = vadd.f32 %v7091, %v7311
      %v7313 = vpop.f32.mrb[0].mxu0
      %v7314 = vpop.f32.mrb[0].mxu0
      %v7315 = vadd.f32 %v7091, %v7314
      %v7316 = vpop.f32.mrb[0].mxu0
      %7317 = vmatprep.mubr.bf16.mxu0 0
      %7318 = vmatmul.mubr.bf16.gmra.mrb[0].mxu0 %v7145
      %v7319 = vpop.f32.mrb[0].mxu0
      %v7320 = vadd.f32 %v7091, %v7319
      %v7321 = vpop.f32.mrb[0].mxu0
      %v7322 = vpop.f32.mrb[0].mxu0
      %v7323 = vadd.f32 %v7091, %v7322
      %v7324 = vpop.f32.mrb[0].mxu0
      %7325 = vmatprep.mubr.bf16.mxu0 0
      %7326 = vmatmul.mubr.bf16.gmra.mrb[0].mxu0 %v7148
      %v7327 = vpop.f32.mrb[0].mxu0
      %v7328 = vadd.f32 %v7091, %v7327
      %v7329 = vpop.f32.mrb[0].mxu0
      %v7330 = vpop.f32.mrb[0].mxu0
      %v7331 = vadd.f32 %v7091, %v7330
      %v7332 = vpop.f32.mrb[0].mxu0
      %7333 = vmatprep.mubr.bf16.mxu0 0
      %7334 = vmatmul.mubr.bf16.gmra.mrb[0].mxu0 %v7151
      %v7335 = vpop.f32.mrb[0].mxu0
      %v7336 = vadd.f32 %v7091, %v7335
      %v7337 = vpop.f32.mrb[0].mxu0
      %v7338 = vpop.f32.mrb[0].mxu0
      %v7339 = vadd.f32 %v7091, %v7338
      %v7340 = vpop.f32.mrb[0].mxu0
      %7341 = vmatprep.mubr.bf16.mxu0 0
      %7342 = vmatmul.mubr.bf16.gmra.mrb[0].mxu0 %v7154
      %v7343 = vpop.f32.mrb[0].mxu0
      %v7344 = vadd.f32 %v7091, %v7343
      %v7345 = vpop.f32.mrb[0].mxu0
      %v7346 = vpop.f32.mrb[0].mxu0
      %v7347 = vadd.f32 %v7091, %v7346
      %v7348 = vpop.f32.mrb[0].mxu0
      %7349 = vmatprep.mubr.bf16.mxu0 0
      %7350 = vmatmul.mubr.bf16.gmra.mrb[0].mxu0 %v7157
      %v7351 = vpop.f32.mrb[0].mxu0
      %v7352 = vadd.f32 %v7091, %v7351
      %v7353 = vpop.f32.mrb[0].mxu0
      %v7354 = vpop.f32.mrb[0].mxu0
      %v7355 = vadd.f32 %v7091, %v7354
      %v7356 = vpop.f32.mrb[0].mxu0
      %7357 = vmatprep.mubr.bf16.mxu0 0
      %7358 = vmatmul.mubr.bf16.gmra.mrb[0].mxu0 %v7160
      %v7359 = vpop.f32.mrb[0].mxu0
      %v7360 = vadd.f32 %v7091, %v7359
      %v7361 = vpop.f32.mrb[0].mxu0
      %v7362 = vpop.f32.mrb[0].mxu0
      %v7363 = vadd.f32 %v7091, %v7362
      %v7364 = vpop.f32.mrb[0].mxu0
      %7365 = vmatprep.mubr.bf16.mxu0 0
      %7366 = vmatmul.mubr.bf16.gmra.mrb[0].mxu0 %v7163
      %v7367 = vpop.f32.mrb[0].mxu0
      %v7368 = vadd.f32 %v7091, %v7367
      %v7369 = vpop.f32.mrb[0].mxu0
      %v7370 = vpop.f32.mrb[0].mxu0
      %v7371 = vadd.f32 %v7091, %v7370
      %v7372 = vpop.f32.mrb[0].mxu0
      %7373 = vmatprep.mubr.bf16.mxu0 0
      %7374 = vmatmul.mubr.bf16.gmra.mrb[0].mxu0 %v7166
      %v7375 = vpop.f32.mrb[0].mxu0
      %v7376 = vadd.f32 %v7091, %v7375
      %v7377 = vpop.f32.mrb[0].mxu0
      %v7378 = vpop.f32.mrb[0].mxu0
      %v7379 = vadd.f32 %v7091, %v7378
      %v7380 = vpop.f32.mrb[0].mxu0
      %7381 = vmatprep.mubr.bf16.mxu0 0
      %7382 = vmatmul.mubr.bf16.gmra.mrb[0].mxu0 %v7169
      %v7383 = vpop.f32.mrb[0].mxu0
      %v7384 = vadd.f32 %v7091, %v7383
      %v7385 = vpop.f32.mrb[0].mxu0
      %v7386 = vpop.f32.mrb[0].mxu0
      %v7387 = vadd.f32 %v7091, %v7386
      %v7388 = vpop.f32.mrb[0].mxu0
      %7389 = vmatprep.mubr.bf16.mxu0 0
      %7390 = vmatmul.mubr.bf16.gmra.mrb[0].mxu0 %v7172
      %v7391 = vpop.f32.mrb[0].mxu0
      %v7392 = vadd.f32 %v7091, %v7391
      %v7393 = vpop.f32.mrb[0].mxu0
      %v7394 = vpop.f32.mrb[0].mxu0
      %v7395 = vadd.f32 %v7091, %v7394
      %v7396 = vpop.f32.mrb[0].mxu0
      %7397 = vmatprep.mubr.bf16.mxu0 0
      %7398 = vmatmul.mubr.bf16.gmra.mrb[0].mxu0 %v7175
      %v7399 = vpop.f32.mrb[0].mxu0
      %v7400 = vadd.f32 %v7091, %v7399
      %v7401 = vpop.f32.mrb[0].mxu0
      %v7402 = vpop.f32.mrb[0].mxu0
      %v7403 = vadd.f32 %v7091, %v7402
      %v7404 = vpop.f32.mrb[0].mxu0
      %7405 = vmatprep.mubr.bf16.mxu0 0
      %7406 = vmatmul.mubr.bf16.gmra.mrb[0].mxu0 %v7178
      %v7407 = vpop.f32.mrb[0].mxu0
      %v7408 = vadd.f32 %v7091, %v7407
      %v7409 = vpop.f32.mrb[0].mxu0
      %v7410 = vpop.f32.mrb[0].mxu0
      %v7411 = vadd.f32 %v7091, %v7410
      %v7412 = vpop.f32.mrb[0].mxu0
      %7413 = vmatprep.mubr.bf16.mxu0 0
      %7414 = vmatmul.mubr.bf16.gmra.mrb[0].mxu0 %v7181
      %v7415 = vpop.f32.mrb[0].mxu0
      %v7416 = vadd.f32 %v7091, %v7415
      %v7417 = vpop.f32.mrb[0].mxu0
      %v7418 = vpop.f32.mrb[0].mxu0
      %v7419 = vadd.f32 %v7091, %v7418
      %v7420 = vpop.f32.mrb[0].mxu0
      %7421 = vmatprep.mubr.bf16.mxu0 0
      %7422 = vmatmul.mubr.bf16.gmra.mrb[0].mxu0 %v7184
      %v7423 = vpop.f32.mrb[0].mxu0
      %v7424 = vadd.f32 %v7091, %v7423
      %v7425 = vpop.f32.mrb[0].mxu0
      %v7426 = vpop.f32.mrb[0].mxu0
      %v7427 = vadd.f32 %v7091, %v7426
      %v7428 = vpop.f32.mrb[0].mxu0
      %7429 = vmatprep.mubr.bf16.mxu0 0
      %7430 = vmatmul.mubr.bf16.gmra.mrb[0].mxu0 %v7187
      %v7431 = vpop.f32.mrb[0].mxu0
      %v7432 = vadd.f32 %v7091, %v7431
      %v7433 = vpop.f32.mrb[0].mxu0
      %v7434 = vpop.f32.mrb[0].mxu0
      %v7435 = vadd.f32 %v7091, %v7434
      %v7436 = vpop.f32.mrb[0].mxu0
      %7437 = vmatprep.mubr.bf16.mxu0 0
      %7438 = vmatmul.mubr.bf16.gmra.mrb[0].mxu0 %v7190
      %v7439 = vpop.f32.mrb[0].mxu0
      %v7440 = vadd.f32 %v7091, %v7439
      %v7441 = vpop.f32.mrb[0].mxu0
      %v7442 = vpop.f32.mrb[0].mxu0
      %v7443 = vadd.f32 %v7091, %v7442
      %v7444 = vpop.f32.mrb[0].mxu0
      %7445 = vmatprep.mubr.bf16.mxu0 0
      %7446 = vmatmul.mubr.bf16.gmra.mrb[0].mxu0 %v7193
      %v7447 = vpop.f32.mrb[0].mxu0
      %v7448 = vadd.f32 %v7091, %v7447
      %v7449 = vpop.f32.mrb[0].mxu0
      %v7450 = vpop.f32.mrb[0].mxu0
      %v7451 = vadd.f32 %v7091, %v7450
      %v7452 = vpop.f32.mrb[0].mxu0
      %7453 = vmatprep.mubr.bf16.mxu0 0
      %7454 = vmatmul.mubr.bf16.gmra.mrb[0].mxu0 %v7196
      %v7455 = vpop.f32.mrb[0].mxu0
      %v7456 = vadd.f32 %v7091, %v7455
      %v7457 = vpop.f32.mrb[0].mxu0
      %v7458 = vpop.f32.mrb[0].mxu0
      %v7459 = vadd.f32 %v7091, %v7458
      %v7460 = vpop.f32.mrb[0].mxu0
      %7461 = vmatprep.mubr.bf16.mxu0 0
      %7462 = vmatmul.mubr.bf16.gmra.mrb[0].mxu0 %v7199
      %v7463 = vpop.f32.mrb[0].mxu0
      %v7464 = vadd.f32 %v7091, %v7463
      %v7465 = vpop.f32.mrb[0].mxu0
      %v7466 = vpop.f32.mrb[0].mxu0
      %v7467 = vadd.f32 %v7091, %v7466
      %v7468 = vpop.f32.mrb[0].mxu0
      %7469 = vmatprep.mubr.bf16.mxu0 0
      %7470 = vmatmul.mubr.bf16.gmra.mrb[0].mxu0 %v7202
      %v7471 = vpop.f32.mrb[0].mxu0
      %v7472 = vadd.f32 %v7091, %v7471
      %v7473 = vpop.f32.mrb[0].mxu0
      %v7474 = vpop.f32.mrb[0].mxu0
      %v7475 = vadd.f32 %v7091, %v7474
      %v7476 = vpop.f32.mrb[0].mxu0
      %7477 = vmatprep.mubr.bf16.mxu0 0
      %7478 = vmatmul.mubr.bf16.gmra.mrb[0].mxu0 %v7205
      %v7479 = vpop.f32.mrb[0].mxu0
      %v7480 = vadd.f32 %v7091, %v7479
      %v7481 = vpop.f32.mrb[0].mxu0
      %v7482 = vpop.f32.mrb[0].mxu0
      %v7483 = vadd.f32 %v7091, %v7482
      %v7484 = vpop.f32.mrb[0].mxu0
      %7485 = vmatprep.mubr.bf16.mxu0 0
      %7486 = vmatmul.mubr.bf16.gmra.mrb[0].mxu0 %v7208
      %v7487 = vpop.f32.mrb[0].mxu0
      %v7488 = vadd.f32 %v7091, %v7487
      %v7489 = vpop.f32.mrb[0].mxu0
      %v7490 = vpop.f32.mrb[0].mxu0
      %v7491 = vadd.f32 %v7091, %v7490
      %v7492 = vpop.f32.mrb[0].mxu0
      %7493 = vmatprep.mubr.bf16.mxu0 0
      %7494 = vmatmul.mubr.bf16.gmra.mrb[0].mxu0 %v7211
      %v7495 = vpop.f32.mrb[0].mxu0
      %v7496 = vadd.f32 %v7091, %v7495
      %v7497 = vpop.f32.mrb[0].mxu0
      %v7498 = vpop.f32.mrb[0].mxu0
      %v7499 = vadd.f32 %v7091, %v7498
      %v7500 = vpop.f32.mrb[0].mxu0
      %7501 = vdwg.mxu0
      %v7502 = vld [vmem:[%s1028] sm:$0xf]
      %v7503 = vld [vmem:[%s1028 + $0x4] sm:$0xf]
      %v7504 = vld [vmem:[%s1028 + $0x8] sm:$0xf]
      %v7505 = vld [vmem:[%s1028 + $0xc] sm:$0xf]
      %v7506 = vld [vmem:[%s1031] sm:$0x1]
      %v7507 = vmax.f32 %v7248, 0.0
      %v7508 = vmax.f32 %v7251, 0.0
      %v7509 = vmax.f32 %v7256, 0.0
      %v7510 = vmax.f32 %v7259, 0.0
      %v7511 = vmax.f32 %v7264, 0.0
      %v7512 = vmax.f32 %v7267, 0.0
      %v7513 = vmax.f32 %v7272, 0.0
      %v7514 = vmax.f32 %v7275, 0.0
      %v7515 = vmax.f32 %v7280, 0.0
      %v7516 = vmax.f32 %v7283, 0.0
      %v7517 = vmax.f32 %v7288, 0.0
      %v7518 = vmax.f32 %v7291, 0.0
      %v7519 = vmax.f32 %v7296, 0.0
      %v7520 = vmax.f32 %v7299, 0.0
      %v7521 = vmax.f32 %v7304, 0.0
      %v7522 = vmax.f32 %v7307, 0.0
      %v7523 = vmax.f32 %v7312, 0.0
      %v7524 = vmax.f32 %v7315, 0.0
      %v7525 = vmax.f32 %v7320, 0.0
      %v7526 = vmax.f32 %v7323, 0.0
      %v7527 = vmax.f32 %v7328, 0.0
      %v7528 = vmax.f32 %v7331, 0.0
      %v7529 = vmax.f32 %v7336, 0.0
      %v7530 = vmax.f32 %v7339, 0.0
      %v7531 = vmax.f32 %v7344, 0.0
      %v7532 = vmax.f32 %v7347, 0.0
      %v7533 = vmax.f32 %v7352, 0.0
      %v7534 = vmax.f32 %v7355, 0.0
      %v7535 = vmax.f32 %v7360, 0.0
      %v7536 = vmax.f32 %v7363, 0.0
      %v7537 = vmax.f32 %v7368, 0.0
      %v7538 = vmax.f32 %v7371, 0.0
      %v7539 = vmax.f32 %v7376, 0.0
      %v7540 = vmax.f32 %v7379, 0.0
      %v7541 = vmax.f32 %v7384, 0.0
      %v7542 = vmax.f32 %v7387, 0.0
      %v7543 = vmax.f32 %v7392, 0.0
      %v7544 = vmax.f32 %v7395, 0.0
      %v7545 = vmax.f32 %v7400, 0.0
      %v7546 = vmax.f32 %v7403, 0.0
      %v7547 = vmax.f32 %v7408, 0.0
      %v7548 = vmax.f32 %v7411, 0.0
      %v7549 = vmax.f32 %v7416, 0.0
      %v7550 = vmax.f32 %v7419, 0.0
      %v7551 = vmax.f32 %v7424, 0.0
      %v7552 = vmax.f32 %v7427, 0.0
      %v7553 = vmax.f32 %v7432, 0.0
      %v7554 = vmax.f32 %v7435, 0.0
      %v7555 = vmax.f32 %v7440, 0.0
      %v7556 = vmax.f32 %v7443, 0.0
      %v7557 = vmax.f32 %v7448, 0.0
      %v7558 = vmax.f32 %v7451, 0.0
      %v7559 = vmax.f32 %v7456, 0.0
      %v7560 = vmax.f32 %v7459, 0.0
      %v7561 = vmax.f32 %v7464, 0.0
      %v7562 = vmax.f32 %v7467, 0.0
      %v7563 = vmax.f32 %v7472, 0.0
      %v7564 = vmax.f32 %v7475, 0.0
      %v7565 = vmax.f32 %v7480, 0.0
      %v7566 = vmax.f32 %v7483, 0.0
      %v7567 = vmax.f32 %v7488, 0.0
      %v7568 = vmax.f32 %v7491, 0.0
      %v7569 = vmax.f32 %v7496, 0.0
      %v7570 = vmax.f32 %v7499, 0.0
      %v7571 = vpack.c.bf16 %v7508, %v7507
      %v7572 = vpack.c.bf16 %v7510, %v7509
      %v7573 = vpack.c.bf16 %v7512, %v7511
      %v7574 = vpack.c.bf16 %v7514, %v7513
      %v7575 = vpack.c.bf16 %v7516, %v7515
      %v7576 = vpack.c.bf16 %v7518, %v7517
      %v7577 = vpack.c.bf16 %v7520, %v7519
      %v7578 = vpack.c.bf16 %v7522, %v7521
      %v7579 = vpack.c.bf16 %v7524, %v7523
      %v7580 = vpack.c.bf16 %v7526, %v7525
      %v7581 = vpack.c.bf16 %v7528, %v7527
      %v7582 = vpack.c.bf16 %v7530, %v7529
      %v7583 = vpack.c.bf16 %v7532, %v7531
      %v7584 = vpack.c.bf16 %v7534, %v7533
      %v7585 = vpack.c.bf16 %v7536, %v7535
      %v7586 = vpack.c.bf16 %v7538, %v7537
      %v7587 = vpack.c.bf16 %v7540, %v7539
      %v7588 = vpack.c.bf16 %v7542, %v7541
      %v7589 = vpack.c.bf16 %v7544, %v7543
      %v7590 = vpack.c.bf16 %v7546, %v7545
      %v7591 = vpack.c.bf16 %v7548, %v7547
      %v7592 = vpack.c.bf16 %v7550, %v7549
      %v7593 = vpack.c.bf16 %v7552, %v7551
      %v7594 = vpack.c.bf16 %v7554, %v7553
      %v7595 = vpack.c.bf16 %v7556, %v7555
      %v7596 = vpack.c.bf16 %v7558, %v7557
      %v7597 = vpack.c.bf16 %v7560, %v7559
      %v7598 = vpack.c.bf16 %v7562, %v7561
      %v7599 = vpack.c.bf16 %v7564, %v7563
      %v7600 = vpack.c.bf16 %v7566, %v7565
      %v7601 = vpack.c.bf16 %v7568, %v7567
      %v7602 = vpack.c.bf16 %v7570, %v7569
      %v7604 = vlaneseq
      %v7605 = vshrl.u32 %v7604, 7
      %v7606 = vsub.s32 0, %v7605
      %v7607 = vrot.slane %v7506, %v7606
      %v7613 = vunpack.c.l.b16 %v7502
      %v7614 = vunpack.c.l.b16 %v7503
      %v7615 = vunpack.c.l.b16 %v7504
      %v7616 = vunpack.c.l.b16 %v7505
      %v7617 = vpack.c.b16 %v7614, %v7613
      %v7618 = vpack.c.b16 %v7616, %v7615
      %v7622 = vsel %vm1656, %v7571, 0
      %v7625 = vsel %vm1656, %v7572, 0
      %v7628 = vsel %vm1656, %v7573, 0
      %v7631 = vsel %vm1656, %v7574, 0
      %v7634 = vsel %vm1656, %v7575, 0
      %v7637 = vsel %vm1656, %v7576, 0
      %v7640 = vsel %vm1656, %v7577, 0
      %v7643 = vsel %vm1656, %v7578, 0
      %v7646 = vsel %vm1656, %v7579, 0
      %v7649 = vsel %vm1656, %v7580, 0
      %v7652 = vsel %vm1656, %v7581, 0
      %v7655 = vsel %vm1656, %v7582, 0
      %v7658 = vsel %vm1656, %v7583, 0
      %v7661 = vsel %vm1656, %v7584, 0
      %v7664 = vsel %vm1656, %v7585, 0
      %v7667 = vsel %vm1656, %v7586, 0
      %v7670 = vsel %vm1656, %v7587, 0
      %v7673 = vsel %vm1656, %v7588, 0
      %v7676 = vsel %vm1656, %v7589, 0
      %v7679 = vsel %vm1656, %v7590, 0
      %v7682 = vsel %vm1656, %v7591, 0
      %v7685 = vsel %vm1656, %v7592, 0
      %v7688 = vsel %vm1656, %v7593, 0
      %v7691 = vsel %vm1656, %v7594, 0
      %v7694 = vsel %vm1656, %v7595, 0
      %v7697 = vsel %vm1656, %v7596, 0
      %v7700 = vsel %vm1656, %v7597, 0
      %v7703 = vsel %vm1656, %v7598, 0
      %v7706 = vsel %vm1656, %v7599, 0
      %v7709 = vsel %vm1656, %v7600, 0
      %v7712 = vsel %vm1656, %v7601, 0
      %v7715 = vsel %vm1656, %v7602, 0
      %7717 = vmatprep.subr.bf16.mxu0 0
      %7718 = vmatpush1.bf16.msra.mxu0 %v7617
      %7719 = vmatprep.subr.bf16.mxu0 0
      %7720 = vmatpush1.bf16.msra.mxu0 %v7618
      %7721 = vmatprep.subr.bf16.mxu0 0
      %7722 = vmatpush1.bf16.msra.mxu0 0
      %7723 = vmatprep.subr.bf16.mxu0 0
      %7724 = vmatpush1.bf16.msra.mxu0 0
      %7725 = vmatprep.subr.bf16.mxu0 0
      %7726 = vmatpush1.bf16.msra.mxu0 0
      %7727 = vmatprep.subr.bf16.mxu0 0
      %7728 = vmatpush1.bf16.msra.mxu0 0
      %7729 = vmatprep.subr.bf16.mxu0 0
      %7730 = vmatpush1.bf16.msra.mxu0 0
      %7731 = vmatprep.subr.bf16.mxu0 0
      %7732 = vmatpush1.bf16.msra.mxu0 0
      %7733 = vmatprep.subr.bf16.mxu0 0
      %7734 = vmatpush1.bf16.msra.mxu0 0
      %7735 = vmatprep.subr.bf16.mxu0 0
      %7736 = vmatpush1.bf16.msra.mxu0 0
      %7737 = vmatprep.subr.bf16.mxu0 0
      %7738 = vmatpush1.bf16.msra.mxu0 0
      %7739 = vmatprep.subr.bf16.mxu0 0
      %7740 = vmatpush1.bf16.msra.mxu0 0
      %7741 = vmatprep.subr.bf16.mxu0 0
      %7742 = vmatpush1.bf16.msra.mxu0 0
      %7743 = vmatprep.subr.bf16.mxu0 0
      %7744 = vmatpush1.bf16.msra.mxu0 0
      %7745 = vmatprep.subr.bf16.mxu0 0
      %7746 = vmatpush1.bf16.msra.mxu0 0
      %7747 = vmatprep.subr.bf16.mxu0 0
      %7748 = vmatpush1.bf16.msra.mxu0 0
      %7749 = vmatprep.mubr.bf16.mxu0 0
      %7750 = vmatmul.mubr.bf16.gmra.mrb[0].mxu0 %v7622
      %v7751 = vpop.f32.mrb[0].mxu0
      %v7752 = vadd.f32 %v7607, %v7751
      %v7753 = vpop.f32.mrb[0].mxu0
      %v7754 = vpop.f32.mrb[0].mxu0
      %v7755 = vadd.f32 %v7607, %v7754
      %v7756 = vpop.f32.mrb[0].mxu0
      %7757 = vmatprep.mubr.bf16.mxu0 0
      %7758 = vmatmul.mubr.bf16.gmra.mrb[0].mxu0 %v7625
      %v7759 = vpop.f32.mrb[0].mxu0
      %v7760 = vadd.f32 %v7607, %v7759
      %v7761 = vpop.f32.mrb[0].mxu0
      %v7762 = vpop.f32.mrb[0].mxu0
      %v7763 = vadd.f32 %v7607, %v7762
      %v7764 = vpop.f32.mrb[0].mxu0
      %7765 = vmatprep.mubr.bf16.mxu0 0
      %7766 = vmatmul.mubr.bf16.gmra.mrb[0].mxu0 %v7628
      %v7767 = vpop.f32.mrb[0].mxu0
      %v7768 = vadd.f32 %v7607, %v7767
      %v7769 = vpop.f32.mrb[0].mxu0
      %v7770 = vpop.f32.mrb[0].mxu0
      %v7771 = vadd.f32 %v7607, %v7770
      %v7772 = vpop.f32.mrb[0].mxu0
      %7773 = vmatprep.mubr.bf16.mxu0 0
      %7774 = vmatmul.mubr.bf16.gmra.mrb[0].mxu0 %v7631
      %v7775 = vpop.f32.mrb[0].mxu0
      %v7776 = vadd.f32 %v7607, %v7775
      %v7777 = vpop.f32.mrb[0].mxu0
      %v7778 = vpop.f32.mrb[0].mxu0
      %v7779 = vadd.f32 %v7607, %v7778
      %v7780 = vpop.f32.mrb[0].mxu0
      %7781 = vmatprep.mubr.bf16.mxu0 0
      %7782 = vmatmul.mubr.bf16.gmra.mrb[0].mxu0 %v7634
      %v7783 = vpop.f32.mrb[0].mxu0
      %v7784 = vadd.f32 %v7607, %v7783
      %v7785 = vpop.f32.mrb[0].mxu0
      %v7786 = vpop.f32.mrb[0].mxu0
      %v7787 = vadd.f32 %v7607, %v7786
      %v7788 = vpop.f32.mrb[0].mxu0
      %7789 = vmatprep.mubr.bf16.mxu0 0
      %7790 = vmatmul.mubr.bf16.gmra.mrb[0].mxu0 %v7637
      %v7791 = vpop.f32.mrb[0].mxu0
      %v7792 = vadd.f32 %v7607, %v7791
      %v7793 = vpop.f32.mrb[0].mxu0
      %v7794 = vpop.f32.mrb[0].mxu0
      %v7795 = vadd.f32 %v7607, %v7794
      %v7796 = vpop.f32.mrb[0].mxu0
      %7797 = vmatprep.mubr.bf16.mxu0 0
      %7798 = vmatmul.mubr.bf16.gmra.mrb[0].mxu0 %v7640
      %v7799 = vpop.f32.mrb[0].mxu0
      %v7800 = vadd.f32 %v7607, %v7799
      %v7801 = vpop.f32.mrb[0].mxu0
      %v7802 = vpop.f32.mrb[0].mxu0
      %v7803 = vadd.f32 %v7607, %v7802
      %v7804 = vpop.f32.mrb[0].mxu0
      %7805 = vmatprep.mubr.bf16.mxu0 0
      %7806 = vmatmul.mubr.bf16.gmra.mrb[0].mxu0 %v7643
      %v7807 = vpop.f32.mrb[0].mxu0
      %v7808 = vadd.f32 %v7607, %v7807
      %v7809 = vpop.f32.mrb[0].mxu0
      %v7810 = vpop.f32.mrb[0].mxu0
      %v7811 = vadd.f32 %v7607, %v7810
      %v7812 = vpop.f32.mrb[0].mxu0
      %7813 = vmatprep.mubr.bf16.mxu0 0
      %7814 = vmatmul.mubr.bf16.gmra.mrb[0].mxu0 %v7646
      %v7815 = vpop.f32.mrb[0].mxu0
      %v7816 = vadd.f32 %v7607, %v7815
      %v7817 = vpop.f32.mrb[0].mxu0
      %v7818 = vpop.f32.mrb[0].mxu0
      %v7819 = vadd.f32 %v7607, %v7818
      %v7820 = vpop.f32.mrb[0].mxu0
      %7821 = vmatprep.mubr.bf16.mxu0 0
      %7822 = vmatmul.mubr.bf16.gmra.mrb[0].mxu0 %v7649
      %v7823 = vpop.f32.mrb[0].mxu0
      %v7824 = vadd.f32 %v7607, %v7823
      %v7825 = vpop.f32.mrb[0].mxu0
      %v7826 = vpop.f32.mrb[0].mxu0
      %v7827 = vadd.f32 %v7607, %v7826
      %v7828 = vpop.f32.mrb[0].mxu0
      %7829 = vmatprep.mubr.bf16.mxu0 0
      %7830 = vmatmul.mubr.bf16.gmra.mrb[0].mxu0 %v7652
      %v7831 = vpop.f32.mrb[0].mxu0
      %v7832 = vadd.f32 %v7607, %v7831
      %v7833 = vpop.f32.mrb[0].mxu0
      %v7834 = vpop.f32.mrb[0].mxu0
      %v7835 = vadd.f32 %v7607, %v7834
      %v7836 = vpop.f32.mrb[0].mxu0
      %7837 = vmatprep.mubr.bf16.mxu0 0
      %7838 = vmatmul.mubr.bf16.gmra.mrb[0].mxu0 %v7655
      %v7839 = vpop.f32.mrb[0].mxu0
      %v7840 = vadd.f32 %v7607, %v7839
      %v7841 = vpop.f32.mrb[0].mxu0
      %v7842 = vpop.f32.mrb[0].mxu0
      %v7843 = vadd.f32 %v7607, %v7842
      %v7844 = vpop.f32.mrb[0].mxu0
      %7845 = vmatprep.mubr.bf16.mxu0 0
      %7846 = vmatmul.mubr.bf16.gmra.mrb[0].mxu0 %v7658
      %v7847 = vpop.f32.mrb[0].mxu0
      %v7848 = vadd.f32 %v7607, %v7847
      %v7849 = vpop.f32.mrb[0].mxu0
      %v7850 = vpop.f32.mrb[0].mxu0
      %v7851 = vadd.f32 %v7607, %v7850
      %v7852 = vpop.f32.mrb[0].mxu0
      %7853 = vmatprep.mubr.bf16.mxu0 0
      %7854 = vmatmul.mubr.bf16.gmra.mrb[0].mxu0 %v7661
      %v7855 = vpop.f32.mrb[0].mxu0
      %v7856 = vadd.f32 %v7607, %v7855
      %v7857 = vpop.f32.mrb[0].mxu0
      %v7858 = vpop.f32.mrb[0].mxu0
      %v7859 = vadd.f32 %v7607, %v7858
      %v7860 = vpop.f32.mrb[0].mxu0
      %7861 = vmatprep.mubr.bf16.mxu0 0
      %7862 = vmatmul.mubr.bf16.gmra.mrb[0].mxu0 %v7664
      %v7863 = vpop.f32.mrb[0].mxu0
      %v7864 = vadd.f32 %v7607, %v7863
      %v7865 = vpop.f32.mrb[0].mxu0
      %v7866 = vpop.f32.mrb[0].mxu0
      %v7867 = vadd.f32 %v7607, %v7866
      %v7868 = vpop.f32.mrb[0].mxu0
      %7869 = vmatprep.mubr.bf16.mxu0 0
      %7870 = vmatmul.mubr.bf16.gmra.mrb[0].mxu0 %v7667
      %v7871 = vpop.f32.mrb[0].mxu0
      %v7872 = vadd.f32 %v7607, %v7871
      %v7873 = vpop.f32.mrb[0].mxu0
      %v7874 = vpop.f32.mrb[0].mxu0
      %v7875 = vadd.f32 %v7607, %v7874
      %v7876 = vpop.f32.mrb[0].mxu0
      %7877 = vmatprep.mubr.bf16.mxu0 0
      %7878 = vmatmul.mubr.bf16.gmra.mrb[0].mxu0 %v7670
      %v7879 = vpop.f32.mrb[0].mxu0
      %v7880 = vadd.f32 %v7607, %v7879
      %v7881 = vpop.f32.mrb[0].mxu0
      %v7882 = vpop.f32.mrb[0].mxu0
      %v7883 = vadd.f32 %v7607, %v7882
      %v7884 = vpop.f32.mrb[0].mxu0
      %7885 = vmatprep.mubr.bf16.mxu0 0
      %7886 = vmatmul.mubr.bf16.gmra.mrb[0].mxu0 %v7673
      %v7887 = vpop.f32.mrb[0].mxu0
      %v7888 = vadd.f32 %v7607, %v7887
      %v7889 = vpop.f32.mrb[0].mxu0
      %v7890 = vpop.f32.mrb[0].mxu0
      %v7891 = vadd.f32 %v7607, %v7890
      %v7892 = vpop.f32.mrb[0].mxu0
      %7893 = vmatprep.mubr.bf16.mxu0 0
      %7894 = vmatmul.mubr.bf16.gmra.mrb[0].mxu0 %v7676
      %v7895 = vpop.f32.mrb[0].mxu0
      %v7896 = vadd.f32 %v7607, %v7895
      %v7897 = vpop.f32.mrb[0].mxu0
      %v7898 = vpop.f32.mrb[0].mxu0
      %v7899 = vadd.f32 %v7607, %v7898
      %v7900 = vpop.f32.mrb[0].mxu0
      %7901 = vmatprep.mubr.bf16.mxu0 0
      %7902 = vmatmul.mubr.bf16.gmra.mrb[0].mxu0 %v7679
      %v7903 = vpop.f32.mrb[0].mxu0
      %v7904 = vadd.f32 %v7607, %v7903
      %v7905 = vpop.f32.mrb[0].mxu0
      %v7906 = vpop.f32.mrb[0].mxu0
      %v7907 = vadd.f32 %v7607, %v7906
      %v7908 = vpop.f32.mrb[0].mxu0
      %7909 = vmatprep.mubr.bf16.mxu0 0
      %7910 = vmatmul.mubr.bf16.gmra.mrb[0].mxu0 %v7682
      %v7911 = vpop.f32.mrb[0].mxu0
      %v7912 = vadd.f32 %v7607, %v7911
      %v7913 = vpop.f32.mrb[0].mxu0
      %v7914 = vpop.f32.mrb[0].mxu0
      %v7915 = vadd.f32 %v7607, %v7914
      %v7916 = vpop.f32.mrb[0].mxu0
      %7917 = vmatprep.mubr.bf16.mxu0 0
      %7918 = vmatmul.mubr.bf16.gmra.mrb[0].mxu0 %v7685
      %v7919 = vpop.f32.mrb[0].mxu0
      %v7920 = vadd.f32 %v7607, %v7919
      %v7921 = vpop.f32.mrb[0].mxu0
      %v7922 = vpop.f32.mrb[0].mxu0
      %v7923 = vadd.f32 %v7607, %v7922
      %v7924 = vpop.f32.mrb[0].mxu0
      %7925 = vmatprep.mubr.bf16.mxu0 0
      %7926 = vmatmul.mubr.bf16.gmra.mrb[0].mxu0 %v7688
      %v7927 = vpop.f32.mrb[0].mxu0
      %v7928 = vadd.f32 %v7607, %v7927
      %v7929 = vpop.f32.mrb[0].mxu0
      %v7930 = vpop.f32.mrb[0].mxu0
      %v7931 = vadd.f32 %v7607, %v7930
      %v7932 = vpop.f32.mrb[0].mxu0
      %7933 = vmatprep.mubr.bf16.mxu0 0
      %7934 = vmatmul.mubr.bf16.gmra.mrb[0].mxu0 %v7691
      %v7935 = vpop.f32.mrb[0].mxu0
      %v7936 = vadd.f32 %v7607, %v7935
      %v7937 = vpop.f32.mrb[0].mxu0
      %v7938 = vpop.f32.mrb[0].mxu0
      %v7939 = vadd.f32 %v7607, %v7938
      %v7940 = vpop.f32.mrb[0].mxu0
      %7941 = vmatprep.mubr.bf16.mxu0 0
      %7942 = vmatmul.mubr.bf16.gmra.mrb[0].mxu0 %v7694
      %v7943 = vpop.f32.mrb[0].mxu0
      %v7944 = vadd.f32 %v7607, %v7943
      %v7945 = vpop.f32.mrb[0].mxu0
      %v7946 = vpop.f32.mrb[0].mxu0
      %v7947 = vadd.f32 %v7607, %v7946
      %v7948 = vpop.f32.mrb[0].mxu0
      %7949 = vmatprep.mubr.bf16.mxu0 0
      %7950 = vmatmul.mubr.bf16.gmra.mrb[0].mxu0 %v7697
      %v7951 = vpop.f32.mrb[0].mxu0
      %v7952 = vadd.f32 %v7607, %v7951
      %v7953 = vpop.f32.mrb[0].mxu0
      %v7954 = vpop.f32.mrb[0].mxu0
      %v7955 = vadd.f32 %v7607, %v7954
      %v7956 = vpop.f32.mrb[0].mxu0
      %7957 = vmatprep.mubr.bf16.mxu0 0
      %7958 = vmatmul.mubr.bf16.gmra.mrb[0].mxu0 %v7700
      %v7959 = vpop.f32.mrb[0].mxu0
      %v7960 = vadd.f32 %v7607, %v7959
      %v7961 = vpop.f32.mrb[0].mxu0
      %v7962 = vpop.f32.mrb[0].mxu0
      %v7963 = vadd.f32 %v7607, %v7962
      %v7964 = vpop.f32.mrb[0].mxu0
      %7965 = vmatprep.mubr.bf16.mxu0 0
      %7966 = vmatmul.mubr.bf16.gmra.mrb[0].mxu0 %v7703
      %v7967 = vpop.f32.mrb[0].mxu0
      %v7968 = vadd.f32 %v7607, %v7967
      %v7969 = vpop.f32.mrb[0].mxu0
      %v7970 = vpop.f32.mrb[0].mxu0
      %v7971 = vadd.f32 %v7607, %v7970
      %v7972 = vpop.f32.mrb[0].mxu0
      %7973 = vmatprep.mubr.bf16.mxu0 0
      %7974 = vmatmul.mubr.bf16.gmra.mrb[0].mxu0 %v7706
      %v7975 = vpop.f32.mrb[0].mxu0
      %v7976 = vadd.f32 %v7607, %v7975
      %v7977 = vpop.f32.mrb[0].mxu0
      %v7978 = vpop.f32.mrb[0].mxu0
      %v7979 = vadd.f32 %v7607, %v7978
      %v7980 = vpop.f32.mrb[0].mxu0
      %7981 = vmatprep.mubr.bf16.mxu0 0
      %7982 = vmatmul.mubr.bf16.gmra.mrb[0].mxu0 %v7709
      %v7983 = vpop.f32.mrb[0].mxu0
      %v7984 = vadd.f32 %v7607, %v7983
      %v7985 = vpop.f32.mrb[0].mxu0
      %v7986 = vpop.f32.mrb[0].mxu0
      %v7987 = vadd.f32 %v7607, %v7986
      %v7988 = vpop.f32.mrb[0].mxu0
      %7989 = vmatprep.mubr.bf16.mxu0 0
      %7990 = vmatmul.mubr.bf16.gmra.mrb[0].mxu0 %v7712
      %v7991 = vpop.f32.mrb[0].mxu0
      %v7992 = vadd.f32 %v7607, %v7991
      %v7993 = vpop.f32.mrb[0].mxu0
      %v7994 = vpop.f32.mrb[0].mxu0
      %v7995 = vadd.f32 %v7607, %v7994
      %v7996 = vpop.f32.mrb[0].mxu0
      %7997 = vmatprep.mubr.bf16.mxu0 0
      %7998 = vmatmul.mubr.bf16.gmra.mrb[0].mxu0 %v7715
      %v7999 = vpop.f32.mrb[0].mxu0
      %v8000 = vadd.f32 %v7607, %v7999
      %v8001 = vpop.f32.mrb[0].mxu0
      %v8002 = vpop.f32.mrb[0].mxu0
      %v8003 = vadd.f32 %v7607, %v8002
      %v8004 = vpop.f32.mrb[0].mxu0
      %8005 = vdwg.mxu0
      %8006 = vst [vmem:[%s1040] sm:$0xff] %v7752
      %8007 = vst [vmem:[%s1040 + $0x8] sm:$0xff] %v7755
      %8008 = vst [vmem:[%s1040 + $0x10] sm:$0xff] %v7760
      %8009 = vst [vmem:[%s1040 + $0x18] sm:$0xff] %v7763
      %8010 = vst [vmem:[%s1040 + $0x20] sm:$0xff] %v7768
      %8011 = vst [vmem:[%s1040 + $0x28] sm:$0xff] %v7771
      %8012 = vst [vmem:[%s1040 + $0x30] sm:$0xff] %v7776
      %8013 = vst [vmem:[%s1040 + $0x38] sm:$0xff] %v7779
      %8014 = vst [vmem:[%s1040 + $0x40] sm:$0xff] %v7784
      %8015 = vst [vmem:[%s1040 + $0x48] sm:$0xff] %v7787
      %8016 = vst [vmem:[%s1040 + $0x50] sm:$0xff] %v7792
      %8017 = vst [vmem:[%s1040 + $0x58] sm:$0xff] %v7795
      %8018 = vst [vmem:[%s1040 + $0x60] sm:$0xff] %v7800
      %8019 = vst [vmem:[%s1040 + $0x68] sm:$0xff] %v7803
      %8020 = vst [vmem:[%s1040 + $0x70] sm:$0xff] %v7808
      %8021 = vst [vmem:[%s1040 + $0x78] sm:$0xff] %v7811
      %8022 = vst [vmem:[%s1040 + $0x80] sm:$0xff] %v7816
      %8023 = vst [vmem:[%s1040 + $0x88] sm:$0xff] %v7819
      %8024 = vst [vmem:[%s1040 + $0x90] sm:$0xff] %v7824
      %8025 = vst [vmem:[%s1040 + $0x98] sm:$0xff] %v7827
      %8026 = vst [vmem:[%s1040 + $0xa0] sm:$0xff] %v7832
      %8027 = vst [vmem:[%s1040 + $0xa8] sm:$0xff] %v7835
      %8028 = vst [vmem:[%s1040 + $0xb0] sm:$0xff] %v7840
      %8029 = vst [vmem:[%s1040 + $0xb8] sm:$0xff] %v7843
      %8030 = vst [vmem:[%s1040 + $0xc0] sm:$0xff] %v7848
      %8031 = vst [vmem:[%s1040 + $0xc8] sm:$0xff] %v7851
      %8032 = vst [vmem:[%s1040 + $0xd0] sm:$0xff] %v7856
      %8033 = vst [vmem:[%s1040 + $0xd8] sm:$0xff] %v7859
      %8034 = vst [vmem:[%s1040 + $0xe0] sm:$0xff] %v7864
      %8035 = vst [vmem:[%s1040 + $0xe8] sm:$0xff] %v7867
      %8036 = vst [vmem:[%s1040 + $0xf0] sm:$0xff] %v7872
      %8037 = vst [vmem:[%s1040 + $0xf8] sm:$0xff] %v7875
      %8038 = vst [vmem:[%s1040 + $0x100] sm:$0xff] %v7880
      %8039 = vst [vmem:[%s1040 + $0x108] sm:$0xff] %v7883
      %8040 = vst [vmem:[%s1040 + $0x110] sm:$0xff] %v7888
      %8041 = vst [vmem:[%s1040 + $0x118] sm:$0xff] %v7891
      %8042 = vst [vmem:[%s1040 + $0x120] sm:$0xff] %v7896
      %8043 = vst [vmem:[%s1040 + $0x128] sm:$0xff] %v7899
      %8044 = vst [vmem:[%s1040 + $0x130] sm:$0xff] %v7904
      %8045 = vst [vmem:[%s1040 + $0x138] sm:$0xff] %v7907
      %8046 = vst [vmem:[%s1040 + $0x140] sm:$0xff] %v7912
      %8047 = vst [vmem:[%s1040 + $0x148] sm:$0xff] %v7915
      %8048 = vst [vmem:[%s1040 + $0x150] sm:$0xff] %v7920
      %8049 = vst [vmem:[%s1040 + $0x158] sm:$0xff] %v7923
      %8050 = vst [vmem:[%s1040 + $0x160] sm:$0xff] %v7928
      %8051 = vst [vmem:[%s1040 + $0x168] sm:$0xff] %v7931
      %8052 = vst [vmem:[%s1040 + $0x170] sm:$0xff] %v7936
      %8053 = vst [vmem:[%s1040 + $0x178] sm:$0xff] %v7939
      %8054 = vst [vmem:[%s1040 + $0x180] sm:$0xff] %v7944
      %8055 = vst [vmem:[%s1040 + $0x188] sm:$0xff] %v7947
      %8056 = vst [vmem:[%s1040 + $0x190] sm:$0xff] %v7952
      %8057 = vst [vmem:[%s1040 + $0x198] sm:$0xff] %v7955
      %8058 = vst [vmem:[%s1040 + $0x1a0] sm:$0xff] %v7960
      %8059 = vst [vmem:[%s1040 + $0x1a8] sm:$0xff] %v7963
      %8060 = vst [vmem:[%s1040 + $0x1b0] sm:$0xff] %v7968
      %8061 = vst [vmem:[%s1040 + $0x1b8] sm:$0xff] %v7971
      %8062 = vst [vmem:[%s1040 + $0x1c0] sm:$0xff] %v7976
      %8063 = vst [vmem:[%s1040 + $0x1c8] sm:$0xff] %v7979
      %8064 = vst [vmem:[%s1040 + $0x1d0] sm:$0xff] %v7984
      %8065 = vst [vmem:[%s1040 + $0x1d8] sm:$0xff] %v7987
      %8066 = vst [vmem:[%s1040 + $0x1e0] sm:$0xff] %v7992
      %8067 = vst [vmem:[%s1040 + $0x1e8] sm:$0xff] %v7995
      %8068 = vst [vmem:[%s1040 + $0x1f0] sm:$0xff] %v8000
      %8069 = vst [vmem:[%s1040 + $0x1f8] sm:$0xff] %v8003
      %s8070 = smul.u32 64, %s37
      %p8071 = scmp.lt.s32.totalorder %s36, 1
      %s8072 = scalar_select %p8071, %s36, 1
      %p8073 = scmp.lt.s32.totalorder %s8070, 63
      %s8074 = scalar_select %p8073, %s8070, 63
      %s8075 = smul.addr %s8072, 64
      %s8076 = sadd.s32 %s8074, %s8075
      %s8077 = smul.addr %s8076, 8
      %s8078 = scalar_lea.vmem %s21, %s8077
      // Predicated region
      $region105: #{pointwise_forward.1} parent=103 // pred_check
        %p8079 = pneg %p612
      $region106: #{pointwise_forward.1} parent=103 // pred_check_branch
        %8081 = sbr.rel (%p8079) target = $region108
      $region107: #{pointwise_forward.1} parent=103 // pred_region
        %s8082 = smul.u32 64, %s37
      $region108: #{pointwise_forward.1} parent=103 // pred_fallthru
        _
    $region104: #{pointwise_forward.1} parent=5 // pred_fallthru
      _
    %p8083 = scmp.le.s32.totalorder 2, %s27
    // Predicated region
    $region109: #{pointwise_forward.1} parent=5 // pred_check
      %p8084 = pneg %p8083
    $region110: #{pointwise_forward.1} parent=5 // pred_check_branch
      %8086 = sbr.rel (%p8084) target = $region112
    $region111: #{pointwise_forward.1} parent=5 // pred_region
      %s8087 = ssub.s32 %s27, 2
      // Predicated region
      $region113: #{pointwise_forward.1} parent=111 // pred_check
        %p8088 = pneg %p618
      $region114: #{pointwise_forward.1} parent=111 // pred_check_branch
        %8090 = sbr.rel (%p8088) target = $region116
      $region115: #{pointwise_forward.1} parent=111 // pred_region
        %s8091 = smul.u32 64, %s39
        %p8092 = scmp.lt.s32.totalorder %s38, 1
        %s8093 = scalar_select %p8092, %s38, 1
        %p8094 = scmp.lt.s32.totalorder %s8091, 63
        %s8095 = scalar_select %p8094, %s8091, 63
        %s8096 = smul.addr %s8093, 64
        %s8097 = sadd.s32 %s8095, %s8096
        %s8098 = smul.addr %s8097, 8
        %s8099 = scalar_lea.vmem %s21, %s8098
      $region116: #{pointwise_forward.1} parent=111 // pred_fallthru
        _
    $region112: #{pointwise_forward.1} parent=5 // pred_fallthru
      _
  $region6: #{pointwise_forward.1} parent=0 // loop_footer
    %s31 = sadd.s32 1, %s27
  $region7: #{pointwise_forward.1} parent=0 // loop_footer_branch
    %26 = sbr.rel target = $region3
  $region8: #{pointwise_forward.1} parent=0 // loop_exit
    _

</llo_original>
